<compile_context>
chip_gen: v7x
topology: tpu7x:2x2x1
jax: 0.10.0
libtpu: 0.0.40
codegen_flags: <defaults>
</compile_context>

<pallas_src>
import functools

import jax
import jax.numpy as jnp
from jax.experimental import pallas as pl
from jax.experimental.pallas import tpu as pltpu

# ----------------------------- model hyper-params ---------------------------
D_IN = 16
HIDDENS = [32, 16]
CONV_HIDDENS = [32, 16]
NUM_BLOCKS = 2
S2S_LAYERS = 1          # TODO(synk): kernel hard-codes a single-layer LSTM.
S2S_ITERS = 2
OUTPUT_HIDDENS = [32, 16]
BLOCK_OUT = CONV_HIDDENS[-1]            # == HIDDENS[-1] so skip connections add

LANES = 128                              # slab minor dim = one vreg of lanes
MM_DTYPE = jnp.bfloat16                  # MXU operand dtype (f32 accumulate)


# ------------------------------------------------------------ slab packing --
def _round8(n):
    return -(-n // 8) * 8


def pack_slab(tree):
    """Pack every 2-D leaf of `tree` into one (rows, 128) f32 slab.

    Each leaf (r, c) occupies rows [off, off+r) x lanes [0, c); `off` is
    8-row aligned so every in-kernel slice is f32-tile aligned.  Returns the
    slab and a pytree of static (off, rows, cols) metadata mirroring `tree`.
    """
    leaves, treedef = jax.tree_util.tree_flatten(tree)
    metas, off = [], 0
    for p in leaves:
        r, c = p.shape
        metas.append((off, int(r), int(c)))
        off += _round8(r)
    slab = jnp.zeros((max(8, off), LANES), jnp.float32)
    for p, (o, r, c) in zip(leaves, metas):
        slab = slab.at[o:o + r, 0:c].set(jnp.asarray(p, jnp.float32))
    return slab, jax.tree_util.tree_unflatten(treedef, metas)


# ------------------------------------------------------------ fused kernel --
def _megnet_kernel(pm, gm, e_ref, v_ref, u_ref, gslab_ref, pslab_ref, out_ref):
    """Entire MegNet forward: encoders -> blocks -> 2x Set2Set -> output head.

    `pm` / `gm` are static pytrees of (offset, rows, cols) into the two slabs.
    """
    f32 = jnp.float32

    def sl(ref, m):                       # static slice of a packed slab entry
        off, r, c = m
        return ref[off:off + r, 0:c]

    def dot(a, b):                        # bf16 MXU matmul, f32 accumulation
        return jnp.dot(a.astype(MM_DTYPE), b.astype(MM_DTYPE),
                       preferred_element_type=f32)

    def mlp(x, metas, activate_last):     # Softplus MLP from packed params
        n = len(metas) // 2
        for i in range(n):
            x = dot(x, sl(pslab_ref, metas[2 * i])) + sl(pslab_ref, metas[2 * i + 1])
            if i < n - 1 or activate_last:
                x = jax.nn.softplus(x)
        return x

    def mlp_cat(parts, metas, activate_last):
        # First layer consumes hstack(parts): realized as row-slab matmuls of
        # w0 so no concatenated tensor is ever materialized.
        off0, _, fan_out = metas[0]
        acc = sl(pslab_ref, metas[1])     # first-layer bias, broadcasts
        row = 0
        for xp in parts:
            r = xp.shape[1]
            acc = acc + dot(xp, pslab_ref[off0 + row:off0 + row + r, 0:fan_out])
            row += r
        if len(metas) > 2 or activate_last:
            acc = jax.nn.softplus(acc)
        return mlp(acc, metas[2:], activate_last)

    # graph structure operators: one-hot gathers / pre-normalized means
    src_oh = sl(gslab_ref, gm["src_oh"])            # (E, N)
    dst_oh = sl(gslab_ref, gm["dst_oh"])            # (E, N)
    scat = sl(gslab_ref, gm["dst_scatter_mean"])    # (N, E) incoming-msg mean
    e2g = sl(gslab_ref, gm["e2g"])                  # (E, G)
    n2g = sl(gslab_ref, gm["n2g"])                  # (N, G)
    g2e_mean = sl(gslab_ref, gm["g2e_mean"])        # (G, E) per-graph edge mean
    g2n_mean = sl(gslab_ref, gm["g2n_mean"])        # (G, N) per-graph node mean
    g2e = sl(gslab_ref, gm["g2e"])                  # (G, E) binary membership
    g2n = sl(gslab_ref, gm["g2n"])                  # (G, N) binary membership

    # ---- encoders (Softplus MLPs, activate_last=True); embeds are Identity -
    e = mlp(e_ref[...], pm["edge_encoder"], True)
    v = mlp(v_ref[...], pm["node_encoder"], True)
    u = mlp(u_ref[...], pm["attr_encoder"], True)

    # ---- MegNet blocks (dense funcs + MegNetGraphConv + skip adds) ---------
    for bm in pm["blocks"]:
        e_in, v_in, u_in = e, v, u
        if bm["edge_func"]:                          # inner dense (blocks >= 2)
            e = mlp(e, bm["edge_func"], True)
            v = mlp(v, bm["node_func"], True)
            u = mlp(u, bm["attr_func"], True)
        # edge update:  mij = MLP([v_src, v_dst, e, u_per_edge])
        vi = dot(src_oh, v)
        vj = dot(dst_oh, v)
        ue = dot(e2g, u)
        mij = mlp_cat([vi, vj, e, ue], bm["conv_edge"], True)
        # node update:  v' = MLP([v, mean_incoming(mij), u_per_node])
        ve = dot(scat, mij)
        un = dot(n2g, u)
        v_new = mlp_cat([v, ve, un], bm["conv_node"], True)
        # attr update:  u' = MLP([u, mean_edges(mij), mean_nodes(v')])
        u_new = mlp_cat([u, dot(g2e_mean, mij), dot(g2n_mean, v_new)],
                        bm["conv_attr"], True)
        # skip connections on the original block inputs (dropout=None)
        e = mij + e_in
        v = v_new + v_in
        u = u_new + u_in

    # ---- Set2Set (node + edge branches fused in this same kernel) ----------
    def set2set(feat, member, lm):
        off_ih, _, four_h = lm[0]                    # W_ih: (2*dim, 4*dim)
        dim = four_h // 4
        # q_star = [q, r]: split W_ih into the slabs acting on each half.
        w_q = pslab_ref[off_ih:off_ih + dim, 0:four_h].astype(MM_DTYPE)
        w_r = pslab_ref[off_ih + dim:off_ih + 2 * dim, 0:four_h].astype(MM_DTYPE)
        w_hh = sl(pslab_ref, lm[1]).astype(MM_DTYPE)
        bias = sl(pslab_ref, lm[2]) + sl(pslab_ref, lm[3])    # b_ih + b_hh
        n_graphs = member.shape[0]
        mask = member > 0.5                 # computed once, reused every iter
        feat_bf = feat.astype(MM_DTYPE)     # loop-invariant cast hoisted
        h = jnp.zeros((n_graphs, dim), f32)
        c = jnp.zeros((n_graphs, dim), f32)
        q = jnp.zeros((n_graphs, dim), f32)
        r = jnp.zeros((n_graphs, dim), f32)
        for _ in range(S2S_ITERS):          # tiny static unroll
            # one fused matmul group for all four LSTM gates [i|f|g|o]
            gates = (jnp.dot(q.astype(MM_DTYPE), w_q, preferred_element_type=f32)
                     + jnp.dot(r.astype(MM_DTYPE), w_r, preferred_element_type=f32)
                     + jnp.dot(h.astype(MM_DTYPE), w_hh, preferred_element_type=f32)
                     + bias)
            i_g = jax.nn.sigmoid(gates[:, 0:dim])
            f_g = jax.nn.sigmoid(gates[:, dim:2 * dim])
            g_g = jnp.tanh(gates[:, 2 * dim:3 * dim])
            o_g = jax.nn.sigmoid(gates[:, 3 * dim:4 * dim])
            c = f_g * c + i_g * g_g
            h = o_g * jnp.tanh(c)
            q = h
            # per-graph masked softmax attention over members (max-shifted)
            scores = jax.lax.dot_general(q.astype(MM_DTYPE), feat_bf,
                                         (((1,), (1,)), ((), ())),
                                         preferred_element_type=f32)
            masked = jnp.where(mask, scores, jnp.float32(-1e30))
            shift = jnp.max(masked, axis=-1, keepdims=True)
            ex = jnp.where(mask, jnp.exp(masked - shift), 0.0)
            denom = jnp.maximum(jnp.sum(ex, axis=-1, keepdims=True), 1e-20)
            alpha = ex / denom
            r = dot(alpha, feat)            # weighted per-graph readout
        return q, r

    nq, nr = set2set(v, g2n, pm["node_s2s"])
    eq, er = set2set(e, g2e, pm["edge_s2s"])

    # ---- output head: hstack + output MLP + sigmoid (is_classification) ----
    logits = mlp_cat([nq, nr, eq, er, u], pm["output_proj"], False)
    out_ref[...] = jax.nn.sigmoid(logits)


# ------------------------------------------------------------- wrapper ------
def _full_spec(shape):
    nd = len(shape)
    return pl.BlockSpec(tuple(shape), lambda i, _nd=nd: (0,) * _nd)


def build_megnet_forward(pmeta, gmeta, n_graphs):
    """Bind the static slab metadata and return a jit-able fused forward."""
    kernel = functools.partial(_megnet_kernel, pmeta, gmeta)

    def forward(param_slab, graph_slab, edge_feat, node_feat, graph_attr):
        return pl.pallas_call(
            kernel,
            grid=(1,),
            out_shape=jax.ShapeDtypeStruct((n_graphs, 1), jnp.float32),
            in_specs=[_full_spec(edge_feat.shape),
                      _full_spec(node_feat.shape),
                      _full_spec(graph_attr.shape),
                      _full_spec(graph_slab.shape),
                      _full_spec(param_slab.shape)],
            out_specs=_full_spec((n_graphs, 1)),
            # TODO(synk): when graphs are batched, add a leading "parallel"
            # grid axis over graph batches so v7x's second TensorCore is used.
            compiler_params=pltpu.CompilerParams(
                dimension_semantics=("arbitrary",)),
        )(edge_feat, node_feat, graph_attr, graph_slab, param_slab)

    return forward


# --------------------------------------------------------- parameter init ---
def _init_linear(key, fan_in, fan_out):
    kw, kb = jax.random.split(key)
    bound = 1.0 / (fan_in ** 0.5)
    w = jax.random.uniform(kw, (fan_in, fan_out), jnp.float32, -bound, bound)
    b = jax.random.uniform(kb, (1, fan_out), jnp.float32, -bound, bound)
    return w, b


def _init_mlp(key, dims):
    flat = []
    for i in range(len(dims) - 1):
        key, sub = jax.random.split(key)
        w, b = _init_linear(sub, dims[i], dims[i + 1])
        flat += [w, b]
    return flat


def _init_lstm(key, input_size, hidden):
    # single-layer nn.LSTM: W_ih (in, 4h), W_hh (h, 4h), b_ih, b_hh
    k1, k2, k3, k4 = jax.random.split(key, 4)
    bound = 1.0 / (hidden ** 0.5)
    u = lambda k, s: jax.random.uniform(k, s, jnp.float32, -bound, bound)
    return [u(k1, (input_size, 4 * hidden)), u(k2, (hidden, 4 * hidden)),
            u(k3, (1, 4 * hidden)), u(k4, (1, 4 * hidden))]


def _init_block(key, dims, conv_hiddens):
    ks = jax.random.split(key, 6)
    has_dense = len(dims) > 1
    c = dims[-1]
    co = conv_hiddens[-1]
    return {
        "edge_func": _init_mlp(ks[0], dims) if has_dense else [],
        "node_func": _init_mlp(ks[1], dims) if has_dense else [],
        "attr_func": _init_mlp(ks[2], dims) if has_dense else [],
        # edge update input: [v_src, v_dst, e, u]   -> 4*c
        "conv_edge": _init_mlp(ks[3], [4 * c] + list(conv_hiddens)),
        # node update input: [v, mean(mij), u]      -> c + co + c
        "conv_node": _init_mlp(ks[4], [c + co + c] + list(conv_hiddens)),
        # attr update input: [u, mean_e, mean_v]    -> c + 2*co
        "conv_attr": _init_mlp(ks[5], [c + 2 * co] + list(conv_hiddens)),
    }


def init_megnet(key):
    ks = jax.random.split(key, 6 + NUM_BLOCKS)
    dims_enc = [D_IN] + HIDDENS
    blocks = [_init_block(ks[3], [HIDDENS[-1]], CONV_HIDDENS)]
    for i in range(1, NUM_BLOCKS):
        blocks.append(_init_block(ks[3 + i],
                                  [CONV_HIDDENS[-1]] + HIDDENS, CONV_HIDDENS))
    out_dims = [2 * 2 * BLOCK_OUT + BLOCK_OUT] + OUTPUT_HIDDENS + [1]
    return {
        "edge_encoder": _init_mlp(ks[0], dims_enc),
        "node_encoder": _init_mlp(ks[1], dims_enc),
        "attr_encoder": _init_mlp(ks[2], dims_enc),
        "blocks": blocks,
        "node_s2s": _init_lstm(ks[3 + NUM_BLOCKS], 2 * BLOCK_OUT, BLOCK_OUT),
        "edge_s2s": _init_lstm(ks[4 + NUM_BLOCKS], 2 * BLOCK_OUT, BLOCK_OUT),
        "output_proj": _init_mlp(ks[5 + NUM_BLOCKS], out_dims),
    }


# -------------------------------------------------------- graph encoding ----
def build_graph(src, dst, node_gid, edge_gid, n_nodes, n_graphs):
    # TODO(synk): replace dense one-hot/mean matrices with scalar-prefetch
    # index gathers when E, N grow beyond a few hundred rows.
    src_oh = jax.nn.one_hot(src, n_nodes, dtype=jnp.float32)       # (E, N)
    dst_oh = jax.nn.one_hot(dst, n_nodes, dtype=jnp.float32)       # (E, N)
    e2g = jax.nn.one_hot(edge_gid, n_graphs, dtype=jnp.float32)    # (E, G)
    n2g = jax.nn.one_hot(node_gid, n_graphs, dtype=jnp.float32)    # (N, G)

    def row_mean(m):   # rows with zero members stay all-zero (mean of empty = 0)
        cnt = jnp.sum(m, axis=-1, keepdims=True)
        return m / jnp.maximum(cnt, 1.0)

    return {
        "src_oh": src_oh, "dst_oh": dst_oh,            # edge -> src/dst gather
        "e2g": e2g, "n2g": n2g,                        # graph-attr broadcast
        "g2e": e2g.T, "g2n": n2g.T,                    # binary membership (S2S)
        "dst_scatter_mean": row_mean(dst_oh.T),        # (N, E) incoming-msg mean
        "g2e_mean": row_mean(e2g.T),                   # (G, E) per-graph edge mean
        "g2n_mean": row_mean(n2g.T),                   # (G, N) per-graph node mean
    }


# ---------------------------------------------------- pure-JAX reference ----
def _rdot(a, b):
    return jnp.dot(a.astype(MM_DTYPE), b.astype(MM_DTYPE),
                   preferred_element_type=jnp.float32)


def _rmlp(x, params, activate_last):
    n = len(params) // 2
    for i in range(n):
        x = _rdot(x, params[2 * i]) + params[2 * i + 1]
        if i < n - 1 or activate_last:
            x = jax.nn.softplus(x)
    return x


def megnet_reference(params, graph, edge_feat, node_feat, graph_attr):
    """Non-Pallas forward with identical math, used to validate the kernel."""
    e = _rmlp(edge_feat, params["edge_encoder"], True)
    v = _rmlp(node_feat, params["node_encoder"], True)
    u = _rmlp(graph_attr, params["attr_encoder"], True)
    for blk in params["blocks"]:
        e_in, v_in, u_in = e, v, u
        if blk["edge_func"]:
            e = _rmlp(e, blk["edge_func"], True)
            v = _rmlp(v, blk["node_func"], True)
            u = _rmlp(u, blk["attr_func"], True)
        vi = _rdot(graph["src_oh"], v)
        vj = _rdot(graph["dst_oh"], v)
        ue = _rdot(graph["e2g"], u)
        mij = _rmlp(jnp.hstack([vi, vj, e, ue]), blk["conv_edge"], True)
        ve = _rdot(graph["dst_scatter_mean"], mij)
        un = _rdot(graph["n2g"], u)
        v_new = _rmlp(jnp.hstack([v, ve, un]), blk["conv_node"], True)
        u_new = _rmlp(jnp.hstack([u, _rdot(graph["g2e_mean"], mij),
                                  _rdot(graph["g2n_mean"], v_new)]),
                      blk["conv_attr"], True)
        e, v, u = mij + e_in, v_new + v_in, u_new + u_in

    def s2s(feat, member, lstm):
        w_ih, w_hh, b_ih, b_hh = lstm
        dim = w_hh.shape[0]
        g = member.shape[0]
        h = jnp.zeros((g, dim), jnp.float32)
        c = jnp.zeros((g, dim), jnp.float32)
        q_star = jnp.zeros((g, 2 * dim), jnp.float32)
        for _ in range(S2S_ITERS):
            gates = _rdot(q_star, w_ih) + _rdot(h, w_hh) + b_ih + b_hh
            i_g = jax.nn.sigmoid(gates[:, 0:dim])
            f_g = jax.nn.sigmoid(gates[:, dim:2 * dim])
            g_g = jnp.tanh(gates[:, 2 * dim:3 * dim])
            o_g = jax.nn.sigmoid(gates[:, 3 * dim:4 * dim])
            c = f_g * c + i_g * g_g
            h = o_g * jnp.tanh(c)
            q = h
            scores = _rdot(q, feat.T)
            masked = jnp.where(member > 0.5, scores, -1e30)
            ex = jnp.where(member > 0.5,
                           jnp.exp(masked - masked.max(-1, keepdims=True)), 0.0)
            alpha = ex / jnp.maximum(ex.sum(-1, keepdims=True), 1e-20)
            r = _rdot(alpha, feat)
            q_star = jnp.hstack([q, r])
        return q_star

    node_vec = s2s(v, graph["g2n"], params["node_s2s"])
    edge_vec = s2s(e, graph["g2e"], params["edge_s2s"])
    vec = jnp.hstack([node_vec, edge_vec, u])
    return jax.nn.sigmoid(_rmlp(vec, params["output_proj"], False))


# ------------------------------------------------------------------ main ----
if __name__ == "__main__":
    key = jax.random.PRNGKey(0)

    # Batched graph: graph0 has 6 nodes / 10 edges, graph1 has 4 nodes / 6 edges.
    src = jnp.array([0, 1, 2, 3, 4, 5, 0, 2, 1, 3, 6, 7, 8, 9, 6, 8], jnp.int32)
    dst = jnp.array([1, 2, 3, 4, 5, 0, 3, 5, 4, 0, 7, 8, 9, 6, 8, 7], jnp.int32)
    node_gid = jnp.array([0] * 6 + [1] * 4, jnp.int32)
    edge_gid = jnp.array([0] * 10 + [1] * 6, jnp.int32)
    N, E, G = 10, 16, 2
    graph = build_graph(src, dst, node_gid, edge_gid, N, G)

    k1, k2, k3, kp = jax.random.split(key, 4)
    edge_feat = jax.random.normal(k1, (E, D_IN), jnp.float32)
    node_feat = jax.random.normal(k2, (N, D_IN), jnp.float32)
    graph_attr = jax.random.normal(k3, (G, D_IN), jnp.float32)

    params = init_megnet(kp)

    # Host-side one-time packing: 2 slab operands instead of ~75 tiny ones.
    param_slab, pmeta = pack_slab(params)
    graph_slab, gmeta = pack_slab(graph)

    forward = jax.jit(build_megnet_forward(pmeta, gmeta, G))
    out = forward(param_slab, graph_slab, edge_feat, node_feat, graph_attr)
    out = jax.block_until_ready(out)

    ref = megnet_reference(params, graph, edge_feat, node_feat, graph_attr)
    max_diff = float(jnp.max(jnp.abs(out - ref)))

    assert out.shape == (G, 1), out.shape
    assert bool(jnp.all(jnp.isfinite(out)))
    assert bool(jnp.all((out >= 0.0) & (out <= 1.0)))
    assert max_diff < 5e-3, f"kernel vs reference max |diff| = {max_diff}"
    print("KERNEL_OK")
</pallas_src>

<mosaic_0001>
module attributes {stable_mosaic.version = 11 : i64} {
  func.func @_megnet_kernel(%arg0: i32, %arg1: memref<16x16xf32, #tpu.memory_space<vmem>>, %arg2: memref<10x16xf32, #tpu.memory_space<vmem>>, %arg3: memref<2x16xf32, #tpu.memory_space<vmem>>, %arg4: memref<112x128xf32, #tpu.memory_space<vmem>>, %arg5: memref<1272x128xf32, #tpu.memory_space<vmem>>, %arg6: memref<2x1xf32, #tpu.memory_space<vmem>>) attributes {dimension_semantics = [#tpu.dimension_semantics<arbitrary>], iteration_bounds = array<i64: 1>, scalar_prefetch = 0 : i64, scratch_operands = 0 : i64, tpu.core_type = #tpu.core_type<tc>, window_params = [{pipeline_mode = #tpu.pipeline_mode<synchronous>, transform_indices = @transform_0, window_bounds = array<i64: 16, 16>}, {pipeline_mode = #tpu.pipeline_mode<synchronous>, transform_indices = @transform_1, window_bounds = array<i64: 10, 16>}, {pipeline_mode = #tpu.pipeline_mode<synchronous>, transform_indices = @transform_2, window_bounds = array<i64: 2, 16>}, {pipeline_mode = #tpu.pipeline_mode<synchronous>, transform_indices = @transform_3, window_bounds = array<i64: 112, 128>}, {pipeline_mode = #tpu.pipeline_mode<synchronous>, transform_indices = @transform_4, window_bounds = array<i64: 1272, 128>}, {pipeline_mode = #tpu.pipeline_mode<synchronous>, transform_indices = @transform_5, window_bounds = array<i64: 2, 1>}]} {
    %c96 = arith.constant 96 : index
    %c0 = arith.constant 0 : index
    %0 = vector.load %arg4[%c96, %c0] : memref<112x128xf32, #tpu.memory_space<vmem>>, vector<16x10xf32>
    %c0_0 = arith.constant 0 : index
    %c0_1 = arith.constant 0 : index
    %1 = vector.load %arg4[%c0_0, %c0_1] : memref<112x128xf32, #tpu.memory_space<vmem>>, vector<16x10xf32>
    %c16 = arith.constant 16 : index
    %c0_2 = arith.constant 0 : index
    %2 = vector.load %arg4[%c16, %c0_2] : memref<112x128xf32, #tpu.memory_space<vmem>>, vector<10x16xf32>
    %c32 = arith.constant 32 : index
    %c0_3 = arith.constant 0 : index
    %3 = vector.load %arg4[%c32, %c0_3] : memref<112x128xf32, #tpu.memory_space<vmem>>, vector<16x2xf32>
    %c80 = arith.constant 80 : index
    %c0_4 = arith.constant 0 : index
    %4 = vector.load %arg4[%c80, %c0_4] : memref<112x128xf32, #tpu.memory_space<vmem>>, vector<10x2xf32>
    %c56 = arith.constant 56 : index
    %c0_5 = arith.constant 0 : index
    %5 = vector.load %arg4[%c56, %c0_5] : memref<112x128xf32, #tpu.memory_space<vmem>>, vector<2x16xf32>
    %c72 = arith.constant 72 : index
    %c0_6 = arith.constant 0 : index
    %6 = vector.load %arg4[%c72, %c0_6] : memref<112x128xf32, #tpu.memory_space<vmem>>, vector<2x10xf32>
    %c48 = arith.constant 48 : index
    %c0_7 = arith.constant 0 : index
    %7 = vector.load %arg4[%c48, %c0_7] : memref<112x128xf32, #tpu.memory_space<vmem>>, vector<2x16xf32>
    %c64 = arith.constant 64 : index
    %c0_8 = arith.constant 0 : index
    %8 = vector.load %arg4[%c64, %c0_8] : memref<112x128xf32, #tpu.memory_space<vmem>>, vector<2x10xf32>
    %c0_9 = arith.constant 0 : index
    %c0_10 = arith.constant 0 : index
    %9 = vector.load %arg1[%c0_9, %c0_10] : memref<16x16xf32, #tpu.memory_space<vmem>>, vector<16x16xf32>
    %c864 = arith.constant 864 : index
    %c0_11 = arith.constant 0 : index
    %10 = vector.load %arg5[%c864, %c0_11] : memref<1272x128xf32, #tpu.memory_space<vmem>>, vector<16x32xf32>
    %11 = arith.truncf %9 : vector<16x16xf32> to vector<16x16xbf16>
    %12 = arith.truncf %10 : vector<16x32xf32> to vector<16x32xbf16>
    %cst = arith.constant dense<0.000000e+00> : vector<16x32xf32>
    %13 = tpu.matmul %11, %12, %cst {dimension_numbers = #tpu.dot_dimension_numbers<[1], [0], [0], [1], [0, 0, 1, 1], [], []>} : vector<16x16xbf16>, vector<16x32xbf16>, vector<16x32xf32> -> vector<16x32xf32>
    %c880 = arith.constant 880 : index
    %c0_12 = arith.constant 0 : index
    %14 = vector.load %arg5[%c880, %c0_12] : memref<1272x128xf32, #tpu.memory_space<vmem>>, vector<1x32xf32>
    %15 = vector.broadcast %14 : vector<1x32xf32> to vector<16x32xf32>
    %16 = arith.addf %13, %15 : vector<16x32xf32>
    %cst_13 = arith.constant 0.000000e+00 : f32
    %17 = vector.broadcast %cst_13 : f32 to vector<16x32xf32>
    %18 = arith.maximumf %16, %17 : vector<16x32xf32>
    %19 = vector.broadcast %cst_13 : f32 to vector<16x32xf32>
    %20 = arith.subf %16, %19 : vector<16x32xf32>
    %21 = arith.cmpf one, %20, %20 : vector<16x32xf32>
    %22 = vector.broadcast %cst_13 : f32 to vector<16x32xf32>
    %23 = arith.addf %16, %22 : vector<16x32xf32>
    %24 = math.absf %20 : vector<16x32xf32>
    %cst_14 = arith.constant 0.000000e+00 : f32
    %25 = vector.broadcast %cst_14 : f32 to vector<16x32xf32>
    %26 = arith.subf %25, %24 : vector<16x32xf32>
    %27 = math.exp %26 : vector<16x32xf32>
    %28 = math.log1p %27 : vector<16x32xf32>
    %29 = arith.addf %18, %28 : vector<16x32xf32>
    %30 = arith.select %21, %23, %29 : vector<16x32xi1>, vector<16x32xf32>
    %c888 = arith.constant 888 : index
    %c0_15 = arith.constant 0 : index
    %31 = vector.load %arg5[%c888, %c0_15] : memref<1272x128xf32, #tpu.memory_space<vmem>>, vector<32x16xf32>
    %32 = arith.truncf %30 : vector<16x32xf32> to vector<16x32xbf16>
    %33 = arith.truncf %31 : vector<32x16xf32> to vector<32x16xbf16>
    %cst_16 = arith.constant dense<0.000000e+00> : vector<16x16xf32>
    %34 = tpu.matmul %32, %33, %cst_16 {dimension_numbers = #tpu.dot_dimension_numbers<[1], [0], [0], [1], [0, 0, 1, 1], [], []>} : vector<16x32xbf16>, vector<32x16xbf16>, vector<16x16xf32> -> vector<16x16xf32>
    %c920 = arith.constant 920 : index
    %c0_17 = arith.constant 0 : index
    %35 = vector.load %arg5[%c920, %c0_17] : memref<1272x128xf32, #tpu.memory_space<vmem>>, vector<1x16xf32>
    %36 = vector.broadcast %35 : vector<1x16xf32> to vector<16x16xf32>
    %37 = arith.addf %34, %36 : vector<16x16xf32>
    %cst_18 = arith.constant 0.000000e+00 : f32
    %38 = vector.broadcast %cst_18 : f32 to vector<16x16xf32>
    %39 = arith.maximumf %37, %38 : vector<16x16xf32>
    %40 = vector.broadcast %cst_18 : f32 to vector<16x16xf32>
    %41 = arith.subf %37, %40 : vector<16x16xf32>
    %42 = arith.cmpf one, %41, %41 : vector<16x16xf32>
    %43 = vector.broadcast %cst_18 : f32 to vector<16x16xf32>
    %44 = arith.addf %37, %43 : vector<16x16xf32>
    %45 = math.absf %41 : vector<16x16xf32>
    %cst_19 = arith.constant 0.000000e+00 : f32
    %46 = vector.broadcast %cst_19 : f32 to vector<16x16xf32>
    %47 = arith.subf %46, %45 : vector<16x16xf32>
    %48 = math.exp %47 : vector<16x16xf32>
    %49 = math.log1p %48 : vector<16x16xf32>
    %50 = arith.addf %39, %49 : vector<16x16xf32>
    %51 = arith.select %42, %44, %50 : vector<16x16xi1>, vector<16x16xf32>
    %c0_20 = arith.constant 0 : index
    %c0_21 = arith.constant 0 : index
    %52 = vector.load %arg2[%c0_20, %c0_21] : memref<10x16xf32, #tpu.memory_space<vmem>>, vector<10x16xf32>
    %c992 = arith.constant 992 : index
    %c0_22 = arith.constant 0 : index
    %53 = vector.load %arg5[%c992, %c0_22] : memref<1272x128xf32, #tpu.memory_space<vmem>>, vector<16x32xf32>
    %54 = arith.truncf %52 : vector<10x16xf32> to vector<10x16xbf16>
    %55 = arith.truncf %53 : vector<16x32xf32> to vector<16x32xbf16>
    %cst_23 = arith.constant dense<0.000000e+00> : vector<10x32xf32>
    %56 = tpu.matmul %54, %55, %cst_23 {dimension_numbers = #tpu.dot_dimension_numbers<[1], [0], [0], [1], [0, 0, 1, 1], [], []>} : vector<10x16xbf16>, vector<16x32xbf16>, vector<10x32xf32> -> vector<10x32xf32>
    %c1008 = arith.constant 1008 : index
    %c0_24 = arith.constant 0 : index
    %57 = vector.load %arg5[%c1008, %c0_24] : memref<1272x128xf32, #tpu.memory_space<vmem>>, vector<1x32xf32>
    %58 = vector.broadcast %57 : vector<1x32xf32> to vector<10x32xf32>
    %59 = arith.addf %56, %58 : vector<10x32xf32>
    %cst_25 = arith.constant 0.000000e+00 : f32
    %60 = vector.broadcast %cst_25 : f32 to vector<10x32xf32>
    %61 = arith.maximumf %59, %60 : vector<10x32xf32>
    %62 = vector.broadcast %cst_25 : f32 to vector<10x32xf32>
    %63 = arith.subf %59, %62 : vector<10x32xf32>
    %64 = arith.cmpf one, %63, %63 : vector<10x32xf32>
    %65 = vector.broadcast %cst_25 : f32 to vector<10x32xf32>
    %66 = arith.addf %59, %65 : vector<10x32xf32>
    %67 = math.absf %63 : vector<10x32xf32>
    %cst_26 = arith.constant 0.000000e+00 : f32
    %68 = vector.broadcast %cst_26 : f32 to vector<10x32xf32>
    %69 = arith.subf %68, %67 : vector<10x32xf32>
    %70 = math.exp %69 : vector<10x32xf32>
    %71 = math.log1p %70 : vector<10x32xf32>
    %72 = arith.addf %61, %71 : vector<10x32xf32>
    %73 = arith.select %64, %66, %72 : vector<10x32xi1>, vector<10x32xf32>
    %c1016 = arith.constant 1016 : index
    %c0_27 = arith.constant 0 : index
    %74 = vector.load %arg5[%c1016, %c0_27] : memref<1272x128xf32, #tpu.memory_space<vmem>>, vector<32x16xf32>
    %75 = arith.truncf %73 : vector<10x32xf32> to vector<10x32xbf16>
    %76 = arith.truncf %74 : vector<32x16xf32> to vector<32x16xbf16>
    %cst_28 = arith.constant dense<0.000000e+00> : vector<10x16xf32>
    %77 = tpu.matmul %75, %76, %cst_28 {dimension_numbers = #tpu.dot_dimension_numbers<[1], [0], [0], [1], [0, 0, 1, 1], [], []>} : vector<10x32xbf16>, vector<32x16xbf16>, vector<10x16xf32> -> vector<10x16xf32>
    %c1048 = arith.constant 1048 : index
    %c0_29 = arith.constant 0 : index
    %78 = vector.load %arg5[%c1048, %c0_29] : memref<1272x128xf32, #tpu.memory_space<vmem>>, vector<1x16xf32>
    %79 = vector.broadcast %78 : vector<1x16xf32> to vector<10x16xf32>
    %80 = arith.addf %77, %79 : vector<10x16xf32>
    %cst_30 = arith.constant 0.000000e+00 : f32
    %81 = vector.broadcast %cst_30 : f32 to vector<10x16xf32>
    %82 = arith.maximumf %80, %81 : vector<10x16xf32>
    %83 = vector.broadcast %cst_30 : f32 to vector<10x16xf32>
    %84 = arith.subf %80, %83 : vector<10x16xf32>
    %85 = arith.cmpf one, %84, %84 : vector<10x16xf32>
    %86 = vector.broadcast %cst_30 : f32 to vector<10x16xf32>
    %87 = arith.addf %80, %86 : vector<10x16xf32>
    %88 = math.absf %84 : vector<10x16xf32>
    %cst_31 = arith.constant 0.000000e+00 : f32
    %89 = vector.broadcast %cst_31 : f32 to vector<10x16xf32>
    %90 = arith.subf %89, %88 : vector<10x16xf32>
    %91 = math.exp %90 : vector<10x16xf32>
    %92 = math.log1p %91 : vector<10x16xf32>
    %93 = arith.addf %82, %92 : vector<10x16xf32>
    %94 = arith.select %85, %87, %93 : vector<10x16xi1>, vector<10x16xf32>
    %c0_32 = arith.constant 0 : index
    %c0_33 = arith.constant 0 : index
    %95 = vector.load %arg3[%c0_32, %c0_33] : memref<2x16xf32, #tpu.memory_space<vmem>>, vector<2x16xf32>
    %c0_34 = arith.constant 0 : index
    %c0_35 = arith.constant 0 : index
    %96 = vector.load %arg5[%c0_34, %c0_35] : memref<1272x128xf32, #tpu.memory_space<vmem>>, vector<16x32xf32>
    %97 = arith.truncf %95 : vector<2x16xf32> to vector<2x16xbf16>
    %98 = arith.truncf %96 : vector<16x32xf32> to vector<16x32xbf16>
    %cst_36 = arith.constant dense<0.000000e+00> : vector<2x32xf32>
    %99 = tpu.matmul %97, %98, %cst_36 {dimension_numbers = #tpu.dot_dimension_numbers<[1], [0], [0], [1], [0, 0, 1, 1], [], []>} : vector<2x16xbf16>, vector<16x32xbf16>, vector<2x32xf32> -> vector<2x32xf32>
    %c16_37 = arith.constant 16 : index
    %c0_38 = arith.constant 0 : index
    %100 = vector.load %arg5[%c16_37, %c0_38] : memref<1272x128xf32, #tpu.memory_space<vmem>>, vector<1x32xf32>
    %101 = vector.broadcast %100 : vector<1x32xf32> to vector<2x32xf32>
    %102 = arith.addf %99, %101 : vector<2x32xf32>
    %cst_39 = arith.constant 0.000000e+00 : f32
    %103 = vector.broadcast %cst_39 : f32 to vector<2x32xf32>
    %104 = arith.maximumf %102, %103 : vector<2x32xf32>
    %105 = vector.broadcast %cst_39 : f32 to vector<2x32xf32>
    %106 = arith.subf %102, %105 : vector<2x32xf32>
    %107 = arith.cmpf one, %106, %106 : vector<2x32xf32>
    %108 = vector.broadcast %cst_39 : f32 to vector<2x32xf32>
    %109 = arith.addf %102, %108 : vector<2x32xf32>
    %110 = math.absf %106 : vector<2x32xf32>
    %cst_40 = arith.constant 0.000000e+00 : f32
    %111 = vector.broadcast %cst_40 : f32 to vector<2x32xf32>
    %112 = arith.subf %111, %110 : vector<2x32xf32>
    %113 = math.exp %112 : vector<2x32xf32>
    %114 = math.log1p %113 : vector<2x32xf32>
    %115 = arith.addf %104, %114 : vector<2x32xf32>
    %116 = arith.select %107, %109, %115 : vector<2x32xi1>, vector<2x32xf32>
    %c24 = arith.constant 24 : index
    %c0_41 = arith.constant 0 : index
    %117 = vector.load %arg5[%c24, %c0_41] : memref<1272x128xf32, #tpu.memory_space<vmem>>, vector<32x16xf32>
    %118 = arith.truncf %116 : vector<2x32xf32> to vector<2x32xbf16>
    %119 = arith.truncf %117 : vector<32x16xf32> to vector<32x16xbf16>
    %cst_42 = arith.constant dense<0.000000e+00> : vector<2x16xf32>
    %120 = tpu.matmul %118, %119, %cst_42 {dimension_numbers = #tpu.dot_dimension_numbers<[1], [0], [0], [1], [0, 0, 1, 1], [], []>} : vector<2x32xbf16>, vector<32x16xbf16>, vector<2x16xf32> -> vector<2x16xf32>
    %c56_43 = arith.constant 56 : index
    %c0_44 = arith.constant 0 : index
    %121 = vector.load %arg5[%c56_43, %c0_44] : memref<1272x128xf32, #tpu.memory_space<vmem>>, vector<1x16xf32>
    %122 = vector.broadcast %121 : vector<1x16xf32> to vector<2x16xf32>
    %123 = arith.addf %120, %122 : vector<2x16xf32>
    %cst_45 = arith.constant 0.000000e+00 : f32
    %124 = vector.broadcast %cst_45 : f32 to vector<2x16xf32>
    %125 = arith.maximumf %123, %124 : vector<2x16xf32>
    %126 = vector.broadcast %cst_45 : f32 to vector<2x16xf32>
    %127 = arith.subf %123, %126 : vector<2x16xf32>
    %128 = arith.cmpf one, %127, %127 : vector<2x16xf32>
    %129 = vector.broadcast %cst_45 : f32 to vector<2x16xf32>
    %130 = arith.addf %123, %129 : vector<2x16xf32>
    %131 = math.absf %127 : vector<2x16xf32>
    %cst_46 = arith.constant 0.000000e+00 : f32
    %132 = vector.broadcast %cst_46 : f32 to vector<2x16xf32>
    %133 = arith.subf %132, %131 : vector<2x16xf32>
    %134 = math.exp %133 : vector<2x16xf32>
    %135 = math.log1p %134 : vector<2x16xf32>
    %136 = arith.addf %125, %135 : vector<2x16xf32>
    %137 = arith.select %128, %130, %136 : vector<2x16xi1>, vector<2x16xf32>
    %138 = arith.truncf %0 : vector<16x10xf32> to vector<16x10xbf16>
    %139 = arith.truncf %94 : vector<10x16xf32> to vector<10x16xbf16>
    %cst_47 = arith.constant dense<0.000000e+00> : vector<16x16xf32>
    %140 = tpu.matmul %138, %139, %cst_47 {dimension_numbers = #tpu.dot_dimension_numbers<[1], [0], [0], [1], [0, 0, 1, 1], [], []>} : vector<16x10xbf16>, vector<10x16xbf16>, vector<16x16xf32> -> vector<16x16xf32>
    %141 = arith.truncf %1 : vector<16x10xf32> to vector<16x10xbf16>
    %142 = arith.truncf %94 : vector<10x16xf32> to vector<10x16xbf16>
    %cst_48 = arith.constant dense<0.000000e+00> : vector<16x16xf32>
    %143 = tpu.matmul %141, %142, %cst_48 {dimension_numbers = #tpu.dot_dimension_numbers<[1], [0], [0], [1], [0, 0, 1, 1], [], []>} : vector<16x10xbf16>, vector<10x16xbf16>, vector<16x16xf32> -> vector<16x16xf32>
    %144 = arith.truncf %3 : vector<16x2xf32> to vector<16x2xbf16>
    %145 = arith.truncf %137 : vector<2x16xf32> to vector<2x16xbf16>
    %cst_49 = arith.constant dense<0.000000e+00> : vector<16x16xf32>
    %146 = tpu.matmul %144, %145, %cst_49 {dimension_numbers = #tpu.dot_dimension_numbers<[1], [0], [0], [1], [0, 0, 1, 1], [], []>} : vector<16x2xbf16>, vector<2x16xbf16>, vector<16x16xf32> -> vector<16x16xf32>
    %c224 = arith.constant 224 : index
    %c0_50 = arith.constant 0 : index
    %147 = vector.load %arg5[%c224, %c0_50] : memref<1272x128xf32, #tpu.memory_space<vmem>>, vector<1x32xf32>
    %c160 = arith.constant 160 : index
    %c0_51 = arith.constant 0 : index
    %148 = vector.load %arg5[%c160, %c0_51] : memref<1272x128xf32, #tpu.memory_space<vmem>>, vector<16x32xf32>
    %149 = arith.truncf %140 : vector<16x16xf32> to vector<16x16xbf16>
    %150 = arith.truncf %148 : vector<16x32xf32> to vector<16x32xbf16>
    %cst_52 = arith.constant dense<0.000000e+00> : vector<16x32xf32>
    %151 = tpu.matmul %149, %150, %cst_52 {dimension_numbers = #tpu.dot_dimension_numbers<[1], [0], [0], [1], [0, 0, 1, 1], [], []>} : vector<16x16xbf16>, vector<16x32xbf16>, vector<16x32xf32> -> vector<16x32xf32>
    %152 = vector.broadcast %147 : vector<1x32xf32> to vector<16x32xf32>
    %153 = arith.addf %152, %151 : vector<16x32xf32>
    %c176 = arith.constant 176 : index
    %c0_53 = arith.constant 0 : index
    %154 = vector.load %arg5[%c176, %c0_53] : memref<1272x128xf32, #tpu.memory_space<vmem>>, vector<16x32xf32>
    %155 = arith.truncf %143 : vector<16x16xf32> to vector<16x16xbf16>
    %156 = arith.truncf %154 : vector<16x32xf32> to vector<16x32xbf16>
    %cst_54 = arith.constant dense<0.000000e+00> : vector<16x32xf32>
    %157 = tpu.matmul %155, %156, %cst_54 {dimension_numbers = #tpu.dot_dimension_numbers<[1], [0], [0], [1], [0, 0, 1, 1], [], []>} : vector<16x16xbf16>, vector<16x32xbf16>, vector<16x32xf32> -> vector<16x32xf32>
    %158 = arith.addf %153, %157 : vector<16x32xf32>
    %c192 = arith.constant 192 : index
    %c0_55 = arith.constant 0 : index
    %159 = vector.load %arg5[%c192, %c0_55] : memref<1272x128xf32, #tpu.memory_space<vmem>>, vector<16x32xf32>
    %160 = arith.truncf %51 : vector<16x16xf32> to vector<16x16xbf16>
    %161 = arith.truncf %159 : vector<16x32xf32> to vector<16x32xbf16>
    %cst_56 = arith.constant dense<0.000000e+00> : vector<16x32xf32>
    %162 = tpu.matmul %160, %161, %cst_56 {dimension_numbers = #tpu.dot_dimension_numbers<[1], [0], [0], [1], [0, 0, 1, 1], [], []>} : vector<16x16xbf16>, vector<16x32xbf16>, vector<16x32xf32> -> vector<16x32xf32>
    %163 = arith.addf %158, %162 : vector<16x32xf32>
    %c208 = arith.constant 208 : index
    %c0_57 = arith.constant 0 : index
    %164 = vector.load %arg5[%c208, %c0_57] : memref<1272x128xf32, #tpu.memory_space<vmem>>, vector<16x32xf32>
    %165 = arith.truncf %146 : vector<16x16xf32> to vector<16x16xbf16>
    %166 = arith.truncf %164 : vector<16x32xf32> to vector<16x32xbf16>
    %cst_58 = arith.constant dense<0.000000e+00> : vector<16x32xf32>
    %167 = tpu.matmul %165, %166, %cst_58 {dimension_numbers = #tpu.dot_dimension_numbers<[1], [0], [0], [1], [0, 0, 1, 1], [], []>} : vector<16x16xbf16>, vector<16x32xbf16>, vector<16x32xf32> -> vector<16x32xf32>
    %168 = arith.addf %163, %167 : vector<16x32xf32>
    %cst_59 = arith.constant 0.000000e+00 : f32
    %169 = vector.broadcast %cst_59 : f32 to vector<16x32xf32>
    %170 = arith.maximumf %168, %169 : vector<16x32xf32>
    %171 = vector.broadcast %cst_59 : f32 to vector<16x32xf32>
    %172 = arith.subf %168, %171 : vector<16x32xf32>
    %173 = arith.cmpf one, %172, %172 : vector<16x32xf32>
    %174 = vector.broadcast %cst_59 : f32 to vector<16x32xf32>
    %175 = arith.addf %168, %174 : vector<16x32xf32>
    %176 = math.absf %172 : vector<16x32xf32>
    %cst_60 = arith.constant 0.000000e+00 : f32
    %177 = vector.broadcast %cst_60 : f32 to vector<16x32xf32>
    %178 = arith.subf %177, %176 : vector<16x32xf32>
    %179 = math.exp %178 : vector<16x32xf32>
    %180 = math.log1p %179 : vector<16x32xf32>
    %181 = arith.addf %170, %180 : vector<16x32xf32>
    %182 = arith.select %173, %175, %181 : vector<16x32xi1>, vector<16x32xf32>
    %c232 = arith.constant 232 : index
    %c0_61 = arith.constant 0 : index
    %183 = vector.load %arg5[%c232, %c0_61] : memref<1272x128xf32, #tpu.memory_space<vmem>>, vector<32x16xf32>
    %184 = arith.truncf %182 : vector<16x32xf32> to vector<16x32xbf16>
    %185 = arith.truncf %183 : vector<32x16xf32> to vector<32x16xbf16>
    %cst_62 = arith.constant dense<0.000000e+00> : vector<16x16xf32>
    %186 = tpu.matmul %184, %185, %cst_62 {dimension_numbers = #tpu.dot_dimension_numbers<[1], [0], [0], [1], [0, 0, 1, 1], [], []>} : vector<16x32xbf16>, vector<32x16xbf16>, vector<16x16xf32> -> vector<16x16xf32>
    %c264 = arith.constant 264 : index
    %c0_63 = arith.constant 0 : index
    %187 = vector.load %arg5[%c264, %c0_63] : memref<1272x128xf32, #tpu.memory_space<vmem>>, vector<1x16xf32>
    %188 = vector.broadcast %187 : vector<1x16xf32> to vector<16x16xf32>
    %189 = arith.addf %186, %188 : vector<16x16xf32>
    %cst_64 = arith.constant 0.000000e+00 : f32
    %190 = vector.broadcast %cst_64 : f32 to vector<16x16xf32>
    %191 = arith.maximumf %189, %190 : vector<16x16xf32>
    %192 = vector.broadcast %cst_64 : f32 to vector<16x16xf32>
    %193 = arith.subf %189, %192 : vector<16x16xf32>
    %194 = arith.cmpf one, %193, %193 : vector<16x16xf32>
    %195 = vector.broadcast %cst_64 : f32 to vector<16x16xf32>
    %196 = arith.addf %189, %195 : vector<16x16xf32>
    %197 = math.absf %193 : vector<16x16xf32>
    %cst_65 = arith.constant 0.000000e+00 : f32
    %198 = vector.broadcast %cst_65 : f32 to vector<16x16xf32>
    %199 = arith.subf %198, %197 : vector<16x16xf32>
    %200 = math.exp %199 : vector<16x16xf32>
    %201 = math.log1p %200 : vector<16x16xf32>
    %202 = arith.addf %191, %201 : vector<16x16xf32>
    %203 = arith.select %194, %196, %202 : vector<16x16xi1>, vector<16x16xf32>
    %204 = arith.truncf %2 : vector<10x16xf32> to vector<10x16xbf16>
    %205 = arith.truncf %203 : vector<16x16xf32> to vector<16x16xbf16>
    %cst_66 = arith.constant dense<0.000000e+00> : vector<10x16xf32>
    %206 = tpu.matmul %204, %205, %cst_66 {dimension_numbers = #tpu.dot_dimension_numbers<[1], [0], [0], [1], [0, 0, 1, 1], [], []>} : vector<10x16xbf16>, vector<16x16xbf16>, vector<10x16xf32> -> vector<10x16xf32>
    %207 = arith.truncf %4 : vector<10x2xf32> to vector<10x2xbf16>
    %208 = arith.truncf %137 : vector<2x16xf32> to vector<2x16xbf16>
    %cst_67 = arith.constant dense<0.000000e+00> : vector<10x16xf32>
    %209 = tpu.matmul %207, %208, %cst_67 {dimension_numbers = #tpu.dot_dimension_numbers<[1], [0], [0], [1], [0, 0, 1, 1], [], []>} : vector<10x2xbf16>, vector<2x16xbf16>, vector<10x16xf32> -> vector<10x16xf32>
    %c320 = arith.constant 320 : index
    %c0_68 = arith.constant 0 : index
    %210 = vector.load %arg5[%c320, %c0_68] : memref<1272x128xf32, #tpu.memory_space<vmem>>, vector<1x32xf32>
    %c272 = arith.constant 272 : index
    %c0_69 = arith.constant 0 : index
    %211 = vector.load %arg5[%c272, %c0_69] : memref<1272x128xf32, #tpu.memory_space<vmem>>, vector<16x32xf32>
    %212 = arith.truncf %94 : vector<10x16xf32> to vector<10x16xbf16>
    %213 = arith.truncf %211 : vector<16x32xf32> to vector<16x32xbf16>
    %cst_70 = arith.constant dense<0.000000e+00> : vector<10x32xf32>
    %214 = tpu.matmul %212, %213, %cst_70 {dimension_numbers = #tpu.dot_dimension_numbers<[1], [0], [0], [1], [0, 0, 1, 1], [], []>} : vector<10x16xbf16>, vector<16x32xbf16>, vector<10x32xf32> -> vector<10x32xf32>
    %215 = vector.broadcast %210 : vector<1x32xf32> to vector<10x32xf32>
    %216 = arith.addf %215, %214 : vector<10x32xf32>
    %c288 = arith.constant 288 : index
    %c0_71 = arith.constant 0 : index
    %217 = vector.load %arg5[%c288, %c0_71] : memref<1272x128xf32, #tpu.memory_space<vmem>>, vector<16x32xf32>
    %218 = arith.truncf %206 : vector<10x16xf32> to vector<10x16xbf16>
    %219 = arith.truncf %217 : vector<16x32xf32> to vector<16x32xbf16>
    %cst_72 = arith.constant dense<0.000000e+00> : vector<10x32xf32>
    %220 = tpu.matmul %218, %219, %cst_72 {dimension_numbers = #tpu.dot_dimension_numbers<[1], [0], [0], [1], [0, 0, 1, 1], [], []>} : vector<10x16xbf16>, vector<16x32xbf16>, vector<10x32xf32> -> vector<10x32xf32>
    %221 = arith.addf %216, %220 : vector<10x32xf32>
    %c304 = arith.constant 304 : index
    %c0_73 = arith.constant 0 : index
    %222 = vector.load %arg5[%c304, %c0_73] : memref<1272x128xf32, #tpu.memory_space<vmem>>, vector<16x32xf32>
    %223 = arith.truncf %209 : vector<10x16xf32> to vector<10x16xbf16>
    %224 = arith.truncf %222 : vector<16x32xf32> to vector<16x32xbf16>
    %cst_74 = arith.constant dense<0.000000e+00> : vector<10x32xf32>
    %225 = tpu.matmul %223, %224, %cst_74 {dimension_numbers = #tpu.dot_dimension_numbers<[1], [0], [0], [1], [0, 0, 1, 1], [], []>} : vector<10x16xbf16>, vector<16x32xbf16>, vector<10x32xf32> -> vector<10x32xf32>
    %226 = arith.addf %221, %225 : vector<10x32xf32>
    %cst_75 = arith.constant 0.000000e+00 : f32
    %227 = vector.broadcast %cst_75 : f32 to vector<10x32xf32>
    %228 = arith.maximumf %226, %227 : vector<10x32xf32>
    %229 = vector.broadcast %cst_75 : f32 to vector<10x32xf32>
    %230 = arith.subf %226, %229 : vector<10x32xf32>
    %231 = arith.cmpf one, %230, %230 : vector<10x32xf32>
    %232 = vector.broadcast %cst_75 : f32 to vector<10x32xf32>
    %233 = arith.addf %226, %232 : vector<10x32xf32>
    %234 = math.absf %230 : vector<10x32xf32>
    %cst_76 = arith.constant 0.000000e+00 : f32
    %235 = vector.broadcast %cst_76 : f32 to vector<10x32xf32>
    %236 = arith.subf %235, %234 : vector<10x32xf32>
    %237 = math.exp %236 : vector<10x32xf32>
    %238 = math.log1p %237 : vector<10x32xf32>
    %239 = arith.addf %228, %238 : vector<10x32xf32>
    %240 = arith.select %231, %233, %239 : vector<10x32xi1>, vector<10x32xf32>
    %c328 = arith.constant 328 : index
    %c0_77 = arith.constant 0 : index
    %241 = vector.load %arg5[%c328, %c0_77] : memref<1272x128xf32, #tpu.memory_space<vmem>>, vector<32x16xf32>
    %242 = arith.truncf %240 : vector<10x32xf32> to vector<10x32xbf16>
    %243 = arith.truncf %241 : vector<32x16xf32> to vector<32x16xbf16>
    %cst_78 = arith.constant dense<0.000000e+00> : vector<10x16xf32>
    %244 = tpu.matmul %242, %243, %cst_78 {dimension_numbers = #tpu.dot_dimension_numbers<[1], [0], [0], [1], [0, 0, 1, 1], [], []>} : vector<10x32xbf16>, vector<32x16xbf16>, vector<10x16xf32> -> vector<10x16xf32>
    %c360 = arith.constant 360 : index
    %c0_79 = arith.constant 0 : index
    %245 = vector.load %arg5[%c360, %c0_79] : memref<1272x128xf32, #tpu.memory_space<vmem>>, vector<1x16xf32>
    %246 = vector.broadcast %245 : vector<1x16xf32> to vector<10x16xf32>
    %247 = arith.addf %244, %246 : vector<10x16xf32>
    %cst_80 = arith.constant 0.000000e+00 : f32
    %248 = vector.broadcast %cst_80 : f32 to vector<10x16xf32>
    %249 = arith.maximumf %247, %248 : vector<10x16xf32>
    %250 = vector.broadcast %cst_80 : f32 to vector<10x16xf32>
    %251 = arith.subf %247, %250 : vector<10x16xf32>
    %252 = arith.cmpf one, %251, %251 : vector<10x16xf32>
    %253 = vector.broadcast %cst_80 : f32 to vector<10x16xf32>
    %254 = arith.addf %247, %253 : vector<10x16xf32>
    %255 = math.absf %251 : vector<10x16xf32>
    %cst_81 = arith.constant 0.000000e+00 : f32
    %256 = vector.broadcast %cst_81 : f32 to vector<10x16xf32>
    %257 = arith.subf %256, %255 : vector<10x16xf32>
    %258 = math.exp %257 : vector<10x16xf32>
    %259 = math.log1p %258 : vector<10x16xf32>
    %260 = arith.addf %249, %259 : vector<10x16xf32>
    %261 = arith.select %252, %254, %260 : vector<10x16xi1>, vector<10x16xf32>
    %262 = arith.truncf %5 : vector<2x16xf32> to vector<2x16xbf16>
    %263 = arith.truncf %203 : vector<16x16xf32> to vector<16x16xbf16>
    %cst_82 = arith.constant dense<0.000000e+00> : vector<2x16xf32>
    %264 = tpu.matmul %262, %263, %cst_82 {dimension_numbers = #tpu.dot_dimension_numbers<[1], [0], [0], [1], [0, 0, 1, 1], [], []>} : vector<2x16xbf16>, vector<16x16xbf16>, vector<2x16xf32> -> vector<2x16xf32>
    %265 = arith.truncf %6 : vector<2x10xf32> to vector<2x10xbf16>
    %266 = arith.truncf %261 : vector<10x16xf32> to vector<10x16xbf16>
    %cst_83 = arith.constant dense<0.000000e+00> : vector<2x16xf32>
    %267 = tpu.matmul %265, %266, %cst_83 {dimension_numbers = #tpu.dot_dimension_numbers<[1], [0], [0], [1], [0, 0, 1, 1], [], []>} : vector<2x10xbf16>, vector<10x16xbf16>, vector<2x16xf32> -> vector<2x16xf32>
    %c112 = arith.constant 112 : index
    %c0_84 = arith.constant 0 : index
    %268 = vector.load %arg5[%c112, %c0_84] : memref<1272x128xf32, #tpu.memory_space<vmem>>, vector<1x32xf32>
    %c64_85 = arith.constant 64 : index
    %c0_86 = arith.constant 0 : index
    %269 = vector.load %arg5[%c64_85, %c0_86] : memref<1272x128xf32, #tpu.memory_space<vmem>>, vector<16x32xf32>
    %270 = arith.truncf %137 : vector<2x16xf32> to vector<2x16xbf16>
    %271 = arith.truncf %269 : vector<16x32xf32> to vector<16x32xbf16>
    %cst_87 = arith.constant dense<0.000000e+00> : vector<2x32xf32>
    %272 = tpu.matmul %270, %271, %cst_87 {dimension_numbers = #tpu.dot_dimension_numbers<[1], [0], [0], [1], [0, 0, 1, 1], [], []>} : vector<2x16xbf16>, vector<16x32xbf16>, vector<2x32xf32> -> vector<2x32xf32>
    %273 = vector.broadcast %268 : vector<1x32xf32> to vector<2x32xf32>
    %274 = arith.addf %273, %272 : vector<2x32xf32>
    %c80_88 = arith.constant 80 : index
    %c0_89 = arith.constant 0 : index
    %275 = vector.load %arg5[%c80_88, %c0_89] : memref<1272x128xf32, #tpu.memory_space<vmem>>, vector<16x32xf32>
    %276 = arith.truncf %264 : vector<2x16xf32> to vector<2x16xbf16>
    %277 = arith.truncf %275 : vector<16x32xf32> to vector<16x32xbf16>
    %cst_90 = arith.constant dense<0.000000e+00> : vector<2x32xf32>
    %278 = tpu.matmul %276, %277, %cst_90 {dimension_numbers = #tpu.dot_dimension_numbers<[1], [0], [0], [1], [0, 0, 1, 1], [], []>} : vector<2x16xbf16>, vector<16x32xbf16>, vector<2x32xf32> -> vector<2x32xf32>
    %279 = arith.addf %274, %278 : vector<2x32xf32>
    %c96_91 = arith.constant 96 : index
    %c0_92 = arith.constant 0 : index
    %280 = vector.load %arg5[%c96_91, %c0_92] : memref<1272x128xf32, #tpu.memory_space<vmem>>, vector<16x32xf32>
    %281 = arith.truncf %267 : vector<2x16xf32> to vector<2x16xbf16>
    %282 = arith.truncf %280 : vector<16x32xf32> to vector<16x32xbf16>
    %cst_93 = arith.constant dense<0.000000e+00> : vector<2x32xf32>
    %283 = tpu.matmul %281, %282, %cst_93 {dimension_numbers = #tpu.dot_dimension_numbers<[1], [0], [0], [1], [0, 0, 1, 1], [], []>} : vector<2x16xbf16>, vector<16x32xbf16>, vector<2x32xf32> -> vector<2x32xf32>
    %284 = arith.addf %279, %283 : vector<2x32xf32>
    %cst_94 = arith.constant 0.000000e+00 : f32
    %285 = vector.broadcast %cst_94 : f32 to vector<2x32xf32>
    %286 = arith.maximumf %284, %285 : vector<2x32xf32>
    %287 = vector.broadcast %cst_94 : f32 to vector<2x32xf32>
    %288 = arith.subf %284, %287 : vector<2x32xf32>
    %289 = arith.cmpf one, %288, %288 : vector<2x32xf32>
    %290 = vector.broadcast %cst_94 : f32 to vector<2x32xf32>
    %291 = arith.addf %284, %290 : vector<2x32xf32>
    %292 = math.absf %288 : vector<2x32xf32>
    %cst_95 = arith.constant 0.000000e+00 : f32
    %293 = vector.broadcast %cst_95 : f32 to vector<2x32xf32>
    %294 = arith.subf %293, %292 : vector<2x32xf32>
    %295 = math.exp %294 : vector<2x32xf32>
    %296 = math.log1p %295 : vector<2x32xf32>
    %297 = arith.addf %286, %296 : vector<2x32xf32>
    %298 = arith.select %289, %291, %297 : vector<2x32xi1>, vector<2x32xf32>
    %c120 = arith.constant 120 : index
    %c0_96 = arith.constant 0 : index
    %299 = vector.load %arg5[%c120, %c0_96] : memref<1272x128xf32, #tpu.memory_space<vmem>>, vector<32x16xf32>
    %300 = arith.truncf %298 : vector<2x32xf32> to vector<2x32xbf16>
    %301 = arith.truncf %299 : vector<32x16xf32> to vector<32x16xbf16>
    %cst_97 = arith.constant dense<0.000000e+00> : vector<2x16xf32>
    %302 = tpu.matmul %300, %301, %cst_97 {dimension_numbers = #tpu.dot_dimension_numbers<[1], [0], [0], [1], [0, 0, 1, 1], [], []>} : vector<2x32xbf16>, vector<32x16xbf16>, vector<2x16xf32> -> vector<2x16xf32>
    %c152 = arith.constant 152 : index
    %c0_98 = arith.constant 0 : index
    %303 = vector.load %arg5[%c152, %c0_98] : memref<1272x128xf32, #tpu.memory_space<vmem>>, vector<1x16xf32>
    %304 = vector.broadcast %303 : vector<1x16xf32> to vector<2x16xf32>
    %305 = arith.addf %302, %304 : vector<2x16xf32>
    %cst_99 = arith.constant 0.000000e+00 : f32
    %306 = vector.broadcast %cst_99 : f32 to vector<2x16xf32>
    %307 = arith.maximumf %305, %306 : vector<2x16xf32>
    %308 = vector.broadcast %cst_99 : f32 to vector<2x16xf32>
    %309 = arith.subf %305, %308 : vector<2x16xf32>
    %310 = arith.cmpf one, %309, %309 : vector<2x16xf32>
    %311 = vector.broadcast %cst_99 : f32 to vector<2x16xf32>
    %312 = arith.addf %305, %311 : vector<2x16xf32>
    %313 = math.absf %309 : vector<2x16xf32>
    %cst_100 = arith.constant 0.000000e+00 : f32
    %314 = vector.broadcast %cst_100 : f32 to vector<2x16xf32>
    %315 = arith.subf %314, %313 : vector<2x16xf32>
    %316 = math.exp %315 : vector<2x16xf32>
    %317 = math.log1p %316 : vector<2x16xf32>
    %318 = arith.addf %307, %317 : vector<2x16xf32>
    %319 = arith.select %310, %312, %318 : vector<2x16xi1>, vector<2x16xf32>
    %320 = arith.addf %203, %51 : vector<16x16xf32>
    %321 = arith.addf %261, %94 : vector<10x16xf32>
    %322 = arith.addf %319, %137 : vector<2x16xf32>
    %c736 = arith.constant 736 : index
    %c0_101 = arith.constant 0 : index
    %323 = vector.load %arg5[%c736, %c0_101] : memref<1272x128xf32, #tpu.memory_space<vmem>>, vector<16x32xf32>
    %324 = arith.truncf %320 : vector<16x16xf32> to vector<16x16xbf16>
    %325 = arith.truncf %323 : vector<16x32xf32> to vector<16x32xbf16>
    %cst_102 = arith.constant dense<0.000000e+00> : vector<16x32xf32>
    %326 = tpu.matmul %324, %325, %cst_102 {dimension_numbers = #tpu.dot_dimension_numbers<[1], [0], [0], [1], [0, 0, 1, 1], [], []>} : vector<16x16xbf16>, vector<16x32xbf16>, vector<16x32xf32> -> vector<16x32xf32>
    %c752 = arith.constant 752 : index
    %c0_103 = arith.constant 0 : index
    %327 = vector.load %arg5[%c752, %c0_103] : memref<1272x128xf32, #tpu.memory_space<vmem>>, vector<1x32xf32>
    %328 = vector.broadcast %327 : vector<1x32xf32> to vector<16x32xf32>
    %329 = arith.addf %326, %328 : vector<16x32xf32>
    %cst_104 = arith.constant 0.000000e+00 : f32
    %330 = vector.broadcast %cst_104 : f32 to vector<16x32xf32>
    %331 = arith.maximumf %329, %330 : vector<16x32xf32>
    %332 = vector.broadcast %cst_104 : f32 to vector<16x32xf32>
    %333 = arith.subf %329, %332 : vector<16x32xf32>
    %334 = arith.cmpf one, %333, %333 : vector<16x32xf32>
    %335 = vector.broadcast %cst_104 : f32 to vector<16x32xf32>
    %336 = arith.addf %329, %335 : vector<16x32xf32>
    %337 = math.absf %333 : vector<16x32xf32>
    %cst_105 = arith.constant 0.000000e+00 : f32
    %338 = vector.broadcast %cst_105 : f32 to vector<16x32xf32>
    %339 = arith.subf %338, %337 : vector<16x32xf32>
    %340 = math.exp %339 : vector<16x32xf32>
    %341 = math.log1p %340 : vector<16x32xf32>
    %342 = arith.addf %331, %341 : vector<16x32xf32>
    %343 = arith.select %334, %336, %342 : vector<16x32xi1>, vector<16x32xf32>
    %c760 = arith.constant 760 : index
    %c0_106 = arith.constant 0 : index
    %344 = vector.load %arg5[%c760, %c0_106] : memref<1272x128xf32, #tpu.memory_space<vmem>>, vector<32x16xf32>
    %345 = arith.truncf %343 : vector<16x32xf32> to vector<16x32xbf16>
    %346 = arith.truncf %344 : vector<32x16xf32> to vector<32x16xbf16>
    %cst_107 = arith.constant dense<0.000000e+00> : vector<16x16xf32>
    %347 = tpu.matmul %345, %346, %cst_107 {dimension_numbers = #tpu.dot_dimension_numbers<[1], [0], [0], [1], [0, 0, 1, 1], [], []>} : vector<16x32xbf16>, vector<32x16xbf16>, vector<16x16xf32> -> vector<16x16xf32>
    %c792 = arith.constant 792 : index
    %c0_108 = arith.constant 0 : index
    %348 = vector.load %arg5[%c792, %c0_108] : memref<1272x128xf32, #tpu.memory_space<vmem>>, vector<1x16xf32>
    %349 = vector.broadcast %348 : vector<1x16xf32> to vector<16x16xf32>
    %350 = arith.addf %347, %349 : vector<16x16xf32>
    %cst_109 = arith.constant 0.000000e+00 : f32
    %351 = vector.broadcast %cst_109 : f32 to vector<16x16xf32>
    %352 = arith.maximumf %350, %351 : vector<16x16xf32>
    %353 = vector.broadcast %cst_109 : f32 to vector<16x16xf32>
    %354 = arith.subf %350, %353 : vector<16x16xf32>
    %355 = arith.cmpf one, %354, %354 : vector<16x16xf32>
    %356 = vector.broadcast %cst_109 : f32 to vector<16x16xf32>
    %357 = arith.addf %350, %356 : vector<16x16xf32>
    %358 = math.absf %354 : vector<16x16xf32>
    %cst_110 = arith.constant 0.000000e+00 : f32
    %359 = vector.broadcast %cst_110 : f32 to vector<16x16xf32>
    %360 = arith.subf %359, %358 : vector<16x16xf32>
    %361 = math.exp %360 : vector<16x16xf32>
    %362 = math.log1p %361 : vector<16x16xf32>
    %363 = arith.addf %352, %362 : vector<16x16xf32>
    %364 = arith.select %355, %357, %363 : vector<16x16xi1>, vector<16x16xf32>
    %c800 = arith.constant 800 : index
    %c0_111 = arith.constant 0 : index
    %365 = vector.load %arg5[%c800, %c0_111] : memref<1272x128xf32, #tpu.memory_space<vmem>>, vector<16x32xf32>
    %366 = arith.truncf %321 : vector<10x16xf32> to vector<10x16xbf16>
    %367 = arith.truncf %365 : vector<16x32xf32> to vector<16x32xbf16>
    %cst_112 = arith.constant dense<0.000000e+00> : vector<10x32xf32>
    %368 = tpu.matmul %366, %367, %cst_112 {dimension_numbers = #tpu.dot_dimension_numbers<[1], [0], [0], [1], [0, 0, 1, 1], [], []>} : vector<10x16xbf16>, vector<16x32xbf16>, vector<10x32xf32> -> vector<10x32xf32>
    %c816 = arith.constant 816 : index
    %c0_113 = arith.constant 0 : index
    %369 = vector.load %arg5[%c816, %c0_113] : memref<1272x128xf32, #tpu.memory_space<vmem>>, vector<1x32xf32>
    %370 = vector.broadcast %369 : vector<1x32xf32> to vector<10x32xf32>
    %371 = arith.addf %368, %370 : vector<10x32xf32>
    %cst_114 = arith.constant 0.000000e+00 : f32
    %372 = vector.broadcast %cst_114 : f32 to vector<10x32xf32>
    %373 = arith.maximumf %371, %372 : vector<10x32xf32>
    %374 = vector.broadcast %cst_114 : f32 to vector<10x32xf32>
    %375 = arith.subf %371, %374 : vector<10x32xf32>
    %376 = arith.cmpf one, %375, %375 : vector<10x32xf32>
    %377 = vector.broadcast %cst_114 : f32 to vector<10x32xf32>
    %378 = arith.addf %371, %377 : vector<10x32xf32>
    %379 = math.absf %375 : vector<10x32xf32>
    %cst_115 = arith.constant 0.000000e+00 : f32
    %380 = vector.broadcast %cst_115 : f32 to vector<10x32xf32>
    %381 = arith.subf %380, %379 : vector<10x32xf32>
    %382 = math.exp %381 : vector<10x32xf32>
    %383 = math.log1p %382 : vector<10x32xf32>
    %384 = arith.addf %373, %383 : vector<10x32xf32>
    %385 = arith.select %376, %378, %384 : vector<10x32xi1>, vector<10x32xf32>
    %c824 = arith.constant 824 : index
    %c0_116 = arith.constant 0 : index
    %386 = vector.load %arg5[%c824, %c0_116] : memref<1272x128xf32, #tpu.memory_space<vmem>>, vector<32x16xf32>
    %387 = arith.truncf %385 : vector<10x32xf32> to vector<10x32xbf16>
    %388 = arith.truncf %386 : vector<32x16xf32> to vector<32x16xbf16>
    %cst_117 = arith.constant dense<0.000000e+00> : vector<10x16xf32>
    %389 = tpu.matmul %387, %388, %cst_117 {dimension_numbers = #tpu.dot_dimension_numbers<[1], [0], [0], [1], [0, 0, 1, 1], [], []>} : vector<10x32xbf16>, vector<32x16xbf16>, vector<10x16xf32> -> vector<10x16xf32>
    %c856 = arith.constant 856 : index
    %c0_118 = arith.constant 0 : index
    %390 = vector.load %arg5[%c856, %c0_118] : memref<1272x128xf32, #tpu.memory_space<vmem>>, vector<1x16xf32>
    %391 = vector.broadcast %390 : vector<1x16xf32> to vector<10x16xf32>
    %392 = arith.addf %389, %391 : vector<10x16xf32>
    %cst_119 = arith.constant 0.000000e+00 : f32
    %393 = vector.broadcast %cst_119 : f32 to vector<10x16xf32>
    %394 = arith.maximumf %392, %393 : vector<10x16xf32>
    %395 = vector.broadcast %cst_119 : f32 to vector<10x16xf32>
    %396 = arith.subf %392, %395 : vector<10x16xf32>
    %397 = arith.cmpf one, %396, %396 : vector<10x16xf32>
    %398 = vector.broadcast %cst_119 : f32 to vector<10x16xf32>
    %399 = arith.addf %392, %398 : vector<10x16xf32>
    %400 = math.absf %396 : vector<10x16xf32>
    %cst_120 = arith.constant 0.000000e+00 : f32
    %401 = vector.broadcast %cst_120 : f32 to vector<10x16xf32>
    %402 = arith.subf %401, %400 : vector<10x16xf32>
    %403 = math.exp %402 : vector<10x16xf32>
    %404 = math.log1p %403 : vector<10x16xf32>
    %405 = arith.addf %394, %404 : vector<10x16xf32>
    %406 = arith.select %397, %399, %405 : vector<10x16xi1>, vector<10x16xf32>
    %c368 = arith.constant 368 : index
    %c0_121 = arith.constant 0 : index
    %407 = vector.load %arg5[%c368, %c0_121] : memref<1272x128xf32, #tpu.memory_space<vmem>>, vector<16x32xf32>
    %408 = arith.truncf %322 : vector<2x16xf32> to vector<2x16xbf16>
    %409 = arith.truncf %407 : vector<16x32xf32> to vector<16x32xbf16>
    %cst_122 = arith.constant dense<0.000000e+00> : vector<2x32xf32>
    %410 = tpu.matmul %408, %409, %cst_122 {dimension_numbers = #tpu.dot_dimension_numbers<[1], [0], [0], [1], [0, 0, 1, 1], [], []>} : vector<2x16xbf16>, vector<16x32xbf16>, vector<2x32xf32> -> vector<2x32xf32>
    %c384 = arith.constant 384 : index
    %c0_123 = arith.constant 0 : index
    %411 = vector.load %arg5[%c384, %c0_123] : memref<1272x128xf32, #tpu.memory_space<vmem>>, vector<1x32xf32>
    %412 = vector.broadcast %411 : vector<1x32xf32> to vector<2x32xf32>
    %413 = arith.addf %410, %412 : vector<2x32xf32>
    %cst_124 = arith.constant 0.000000e+00 : f32
    %414 = vector.broadcast %cst_124 : f32 to vector<2x32xf32>
    %415 = arith.maximumf %413, %414 : vector<2x32xf32>
    %416 = vector.broadcast %cst_124 : f32 to vector<2x32xf32>
    %417 = arith.subf %413, %416 : vector<2x32xf32>
    %418 = arith.cmpf one, %417, %417 : vector<2x32xf32>
    %419 = vector.broadcast %cst_124 : f32 to vector<2x32xf32>
    %420 = arith.addf %413, %419 : vector<2x32xf32>
    %421 = math.absf %417 : vector<2x32xf32>
    %cst_125 = arith.constant 0.000000e+00 : f32
    %422 = vector.broadcast %cst_125 : f32 to vector<2x32xf32>
    %423 = arith.subf %422, %421 : vector<2x32xf32>
    %424 = math.exp %423 : vector<2x32xf32>
    %425 = math.log1p %424 : vector<2x32xf32>
    %426 = arith.addf %415, %425 : vector<2x32xf32>
    %427 = arith.select %418, %420, %426 : vector<2x32xi1>, vector<2x32xf32>
    %c392 = arith.constant 392 : index
    %c0_126 = arith.constant 0 : index
    %428 = vector.load %arg5[%c392, %c0_126] : memref<1272x128xf32, #tpu.memory_space<vmem>>, vector<32x16xf32>
    %429 = arith.truncf %427 : vector<2x32xf32> to vector<2x32xbf16>
    %430 = arith.truncf %428 : vector<32x16xf32> to vector<32x16xbf16>
    %cst_127 = arith.constant dense<0.000000e+00> : vector<2x16xf32>
    %431 = tpu.matmul %429, %430, %cst_127 {dimension_numbers = #tpu.dot_dimension_numbers<[1], [0], [0], [1], [0, 0, 1, 1], [], []>} : vector<2x32xbf16>, vector<32x16xbf16>, vector<2x16xf32> -> vector<2x16xf32>
    %c424 = arith.constant 424 : index
    %c0_128 = arith.constant 0 : index
    %432 = vector.load %arg5[%c424, %c0_128] : memref<1272x128xf32, #tpu.memory_space<vmem>>, vector<1x16xf32>
    %433 = vector.broadcast %432 : vector<1x16xf32> to vector<2x16xf32>
    %434 = arith.addf %431, %433 : vector<2x16xf32>
    %cst_129 = arith.constant 0.000000e+00 : f32
    %435 = vector.broadcast %cst_129 : f32 to vector<2x16xf32>
    %436 = arith.maximumf %434, %435 : vector<2x16xf32>
    %437 = vector.broadcast %cst_129 : f32 to vector<2x16xf32>
    %438 = arith.subf %434, %437 : vector<2x16xf32>
    %439 = arith.cmpf one, %438, %438 : vector<2x16xf32>
    %440 = vector.broadcast %cst_129 : f32 to vector<2x16xf32>
    %441 = arith.addf %434, %440 : vector<2x16xf32>
    %442 = math.absf %438 : vector<2x16xf32>
    %cst_130 = arith.constant 0.000000e+00 : f32
    %443 = vector.broadcast %cst_130 : f32 to vector<2x16xf32>
    %444 = arith.subf %443, %442 : vector<2x16xf32>
    %445 = math.exp %444 : vector<2x16xf32>
    %446 = math.log1p %445 : vector<2x16xf32>
    %447 = arith.addf %436, %446 : vector<2x16xf32>
    %448 = arith.select %439, %441, %447 : vector<2x16xi1>, vector<2x16xf32>
    %449 = arith.truncf %0 : vector<16x10xf32> to vector<16x10xbf16>
    %450 = arith.truncf %406 : vector<10x16xf32> to vector<10x16xbf16>
    %cst_131 = arith.constant dense<0.000000e+00> : vector<16x16xf32>
    %451 = tpu.matmul %449, %450, %cst_131 {dimension_numbers = #tpu.dot_dimension_numbers<[1], [0], [0], [1], [0, 0, 1, 1], [], []>} : vector<16x10xbf16>, vector<10x16xbf16>, vector<16x16xf32> -> vector<16x16xf32>
    %452 = arith.truncf %1 : vector<16x10xf32> to vector<16x10xbf16>
    %453 = arith.truncf %406 : vector<10x16xf32> to vector<10x16xbf16>
    %cst_132 = arith.constant dense<0.000000e+00> : vector<16x16xf32>
    %454 = tpu.matmul %452, %453, %cst_132 {dimension_numbers = #tpu.dot_dimension_numbers<[1], [0], [0], [1], [0, 0, 1, 1], [], []>} : vector<16x10xbf16>, vector<10x16xbf16>, vector<16x16xf32> -> vector<16x16xf32>
    %455 = arith.truncf %3 : vector<16x2xf32> to vector<16x2xbf16>
    %456 = arith.truncf %448 : vector<2x16xf32> to vector<2x16xbf16>
    %cst_133 = arith.constant dense<0.000000e+00> : vector<16x16xf32>
    %457 = tpu.matmul %455, %456, %cst_133 {dimension_numbers = #tpu.dot_dimension_numbers<[1], [0], [0], [1], [0, 0, 1, 1], [], []>} : vector<16x2xbf16>, vector<2x16xbf16>, vector<16x16xf32> -> vector<16x16xf32>
    %c592 = arith.constant 592 : index
    %c0_134 = arith.constant 0 : index
    %458 = vector.load %arg5[%c592, %c0_134] : memref<1272x128xf32, #tpu.memory_space<vmem>>, vector<1x32xf32>
    %c528 = arith.constant 528 : index
    %c0_135 = arith.constant 0 : index
    %459 = vector.load %arg5[%c528, %c0_135] : memref<1272x128xf32, #tpu.memory_space<vmem>>, vector<16x32xf32>
    %460 = arith.truncf %451 : vector<16x16xf32> to vector<16x16xbf16>
    %461 = arith.truncf %459 : vector<16x32xf32> to vector<16x32xbf16>
    %cst_136 = arith.constant dense<0.000000e+00> : vector<16x32xf32>
    %462 = tpu.matmul %460, %461, %cst_136 {dimension_numbers = #tpu.dot_dimension_numbers<[1], [0], [0], [1], [0, 0, 1, 1], [], []>} : vector<16x16xbf16>, vector<16x32xbf16>, vector<16x32xf32> -> vector<16x32xf32>
    %463 = vector.broadcast %458 : vector<1x32xf32> to vector<16x32xf32>
    %464 = arith.addf %463, %462 : vector<16x32xf32>
    %c544 = arith.constant 544 : index
    %c0_137 = arith.constant 0 : index
    %465 = vector.load %arg5[%c544, %c0_137] : memref<1272x128xf32, #tpu.memory_space<vmem>>, vector<16x32xf32>
    %466 = arith.truncf %454 : vector<16x16xf32> to vector<16x16xbf16>
    %467 = arith.truncf %465 : vector<16x32xf32> to vector<16x32xbf16>
    %cst_138 = arith.constant dense<0.000000e+00> : vector<16x32xf32>
    %468 = tpu.matmul %466, %467, %cst_138 {dimension_numbers = #tpu.dot_dimension_numbers<[1], [0], [0], [1], [0, 0, 1, 1], [], []>} : vector<16x16xbf16>, vector<16x32xbf16>, vector<16x32xf32> -> vector<16x32xf32>
    %469 = arith.addf %464, %468 : vector<16x32xf32>
    %c560 = arith.constant 560 : index
    %c0_139 = arith.constant 0 : index
    %470 = vector.load %arg5[%c560, %c0_139] : memref<1272x128xf32, #tpu.memory_space<vmem>>, vector<16x32xf32>
    %471 = arith.truncf %364 : vector<16x16xf32> to vector<16x16xbf16>
    %472 = arith.truncf %470 : vector<16x32xf32> to vector<16x32xbf16>
    %cst_140 = arith.constant dense<0.000000e+00> : vector<16x32xf32>
    %473 = tpu.matmul %471, %472, %cst_140 {dimension_numbers = #tpu.dot_dimension_numbers<[1], [0], [0], [1], [0, 0, 1, 1], [], []>} : vector<16x16xbf16>, vector<16x32xbf16>, vector<16x32xf32> -> vector<16x32xf32>
    %474 = arith.addf %469, %473 : vector<16x32xf32>
    %c576 = arith.constant 576 : index
    %c0_141 = arith.constant 0 : index
    %475 = vector.load %arg5[%c576, %c0_141] : memref<1272x128xf32, #tpu.memory_space<vmem>>, vector<16x32xf32>
    %476 = arith.truncf %457 : vector<16x16xf32> to vector<16x16xbf16>
    %477 = arith.truncf %475 : vector<16x32xf32> to vector<16x32xbf16>
    %cst_142 = arith.constant dense<0.000000e+00> : vector<16x32xf32>
    %478 = tpu.matmul %476, %477, %cst_142 {dimension_numbers = #tpu.dot_dimension_numbers<[1], [0], [0], [1], [0, 0, 1, 1], [], []>} : vector<16x16xbf16>, vector<16x32xbf16>, vector<16x32xf32> -> vector<16x32xf32>
    %479 = arith.addf %474, %478 : vector<16x32xf32>
    %cst_143 = arith.constant 0.000000e+00 : f32
    %480 = vector.broadcast %cst_143 : f32 to vector<16x32xf32>
    %481 = arith.maximumf %479, %480 : vector<16x32xf32>
    %482 = vector.broadcast %cst_143 : f32 to vector<16x32xf32>
    %483 = arith.subf %479, %482 : vector<16x32xf32>
    %484 = arith.cmpf one, %483, %483 : vector<16x32xf32>
    %485 = vector.broadcast %cst_143 : f32 to vector<16x32xf32>
    %486 = arith.addf %479, %485 : vector<16x32xf32>
    %487 = math.absf %483 : vector<16x32xf32>
    %cst_144 = arith.constant 0.000000e+00 : f32
    %488 = vector.broadcast %cst_144 : f32 to vector<16x32xf32>
    %489 = arith.subf %488, %487 : vector<16x32xf32>
    %490 = math.exp %489 : vector<16x32xf32>
    %491 = math.log1p %490 : vector<16x32xf32>
    %492 = arith.addf %481, %491 : vector<16x32xf32>
    %493 = arith.select %484, %486, %492 : vector<16x32xi1>, vector<16x32xf32>
    %c600 = arith.constant 600 : index
    %c0_145 = arith.constant 0 : index
    %494 = vector.load %arg5[%c600, %c0_145] : memref<1272x128xf32, #tpu.memory_space<vmem>>, vector<32x16xf32>
    %495 = arith.truncf %493 : vector<16x32xf32> to vector<16x32xbf16>
    %496 = arith.truncf %494 : vector<32x16xf32> to vector<32x16xbf16>
    %cst_146 = arith.constant dense<0.000000e+00> : vector<16x16xf32>
    %497 = tpu.matmul %495, %496, %cst_146 {dimension_numbers = #tpu.dot_dimension_numbers<[1], [0], [0], [1], [0, 0, 1, 1], [], []>} : vector<16x32xbf16>, vector<32x16xbf16>, vector<16x16xf32> -> vector<16x16xf32>
    %c632 = arith.constant 632 : index
    %c0_147 = arith.constant 0 : index
    %498 = vector.load %arg5[%c632, %c0_147] : memref<1272x128xf32, #tpu.memory_space<vmem>>, vector<1x16xf32>
    %499 = vector.broadcast %498 : vector<1x16xf32> to vector<16x16xf32>
    %500 = arith.addf %497, %499 : vector<16x16xf32>
    %cst_148 = arith.constant 0.000000e+00 : f32
    %501 = vector.broadcast %cst_148 : f32 to vector<16x16xf32>
    %502 = arith.maximumf %500, %501 : vector<16x16xf32>
    %503 = vector.broadcast %cst_148 : f32 to vector<16x16xf32>
    %504 = arith.subf %500, %503 : vector<16x16xf32>
    %505 = arith.cmpf one, %504, %504 : vector<16x16xf32>
    %506 = vector.broadcast %cst_148 : f32 to vector<16x16xf32>
    %507 = arith.addf %500, %506 : vector<16x16xf32>
    %508 = math.absf %504 : vector<16x16xf32>
    %cst_149 = arith.constant 0.000000e+00 : f32
    %509 = vector.broadcast %cst_149 : f32 to vector<16x16xf32>
    %510 = arith.subf %509, %508 : vector<16x16xf32>
    %511 = math.exp %510 : vector<16x16xf32>
    %512 = math.log1p %511 : vector<16x16xf32>
    %513 = arith.addf %502, %512 : vector<16x16xf32>
    %514 = arith.select %505, %507, %513 : vector<16x16xi1>, vector<16x16xf32>
    %515 = arith.truncf %2 : vector<10x16xf32> to vector<10x16xbf16>
    %516 = arith.truncf %514 : vector<16x16xf32> to vector<16x16xbf16>
    %cst_150 = arith.constant dense<0.000000e+00> : vector<10x16xf32>
    %517 = tpu.matmul %515, %516, %cst_150 {dimension_numbers = #tpu.dot_dimension_numbers<[1], [0], [0], [1], [0, 0, 1, 1], [], []>} : vector<10x16xbf16>, vector<16x16xbf16>, vector<10x16xf32> -> vector<10x16xf32>
    %518 = arith.truncf %4 : vector<10x2xf32> to vector<10x2xbf16>
    %519 = arith.truncf %448 : vector<2x16xf32> to vector<2x16xbf16>
    %cst_151 = arith.constant dense<0.000000e+00> : vector<10x16xf32>
    %520 = tpu.matmul %518, %519, %cst_151 {dimension_numbers = #tpu.dot_dimension_numbers<[1], [0], [0], [1], [0, 0, 1, 1], [], []>} : vector<10x2xbf16>, vector<2x16xbf16>, vector<10x16xf32> -> vector<10x16xf32>
    %c688 = arith.constant 688 : index
    %c0_152 = arith.constant 0 : index
    %521 = vector.load %arg5[%c688, %c0_152] : memref<1272x128xf32, #tpu.memory_space<vmem>>, vector<1x32xf32>
    %c640 = arith.constant 640 : index
    %c0_153 = arith.constant 0 : index
    %522 = vector.load %arg5[%c640, %c0_153] : memref<1272x128xf32, #tpu.memory_space<vmem>>, vector<16x32xf32>
    %523 = arith.truncf %406 : vector<10x16xf32> to vector<10x16xbf16>
    %524 = arith.truncf %522 : vector<16x32xf32> to vector<16x32xbf16>
    %cst_154 = arith.constant dense<0.000000e+00> : vector<10x32xf32>
    %525 = tpu.matmul %523, %524, %cst_154 {dimension_numbers = #tpu.dot_dimension_numbers<[1], [0], [0], [1], [0, 0, 1, 1], [], []>} : vector<10x16xbf16>, vector<16x32xbf16>, vector<10x32xf32> -> vector<10x32xf32>
    %526 = vector.broadcast %521 : vector<1x32xf32> to vector<10x32xf32>
    %527 = arith.addf %526, %525 : vector<10x32xf32>
    %c656 = arith.constant 656 : index
    %c0_155 = arith.constant 0 : index
    %528 = vector.load %arg5[%c656, %c0_155] : memref<1272x128xf32, #tpu.memory_space<vmem>>, vector<16x32xf32>
    %529 = arith.truncf %517 : vector<10x16xf32> to vector<10x16xbf16>
    %530 = arith.truncf %528 : vector<16x32xf32> to vector<16x32xbf16>
    %cst_156 = arith.constant dense<0.000000e+00> : vector<10x32xf32>
    %531 = tpu.matmul %529, %530, %cst_156 {dimension_numbers = #tpu.dot_dimension_numbers<[1], [0], [0], [1], [0, 0, 1, 1], [], []>} : vector<10x16xbf16>, vector<16x32xbf16>, vector<10x32xf32> -> vector<10x32xf32>
    %532 = arith.addf %527, %531 : vector<10x32xf32>
    %c672 = arith.constant 672 : index
    %c0_157 = arith.constant 0 : index
    %533 = vector.load %arg5[%c672, %c0_157] : memref<1272x128xf32, #tpu.memory_space<vmem>>, vector<16x32xf32>
    %534 = arith.truncf %520 : vector<10x16xf32> to vector<10x16xbf16>
    %535 = arith.truncf %533 : vector<16x32xf32> to vector<16x32xbf16>
    %cst_158 = arith.constant dense<0.000000e+00> : vector<10x32xf32>
    %536 = tpu.matmul %534, %535, %cst_158 {dimension_numbers = #tpu.dot_dimension_numbers<[1], [0], [0], [1], [0, 0, 1, 1], [], []>} : vector<10x16xbf16>, vector<16x32xbf16>, vector<10x32xf32> -> vector<10x32xf32>
    %537 = arith.addf %532, %536 : vector<10x32xf32>
    %cst_159 = arith.constant 0.000000e+00 : f32
    %538 = vector.broadcast %cst_159 : f32 to vector<10x32xf32>
    %539 = arith.maximumf %537, %538 : vector<10x32xf32>
    %540 = vector.broadcast %cst_159 : f32 to vector<10x32xf32>
    %541 = arith.subf %537, %540 : vector<10x32xf32>
    %542 = arith.cmpf one, %541, %541 : vector<10x32xf32>
    %543 = vector.broadcast %cst_159 : f32 to vector<10x32xf32>
    %544 = arith.addf %537, %543 : vector<10x32xf32>
    %545 = math.absf %541 : vector<10x32xf32>
    %cst_160 = arith.constant 0.000000e+00 : f32
    %546 = vector.broadcast %cst_160 : f32 to vector<10x32xf32>
    %547 = arith.subf %546, %545 : vector<10x32xf32>
    %548 = math.exp %547 : vector<10x32xf32>
    %549 = math.log1p %548 : vector<10x32xf32>
    %550 = arith.addf %539, %549 : vector<10x32xf32>
    %551 = arith.select %542, %544, %550 : vector<10x32xi1>, vector<10x32xf32>
    %c696 = arith.constant 696 : index
    %c0_161 = arith.constant 0 : index
    %552 = vector.load %arg5[%c696, %c0_161] : memref<1272x128xf32, #tpu.memory_space<vmem>>, vector<32x16xf32>
    %553 = arith.truncf %551 : vector<10x32xf32> to vector<10x32xbf16>
    %554 = arith.truncf %552 : vector<32x16xf32> to vector<32x16xbf16>
    %cst_162 = arith.constant dense<0.000000e+00> : vector<10x16xf32>
    %555 = tpu.matmul %553, %554, %cst_162 {dimension_numbers = #tpu.dot_dimension_numbers<[1], [0], [0], [1], [0, 0, 1, 1], [], []>} : vector<10x32xbf16>, vector<32x16xbf16>, vector<10x16xf32> -> vector<10x16xf32>
    %c728 = arith.constant 728 : index
    %c0_163 = arith.constant 0 : index
    %556 = vector.load %arg5[%c728, %c0_163] : memref<1272x128xf32, #tpu.memory_space<vmem>>, vector<1x16xf32>
    %557 = vector.broadcast %556 : vector<1x16xf32> to vector<10x16xf32>
    %558 = arith.addf %555, %557 : vector<10x16xf32>
    %cst_164 = arith.constant 0.000000e+00 : f32
    %559 = vector.broadcast %cst_164 : f32 to vector<10x16xf32>
    %560 = arith.maximumf %558, %559 : vector<10x16xf32>
    %561 = vector.broadcast %cst_164 : f32 to vector<10x16xf32>
    %562 = arith.subf %558, %561 : vector<10x16xf32>
    %563 = arith.cmpf one, %562, %562 : vector<10x16xf32>
    %564 = vector.broadcast %cst_164 : f32 to vector<10x16xf32>
    %565 = arith.addf %558, %564 : vector<10x16xf32>
    %566 = math.absf %562 : vector<10x16xf32>
    %cst_165 = arith.constant 0.000000e+00 : f32
    %567 = vector.broadcast %cst_165 : f32 to vector<10x16xf32>
    %568 = arith.subf %567, %566 : vector<10x16xf32>
    %569 = math.exp %568 : vector<10x16xf32>
    %570 = math.log1p %569 : vector<10x16xf32>
    %571 = arith.addf %560, %570 : vector<10x16xf32>
    %572 = arith.select %563, %565, %571 : vector<10x16xi1>, vector<10x16xf32>
    %573 = arith.truncf %5 : vector<2x16xf32> to vector<2x16xbf16>
    %574 = arith.truncf %514 : vector<16x16xf32> to vector<16x16xbf16>
    %cst_166 = arith.constant dense<0.000000e+00> : vector<2x16xf32>
    %575 = tpu.matmul %573, %574, %cst_166 {dimension_numbers = #tpu.dot_dimension_numbers<[1], [0], [0], [1], [0, 0, 1, 1], [], []>} : vector<2x16xbf16>, vector<16x16xbf16>, vector<2x16xf32> -> vector<2x16xf32>
    %576 = arith.truncf %6 : vector<2x10xf32> to vector<2x10xbf16>
    %577 = arith.truncf %572 : vector<10x16xf32> to vector<10x16xbf16>
    %cst_167 = arith.constant dense<0.000000e+00> : vector<2x16xf32>
    %578 = tpu.matmul %576, %577, %cst_167 {dimension_numbers = #tpu.dot_dimension_numbers<[1], [0], [0], [1], [0, 0, 1, 1], [], []>} : vector<2x10xbf16>, vector<10x16xbf16>, vector<2x16xf32> -> vector<2x16xf32>
    %c480 = arith.constant 480 : index
    %c0_168 = arith.constant 0 : index
    %579 = vector.load %arg5[%c480, %c0_168] : memref<1272x128xf32, #tpu.memory_space<vmem>>, vector<1x32xf32>
    %c432 = arith.constant 432 : index
    %c0_169 = arith.constant 0 : index
    %580 = vector.load %arg5[%c432, %c0_169] : memref<1272x128xf32, #tpu.memory_space<vmem>>, vector<16x32xf32>
    %581 = arith.truncf %448 : vector<2x16xf32> to vector<2x16xbf16>
    %582 = arith.truncf %580 : vector<16x32xf32> to vector<16x32xbf16>
    %cst_170 = arith.constant dense<0.000000e+00> : vector<2x32xf32>
    %583 = tpu.matmul %581, %582, %cst_170 {dimension_numbers = #tpu.dot_dimension_numbers<[1], [0], [0], [1], [0, 0, 1, 1], [], []>} : vector<2x16xbf16>, vector<16x32xbf16>, vector<2x32xf32> -> vector<2x32xf32>
    %584 = vector.broadcast %579 : vector<1x32xf32> to vector<2x32xf32>
    %585 = arith.addf %584, %583 : vector<2x32xf32>
    %c448 = arith.constant 448 : index
    %c0_171 = arith.constant 0 : index
    %586 = vector.load %arg5[%c448, %c0_171] : memref<1272x128xf32, #tpu.memory_space<vmem>>, vector<16x32xf32>
    %587 = arith.truncf %575 : vector<2x16xf32> to vector<2x16xbf16>
    %588 = arith.truncf %586 : vector<16x32xf32> to vector<16x32xbf16>
    %cst_172 = arith.constant dense<0.000000e+00> : vector<2x32xf32>
    %589 = tpu.matmul %587, %588, %cst_172 {dimension_numbers = #tpu.dot_dimension_numbers<[1], [0], [0], [1], [0, 0, 1, 1], [], []>} : vector<2x16xbf16>, vector<16x32xbf16>, vector<2x32xf32> -> vector<2x32xf32>
    %590 = arith.addf %585, %589 : vector<2x32xf32>
    %c464 = arith.constant 464 : index
    %c0_173 = arith.constant 0 : index
    %591 = vector.load %arg5[%c464, %c0_173] : memref<1272x128xf32, #tpu.memory_space<vmem>>, vector<16x32xf32>
    %592 = arith.truncf %578 : vector<2x16xf32> to vector<2x16xbf16>
    %593 = arith.truncf %591 : vector<16x32xf32> to vector<16x32xbf16>
    %cst_174 = arith.constant dense<0.000000e+00> : vector<2x32xf32>
    %594 = tpu.matmul %592, %593, %cst_174 {dimension_numbers = #tpu.dot_dimension_numbers<[1], [0], [0], [1], [0, 0, 1, 1], [], []>} : vector<2x16xbf16>, vector<16x32xbf16>, vector<2x32xf32> -> vector<2x32xf32>
    %595 = arith.addf %590, %594 : vector<2x32xf32>
    %cst_175 = arith.constant 0.000000e+00 : f32
    %596 = vector.broadcast %cst_175 : f32 to vector<2x32xf32>
    %597 = arith.maximumf %595, %596 : vector<2x32xf32>
    %598 = vector.broadcast %cst_175 : f32 to vector<2x32xf32>
    %599 = arith.subf %595, %598 : vector<2x32xf32>
    %600 = arith.cmpf one, %599, %599 : vector<2x32xf32>
    %601 = vector.broadcast %cst_175 : f32 to vector<2x32xf32>
    %602 = arith.addf %595, %601 : vector<2x32xf32>
    %603 = math.absf %599 : vector<2x32xf32>
    %cst_176 = arith.constant 0.000000e+00 : f32
    %604 = vector.broadcast %cst_176 : f32 to vector<2x32xf32>
    %605 = arith.subf %604, %603 : vector<2x32xf32>
    %606 = math.exp %605 : vector<2x32xf32>
    %607 = math.log1p %606 : vector<2x32xf32>
    %608 = arith.addf %597, %607 : vector<2x32xf32>
    %609 = arith.select %600, %602, %608 : vector<2x32xi1>, vector<2x32xf32>
    %c488 = arith.constant 488 : index
    %c0_177 = arith.constant 0 : index
    %610 = vector.load %arg5[%c488, %c0_177] : memref<1272x128xf32, #tpu.memory_space<vmem>>, vector<32x16xf32>
    %611 = arith.truncf %609 : vector<2x32xf32> to vector<2x32xbf16>
    %612 = arith.truncf %610 : vector<32x16xf32> to vector<32x16xbf16>
    %cst_178 = arith.constant dense<0.000000e+00> : vector<2x16xf32>
    %613 = tpu.matmul %611, %612, %cst_178 {dimension_numbers = #tpu.dot_dimension_numbers<[1], [0], [0], [1], [0, 0, 1, 1], [], []>} : vector<2x32xbf16>, vector<32x16xbf16>, vector<2x16xf32> -> vector<2x16xf32>
    %c520 = arith.constant 520 : index
    %c0_179 = arith.constant 0 : index
    %614 = vector.load %arg5[%c520, %c0_179] : memref<1272x128xf32, #tpu.memory_space<vmem>>, vector<1x16xf32>
    %615 = vector.broadcast %614 : vector<1x16xf32> to vector<2x16xf32>
    %616 = arith.addf %613, %615 : vector<2x16xf32>
    %cst_180 = arith.constant 0.000000e+00 : f32
    %617 = vector.broadcast %cst_180 : f32 to vector<2x16xf32>
    %618 = arith.maximumf %616, %617 : vector<2x16xf32>
    %619 = vector.broadcast %cst_180 : f32 to vector<2x16xf32>
    %620 = arith.subf %616, %619 : vector<2x16xf32>
    %621 = arith.cmpf one, %620, %620 : vector<2x16xf32>
    %622 = vector.broadcast %cst_180 : f32 to vector<2x16xf32>
    %623 = arith.addf %616, %622 : vector<2x16xf32>
    %624 = math.absf %620 : vector<2x16xf32>
    %cst_181 = arith.constant 0.000000e+00 : f32
    %625 = vector.broadcast %cst_181 : f32 to vector<2x16xf32>
    %626 = arith.subf %625, %624 : vector<2x16xf32>
    %627 = math.exp %626 : vector<2x16xf32>
    %628 = math.log1p %627 : vector<2x16xf32>
    %629 = arith.addf %618, %628 : vector<2x16xf32>
    %630 = arith.select %621, %623, %629 : vector<2x16xi1>, vector<2x16xf32>
    %631 = arith.addf %514, %320 : vector<16x16xf32>
    %632 = arith.addf %572, %321 : vector<10x16xf32>
    %633 = arith.addf %630, %322 : vector<2x16xf32>
    %c1056 = arith.constant 1056 : index
    %c0_182 = arith.constant 0 : index
    %634 = vector.load %arg5[%c1056, %c0_182] : memref<1272x128xf32, #tpu.memory_space<vmem>>, vector<16x64xf32>
    %635 = arith.truncf %634 : vector<16x64xf32> to vector<16x64xbf16>
    %c1072 = arith.constant 1072 : index
    %c0_183 = arith.constant 0 : index
    %636 = vector.load %arg5[%c1072, %c0_183] : memref<1272x128xf32, #tpu.memory_space<vmem>>, vector<16x64xf32>
    %637 = arith.truncf %636 : vector<16x64xf32> to vector<16x64xbf16>
    %c1088 = arith.constant 1088 : index
    %c0_184 = arith.constant 0 : index
    %638 = vector.load %arg5[%c1088, %c0_184] : memref<1272x128xf32, #tpu.memory_space<vmem>>, vector<16x64xf32>
    %639 = arith.truncf %638 : vector<16x64xf32> to vector<16x64xbf16>
    %c1104 = arith.constant 1104 : index
    %c0_185 = arith.constant 0 : index
    %640 = vector.load %arg5[%c1104, %c0_185] : memref<1272x128xf32, #tpu.memory_space<vmem>>, vector<1x64xf32>
    %c1112 = arith.constant 1112 : index
    %c0_186 = arith.constant 0 : index
    %641 = vector.load %arg5[%c1112, %c0_186] : memref<1272x128xf32, #tpu.memory_space<vmem>>, vector<1x64xf32>
    %642 = arith.addf %640, %641 : vector<1x64xf32>
    %cst_187 = arith.constant 5.000000e-01 : f32
    %643 = vector.broadcast %cst_187 : f32 to vector<2x10xf32>
    %644 = arith.cmpf ogt, %8, %643 : vector<2x10xf32>
    %645 = arith.truncf %632 : vector<10x16xf32> to vector<10x16xbf16>
    %cst_188 = arith.constant 0.000000e+00 : f32
    %646 = vector.broadcast %cst_188 : f32 to vector<2x16xf32>
    %cst_189 = arith.constant 0.000000e+00 : f32
    %647 = vector.broadcast %cst_189 : f32 to vector<2x16xf32>
    %cst_190 = arith.constant 0.000000e+00 : f32
    %648 = vector.broadcast %cst_190 : f32 to vector<2x16xf32>
    %cst_191 = arith.constant 0.000000e+00 : f32
    %649 = vector.broadcast %cst_191 : f32 to vector<2x16xf32>
    %650 = arith.truncf %648 : vector<2x16xf32> to vector<2x16xbf16>
    %cst_192 = arith.constant dense<0.000000e+00> : vector<2x64xf32>
    %651 = tpu.matmul %650, %635, %cst_192 {dimension_numbers = #tpu.dot_dimension_numbers<[1], [0], [0], [1], [0, 0, 1, 1], [], []>} : vector<2x16xbf16>, vector<16x64xbf16>, vector<2x64xf32> -> vector<2x64xf32>
    %652 = arith.truncf %649 : vector<2x16xf32> to vector<2x16xbf16>
    %cst_193 = arith.constant dense<0.000000e+00> : vector<2x64xf32>
    %653 = tpu.matmul %652, %637, %cst_193 {dimension_numbers = #tpu.dot_dimension_numbers<[1], [0], [0], [1], [0, 0, 1, 1], [], []>} : vector<2x16xbf16>, vector<16x64xbf16>, vector<2x64xf32> -> vector<2x64xf32>
    %654 = arith.addf %651, %653 : vector<2x64xf32>
    %655 = arith.truncf %646 : vector<2x16xf32> to vector<2x16xbf16>
    %cst_194 = arith.constant dense<0.000000e+00> : vector<2x64xf32>
    %656 = tpu.matmul %655, %639, %cst_194 {dimension_numbers = #tpu.dot_dimension_numbers<[1], [0], [0], [1], [0, 0, 1, 1], [], []>} : vector<2x16xbf16>, vector<16x64xbf16>, vector<2x64xf32> -> vector<2x64xf32>
    %657 = arith.addf %654, %656 : vector<2x64xf32>
    %658 = vector.broadcast %642 : vector<1x64xf32> to vector<2x64xf32>
    %659 = arith.addf %657, %658 : vector<2x64xf32>
    %660 = vector.extract_strided_slice %659 {offsets = [0, 0], sizes = [2, 16], strides = [1, 1]} : vector<2x64xf32> to vector<2x16xf32>
    %661 = arith.negf %660 : vector<2x16xf32>
    %662 = math.exp %661 : vector<2x16xf32>
    %cst_195 = arith.constant 1.000000e+00 : f32
    %663 = vector.broadcast %cst_195 : f32 to vector<2x16xf32>
    %664 = arith.addf %663, %662 : vector<2x16xf32>
    %665 = arith.divf %663, %664 : vector<2x16xf32>
    %666 = vector.extract_strided_slice %659 {offsets = [0, 16], sizes = [2, 16], strides = [1, 1]} : vector<2x64xf32> to vector<2x16xf32>
    %667 = arith.negf %666 : vector<2x16xf32>
    %668 = math.exp %667 : vector<2x16xf32>
    %cst_196 = arith.constant 1.000000e+00 : f32
    %669 = vector.broadcast %cst_196 : f32 to vector<2x16xf32>
    %670 = arith.addf %669, %668 : vector<2x16xf32>
    %671 = arith.divf %669, %670 : vector<2x16xf32>
    %672 = vector.extract_strided_slice %659 {offsets = [0, 32], sizes = [2, 16], strides = [1, 1]} : vector<2x64xf32> to vector<2x16xf32>
    %673 = math.tanh %672 : vector<2x16xf32>
    %674 = vector.extract_strided_slice %659 {offsets = [0, 48], sizes = [2, 16], strides = [1, 1]} : vector<2x64xf32> to vector<2x16xf32>
    %675 = arith.negf %674 : vector<2x16xf32>
    %676 = math.exp %675 : vector<2x16xf32>
    %cst_197 = arith.constant 1.000000e+00 : f32
    %677 = vector.broadcast %cst_197 : f32 to vector<2x16xf32>
    %678 = arith.addf %677, %676 : vector<2x16xf32>
    %679 = arith.divf %677, %678 : vector<2x16xf32>
    %680 = arith.mulf %671, %647 : vector<2x16xf32>
    %681 = arith.mulf %665, %673 : vector<2x16xf32>
    %682 = arith.addf %680, %681 : vector<2x16xf32>
    %683 = math.tanh %682 : vector<2x16xf32>
    %684 = arith.mulf %679, %683 : vector<2x16xf32>
    %685 = arith.truncf %684 : vector<2x16xf32> to vector<2x16xbf16>
    %cst_198 = arith.constant dense<0.000000e+00> : vector<2x10xf32>
    %686 = tpu.matmul %685, %645, %cst_198 {dimension_numbers = #tpu.dot_dimension_numbers<[1], [1], [0], [0], [0, 0, 1, 0], [], []>} : vector<2x16xbf16>, vector<10x16xbf16>, vector<2x10xf32> -> vector<2x10xf32>
    %cst_199 = arith.constant -1.000000e+30 : f32
    %687 = vector.broadcast %cst_199 : f32 to vector<2x10xf32>
    %688 = arith.select %644, %686, %687 : vector<2x10xi1>, vector<2x10xf32>
    %cst_200 = arith.constant dense<0xFF800000> : vector<2xf32>
    %689 = vector.multi_reduction <maximumf>, %688, %cst_200 [1] : vector<2x10xf32> to vector<2xf32>
    %690 = vector.shape_cast %689 : vector<2xf32> to vector<2x1xf32>
    %691 = vector.broadcast %690 : vector<2x1xf32> to vector<2x10xf32>
    %692 = arith.subf %688, %691 : vector<2x10xf32>
    %693 = math.exp %692 : vector<2x10xf32>
    %cst_201 = arith.constant 0.000000e+00 : f32
    %694 = vector.broadcast %cst_201 : f32 to vector<2x10xf32>
    %695 = arith.select %644, %693, %694 : vector<2x10xi1>, vector<2x10xf32>
    %cst_202 = arith.constant dense<0.000000e+00> : vector<2xf32>
    %696 = vector.multi_reduction <add>, %695, %cst_202 [1] : vector<2x10xf32> to vector<2xf32>
    %697 = vector.shape_cast %696 : vector<2xf32> to vector<2x1xf32>
    %cst_203 = arith.constant 9.99999968E-21 : f32
    %698 = vector.broadcast %cst_203 : f32 to vector<2x1xf32>
    %699 = arith.maximumf %697, %698 : vector<2x1xf32>
    %700 = vector.broadcast %699 : vector<2x1xf32> to vector<2x10xf32>
    %701 = arith.divf %695, %700 : vector<2x10xf32>
    %702 = arith.truncf %701 : vector<2x10xf32> to vector<2x10xbf16>
    %703 = arith.truncf %632 : vector<10x16xf32> to vector<10x16xbf16>
    %cst_204 = arith.constant dense<0.000000e+00> : vector<2x16xf32>
    %704 = tpu.matmul %702, %703, %cst_204 {dimension_numbers = #tpu.dot_dimension_numbers<[1], [0], [0], [1], [0, 0, 1, 1], [], []>} : vector<2x10xbf16>, vector<10x16xbf16>, vector<2x16xf32> -> vector<2x16xf32>
    %705 = arith.truncf %684 : vector<2x16xf32> to vector<2x16xbf16>
    %cst_205 = arith.constant dense<0.000000e+00> : vector<2x64xf32>
    %706 = tpu.matmul %705, %635, %cst_205 {dimension_numbers = #tpu.dot_dimension_numbers<[1], [0], [0], [1], [0, 0, 1, 1], [], []>} : vector<2x16xbf16>, vector<16x64xbf16>, vector<2x64xf32> -> vector<2x64xf32>
    %707 = arith.truncf %704 : vector<2x16xf32> to vector<2x16xbf16>
    %cst_206 = arith.constant dense<0.000000e+00> : vector<2x64xf32>
    %708 = tpu.matmul %707, %637, %cst_206 {dimension_numbers = #tpu.dot_dimension_numbers<[1], [0], [0], [1], [0, 0, 1, 1], [], []>} : vector<2x16xbf16>, vector<16x64xbf16>, vector<2x64xf32> -> vector<2x64xf32>
    %709 = arith.addf %706, %708 : vector<2x64xf32>
    %710 = arith.truncf %684 : vector<2x16xf32> to vector<2x16xbf16>
    %cst_207 = arith.constant dense<0.000000e+00> : vector<2x64xf32>
    %711 = tpu.matmul %710, %639, %cst_207 {dimension_numbers = #tpu.dot_dimension_numbers<[1], [0], [0], [1], [0, 0, 1, 1], [], []>} : vector<2x16xbf16>, vector<16x64xbf16>, vector<2x64xf32> -> vector<2x64xf32>
    %712 = arith.addf %709, %711 : vector<2x64xf32>
    %713 = vector.broadcast %642 : vector<1x64xf32> to vector<2x64xf32>
    %714 = arith.addf %712, %713 : vector<2x64xf32>
    %715 = vector.extract_strided_slice %714 {offsets = [0, 0], sizes = [2, 16], strides = [1, 1]} : vector<2x64xf32> to vector<2x16xf32>
    %716 = arith.negf %715 : vector<2x16xf32>
    %717 = math.exp %716 : vector<2x16xf32>
    %cst_208 = arith.constant 1.000000e+00 : f32
    %718 = vector.broadcast %cst_208 : f32 to vector<2x16xf32>
    %719 = arith.addf %718, %717 : vector<2x16xf32>
    %720 = arith.divf %718, %719 : vector<2x16xf32>
    %721 = vector.extract_strided_slice %714 {offsets = [0, 16], sizes = [2, 16], strides = [1, 1]} : vector<2x64xf32> to vector<2x16xf32>
    %722 = arith.negf %721 : vector<2x16xf32>
    %723 = math.exp %722 : vector<2x16xf32>
    %cst_209 = arith.constant 1.000000e+00 : f32
    %724 = vector.broadcast %cst_209 : f32 to vector<2x16xf32>
    %725 = arith.addf %724, %723 : vector<2x16xf32>
    %726 = arith.divf %724, %725 : vector<2x16xf32>
    %727 = vector.extract_strided_slice %714 {offsets = [0, 32], sizes = [2, 16], strides = [1, 1]} : vector<2x64xf32> to vector<2x16xf32>
    %728 = math.tanh %727 : vector<2x16xf32>
    %729 = vector.extract_strided_slice %714 {offsets = [0, 48], sizes = [2, 16], strides = [1, 1]} : vector<2x64xf32> to vector<2x16xf32>
    %730 = arith.negf %729 : vector<2x16xf32>
    %731 = math.exp %730 : vector<2x16xf32>
    %cst_210 = arith.constant 1.000000e+00 : f32
    %732 = vector.broadcast %cst_210 : f32 to vector<2x16xf32>
    %733 = arith.addf %732, %731 : vector<2x16xf32>
    %734 = arith.divf %732, %733 : vector<2x16xf32>
    %735 = arith.mulf %726, %682 : vector<2x16xf32>
    %736 = arith.mulf %720, %728 : vector<2x16xf32>
    %737 = arith.addf %735, %736 : vector<2x16xf32>
    %738 = math.tanh %737 : vector<2x16xf32>
    %739 = arith.mulf %734, %738 : vector<2x16xf32>
    %740 = arith.truncf %739 : vector<2x16xf32> to vector<2x16xbf16>
    %cst_211 = arith.constant dense<0.000000e+00> : vector<2x10xf32>
    %741 = tpu.matmul %740, %645, %cst_211 {dimension_numbers = #tpu.dot_dimension_numbers<[1], [1], [0], [0], [0, 0, 1, 0], [], []>} : vector<2x16xbf16>, vector<10x16xbf16>, vector<2x10xf32> -> vector<2x10xf32>
    %cst_212 = arith.constant -1.000000e+30 : f32
    %742 = vector.broadcast %cst_212 : f32 to vector<2x10xf32>
    %743 = arith.select %644, %741, %742 : vector<2x10xi1>, vector<2x10xf32>
    %cst_213 = arith.constant dense<0xFF800000> : vector<2xf32>
    %744 = vector.multi_reduction <maximumf>, %743, %cst_213 [1] : vector<2x10xf32> to vector<2xf32>
    %745 = vector.shape_cast %744 : vector<2xf32> to vector<2x1xf32>
    %746 = vector.broadcast %745 : vector<2x1xf32> to vector<2x10xf32>
    %747 = arith.subf %743, %746 : vector<2x10xf32>
    %748 = math.exp %747 : vector<2x10xf32>
    %cst_214 = arith.constant 0.000000e+00 : f32
    %749 = vector.broadcast %cst_214 : f32 to vector<2x10xf32>
    %750 = arith.select %644, %748, %749 : vector<2x10xi1>, vector<2x10xf32>
    %cst_215 = arith.constant dense<0.000000e+00> : vector<2xf32>
    %751 = vector.multi_reduction <add>, %750, %cst_215 [1] : vector<2x10xf32> to vector<2xf32>
    %752 = vector.shape_cast %751 : vector<2xf32> to vector<2x1xf32>
    %cst_216 = arith.constant 9.99999968E-21 : f32
    %753 = vector.broadcast %cst_216 : f32 to vector<2x1xf32>
    %754 = arith.maximumf %752, %753 : vector<2x1xf32>
    %755 = vector.broadcast %754 : vector<2x1xf32> to vector<2x10xf32>
    %756 = arith.divf %750, %755 : vector<2x10xf32>
    %757 = arith.truncf %756 : vector<2x10xf32> to vector<2x10xbf16>
    %758 = arith.truncf %632 : vector<10x16xf32> to vector<10x16xbf16>
    %cst_217 = arith.constant dense<0.000000e+00> : vector<2x16xf32>
    %759 = tpu.matmul %757, %758, %cst_217 {dimension_numbers = #tpu.dot_dimension_numbers<[1], [0], [0], [1], [0, 0, 1, 1], [], []>} : vector<2x10xbf16>, vector<10x16xbf16>, vector<2x16xf32> -> vector<2x16xf32>
    %c928 = arith.constant 928 : index
    %c0_218 = arith.constant 0 : index
    %760 = vector.load %arg5[%c928, %c0_218] : memref<1272x128xf32, #tpu.memory_space<vmem>>, vector<16x64xf32>
    %761 = arith.truncf %760 : vector<16x64xf32> to vector<16x64xbf16>
    %c944 = arith.constant 944 : index
    %c0_219 = arith.constant 0 : index
    %762 = vector.load %arg5[%c944, %c0_219] : memref<1272x128xf32, #tpu.memory_space<vmem>>, vector<16x64xf32>
    %763 = arith.truncf %762 : vector<16x64xf32> to vector<16x64xbf16>
    %c960 = arith.constant 960 : index
    %c0_220 = arith.constant 0 : index
    %764 = vector.load %arg5[%c960, %c0_220] : memref<1272x128xf32, #tpu.memory_space<vmem>>, vector<16x64xf32>
    %765 = arith.truncf %764 : vector<16x64xf32> to vector<16x64xbf16>
    %c976 = arith.constant 976 : index
    %c0_221 = arith.constant 0 : index
    %766 = vector.load %arg5[%c976, %c0_221] : memref<1272x128xf32, #tpu.memory_space<vmem>>, vector<1x64xf32>
    %c984 = arith.constant 984 : index
    %c0_222 = arith.constant 0 : index
    %767 = vector.load %arg5[%c984, %c0_222] : memref<1272x128xf32, #tpu.memory_space<vmem>>, vector<1x64xf32>
    %768 = arith.addf %766, %767 : vector<1x64xf32>
    %cst_223 = arith.constant 5.000000e-01 : f32
    %769 = vector.broadcast %cst_223 : f32 to vector<2x16xf32>
    %770 = arith.cmpf ogt, %7, %769 : vector<2x16xf32>
    %771 = arith.truncf %631 : vector<16x16xf32> to vector<16x16xbf16>
    %cst_224 = arith.constant 0.000000e+00 : f32
    %772 = vector.broadcast %cst_224 : f32 to vector<2x16xf32>
    %cst_225 = arith.constant 0.000000e+00 : f32
    %773 = vector.broadcast %cst_225 : f32 to vector<2x16xf32>
    %cst_226 = arith.constant 0.000000e+00 : f32
    %774 = vector.broadcast %cst_226 : f32 to vector<2x16xf32>
    %cst_227 = arith.constant 0.000000e+00 : f32
    %775 = vector.broadcast %cst_227 : f32 to vector<2x16xf32>
    %776 = arith.truncf %774 : vector<2x16xf32> to vector<2x16xbf16>
    %cst_228 = arith.constant dense<0.000000e+00> : vector<2x64xf32>
    %777 = tpu.matmul %776, %761, %cst_228 {dimension_numbers = #tpu.dot_dimension_numbers<[1], [0], [0], [1], [0, 0, 1, 1], [], []>} : vector<2x16xbf16>, vector<16x64xbf16>, vector<2x64xf32> -> vector<2x64xf32>
    %778 = arith.truncf %775 : vector<2x16xf32> to vector<2x16xbf16>
    %cst_229 = arith.constant dense<0.000000e+00> : vector<2x64xf32>
    %779 = tpu.matmul %778, %763, %cst_229 {dimension_numbers = #tpu.dot_dimension_numbers<[1], [0], [0], [1], [0, 0, 1, 1], [], []>} : vector<2x16xbf16>, vector<16x64xbf16>, vector<2x64xf32> -> vector<2x64xf32>
    %780 = arith.addf %777, %779 : vector<2x64xf32>
    %781 = arith.truncf %772 : vector<2x16xf32> to vector<2x16xbf16>
    %cst_230 = arith.constant dense<0.000000e+00> : vector<2x64xf32>
    %782 = tpu.matmul %781, %765, %cst_230 {dimension_numbers = #tpu.dot_dimension_numbers<[1], [0], [0], [1], [0, 0, 1, 1], [], []>} : vector<2x16xbf16>, vector<16x64xbf16>, vector<2x64xf32> -> vector<2x64xf32>
    %783 = arith.addf %780, %782 : vector<2x64xf32>
    %784 = vector.broadcast %768 : vector<1x64xf32> to vector<2x64xf32>
    %785 = arith.addf %783, %784 : vector<2x64xf32>
    %786 = vector.extract_strided_slice %785 {offsets = [0, 0], sizes = [2, 16], strides = [1, 1]} : vector<2x64xf32> to vector<2x16xf32>
    %787 = arith.negf %786 : vector<2x16xf32>
    %788 = math.exp %787 : vector<2x16xf32>
    %cst_231 = arith.constant 1.000000e+00 : f32
    %789 = vector.broadcast %cst_231 : f32 to vector<2x16xf32>
    %790 = arith.addf %789, %788 : vector<2x16xf32>
    %791 = arith.divf %789, %790 : vector<2x16xf32>
    %792 = vector.extract_strided_slice %785 {offsets = [0, 16], sizes = [2, 16], strides = [1, 1]} : vector<2x64xf32> to vector<2x16xf32>
    %793 = arith.negf %792 : vector<2x16xf32>
    %794 = math.exp %793 : vector<2x16xf32>
    %cst_232 = arith.constant 1.000000e+00 : f32
    %795 = vector.broadcast %cst_232 : f32 to vector<2x16xf32>
    %796 = arith.addf %795, %794 : vector<2x16xf32>
    %797 = arith.divf %795, %796 : vector<2x16xf32>
    %798 = vector.extract_strided_slice %785 {offsets = [0, 32], sizes = [2, 16], strides = [1, 1]} : vector<2x64xf32> to vector<2x16xf32>
    %799 = math.tanh %798 : vector<2x16xf32>
    %800 = vector.extract_strided_slice %785 {offsets = [0, 48], sizes = [2, 16], strides = [1, 1]} : vector<2x64xf32> to vector<2x16xf32>
    %801 = arith.negf %800 : vector<2x16xf32>
    %802 = math.exp %801 : vector<2x16xf32>
    %cst_233 = arith.constant 1.000000e+00 : f32
    %803 = vector.broadcast %cst_233 : f32 to vector<2x16xf32>
    %804 = arith.addf %803, %802 : vector<2x16xf32>
    %805 = arith.divf %803, %804 : vector<2x16xf32>
    %806 = arith.mulf %797, %773 : vector<2x16xf32>
    %807 = arith.mulf %791, %799 : vector<2x16xf32>
    %808 = arith.addf %806, %807 : vector<2x16xf32>
    %809 = math.tanh %808 : vector<2x16xf32>
    %810 = arith.mulf %805, %809 : vector<2x16xf32>
    %811 = arith.truncf %810 : vector<2x16xf32> to vector<2x16xbf16>
    %cst_234 = arith.constant dense<0.000000e+00> : vector<2x16xf32>
    %812 = tpu.matmul %811, %771, %cst_234 {dimension_numbers = #tpu.dot_dimension_numbers<[1], [1], [0], [0], [0, 0, 1, 0], [], []>} : vector<2x16xbf16>, vector<16x16xbf16>, vector<2x16xf32> -> vector<2x16xf32>
    %cst_235 = arith.constant -1.000000e+30 : f32
    %813 = vector.broadcast %cst_235 : f32 to vector<2x16xf32>
    %814 = arith.select %770, %812, %813 : vector<2x16xi1>, vector<2x16xf32>
    %cst_236 = arith.constant dense<0xFF800000> : vector<2xf32>
    %815 = vector.multi_reduction <maximumf>, %814, %cst_236 [1] : vector<2x16xf32> to vector<2xf32>
    %816 = vector.shape_cast %815 : vector<2xf32> to vector<2x1xf32>
    %817 = vector.broadcast %816 : vector<2x1xf32> to vector<2x16xf32>
    %818 = arith.subf %814, %817 : vector<2x16xf32>
    %819 = math.exp %818 : vector<2x16xf32>
    %cst_237 = arith.constant 0.000000e+00 : f32
    %820 = vector.broadcast %cst_237 : f32 to vector<2x16xf32>
    %821 = arith.select %770, %819, %820 : vector<2x16xi1>, vector<2x16xf32>
    %cst_238 = arith.constant dense<0.000000e+00> : vector<2xf32>
    %822 = vector.multi_reduction <add>, %821, %cst_238 [1] : vector<2x16xf32> to vector<2xf32>
    %823 = vector.shape_cast %822 : vector<2xf32> to vector<2x1xf32>
    %cst_239 = arith.constant 9.99999968E-21 : f32
    %824 = vector.broadcast %cst_239 : f32 to vector<2x1xf32>
    %825 = arith.maximumf %823, %824 : vector<2x1xf32>
    %826 = vector.broadcast %825 : vector<2x1xf32> to vector<2x16xf32>
    %827 = arith.divf %821, %826 : vector<2x16xf32>
    %828 = arith.truncf %827 : vector<2x16xf32> to vector<2x16xbf16>
    %829 = arith.truncf %631 : vector<16x16xf32> to vector<16x16xbf16>
    %cst_240 = arith.constant dense<0.000000e+00> : vector<2x16xf32>
    %830 = tpu.matmul %828, %829, %cst_240 {dimension_numbers = #tpu.dot_dimension_numbers<[1], [0], [0], [1], [0, 0, 1, 1], [], []>} : vector<2x16xbf16>, vector<16x16xbf16>, vector<2x16xf32> -> vector<2x16xf32>
    %831 = arith.truncf %810 : vector<2x16xf32> to vector<2x16xbf16>
    %cst_241 = arith.constant dense<0.000000e+00> : vector<2x64xf32>
    %832 = tpu.matmul %831, %761, %cst_241 {dimension_numbers = #tpu.dot_dimension_numbers<[1], [0], [0], [1], [0, 0, 1, 1], [], []>} : vector<2x16xbf16>, vector<16x64xbf16>, vector<2x64xf32> -> vector<2x64xf32>
    %833 = arith.truncf %830 : vector<2x16xf32> to vector<2x16xbf16>
    %cst_242 = arith.constant dense<0.000000e+00> : vector<2x64xf32>
    %834 = tpu.matmul %833, %763, %cst_242 {dimension_numbers = #tpu.dot_dimension_numbers<[1], [0], [0], [1], [0, 0, 1, 1], [], []>} : vector<2x16xbf16>, vector<16x64xbf16>, vector<2x64xf32> -> vector<2x64xf32>
    %835 = arith.addf %832, %834 : vector<2x64xf32>
    %836 = arith.truncf %810 : vector<2x16xf32> to vector<2x16xbf16>
    %cst_243 = arith.constant dense<0.000000e+00> : vector<2x64xf32>
    %837 = tpu.matmul %836, %765, %cst_243 {dimension_numbers = #tpu.dot_dimension_numbers<[1], [0], [0], [1], [0, 0, 1, 1], [], []>} : vector<2x16xbf16>, vector<16x64xbf16>, vector<2x64xf32> -> vector<2x64xf32>
    %838 = arith.addf %835, %837 : vector<2x64xf32>
    %839 = vector.broadcast %768 : vector<1x64xf32> to vector<2x64xf32>
    %840 = arith.addf %838, %839 : vector<2x64xf32>
    %841 = vector.extract_strided_slice %840 {offsets = [0, 0], sizes = [2, 16], strides = [1, 1]} : vector<2x64xf32> to vector<2x16xf32>
    %842 = arith.negf %841 : vector<2x16xf32>
    %843 = math.exp %842 : vector<2x16xf32>
    %cst_244 = arith.constant 1.000000e+00 : f32
    %844 = vector.broadcast %cst_244 : f32 to vector<2x16xf32>
    %845 = arith.addf %844, %843 : vector<2x16xf32>
    %846 = arith.divf %844, %845 : vector<2x16xf32>
    %847 = vector.extract_strided_slice %840 {offsets = [0, 16], sizes = [2, 16], strides = [1, 1]} : vector<2x64xf32> to vector<2x16xf32>
    %848 = arith.negf %847 : vector<2x16xf32>
    %849 = math.exp %848 : vector<2x16xf32>
    %cst_245 = arith.constant 1.000000e+00 : f32
    %850 = vector.broadcast %cst_245 : f32 to vector<2x16xf32>
    %851 = arith.addf %850, %849 : vector<2x16xf32>
    %852 = arith.divf %850, %851 : vector<2x16xf32>
    %853 = vector.extract_strided_slice %840 {offsets = [0, 32], sizes = [2, 16], strides = [1, 1]} : vector<2x64xf32> to vector<2x16xf32>
    %854 = math.tanh %853 : vector<2x16xf32>
    %855 = vector.extract_strided_slice %840 {offsets = [0, 48], sizes = [2, 16], strides = [1, 1]} : vector<2x64xf32> to vector<2x16xf32>
    %856 = arith.negf %855 : vector<2x16xf32>
    %857 = math.exp %856 : vector<2x16xf32>
    %cst_246 = arith.constant 1.000000e+00 : f32
    %858 = vector.broadcast %cst_246 : f32 to vector<2x16xf32>
    %859 = arith.addf %858, %857 : vector<2x16xf32>
    %860 = arith.divf %858, %859 : vector<2x16xf32>
    %861 = arith.mulf %852, %808 : vector<2x16xf32>
    %862 = arith.mulf %846, %854 : vector<2x16xf32>
    %863 = arith.addf %861, %862 : vector<2x16xf32>
    %864 = math.tanh %863 : vector<2x16xf32>
    %865 = arith.mulf %860, %864 : vector<2x16xf32>
    %866 = arith.truncf %865 : vector<2x16xf32> to vector<2x16xbf16>
    %cst_247 = arith.constant dense<0.000000e+00> : vector<2x16xf32>
    %867 = tpu.matmul %866, %771, %cst_247 {dimension_numbers = #tpu.dot_dimension_numbers<[1], [1], [0], [0], [0, 0, 1, 0], [], []>} : vector<2x16xbf16>, vector<16x16xbf16>, vector<2x16xf32> -> vector<2x16xf32>
    %cst_248 = arith.constant -1.000000e+30 : f32
    %868 = vector.broadcast %cst_248 : f32 to vector<2x16xf32>
    %869 = arith.select %770, %867, %868 : vector<2x16xi1>, vector<2x16xf32>
    %cst_249 = arith.constant dense<0xFF800000> : vector<2xf32>
    %870 = vector.multi_reduction <maximumf>, %869, %cst_249 [1] : vector<2x16xf32> to vector<2xf32>
    %871 = vector.shape_cast %870 : vector<2xf32> to vector<2x1xf32>
    %872 = vector.broadcast %871 : vector<2x1xf32> to vector<2x16xf32>
    %873 = arith.subf %869, %872 : vector<2x16xf32>
    %874 = math.exp %873 : vector<2x16xf32>
    %cst_250 = arith.constant 0.000000e+00 : f32
    %875 = vector.broadcast %cst_250 : f32 to vector<2x16xf32>
    %876 = arith.select %770, %874, %875 : vector<2x16xi1>, vector<2x16xf32>
    %cst_251 = arith.constant dense<0.000000e+00> : vector<2xf32>
    %877 = vector.multi_reduction <add>, %876, %cst_251 [1] : vector<2x16xf32> to vector<2xf32>
    %878 = vector.shape_cast %877 : vector<2xf32> to vector<2x1xf32>
    %cst_252 = arith.constant 9.99999968E-21 : f32
    %879 = vector.broadcast %cst_252 : f32 to vector<2x1xf32>
    %880 = arith.maximumf %878, %879 : vector<2x1xf32>
    %881 = vector.broadcast %880 : vector<2x1xf32> to vector<2x16xf32>
    %882 = arith.divf %876, %881 : vector<2x16xf32>
    %883 = arith.truncf %882 : vector<2x16xf32> to vector<2x16xbf16>
    %884 = arith.truncf %631 : vector<16x16xf32> to vector<16x16xbf16>
    %cst_253 = arith.constant dense<0.000000e+00> : vector<2x16xf32>
    %885 = tpu.matmul %883, %884, %cst_253 {dimension_numbers = #tpu.dot_dimension_numbers<[1], [0], [0], [1], [0, 0, 1, 1], [], []>} : vector<2x16xbf16>, vector<16x16xbf16>, vector<2x16xf32> -> vector<2x16xf32>
    %c1200 = arith.constant 1200 : index
    %c0_254 = arith.constant 0 : index
    %886 = vector.load %arg5[%c1200, %c0_254] : memref<1272x128xf32, #tpu.memory_space<vmem>>, vector<1x32xf32>
    %c1120 = arith.constant 1120 : index
    %c0_255 = arith.constant 0 : index
    %887 = vector.load %arg5[%c1120, %c0_255] : memref<1272x128xf32, #tpu.memory_space<vmem>>, vector<16x32xf32>
    %888 = arith.truncf %739 : vector<2x16xf32> to vector<2x16xbf16>
    %889 = arith.truncf %887 : vector<16x32xf32> to vector<16x32xbf16>
    %cst_256 = arith.constant dense<0.000000e+00> : vector<2x32xf32>
    %890 = tpu.matmul %888, %889, %cst_256 {dimension_numbers = #tpu.dot_dimension_numbers<[1], [0], [0], [1], [0, 0, 1, 1], [], []>} : vector<2x16xbf16>, vector<16x32xbf16>, vector<2x32xf32> -> vector<2x32xf32>
    %891 = vector.broadcast %886 : vector<1x32xf32> to vector<2x32xf32>
    %892 = arith.addf %891, %890 : vector<2x32xf32>
    %c1136 = arith.constant 1136 : index
    %c0_257 = arith.constant 0 : index
    %893 = vector.load %arg5[%c1136, %c0_257] : memref<1272x128xf32, #tpu.memory_space<vmem>>, vector<16x32xf32>
    %894 = arith.truncf %759 : vector<2x16xf32> to vector<2x16xbf16>
    %895 = arith.truncf %893 : vector<16x32xf32> to vector<16x32xbf16>
    %cst_258 = arith.constant dense<0.000000e+00> : vector<2x32xf32>
    %896 = tpu.matmul %894, %895, %cst_258 {dimension_numbers = #tpu.dot_dimension_numbers<[1], [0], [0], [1], [0, 0, 1, 1], [], []>} : vector<2x16xbf16>, vector<16x32xbf16>, vector<2x32xf32> -> vector<2x32xf32>
    %897 = arith.addf %892, %896 : vector<2x32xf32>
    %c1152 = arith.constant 1152 : index
    %c0_259 = arith.constant 0 : index
    %898 = vector.load %arg5[%c1152, %c0_259] : memref<1272x128xf32, #tpu.memory_space<vmem>>, vector<16x32xf32>
    %899 = arith.truncf %865 : vector<2x16xf32> to vector<2x16xbf16>
    %900 = arith.truncf %898 : vector<16x32xf32> to vector<16x32xbf16>
    %cst_260 = arith.constant dense<0.000000e+00> : vector<2x32xf32>
    %901 = tpu.matmul %899, %900, %cst_260 {dimension_numbers = #tpu.dot_dimension_numbers<[1], [0], [0], [1], [0, 0, 1, 1], [], []>} : vector<2x16xbf16>, vector<16x32xbf16>, vector<2x32xf32> -> vector<2x32xf32>
    %902 = arith.addf %897, %901 : vector<2x32xf32>
    %c1168 = arith.constant 1168 : index
    %c0_261 = arith.constant 0 : index
    %903 = vector.load %arg5[%c1168, %c0_261] : memref<1272x128xf32, #tpu.memory_space<vmem>>, vector<16x32xf32>
    %904 = arith.truncf %885 : vector<2x16xf32> to vector<2x16xbf16>
    %905 = arith.truncf %903 : vector<16x32xf32> to vector<16x32xbf16>
    %cst_262 = arith.constant dense<0.000000e+00> : vector<2x32xf32>
    %906 = tpu.matmul %904, %905, %cst_262 {dimension_numbers = #tpu.dot_dimension_numbers<[1], [0], [0], [1], [0, 0, 1, 1], [], []>} : vector<2x16xbf16>, vector<16x32xbf16>, vector<2x32xf32> -> vector<2x32xf32>
    %907 = arith.addf %902, %906 : vector<2x32xf32>
    %c1184 = arith.constant 1184 : index
    %c0_263 = arith.constant 0 : index
    %908 = vector.load %arg5[%c1184, %c0_263] : memref<1272x128xf32, #tpu.memory_space<vmem>>, vector<16x32xf32>
    %909 = arith.truncf %633 : vector<2x16xf32> to vector<2x16xbf16>
    %910 = arith.truncf %908 : vector<16x32xf32> to vector<16x32xbf16>
    %cst_264 = arith.constant dense<0.000000e+00> : vector<2x32xf32>
    %911 = tpu.matmul %909, %910, %cst_264 {dimension_numbers = #tpu.dot_dimension_numbers<[1], [0], [0], [1], [0, 0, 1, 1], [], []>} : vector<2x16xbf16>, vector<16x32xbf16>, vector<2x32xf32> -> vector<2x32xf32>
    %912 = arith.addf %907, %911 : vector<2x32xf32>
    %cst_265 = arith.constant 0.000000e+00 : f32
    %913 = vector.broadcast %cst_265 : f32 to vector<2x32xf32>
    %914 = arith.maximumf %912, %913 : vector<2x32xf32>
    %915 = vector.broadcast %cst_265 : f32 to vector<2x32xf32>
    %916 = arith.subf %912, %915 : vector<2x32xf32>
    %917 = arith.cmpf one, %916, %916 : vector<2x32xf32>
    %918 = vector.broadcast %cst_265 : f32 to vector<2x32xf32>
    %919 = arith.addf %912, %918 : vector<2x32xf32>
    %920 = math.absf %916 : vector<2x32xf32>
    %cst_266 = arith.constant 0.000000e+00 : f32
    %921 = vector.broadcast %cst_266 : f32 to vector<2x32xf32>
    %922 = arith.subf %921, %920 : vector<2x32xf32>
    %923 = math.exp %922 : vector<2x32xf32>
    %924 = math.log1p %923 : vector<2x32xf32>
    %925 = arith.addf %914, %924 : vector<2x32xf32>
    %926 = arith.select %917, %919, %925 : vector<2x32xi1>, vector<2x32xf32>
    %c1208 = arith.constant 1208 : index
    %c0_267 = arith.constant 0 : index
    %927 = vector.load %arg5[%c1208, %c0_267] : memref<1272x128xf32, #tpu.memory_space<vmem>>, vector<32x16xf32>
    %928 = arith.truncf %926 : vector<2x32xf32> to vector<2x32xbf16>
    %929 = arith.truncf %927 : vector<32x16xf32> to vector<32x16xbf16>
    %cst_268 = arith.constant dense<0.000000e+00> : vector<2x16xf32>
    %930 = tpu.matmul %928, %929, %cst_268 {dimension_numbers = #tpu.dot_dimension_numbers<[1], [0], [0], [1], [0, 0, 1, 1], [], []>} : vector<2x32xbf16>, vector<32x16xbf16>, vector<2x16xf32> -> vector<2x16xf32>
    %c1240 = arith.constant 1240 : index
    %c0_269 = arith.constant 0 : index
    %931 = vector.load %arg5[%c1240, %c0_269] : memref<1272x128xf32, #tpu.memory_space<vmem>>, vector<1x16xf32>
    %932 = vector.broadcast %931 : vector<1x16xf32> to vector<2x16xf32>
    %933 = arith.addf %930, %932 : vector<2x16xf32>
    %cst_270 = arith.constant 0.000000e+00 : f32
    %934 = vector.broadcast %cst_270 : f32 to vector<2x16xf32>
    %935 = arith.maximumf %933, %934 : vector<2x16xf32>
    %936 = vector.broadcast %cst_270 : f32 to vector<2x16xf32>
    %937 = arith.subf %933, %936 : vector<2x16xf32>
    %938 = arith.cmpf one, %937, %937 : vector<2x16xf32>
    %939 = vector.broadcast %cst_270 : f32 to vector<2x16xf32>
    %940 = arith.addf %933, %939 : vector<2x16xf32>
    %941 = math.absf %937 : vector<2x16xf32>
    %cst_271 = arith.constant 0.000000e+00 : f32
    %942 = vector.broadcast %cst_271 : f32 to vector<2x16xf32>
    %943 = arith.subf %942, %941 : vector<2x16xf32>
    %944 = math.exp %943 : vector<2x16xf32>
    %945 = math.log1p %944 : vector<2x16xf32>
    %946 = arith.addf %935, %945 : vector<2x16xf32>
    %947 = arith.select %938, %940, %946 : vector<2x16xi1>, vector<2x16xf32>
    %c1248 = arith.constant 1248 : index
    %c0_272 = arith.constant 0 : index
    %948 = vector.load %arg5[%c1248, %c0_272] : memref<1272x128xf32, #tpu.memory_space<vmem>>, vector<16x1xf32>
    %949 = arith.truncf %947 : vector<2x16xf32> to vector<2x16xbf16>
    %950 = arith.truncf %948 : vector<16x1xf32> to vector<16x1xbf16>
    %cst_273 = arith.constant dense<0.000000e+00> : vector<2x1xf32>
    %951 = tpu.matmul %949, %950, %cst_273 {dimension_numbers = #tpu.dot_dimension_numbers<[1], [0], [0], [1], [0, 0, 1, 1], [], []>} : vector<2x16xbf16>, vector<16x1xbf16>, vector<2x1xf32> -> vector<2x1xf32>
    %c1264 = arith.constant 1264 : index
    %c0_274 = arith.constant 0 : index
    %952 = vector.load %arg5[%c1264, %c0_274] : memref<1272x128xf32, #tpu.memory_space<vmem>>, vector<1x1xf32>
    %953 = vector.broadcast %952 : vector<1x1xf32> to vector<2x1xf32>
    %954 = arith.addf %951, %953 : vector<2x1xf32>
    %955 = arith.negf %954 : vector<2x1xf32>
    %956 = math.exp %955 : vector<2x1xf32>
    %cst_275 = arith.constant 1.000000e+00 : f32
    %957 = vector.broadcast %cst_275 : f32 to vector<2x1xf32>
    %958 = arith.addf %957, %956 : vector<2x1xf32>
    %959 = arith.divf %957, %958 : vector<2x1xf32>
    %c0_276 = arith.constant 0 : index
    %c0_277 = arith.constant 0 : index
    %960 = vector.load %arg6[%c0_276, %c0_277] : memref<2x1xf32, #tpu.memory_space<vmem>>, vector<2x1xf32>
    tpu.vector_store %arg6[%c0_276, %c0_277], %959 {strides = array<i32>} : memref<2x1xf32, #tpu.memory_space<vmem>>, vector<2x1xf32>,
    return
  }
  func.func @transform_0(%arg0: i32) -> (i32, i32) {
    %c0_i32 = arith.constant 0 : i32
    %c0_i32_0 = arith.constant 0 : i32
    %c0_i32_1 = arith.constant 0 : i32
    return %c0_i32, %c0_i32_0 : i32, i32
  }
  func.func @transform_1(%arg0: i32) -> (i32, i32) {
    %c0_i32 = arith.constant 0 : i32
    %c0_i32_0 = arith.constant 0 : i32
    %c0_i32_1 = arith.constant 0 : i32
    return %c0_i32, %c0_i32_0 : i32, i32
  }
  func.func @transform_2(%arg0: i32) -> (i32, i32) {
    %c0_i32 = arith.constant 0 : i32
    %c0_i32_0 = arith.constant 0 : i32
    %c0_i32_1 = arith.constant 0 : i32
    return %c0_i32, %c0_i32_0 : i32, i32
  }
  func.func @transform_3(%arg0: i32) -> (i32, i32) {
    %c0_i32 = arith.constant 0 : i32
    %c0_i32_0 = arith.constant 0 : i32
    %c0_i32_1 = arith.constant 0 : i32
    return %c0_i32, %c0_i32_0 : i32, i32
  }
  func.func @transform_4(%arg0: i32) -> (i32, i32) {
    %c0_i32 = arith.constant 0 : i32
    %c0_i32_0 = arith.constant 0 : i32
    %c0_i32_1 = arith.constant 0 : i32
    return %c0_i32, %c0_i32_0 : i32, i32
  }
  func.func @transform_5(%arg0: i32) -> (i32, i32) {
    %c0_i32 = arith.constant 0 : i32
    %c0_i32_0 = arith.constant 0 : i32
    %c0_i32_1 = arith.constant 0 : i32
    return %c0_i32, %c0_i32_0 : i32, i32
  }
}

</mosaic_0001>

<llo_original>
// kernel: forward.1
$region0: #{forward.1}
  #allocation0 [shape = 'u32[]', space=smem, size = 0x4, offset = 0x4, fixed_abs, tag = 'smem constant byte address 0x4 - core index']
  #allocation1 [shape = 'u32[144,128]{1,0:T(1,128)}', space=vmem, size = 0x12000, scoped, tag = 'internal scratch']
  %s0 = inlined_call_operand.hbm [shape: f32[16,16], index: 0, kind: input, shape index: {}]
  %s1 = inlined_call_operand.hbm [shape: f32[10,16], index: 1, kind: input, shape index: {}]
  %s2 = inlined_call_operand.vmem [shape: f32[2,16], index: 2, kind: input, shape index: {}]
  %s3 = inlined_call_operand.hbm [shape: f32[112,128], index: 3, kind: input, shape index: {}]
  %s4 = inlined_call_operand.hbm [shape: f32[1272,128], index: 4, kind: input, shape index: {}]
  %s5 = inlined_call_operand.vmem [shape: f32[2,1], index: 5, kind: output, shape index: {}]
  %s6 = sld [smem:[#allocation0]]
  $region46: #{forward.1} parent=0
    _
  %s8 = ssub.s32 1, %s6
  %s9 = scalar_select 0, %s8, %s6
  $region1: #{forward.1} parent=0
    #allocation2 [shape = 'u8[8192]{0}', space=vmem, size = 0x2000, scoped, tag = 'input window, operand 0, single buffered']
    #allocation3 [shape = 's32[1]{0}', space=sflag, size = 0x4, scoped, tag = 'scoped memory for forward.1']
    #allocation4 [shape = 'u8[8192]{0}', space=vmem, size = 0x2000, scoped, tag = 'input window, operand 1, single buffered']
    #allocation5 [shape = 's32[1]{0}', space=sflag, size = 0x4, scoped, tag = 'scoped memory for forward.1']
    #allocation6 [shape = 'u8[57344]{0}', space=vmem, size = 0xe000, scoped, tag = 'input window, operand 3, single buffered']
    #allocation7 [shape = 'u8[651264]{0}', space=vmem, size = 0x9f000, scoped, tag = 'input window, operand 4, single buffered']
    #allocation8 [shape = 's32[1]{0}', space=sflag, size = 0x4, scoped, tag = 'scoped memory for forward.1']
    %10 = vsyncpa [#allocation3], 0
    %11 = vsyncpa [#allocation5], 0
    %12 = vsyncpa [#allocation8], 0
    // Predicated region
    $region2: #{forward.1} parent=1 // pred_check
      _
    $region3: #{forward.1} parent=1 // pred_check_branch
      %14 = sbr.rel (0) target = $region5
    $region4: #{forward.1} parent=1 // pred_region
      %s16 = ssub.s32 256, 256
      %17 = vsyncadd [#allocation3], %s16
      %s18 = sshll.u32 [#allocation2], 4
      %s19 = int_to_ptr.vmem [resolvable:$true] %s18
      %24 = dma.hbm_to_vmem [thread:$0]  %s0, 256, %s19, [#allocation3], 128, 128, 8
    $region5: #{forward.1} parent=1 // pred_fallthru
      _
    // Predicated region
    $region6: #{forward.1} parent=1 // pred_check
      _
    $region7: #{forward.1} parent=1 // pred_check_branch
      %26 = sbr.rel (0) target = $region9
    $region8: #{forward.1} parent=1 // pred_region
      %s28 = ssub.s32 256, 256
      %29 = vsyncadd [#allocation5], %s28
      %s30 = sshll.u32 [#allocation4], 4
      %s31 = int_to_ptr.vmem [resolvable:$true] %s30
      %36 = dma.hbm_to_vmem [thread:$0]  %s1, 256, %s31, [#allocation5], 128, 128, 8
    $region9: #{forward.1} parent=1 // pred_fallthru
      _
    // Predicated region
    $region10: #{forward.1} parent=1 // pred_check
      _
    $region11: #{forward.1} parent=1 // pred_check_branch
      %38 = sbr.rel (0) target = $region13
    $region12: #{forward.1} parent=1 // pred_region
      _
    $region13: #{forward.1} parent=1 // pred_fallthru
      _
    // Predicated region
    $region14: #{forward.1} parent=1 // pred_check
      _
    $region15: #{forward.1} parent=1 // pred_check_branch
      %40 = sbr.rel (0) target = $region17
    $region16: #{forward.1} parent=1 // pred_region
      %s42 = ssub.s32 1792, 1792
      %43 = vsyncadd [#allocation5], %s42
      %s44 = sshll.u32 [#allocation6], 4
      %s45 = int_to_ptr.vmem [resolvable:$true] %s44
      %50 = dma.hbm_to_vmem [thread:$0]  %s3, 1792, %s45, [#allocation5], 128, 128, 8
    $region17: #{forward.1} parent=1 // pred_fallthru
      _
    // Predicated region
    $region18: #{forward.1} parent=1 // pred_check
      _
    $region19: #{forward.1} parent=1 // pred_check_branch
      %52 = sbr.rel (0) target = $region21
    $region20: #{forward.1} parent=1 // pred_region
      %s54 = ssub.s32 20352, 20352
      %55 = vsyncadd [#allocation8], %s54
      %s56 = sshll.u32 [#allocation7], 4
      %s57 = int_to_ptr.vmem [resolvable:$true] %s56
      %62 = dma.hbm_to_vmem [thread:$0]  %s4, 20352, %s57, [#allocation8], 128, 128, 8
    $region21: #{forward.1} parent=1 // pred_fallthru
      _
    // Predicated region
    $region22: #{forward.1} parent=1 // pred_check
      _
    $region23: #{forward.1} parent=1 // pred_check_branch
      %64 = sbr.rel (0) target = $region25
    $region24: #{forward.1} parent=1 // pred_region
      %65 = dma.done [#allocation3], 256
    $region25: #{forward.1} parent=1 // pred_fallthru
      _
    // Predicated region
    $region26: #{forward.1} parent=1 // pred_check
      _
    $region27: #{forward.1} parent=1 // pred_check_branch
      %67 = sbr.rel (0) target = $region29
    $region28: #{forward.1} parent=1 // pred_region
      %68 = dma.done [#allocation5], 256
    $region29: #{forward.1} parent=1 // pred_fallthru
      _
    // Predicated region
    $region30: #{forward.1} parent=1 // pred_check
      _
    $region31: #{forward.1} parent=1 // pred_check_branch
      %70 = sbr.rel (0) target = $region33
    $region32: #{forward.1} parent=1 // pred_region
      %71 = dma.done [#allocation5], 1792
    $region33: #{forward.1} parent=1 // pred_fallthru
      _
    // Predicated region
    $region34: #{forward.1} parent=1 // pred_check
      _
    $region35: #{forward.1} parent=1 // pred_check_branch
      %73 = sbr.rel (0) target = $region37
    $region36: #{forward.1} parent=1 // pred_region
      %74 = dma.done [#allocation8], 20352
    $region37: #{forward.1} parent=1 // pred_fallthru
      _
    %v76 = vld [vmem:[#allocation6 + $0x60] sm:$0xff]
    %v77 = vld [vmem:[#allocation6 + $0x68] sm:$0xff]
    %v78 = vld [vmem:[#allocation6] sm:$0xff]
    %v79 = vld [vmem:[#allocation6 + $0x8] sm:$0xff]
    %v80 = vld [vmem:[#allocation6 + $0x10] sm:$0xff]
    %v81 = vld [vmem:[#allocation6 + $0x18] sm:$0x3]
    %v82 = vld [vmem:[#allocation6 + $0x20] sm:$0xff]
    %v83 = vld [vmem:[#allocation6 + $0x28] sm:$0xff]
    %v84 = vld [vmem:[#allocation6 + $0x50] sm:$0xff]
    %v85 = vld [vmem:[#allocation6 + $0x58] sm:$0x3]
    %v86 = vld [vmem:[#allocation6 + $0x38] sm:$0x3]
    %v87 = vld [vmem:[#allocation6 + $0x48] sm:$0x3]
    %v88 = vld [vmem:[#allocation6 + $0x30] sm:$0x3]
    %v89 = vld [vmem:[#allocation6 + $0x40] sm:$0x3]
    %v90 = vld [vmem:[#allocation2] sm:$0xff]
    %v91 = vld [vmem:[#allocation2 + $0x8] sm:$0xff]
    %v92 = vld [vmem:[#allocation7 + $0x360] sm:$0xff]
    %v93 = vld [vmem:[#allocation7 + $0x368] sm:$0xff]
    %v94 = vpack.c.bf16 %v91, %v90
    %v95 = vpack.c.bf16 %v93, %v92
    %v96 = vld [vmem:[#allocation7 + $0x370] sm:$0x1]
    %v97 = vlaneseq
    %v98 = vshrl.u32 %v97, 7
    %v99 = vsub.s32 0, %v98
    %v100 = vrot.slane %v96, %v99
    %vm101 = vcmask 130048
    %v103 = vsel %vm101, %v94, 0
    %105 = vmatprep.subr.bf16.mxu0 0
    %106 = vmatpush1.bf16.msra.mxu0 %v95
    %107 = vmatprep.subr.bf16.mxu0 0
    %108 = vmatpush1.bf16.msra.mxu0 0
    %109 = vmatprep.subr.bf16.mxu0 0
    %110 = vmatpush1.bf16.msra.mxu0 0
    %111 = vmatprep.subr.bf16.mxu0 0
    %112 = vmatpush1.bf16.msra.mxu0 0
    %113 = vmatprep.subr.bf16.mxu0 0
    %114 = vmatpush1.bf16.msra.mxu0 0
    %115 = vmatprep.subr.bf16.mxu0 0
    %116 = vmatpush1.bf16.msra.mxu0 0
    %117 = vmatprep.subr.bf16.mxu0 0
    %118 = vmatpush1.bf16.msra.mxu0 0
    %119 = vmatprep.subr.bf16.mxu0 0
    %120 = vmatpush1.bf16.msra.mxu0 0
    %121 = vmatprep.subr.bf16.mxu0 0
    %122 = vmatpush1.bf16.msra.mxu0 0
    %123 = vmatprep.subr.bf16.mxu0 0
    %124 = vmatpush1.bf16.msra.mxu0 0
    %125 = vmatprep.subr.bf16.mxu0 0
    %126 = vmatpush1.bf16.msra.mxu0 0
    %127 = vmatprep.subr.bf16.mxu0 0
    %128 = vmatpush1.bf16.msra.mxu0 0
    %129 = vmatprep.subr.bf16.mxu0 0
    %130 = vmatpush1.bf16.msra.mxu0 0
    %131 = vmatprep.subr.bf16.mxu0 0
    %132 = vmatpush1.bf16.msra.mxu0 0
    %133 = vmatprep.subr.bf16.mxu0 0
    %134 = vmatpush1.bf16.msra.mxu0 0
    %135 = vmatprep.subr.bf16.mxu0 0
    %136 = vmatpush1.bf16.msra.mxu0 0
    %137 = vmatprep.mubr.bf16.mxu0 0
    %138 = vmatmul.mubr.bf16.gmra.mrb[0].mxu0 %v103
    %v139 = vpop.f32.mrb[0].mxu0
    %v140 = vadd.f32 %v100, %v139
    %v141 = vpop.f32.mrb[0].mxu0
    %v142 = vpop.f32.mrb[0].mxu0
    %v143 = vadd.f32 %v100, %v142
    %v144 = vpop.f32.mrb[0].mxu0
    %145 = vdwg.mxu0
    %v146 = vmax.f32 %v140, 0.0
    %v147 = vmax.f32 %v143, 0.0
    %vm148 = vcmp.ne.f32.partialorder %v140, %v140
    %vm149 = vcmp.ne.f32.partialorder %v143, %v143
    %v150 = vadd.f32 %v140, 0.0
    %v151 = vadd.f32 %v143, 0.0
    %v152 = vand.u32 2147483647, %v140
    %v153 = vand.u32 2147483647, %v143
    %v154 = vsub.f32 0.0, %v152
    %v155 = vsub.f32 0.0, %v153
    %v156 = vmul.f32 %v154, 1.442695
    %v157 = vpow.pop %v156
    %v158 = vmul.f32 %v155, 1.442695
    %v159 = vpow.pop %v158
    %v160 = vadd.f32 %v157, 1.0
    %v161 = vlog2.pop %v160
    %v162 = vmul.f32 %v161, 0.6931472
    %v163 = vmul.f32 -0.5, %v157
    %v164 = vadd.f32 %v163, 1.0
    %v165 = vmul.f32 %v164, %v157
    %v166 = vand.u32 2147483647, %v157
    %vm167 = vcmp.lt.f32.partialorder %v166, 0.0004427343
    %v168 = vsel %vm167, %v165, %v162
    %v169 = vadd.f32 %v159, 1.0
    %v170 = vlog2.pop %v169
    %v171 = vmul.f32 %v170, 0.6931472
    %v172 = vmul.f32 -0.5, %v159
    %v173 = vadd.f32 %v172, 1.0
    %v174 = vmul.f32 %v173, %v159
    %v175 = vand.u32 2147483647, %v159
    %vm176 = vcmp.lt.f32.partialorder %v175, 0.0004427343
    %v177 = vsel %vm176, %v174, %v171
    %v178 = vadd.f32 %v146, %v168
    %v179 = vadd.f32 %v147, %v177
    %v180 = vsel %vm148, %v150, %v178
    %v181 = vsel %vm149, %v151, %v179
    %v182 = vld [vmem:[#allocation7 + $0x378] sm:$0xff]
    %v183 = vld [vmem:[#allocation7 + $0x380] sm:$0xff]
    %v184 = vld [vmem:[#allocation7 + $0x388] sm:$0xff]
    %v185 = vld [vmem:[#allocation7 + $0x390] sm:$0xff]
    %v186 = vpack.c.bf16 %v181, %v180
    %v187 = vpack.c.bf16 %v183, %v182
    %v188 = vpack.c.bf16 %v185, %v184
    %v189 = vld [vmem:[#allocation7 + $0x398] sm:$0x1]
    %v190 = vlaneseq
    %v191 = vshrl.u32 %v190, 7
    %v192 = vsub.s32 0, %v191
    %v193 = vrot.slane %v189, %v192
    %vm194 = vcmask 261120
    %v196 = vsel %vm194, %v186, 0
    %198 = vmatprep.subr.bf16.mxu0 0
    %199 = vmatpush1.bf16.msra.mxu0 %v187
    %200 = vmatprep.subr.bf16.mxu0 0
    %201 = vmatpush1.bf16.msra.mxu0 %v188
    %202 = vmatprep.subr.bf16.mxu0 0
    %203 = vmatpush1.bf16.msra.mxu0 0
    %204 = vmatprep.subr.bf16.mxu0 0
    %205 = vmatpush1.bf16.msra.mxu0 0
    %206 = vmatprep.subr.bf16.mxu0 0
    %207 = vmatpush1.bf16.msra.mxu0 0
    %208 = vmatprep.subr.bf16.mxu0 0
    %209 = vmatpush1.bf16.msra.mxu0 0
    %210 = vmatprep.subr.bf16.mxu0 0
    %211 = vmatpush1.bf16.msra.mxu0 0
    %212 = vmatprep.subr.bf16.mxu0 0
    %213 = vmatpush1.bf16.msra.mxu0 0
    %214 = vmatprep.subr.bf16.mxu0 0
    %215 = vmatpush1.bf16.msra.mxu0 0
    %216 = vmatprep.subr.bf16.mxu0 0
    %217 = vmatpush1.bf16.msra.mxu0 0
    %218 = vmatprep.subr.bf16.mxu0 0
    %219 = vmatpush1.bf16.msra.mxu0 0
    %220 = vmatprep.subr.bf16.mxu0 0
    %221 = vmatpush1.bf16.msra.mxu0 0
    %222 = vmatprep.subr.bf16.mxu0 0
    %223 = vmatpush1.bf16.msra.mxu0 0
    %224 = vmatprep.subr.bf16.mxu0 0
    %225 = vmatpush1.bf16.msra.mxu0 0
    %226 = vmatprep.subr.bf16.mxu0 0
    %227 = vmatpush1.bf16.msra.mxu0 0
    %228 = vmatprep.subr.bf16.mxu0 0
    %229 = vmatpush1.bf16.msra.mxu0 0
    %230 = vmatprep.mubr.bf16.mxu0 0
    %231 = vmatmul.mubr.bf16.gmra.mrb[0].mxu0 %v196
    %v232 = vpop.f32.mrb[0].mxu0
    %v233 = vadd.f32 %v193, %v232
    %v234 = vpop.f32.mrb[0].mxu0
    %v235 = vpop.f32.mrb[0].mxu0
    %v236 = vadd.f32 %v193, %v235
    %v237 = vpop.f32.mrb[0].mxu0
    %238 = vdwg.mxu0
    %v239 = vmax.f32 %v233, 0.0
    %v240 = vmax.f32 %v236, 0.0
    %vm241 = vcmp.ne.f32.partialorder %v233, %v233
    %vm242 = vcmp.ne.f32.partialorder %v236, %v236
    %v243 = vadd.f32 %v233, 0.0
    %v244 = vadd.f32 %v236, 0.0
    %v245 = vand.u32 2147483647, %v233
    %v246 = vand.u32 2147483647, %v236
    %v247 = vsub.f32 0.0, %v245
    %v248 = vsub.f32 0.0, %v246
    %v249 = vmul.f32 %v247, 1.442695
    %v250 = vpow.pop %v249
    %v251 = vmul.f32 %v248, 1.442695
    %v252 = vpow.pop %v251
    %v253 = vadd.f32 %v250, 1.0
    %v254 = vlog2.pop %v253
    %v255 = vmul.f32 %v254, 0.6931472
    %v256 = vmul.f32 -0.5, %v250
    %v257 = vadd.f32 %v256, 1.0
    %v258 = vmul.f32 %v257, %v250
    %v259 = vand.u32 2147483647, %v250
    %vm260 = vcmp.lt.f32.partialorder %v259, 0.0004427343
    %v261 = vsel %vm260, %v258, %v255
    %v262 = vadd.f32 %v252, 1.0
    %v263 = vlog2.pop %v262
    %v264 = vmul.f32 %v263, 0.6931472
    %v265 = vmul.f32 -0.5, %v252
    %v266 = vadd.f32 %v265, 1.0
    %v267 = vmul.f32 %v266, %v252
    %v268 = vand.u32 2147483647, %v252
    %vm269 = vcmp.lt.f32.partialorder %v268, 0.0004427343
    %v270 = vsel %vm269, %v267, %v264
    %v271 = vadd.f32 %v239, %v261
    %v272 = vadd.f32 %v240, %v270
    %v273 = vsel %vm241, %v243, %v271
    %v274 = vsel %vm242, %v244, %v272
    %v275 = vld [vmem:[#allocation4] sm:$0xff]
    %v276 = vld [vmem:[#allocation4 + $0x8] sm:$0x3]
    %v277 = vld [vmem:[#allocation7 + $0x3e0] sm:$0xff]
    %v278 = vld [vmem:[#allocation7 + $0x3e8] sm:$0xff]
    %v279 = vpack.c.bf16 %v276, %v275
    %v280 = vpack.c.bf16 %v278, %v277
    %v281 = vld [vmem:[#allocation7 + $0x3f0] sm:$0x1]
    %v282 = vlaneseq
    %v283 = vshrl.u32 %v282, 7
    %v284 = vsub.s32 0, %v283
    %v285 = vrot.slane %v281, %v284
    %v287 = vsel %vm101, %v279, 0
    %289 = vmatprep.subr.bf16.mxu0 0
    %290 = vmatpush1.bf16.msra.mxu0 %v280
    %291 = vmatprep.subr.bf16.mxu0 0
    %292 = vmatpush1.bf16.msra.mxu0 0
    %293 = vmatprep.subr.bf16.mxu0 0
    %294 = vmatpush1.bf16.msra.mxu0 0
    %295 = vmatprep.subr.bf16.mxu0 0
    %296 = vmatpush1.bf16.msra.mxu0 0
    %297 = vmatprep.subr.bf16.mxu0 0
    %298 = vmatpush1.bf16.msra.mxu0 0
    %299 = vmatprep.subr.bf16.mxu0 0
    %300 = vmatpush1.bf16.msra.mxu0 0
    %301 = vmatprep.subr.bf16.mxu0 0
    %302 = vmatpush1.bf16.msra.mxu0 0
    %303 = vmatprep.subr.bf16.mxu0 0
    %304 = vmatpush1.bf16.msra.mxu0 0
    %305 = vmatprep.subr.bf16.mxu0 0
    %306 = vmatpush1.bf16.msra.mxu0 0
    %307 = vmatprep.subr.bf16.mxu0 0
    %308 = vmatpush1.bf16.msra.mxu0 0
    %309 = vmatprep.subr.bf16.mxu0 0
    %310 = vmatpush1.bf16.msra.mxu0 0
    %311 = vmatprep.subr.bf16.mxu0 0
    %312 = vmatpush1.bf16.msra.mxu0 0
    %313 = vmatprep.subr.bf16.mxu0 0
    %314 = vmatpush1.bf16.msra.mxu0 0
    %315 = vmatprep.subr.bf16.mxu0 0
    %316 = vmatpush1.bf16.msra.mxu0 0
    %317 = vmatprep.subr.bf16.mxu0 0
    %318 = vmatpush1.bf16.msra.mxu0 0
    %319 = vmatprep.subr.bf16.mxu0 0
    %320 = vmatpush1.bf16.msra.mxu0 0
    %321 = vmatprep.mubr.bf16.mxu0 0
    %322 = vmatmul.mubr.bf16.gmra.mrb[0].mxu0 %v287
    %v323 = vpop.f32.mrb[0].mxu0
    %v324 = vadd.f32 %v285, %v323
    %v325 = vpop.f32.mrb[0].mxu0
    %v326 = vpop.f32.mrb[0].mxu0
    %v327 = vadd.f32 %v285, %v326
    %v328 = vpop.f32.mrb[0].mxu0
    %329 = vdwg.mxu0
    %v330 = vmax.f32 %v324, 0.0
    %v331 = vmax.f32 %v327, 0.0
    %vm332 = vcmp.ne.f32.partialorder %v324, %v324
    %vm333 = vcmp.ne.f32.partialorder %v327, %v327
    %v334 = vadd.f32 %v324, 0.0
    %v335 = vadd.f32 %v327, 0.0
    %v336 = vand.u32 2147483647, %v324
    %v337 = vand.u32 2147483647, %v327
    %v338 = vsub.f32 0.0, %v336
    %v339 = vsub.f32 0.0, %v337
    %v340 = vmul.f32 %v338, 1.442695
    %v341 = vpow.pop %v340
    %v342 = vmul.f32 %v339, 1.442695
    %v343 = vpow.pop %v342
    %v344 = vadd.f32 %v341, 1.0
    %v345 = vlog2.pop %v344
    %v346 = vmul.f32 %v345, 0.6931472
    %v347 = vmul.f32 -0.5, %v341
    %v348 = vadd.f32 %v347, 1.0
    %v349 = vmul.f32 %v348, %v341
    %v350 = vand.u32 2147483647, %v341
    %vm351 = vcmp.lt.f32.partialorder %v350, 0.0004427343
    %v352 = vsel %vm351, %v349, %v346
    %v353 = vadd.f32 %v343, 1.0
    %v354 = vlog2.pop %v353
    %v355 = vmul.f32 %v354, 0.6931472
    %v356 = vmul.f32 -0.5, %v343
    %v357 = vadd.f32 %v356, 1.0
    %v358 = vmul.f32 %v357, %v343
    %v359 = vand.u32 2147483647, %v343
    %vm360 = vcmp.lt.f32.partialorder %v359, 0.0004427343
    %v361 = vsel %vm360, %v358, %v355
    %v362 = vadd.f32 %v330, %v352
    %v363 = vadd.f32 %v331, %v361
    %v364 = vsel %vm332, %v334, %v362
    %v365 = vsel %vm333, %v335, %v363
    %v366 = vld [vmem:[#allocation7 + $0x3f8] sm:$0xff]
    %v367 = vld [vmem:[#allocation7 + $0x400] sm:$0xff]
    %v368 = vld [vmem:[#allocation7 + $0x408] sm:$0xff]
    %v369 = vld [vmem:[#allocation7 + $0x410] sm:$0xff]
    %v370 = vpack.c.bf16 %v365, %v364
    %v371 = vpack.c.bf16 %v367, %v366
    %v372 = vpack.c.bf16 %v369, %v368
    %v373 = vld [vmem:[#allocation7 + $0x418] sm:$0x1]
    %v374 = vlaneseq
    %v375 = vshrl.u32 %v374, 7
    %v376 = vsub.s32 0, %v375
    %v377 = vrot.slane %v373, %v376
    %v379 = vsel %vm194, %v370, 0
    %381 = vmatprep.subr.bf16.mxu0 0
    %382 = vmatpush1.bf16.msra.mxu0 %v371
    %383 = vmatprep.subr.bf16.mxu0 0
    %384 = vmatpush1.bf16.msra.mxu0 %v372
    %385 = vmatprep.subr.bf16.mxu0 0
    %386 = vmatpush1.bf16.msra.mxu0 0
    %387 = vmatprep.subr.bf16.mxu0 0
    %388 = vmatpush1.bf16.msra.mxu0 0
    %389 = vmatprep.subr.bf16.mxu0 0
    %390 = vmatpush1.bf16.msra.mxu0 0
    %391 = vmatprep.subr.bf16.mxu0 0
    %392 = vmatpush1.bf16.msra.mxu0 0
    %393 = vmatprep.subr.bf16.mxu0 0
    %394 = vmatpush1.bf16.msra.mxu0 0
    %395 = vmatprep.subr.bf16.mxu0 0
    %396 = vmatpush1.bf16.msra.mxu0 0
    %397 = vmatprep.subr.bf16.mxu0 0
    %398 = vmatpush1.bf16.msra.mxu0 0
    %399 = vmatprep.subr.bf16.mxu0 0
    %400 = vmatpush1.bf16.msra.mxu0 0
    %401 = vmatprep.subr.bf16.mxu0 0
    %402 = vmatpush1.bf16.msra.mxu0 0
    %403 = vmatprep.subr.bf16.mxu0 0
    %404 = vmatpush1.bf16.msra.mxu0 0
    %405 = vmatprep.subr.bf16.mxu0 0
    %406 = vmatpush1.bf16.msra.mxu0 0
    %407 = vmatprep.subr.bf16.mxu0 0
    %408 = vmatpush1.bf16.msra.mxu0 0
    %409 = vmatprep.subr.bf16.mxu0 0
    %410 = vmatpush1.bf16.msra.mxu0 0
    %411 = vmatprep.subr.bf16.mxu0 0
    %412 = vmatpush1.bf16.msra.mxu0 0
    %413 = vmatprep.mubr.bf16.mxu0 0
    %414 = vmatmul.mubr.bf16.gmra.mrb[0].mxu0 %v379
    %v415 = vpop.f32.mrb[0].mxu0
    %v416 = vadd.f32 %v377, %v415
    %v417 = vpop.f32.mrb[0].mxu0
    %v418 = vpop.f32.mrb[0].mxu0
    %v419 = vadd.f32 %v377, %v418
    %v420 = vpop.f32.mrb[0].mxu0
    %421 = vdwg.mxu0
    %v422 = vmax.f32 %v416, 0.0
    %v423 = vmax.f32 %v419, 0.0
    %vm424 = vcmp.ne.f32.partialorder %v416, %v416
    %vm425 = vcmp.ne.f32.partialorder %v419, %v419
    %v426 = vadd.f32 %v416, 0.0
    %v427 = vadd.f32 %v419, 0.0
    %v428 = vand.u32 2147483647, %v416
    %v429 = vand.u32 2147483647, %v419
    %v430 = vsub.f32 0.0, %v428
    %v431 = vsub.f32 0.0, %v429
    %v432 = vmul.f32 %v430, 1.442695
    %v433 = vpow.pop %v432
    %v434 = vmul.f32 %v431, 1.442695
    %v435 = vpow.pop %v434
    %v436 = vadd.f32 %v433, 1.0
    %v437 = vlog2.pop %v436
    %v438 = vmul.f32 %v437, 0.6931472
    %v439 = vmul.f32 -0.5, %v433
    %v440 = vadd.f32 %v439, 1.0
    %v441 = vmul.f32 %v440, %v433
    %v442 = vand.u32 2147483647, %v433
    %vm443 = vcmp.lt.f32.partialorder %v442, 0.0004427343
    %v444 = vsel %vm443, %v441, %v438
    %v445 = vadd.f32 %v435, 1.0
    %v446 = vlog2.pop %v445
    %v447 = vmul.f32 %v446, 0.6931472
    %v448 = vmul.f32 -0.5, %v435
    %v449 = vadd.f32 %v448, 1.0
    %v450 = vmul.f32 %v449, %v435
    %v451 = vand.u32 2147483647, %v435
    %vm452 = vcmp.lt.f32.partialorder %v451, 0.0004427343
    %v453 = vsel %vm452, %v450, %v447
    %v454 = vadd.f32 %v422, %v444
    %v455 = vadd.f32 %v423, %v453
    %v456 = vsel %vm424, %v426, %v454
    %v457 = vsel %vm425, %v427, %v455
    %v458 = vld [vmem:[%s2] sm:$0x3]
    %v459 = vld [vmem:[#allocation7] sm:$0xff]
    %v460 = vld [vmem:[#allocation7 + $0x8] sm:$0xff]
    %v461 = vpack.c.bf16 %v458, %v458
    %v462 = vpack.c.bf16 %v460, %v459
    %v463 = vld [vmem:[#allocation7 + $0x10] sm:$0x1]
    %v464 = vlaneseq
    %v465 = vshrl.u32 %v464, 7
    %v466 = vsub.s32 0, %v465
    %v467 = vrot.slane %v463, %v466
    %v469 = vsel %vm101, %v461, 0
    %471 = vmatprep.subr.bf16.mxu0 0
    %472 = vmatpush1.bf16.msra.mxu0 %v462
    %473 = vmatprep.subr.bf16.mxu0 0
    %474 = vmatpush1.bf16.msra.mxu0 0
    %475 = vmatprep.subr.bf16.mxu0 0
    %476 = vmatpush1.bf16.msra.mxu0 0
    %477 = vmatprep.subr.bf16.mxu0 0
    %478 = vmatpush1.bf16.msra.mxu0 0
    %479 = vmatprep.subr.bf16.mxu0 0
    %480 = vmatpush1.bf16.msra.mxu0 0
    %481 = vmatprep.subr.bf16.mxu0 0
    %482 = vmatpush1.bf16.msra.mxu0 0
    %483 = vmatprep.subr.bf16.mxu0 0
    %484 = vmatpush1.bf16.msra.mxu0 0
    %485 = vmatprep.subr.bf16.mxu0 0
    %486 = vmatpush1.bf16.msra.mxu0 0
    %487 = vmatprep.subr.bf16.mxu0 0
    %488 = vmatpush1.bf16.msra.mxu0 0
    %489 = vmatprep.subr.bf16.mxu0 0
    %490 = vmatpush1.bf16.msra.mxu0 0
    %491 = vmatprep.subr.bf16.mxu0 0
    %492 = vmatpush1.bf16.msra.mxu0 0
    %493 = vmatprep.subr.bf16.mxu0 0
    %494 = vmatpush1.bf16.msra.mxu0 0
    %495 = vmatprep.subr.bf16.mxu0 0
    %496 = vmatpush1.bf16.msra.mxu0 0
    %497 = vmatprep.subr.bf16.mxu0 0
    %498 = vmatpush1.bf16.msra.mxu0 0
    %499 = vmatprep.subr.bf16.mxu0 0
    %500 = vmatpush1.bf16.msra.mxu0 0
    %501 = vmatprep.subr.bf16.mxu0 0
    %502 = vmatpush1.bf16.msra.mxu0 0
    %503 = vmatprep.mubr.bf16.mxu0 0
    %504 = vmatmul.mubr.bf16.gmra.mrb[0].mxu0 %v469
    %v505 = vpop.f32.mrb[0].mxu0
    %v506 = vadd.f32 %v467, %v505
    %v507 = vpop.f32.mrb[0].mxu0
    %v508 = vpop.f32.mrb[0].mxu0
    %v509 = vpop.f32.mrb[0].mxu0
    %510 = vdwg.mxu0
    %v511 = vmax.f32 %v506, 0.0
    %vm512 = vcmp.ne.f32.partialorder %v506, %v506
    %v513 = vadd.f32 %v506, 0.0
    %v514 = vand.u32 2147483647, %v506
    %v515 = vsub.f32 0.0, %v514
    %v516 = vmul.f32 %v515, 1.442695
    %v517 = vpow.pop %v516
    %v518 = vadd.f32 %v517, 1.0
    %v519 = vlog2.pop %v518
    %v520 = vmul.f32 %v519, 0.6931472
    %v521 = vmul.f32 -0.5, %v517
    %v522 = vadd.f32 %v521, 1.0
    %v523 = vmul.f32 %v522, %v517
    %v524 = vand.u32 2147483647, %v517
    %vm525 = vcmp.lt.f32.partialorder %v524, 0.0004427343
    %v526 = vsel %vm525, %v523, %v520
    %v527 = vadd.f32 %v511, %v526
    %v528 = vsel %vm512, %v513, %v527
    %v529 = vld [vmem:[#allocation7 + $0x18] sm:$0xff]
    %v530 = vld [vmem:[#allocation7 + $0x20] sm:$0xff]
    %v531 = vld [vmem:[#allocation7 + $0x28] sm:$0xff]
    %v532 = vld [vmem:[#allocation7 + $0x30] sm:$0xff]
    %v533 = vpack.c.bf16 %v528, %v528
    %v534 = vpack.c.bf16 %v530, %v529
    %v535 = vpack.c.bf16 %v532, %v531
    %v536 = vld [vmem:[#allocation7 + $0x38] sm:$0x1]
    %v537 = vlaneseq
    %v538 = vshrl.u32 %v537, 7
    %v539 = vsub.s32 0, %v538
    %v540 = vrot.slane %v536, %v539
    %v542 = vsel %vm194, %v533, 0
    %544 = vmatprep.subr.bf16.mxu0 0
    %545 = vmatpush1.bf16.msra.mxu0 %v534
    %546 = vmatprep.subr.bf16.mxu0 0
    %547 = vmatpush1.bf16.msra.mxu0 %v535
    %548 = vmatprep.subr.bf16.mxu0 0
    %549 = vmatpush1.bf16.msra.mxu0 0
    %550 = vmatprep.subr.bf16.mxu0 0
    %551 = vmatpush1.bf16.msra.mxu0 0
    %552 = vmatprep.subr.bf16.mxu0 0
    %553 = vmatpush1.bf16.msra.mxu0 0
    %554 = vmatprep.subr.bf16.mxu0 0
    %555 = vmatpush1.bf16.msra.mxu0 0
    %556 = vmatprep.subr.bf16.mxu0 0
    %557 = vmatpush1.bf16.msra.mxu0 0
    %558 = vmatprep.subr.bf16.mxu0 0
    %559 = vmatpush1.bf16.msra.mxu0 0
    %560 = vmatprep.subr.bf16.mxu0 0
    %561 = vmatpush1.bf16.msra.mxu0 0
    %562 = vmatprep.subr.bf16.mxu0 0
    %563 = vmatpush1.bf16.msra.mxu0 0
    %564 = vmatprep.subr.bf16.mxu0 0
    %565 = vmatpush1.bf16.msra.mxu0 0
    %566 = vmatprep.subr.bf16.mxu0 0
    %567 = vmatpush1.bf16.msra.mxu0 0
    %568 = vmatprep.subr.bf16.mxu0 0
    %569 = vmatpush1.bf16.msra.mxu0 0
    %570 = vmatprep.subr.bf16.mxu0 0
    %571 = vmatpush1.bf16.msra.mxu0 0
    %572 = vmatprep.subr.bf16.mxu0 0
    %573 = vmatpush1.bf16.msra.mxu0 0
    %574 = vmatprep.subr.bf16.mxu0 0
    %575 = vmatpush1.bf16.msra.mxu0 0
    %576 = vmatprep.mubr.bf16.mxu0 0
    %577 = vmatmul.mubr.bf16.gmra.mrb[0].mxu0 %v542
    %v578 = vpop.f32.mrb[0].mxu0
    %v579 = vadd.f32 %v540, %v578
    %v580 = vpop.f32.mrb[0].mxu0
    %v581 = vpop.f32.mrb[0].mxu0
    %v582 = vpop.f32.mrb[0].mxu0
    %583 = vdwg.mxu0
    %v584 = vmax.f32 %v579, 0.0
    %vm585 = vcmp.ne.f32.partialorder %v579, %v579
    %v586 = vadd.f32 %v579, 0.0
    %v587 = vand.u32 2147483647, %v579
    %v588 = vsub.f32 0.0, %v587
    %v589 = vmul.f32 %v588, 1.442695
    %v590 = vpow.pop %v589
    %v591 = vadd.f32 %v590, 1.0
    %v592 = vlog2.pop %v591
    %v593 = vmul.f32 %v592, 0.6931472
    %v594 = vmul.f32 -0.5, %v590
    %v595 = vadd.f32 %v594, 1.0
    %v596 = vmul.f32 %v595, %v590
    %v597 = vand.u32 2147483647, %v590
    %vm598 = vcmp.lt.f32.partialorder %v597, 0.0004427343
    %v599 = vsel %vm598, %v596, %v593
    %v600 = vadd.f32 %v584, %v599
    %v601 = vsel %vm585, %v586, %v600
    %v602 = vpack.c.bf16 %v77, %v76
    %v603 = vpack.c.bf16 %v457, %v456
    %vm604 = vcmask 80896
    %v606 = vsel %vm604, %v602, 0
    %vm608 = vcmask 1044480
    %v610 = vsel %vm608, %v603, 0
    %612 = vmatprep.subr.bf16.mxu0 0
    %613 = vmatpush1.bf16.msra.mxu0 %v610
    %614 = vmatprep.subr.bf16.mxu0 0
    %615 = vmatpush1.bf16.msra.mxu0 0
    %616 = vmatprep.subr.bf16.mxu0 0
    %617 = vmatpush1.bf16.msra.mxu0 0
    %618 = vmatprep.subr.bf16.mxu0 0
    %619 = vmatpush1.bf16.msra.mxu0 0
    %620 = vmatprep.subr.bf16.mxu0 0
    %621 = vmatpush1.bf16.msra.mxu0 0
    %622 = vmatprep.subr.bf16.mxu0 0
    %623 = vmatpush1.bf16.msra.mxu0 0
    %624 = vmatprep.subr.bf16.mxu0 0
    %625 = vmatpush1.bf16.msra.mxu0 0
    %626 = vmatprep.subr.bf16.mxu0 0
    %627 = vmatpush1.bf16.msra.mxu0 0
    %628 = vmatprep.subr.bf16.mxu0 0
    %629 = vmatpush1.bf16.msra.mxu0 0
    %630 = vmatprep.subr.bf16.mxu0 0
    %631 = vmatpush1.bf16.msra.mxu0 0
    %632 = vmatprep.subr.bf16.mxu0 0
    %633 = vmatpush1.bf16.msra.mxu0 0
    %634 = vmatprep.subr.bf16.mxu0 0
    %635 = vmatpush1.bf16.msra.mxu0 0
    %636 = vmatprep.subr.bf16.mxu0 0
    %637 = vmatpush1.bf16.msra.mxu0 0
    %638 = vmatprep.subr.bf16.mxu0 0
    %639 = vmatpush1.bf16.msra.mxu0 0
    %640 = vmatprep.subr.bf16.mxu0 0
    %641 = vmatpush1.bf16.msra.mxu0 0
    %642 = vmatprep.subr.bf16.mxu0 0
    %643 = vmatpush1.bf16.msra.mxu0 0
    %644 = vmatprep.mubr.bf16.mxu0 0
    %645 = vmatmul.mubr.bf16.gmra.mrb[0].mxu0 %v606
    %v646 = vpop.f32.mrb[0].mxu0
    %v647 = vadd.f32 0.0, %v646
    %v648 = vpop.f32.mrb[0].mxu0
    %v649 = vpop.f32.mrb[0].mxu0
    %v650 = vadd.f32 0.0, %v649
    %v651 = vpop.f32.mrb[0].mxu0
    %652 = vdwg.mxu0
    %v653 = vpack.c.bf16 %v79, %v78
    %v655 = vsel %vm604, %v653, 0
    %657 = vmatprep.subr.bf16.mxu0 0
    %658 = vmatpush1.bf16.msra.mxu0 %v610
    %659 = vmatprep.subr.bf16.mxu0 0
    %660 = vmatpush1.bf16.msra.mxu0 0
    %661 = vmatprep.subr.bf16.mxu0 0
    %662 = vmatpush1.bf16.msra.mxu0 0
    %663 = vmatprep.subr.bf16.mxu0 0
    %664 = vmatpush1.bf16.msra.mxu0 0
    %665 = vmatprep.subr.bf16.mxu0 0
    %666 = vmatpush1.bf16.msra.mxu0 0
    %667 = vmatprep.subr.bf16.mxu0 0
    %668 = vmatpush1.bf16.msra.mxu0 0
    %669 = vmatprep.subr.bf16.mxu0 0
    %670 = vmatpush1.bf16.msra.mxu0 0
    %671 = vmatprep.subr.bf16.mxu0 0
    %672 = vmatpush1.bf16.msra.mxu0 0
    %673 = vmatprep.subr.bf16.mxu0 0
    %674 = vmatpush1.bf16.msra.mxu0 0
    %675 = vmatprep.subr.bf16.mxu0 0
    %676 = vmatpush1.bf16.msra.mxu0 0
    %677 = vmatprep.subr.bf16.mxu0 0
    %678 = vmatpush1.bf16.msra.mxu0 0
    %679 = vmatprep.subr.bf16.mxu0 0
    %680 = vmatpush1.bf16.msra.mxu0 0
    %681 = vmatprep.subr.bf16.mxu0 0
    %682 = vmatpush1.bf16.msra.mxu0 0
    %683 = vmatprep.subr.bf16.mxu0 0
    %684 = vmatpush1.bf16.msra.mxu0 0
    %685 = vmatprep.subr.bf16.mxu0 0
    %686 = vmatpush1.bf16.msra.mxu0 0
    %687 = vmatprep.subr.bf16.mxu0 0
    %688 = vmatpush1.bf16.msra.mxu0 0
    %689 = vmatprep.mubr.bf16.mxu0 0
    %690 = vmatmul.mubr.bf16.gmra.mrb[0].mxu0 %v655
    %v691 = vpop.f32.mrb[0].mxu0
    %v692 = vadd.f32 0.0, %v691
    %v693 = vpop.f32.mrb[0].mxu0
    %v694 = vpop.f32.mrb[0].mxu0
    %v695 = vadd.f32 0.0, %v694
    %v696 = vpop.f32.mrb[0].mxu0
    %697 = vdwg.mxu0
    %v698 = vpack.c.bf16 %v83, %v82
    %v699 = vpack.c.bf16 %v601, %v601
    %vm700 = vcmask 15360
    %v702 = vsel %vm700, %v698, 0
    %vm704 = vcmask 1040384
    %v706 = vsel %vm704, %v699, 0
    %708 = vmatprep.subr.bf16.mxu0 0
    %709 = vmatpush1.bf16.msra.mxu0 %v706
    %710 = vmatprep.subr.bf16.mxu0 0
    %711 = vmatpush1.bf16.msra.mxu0 0
    %712 = vmatprep.subr.bf16.mxu0 0
    %713 = vmatpush1.bf16.msra.mxu0 0
    %714 = vmatprep.subr.bf16.mxu0 0
    %715 = vmatpush1.bf16.msra.mxu0 0
    %716 = vmatprep.subr.bf16.mxu0 0
    %717 = vmatpush1.bf16.msra.mxu0 0
    %718 = vmatprep.subr.bf16.mxu0 0
    %719 = vmatpush1.bf16.msra.mxu0 0
    %720 = vmatprep.subr.bf16.mxu0 0
    %721 = vmatpush1.bf16.msra.mxu0 0
    %722 = vmatprep.subr.bf16.mxu0 0
    %723 = vmatpush1.bf16.msra.mxu0 0
    %724 = vmatprep.subr.bf16.mxu0 0
    %725 = vmatpush1.bf16.msra.mxu0 0
    %726 = vmatprep.subr.bf16.mxu0 0
    %727 = vmatpush1.bf16.msra.mxu0 0
    %728 = vmatprep.subr.bf16.mxu0 0
    %729 = vmatpush1.bf16.msra.mxu0 0
    %730 = vmatprep.subr.bf16.mxu0 0
    %731 = vmatpush1.bf16.msra.mxu0 0
    %732 = vmatprep.subr.bf16.mxu0 0
    %733 = vmatpush1.bf16.msra.mxu0 0
    %734 = vmatprep.subr.bf16.mxu0 0
    %735 = vmatpush1.bf16.msra.mxu0 0
    %736 = vmatprep.subr.bf16.mxu0 0
    %737 = vmatpush1.bf16.msra.mxu0 0
    %738 = vmatprep.subr.bf16.mxu0 0
    %739 = vmatpush1.bf16.msra.mxu0 0
    %740 = vmatprep.mubr.bf16.mxu0 0
    %741 = vmatmul.mubr.bf16.gmra.mrb[0].mxu0 %v702
    %v742 = vpop.f32.mrb[0].mxu0
    %v743 = vadd.f32 0.0, %v742
    %v744 = vpop.f32.mrb[0].mxu0
    %v745 = vpop.f32.mrb[0].mxu0
    %v746 = vadd.f32 0.0, %v745
    %v747 = vpop.f32.mrb[0].mxu0
    %748 = vdwg.mxu0
    %v749 = vld [vmem:[#allocation7 + $0xe0] sm:$0x1]
    %v750 = vld [vmem:[#allocation7 + $0xa0] sm:$0xff]
    %v751 = vld [vmem:[#allocation7 + $0xa8] sm:$0xff]
    %v752 = vpack.c.bf16 %v650, %v647
    %v753 = vpack.c.bf16 %v751, %v750
    %v755 = vsel %vm101, %v752, 0
    %757 = vmatprep.subr.bf16.mxu0 0
    %758 = vmatpush1.bf16.msra.mxu0 %v753
    %759 = vmatprep.subr.bf16.mxu0 0
    %760 = vmatpush1.bf16.msra.mxu0 0
    %761 = vmatprep.subr.bf16.mxu0 0
    %762 = vmatpush1.bf16.msra.mxu0 0
    %763 = vmatprep.subr.bf16.mxu0 0
    %764 = vmatpush1.bf16.msra.mxu0 0
    %765 = vmatprep.subr.bf16.mxu0 0
    %766 = vmatpush1.bf16.msra.mxu0 0
    %767 = vmatprep.subr.bf16.mxu0 0
    %768 = vmatpush1.bf16.msra.mxu0 0
    %769 = vmatprep.subr.bf16.mxu0 0
    %770 = vmatpush1.bf16.msra.mxu0 0
    %771 = vmatprep.subr.bf16.mxu0 0
    %772 = vmatpush1.bf16.msra.mxu0 0
    %773 = vmatprep.subr.bf16.mxu0 0
    %774 = vmatpush1.bf16.msra.mxu0 0
    %775 = vmatprep.subr.bf16.mxu0 0
    %776 = vmatpush1.bf16.msra.mxu0 0
    %777 = vmatprep.subr.bf16.mxu0 0
    %778 = vmatpush1.bf16.msra.mxu0 0
    %779 = vmatprep.subr.bf16.mxu0 0
    %780 = vmatpush1.bf16.msra.mxu0 0
    %781 = vmatprep.subr.bf16.mxu0 0
    %782 = vmatpush1.bf16.msra.mxu0 0
    %783 = vmatprep.subr.bf16.mxu0 0
    %784 = vmatpush1.bf16.msra.mxu0 0
    %785 = vmatprep.subr.bf16.mxu0 0
    %786 = vmatpush1.bf16.msra.mxu0 0
    %787 = vmatprep.subr.bf16.mxu0 0
    %788 = vmatpush1.bf16.msra.mxu0 0
    %789 = vmatprep.mubr.bf16.mxu0 0
    %790 = vmatmul.mubr.bf16.gmra.mrb[0].mxu0 %v755
    %v791 = vpop.f32.mrb[0].mxu0
    %v792 = vadd.f32 0.0, %v791
    %v793 = vpop.f32.mrb[0].mxu0
    %v794 = vpop.f32.mrb[0].mxu0
    %v795 = vadd.f32 0.0, %v794
    %v796 = vpop.f32.mrb[0].mxu0
    %797 = vdwg.mxu0
    %v798 = vlaneseq
    %v799 = vshrl.u32 %v798, 7
    %v800 = vsub.s32 0, %v799
    %v801 = vrot.slane %v749, %v800
    %v802 = vadd.f32 %v801, %v792
    %v803 = vadd.f32 %v801, %v795
    %v804 = vld [vmem:[#allocation7 + $0xb0] sm:$0xff]
    %v805 = vld [vmem:[#allocation7 + $0xb8] sm:$0xff]
    %v806 = vpack.c.bf16 %v695, %v692
    %v807 = vpack.c.bf16 %v805, %v804
    %v809 = vsel %vm101, %v806, 0
    %811 = vmatprep.subr.bf16.mxu0 0
    %812 = vmatpush1.bf16.msra.mxu0 %v807
    %813 = vmatprep.subr.bf16.mxu0 0
    %814 = vmatpush1.bf16.msra.mxu0 0
    %815 = vmatprep.subr.bf16.mxu0 0
    %816 = vmatpush1.bf16.msra.mxu0 0
    %817 = vmatprep.subr.bf16.mxu0 0
    %818 = vmatpush1.bf16.msra.mxu0 0
    %819 = vmatprep.subr.bf16.mxu0 0
    %820 = vmatpush1.bf16.msra.mxu0 0
    %821 = vmatprep.subr.bf16.mxu0 0
    %822 = vmatpush1.bf16.msra.mxu0 0
    %823 = vmatprep.subr.bf16.mxu0 0
    %824 = vmatpush1.bf16.msra.mxu0 0
    %825 = vmatprep.subr.bf16.mxu0 0
    %826 = vmatpush1.bf16.msra.mxu0 0
    %827 = vmatprep.subr.bf16.mxu0 0
    %828 = vmatpush1.bf16.msra.mxu0 0
    %829 = vmatprep.subr.bf16.mxu0 0
    %830 = vmatpush1.bf16.msra.mxu0 0
    %831 = vmatprep.subr.bf16.mxu0 0
    %832 = vmatpush1.bf16.msra.mxu0 0
    %833 = vmatprep.subr.bf16.mxu0 0
    %834 = vmatpush1.bf16.msra.mxu0 0
    %835 = vmatprep.subr.bf16.mxu0 0
    %836 = vmatpush1.bf16.msra.mxu0 0
    %837 = vmatprep.subr.bf16.mxu0 0
    %838 = vmatpush1.bf16.msra.mxu0 0
    %839 = vmatprep.subr.bf16.mxu0 0
    %840 = vmatpush1.bf16.msra.mxu0 0
    %841 = vmatprep.subr.bf16.mxu0 0
    %842 = vmatpush1.bf16.msra.mxu0 0
    %843 = vmatprep.mubr.bf16.mxu0 0
    %844 = vmatmul.mubr.bf16.gmra.mrb[0].mxu0 %v809
    %v845 = vpop.f32.mrb[0].mxu0
    %v846 = vadd.f32 0.0, %v845
    %v847 = vpop.f32.mrb[0].mxu0
    %v848 = vpop.f32.mrb[0].mxu0
    %v849 = vadd.f32 0.0, %v848
    %v850 = vpop.f32.mrb[0].mxu0
    %851 = vdwg.mxu0
    %v852 = vadd.f32 %v802, %v846
    %v853 = vadd.f32 %v803, %v849
    %v854 = vld [vmem:[#allocation7 + $0xc0] sm:$0xff]
    %v855 = vld [vmem:[#allocation7 + $0xc8] sm:$0xff]
    %v856 = vpack.c.bf16 %v274, %v273
    %v857 = vpack.c.bf16 %v855, %v854
    %v859 = vsel %vm101, %v856, 0
    %861 = vmatprep.subr.bf16.mxu0 0
    %862 = vmatpush1.bf16.msra.mxu0 %v857
    %863 = vmatprep.subr.bf16.mxu0 0
    %864 = vmatpush1.bf16.msra.mxu0 0
    %865 = vmatprep.subr.bf16.mxu0 0
    %866 = vmatpush1.bf16.msra.mxu0 0
    %867 = vmatprep.subr.bf16.mxu0 0
    %868 = vmatpush1.bf16.msra.mxu0 0
    %869 = vmatprep.subr.bf16.mxu0 0
    %870 = vmatpush1.bf16.msra.mxu0 0
    %871 = vmatprep.subr.bf16.mxu0 0
    %872 = vmatpush1.bf16.msra.mxu0 0
    %873 = vmatprep.subr.bf16.mxu0 0
    %874 = vmatpush1.bf16.msra.mxu0 0
    %875 = vmatprep.subr.bf16.mxu0 0
    %876 = vmatpush1.bf16.msra.mxu0 0
    %877 = vmatprep.subr.bf16.mxu0 0
    %878 = vmatpush1.bf16.msra.mxu0 0
    %879 = vmatprep.subr.bf16.mxu0 0
    %880 = vmatpush1.bf16.msra.mxu0 0
    %881 = vmatprep.subr.bf16.mxu0 0
    %882 = vmatpush1.bf16.msra.mxu0 0
    %883 = vmatprep.subr.bf16.mxu0 0
    %884 = vmatpush1.bf16.msra.mxu0 0
    %885 = vmatprep.subr.bf16.mxu0 0
    %886 = vmatpush1.bf16.msra.mxu0 0
    %887 = vmatprep.subr.bf16.mxu0 0
    %888 = vmatpush1.bf16.msra.mxu0 0
    %889 = vmatprep.subr.bf16.mxu0 0
    %890 = vmatpush1.bf16.msra.mxu0 0
    %891 = vmatprep.subr.bf16.mxu0 0
    %892 = vmatpush1.bf16.msra.mxu0 0
    %893 = vmatprep.mubr.bf16.mxu0 0
    %894 = vmatmul.mubr.bf16.gmra.mrb[0].mxu0 %v859
    %v895 = vpop.f32.mrb[0].mxu0
    %v896 = vadd.f32 0.0, %v895
    %v897 = vpop.f32.mrb[0].mxu0
    %v898 = vpop.f32.mrb[0].mxu0
    %v899 = vadd.f32 0.0, %v898
    %v900 = vpop.f32.mrb[0].mxu0
    %901 = vdwg.mxu0
    %v902 = vadd.f32 %v852, %v896
    %v903 = vadd.f32 %v853, %v899
    %v904 = vld [vmem:[#allocation7 + $0xd0] sm:$0xff]
    %v905 = vld [vmem:[#allocation7 + $0xd8] sm:$0xff]
    %v906 = vpack.c.bf16 %v746, %v743
    %v907 = vpack.c.bf16 %v905, %v904
    %v909 = vsel %vm101, %v906, 0
    %911 = vmatprep.subr.bf16.mxu0 0
    %912 = vmatpush1.bf16.msra.mxu0 %v907
    %913 = vmatprep.subr.bf16.mxu0 0
    %914 = vmatpush1.bf16.msra.mxu0 0
    %915 = vmatprep.subr.bf16.mxu0 0
    %916 = vmatpush1.bf16.msra.mxu0 0
    %917 = vmatprep.subr.bf16.mxu0 0
    %918 = vmatpush1.bf16.msra.mxu0 0
    %919 = vmatprep.subr.bf16.mxu0 0
    %920 = vmatpush1.bf16.msra.mxu0 0
    %921 = vmatprep.subr.bf16.mxu0 0
    %922 = vmatpush1.bf16.msra.mxu0 0
    %923 = vmatprep.subr.bf16.mxu0 0
    %924 = vmatpush1.bf16.msra.mxu0 0
    %925 = vmatprep.subr.bf16.mxu0 0
    %926 = vmatpush1.bf16.msra.mxu0 0
    %927 = vmatprep.subr.bf16.mxu0 0
    %928 = vmatpush1.bf16.msra.mxu0 0
    %929 = vmatprep.subr.bf16.mxu0 0
    %930 = vmatpush1.bf16.msra.mxu0 0
    %931 = vmatprep.subr.bf16.mxu0 0
    %932 = vmatpush1.bf16.msra.mxu0 0
    %933 = vmatprep.subr.bf16.mxu0 0
    %934 = vmatpush1.bf16.msra.mxu0 0
    %935 = vmatprep.subr.bf16.mxu0 0
    %936 = vmatpush1.bf16.msra.mxu0 0
    %937 = vmatprep.subr.bf16.mxu0 0
    %938 = vmatpush1.bf16.msra.mxu0 0
    %939 = vmatprep.subr.bf16.mxu0 0
    %940 = vmatpush1.bf16.msra.mxu0 0
    %941 = vmatprep.subr.bf16.mxu0 0
    %942 = vmatpush1.bf16.msra.mxu0 0
    %943 = vmatprep.mubr.bf16.mxu0 0
    %944 = vmatmul.mubr.bf16.gmra.mrb[0].mxu0 %v909
    %v945 = vpop.f32.mrb[0].mxu0
    %v946 = vadd.f32 0.0, %v945
    %v947 = vpop.f32.mrb[0].mxu0
    %v948 = vpop.f32.mrb[0].mxu0
    %v949 = vadd.f32 0.0, %v948
    %v950 = vpop.f32.mrb[0].mxu0
    %951 = vdwg.mxu0
    %v952 = vadd.f32 %v902, %v946
    %v953 = vadd.f32 %v903, %v949
    %v954 = vmax.f32 %v952, 0.0
    %v955 = vmax.f32 %v953, 0.0
    %vm956 = vcmp.ne.f32.partialorder %v952, %v952
    %vm957 = vcmp.ne.f32.partialorder %v953, %v953
    %v958 = vadd.f32 %v952, 0.0
    %v959 = vadd.f32 %v953, 0.0
    %v960 = vand.u32 2147483647, %v952
    %v961 = vand.u32 2147483647, %v953
    %v962 = vsub.f32 0.0, %v960
    %v963 = vsub.f32 0.0, %v961
    %v964 = vmul.f32 %v962, 1.442695
    %v965 = vpow.pop %v964
    %v966 = vmul.f32 %v963, 1.442695
    %v967 = vpow.pop %v966
    %v968 = vadd.f32 %v965, 1.0
    %v969 = vlog2.pop %v968
    %v970 = vmul.f32 %v969, 0.6931472
    %v971 = vmul.f32 -0.5, %v965
    %v972 = vadd.f32 %v971, 1.0
    %v973 = vmul.f32 %v972, %v965
    %v974 = vand.u32 2147483647, %v965
    %vm975 = vcmp.lt.f32.partialorder %v974, 0.0004427343
    %v976 = vsel %vm975, %v973, %v970
    %v977 = vadd.f32 %v967, 1.0
    %v978 = vlog2.pop %v977
    %v979 = vmul.f32 %v978, 0.6931472
    %v980 = vmul.f32 -0.5, %v967
    %v981 = vadd.f32 %v980, 1.0
    %v982 = vmul.f32 %v981, %v967
    %v983 = vand.u32 2147483647, %v967
    %vm984 = vcmp.lt.f32.partialorder %v983, 0.0004427343
    %v985 = vsel %vm984, %v982, %v979
    %v986 = vadd.f32 %v954, %v976
    %v987 = vadd.f32 %v955, %v985
    %v988 = vsel %vm956, %v958, %v986
    %v989 = vsel %vm957, %v959, %v987
    %v990 = vld [vmem:[#allocation7 + $0xe8] sm:$0xff]
    %v991 = vld [vmem:[#allocation7 + $0xf0] sm:$0xff]
    %v992 = vld [vmem:[#allocation7 + $0xf8] sm:$0xff]
    %v993 = vld [vmem:[#allocation7 + $0x100] sm:$0xff]
    %v994 = vpack.c.bf16 %v989, %v988
    %v995 = vpack.c.bf16 %v991, %v990
    %v996 = vpack.c.bf16 %v993, %v992
    %v997 = vld [vmem:[#allocation7 + $0x108] sm:$0x1]
    %v998 = vlaneseq
    %v999 = vshrl.u32 %v998, 7
    %v1000 = vsub.s32 0, %v999
    %v1001 = vrot.slane %v997, %v1000
    %v1003 = vsel %vm194, %v994, 0
    %1005 = vmatprep.subr.bf16.mxu0 0
    %1006 = vmatpush1.bf16.msra.mxu0 %v995
    %1007 = vmatprep.subr.bf16.mxu0 0
    %1008 = vmatpush1.bf16.msra.mxu0 %v996
    %1009 = vmatprep.subr.bf16.mxu0 0
    %1010 = vmatpush1.bf16.msra.mxu0 0
    %1011 = vmatprep.subr.bf16.mxu0 0
    %1012 = vmatpush1.bf16.msra.mxu0 0
    %1013 = vmatprep.subr.bf16.mxu0 0
    %1014 = vmatpush1.bf16.msra.mxu0 0
    %1015 = vmatprep.subr.bf16.mxu0 0
    %1016 = vmatpush1.bf16.msra.mxu0 0
    %1017 = vmatprep.subr.bf16.mxu0 0
    %1018 = vmatpush1.bf16.msra.mxu0 0
    %1019 = vmatprep.subr.bf16.mxu0 0
    %1020 = vmatpush1.bf16.msra.mxu0 0
    %1021 = vmatprep.subr.bf16.mxu0 0
    %1022 = vmatpush1.bf16.msra.mxu0 0
    %1023 = vmatprep.subr.bf16.mxu0 0
    %1024 = vmatpush1.bf16.msra.mxu0 0
    %1025 = vmatprep.subr.bf16.mxu0 0
    %1026 = vmatpush1.bf16.msra.mxu0 0
    %1027 = vmatprep.subr.bf16.mxu0 0
    %1028 = vmatpush1.bf16.msra.mxu0 0
    %1029 = vmatprep.subr.bf16.mxu0 0
    %1030 = vmatpush1.bf16.msra.mxu0 0
    %1031 = vmatprep.subr.bf16.mxu0 0
    %1032 = vmatpush1.bf16.msra.mxu0 0
    %1033 = vmatprep.subr.bf16.mxu0 0
    %1034 = vmatpush1.bf16.msra.mxu0 0
    %1035 = vmatprep.subr.bf16.mxu0 0
    %1036 = vmatpush1.bf16.msra.mxu0 0
    %1037 = vmatprep.mubr.bf16.mxu0 0
    %1038 = vmatmul.mubr.bf16.gmra.mrb[0].mxu0 %v1003
    %v1039 = vpop.f32.mrb[0].mxu0
    %v1040 = vadd.f32 %v1001, %v1039
    %v1041 = vpop.f32.mrb[0].mxu0
    %v1042 = vpop.f32.mrb[0].mxu0
    %v1043 = vadd.f32 %v1001, %v1042
    %v1044 = vpop.f32.mrb[0].mxu0
    %1045 = vdwg.mxu0
    %v1046 = vmax.f32 %v1040, 0.0
    %v1047 = vmax.f32 %v1043, 0.0
    %vm1048 = vcmp.ne.f32.partialorder %v1040, %v1040
    %vm1049 = vcmp.ne.f32.partialorder %v1043, %v1043
    %v1050 = vadd.f32 %v1040, 0.0
    %v1051 = vadd.f32 %v1043, 0.0
    %v1052 = vand.u32 2147483647, %v1040
    %v1053 = vand.u32 2147483647, %v1043
    %v1054 = vsub.f32 0.0, %v1052
    %v1055 = vsub.f32 0.0, %v1053
    %v1056 = vmul.f32 %v1054, 1.442695
    %v1057 = vpow.pop %v1056
    %v1058 = vmul.f32 %v1055, 1.442695
    %v1059 = vpow.pop %v1058
    %v1060 = vadd.f32 %v1057, 1.0
    %v1061 = vlog2.pop %v1060
    %v1062 = vmul.f32 %v1061, 0.6931472
    %v1063 = vmul.f32 -0.5, %v1057
    %v1064 = vadd.f32 %v1063, 1.0
    %v1065 = vmul.f32 %v1064, %v1057
    %v1066 = vand.u32 2147483647, %v1057
    %vm1067 = vcmp.lt.f32.partialorder %v1066, 0.0004427343
    %v1068 = vsel %vm1067, %v1065, %v1062
    %v1069 = vadd.f32 %v1059, 1.0
    %v1070 = vlog2.pop %v1069
    %v1071 = vmul.f32 %v1070, 0.6931472
    %v1072 = vmul.f32 -0.5, %v1059
    %v1073 = vadd.f32 %v1072, 1.0
    %v1074 = vmul.f32 %v1073, %v1059
    %v1075 = vand.u32 2147483647, %v1059
    %vm1076 = vcmp.lt.f32.partialorder %v1075, 0.0004427343
    %v1077 = vsel %vm1076, %v1074, %v1071
    %v1078 = vadd.f32 %v1046, %v1068
    %v1079 = vadd.f32 %v1047, %v1077
    %v1080 = vsel %vm1048, %v1050, %v1078
    %v1081 = vsel %vm1049, %v1051, %v1079
    %v1082 = vpack.c.bf16 %v81, %v80
    %v1083 = vpack.c.bf16 %v1081, %v1080
    %v1085 = vsel %vm101, %v1082, 0
    %1087 = vmatprep.subr.bf16.mxu0 0
    %1088 = vmatpush1.bf16.msra.mxu0 %v1083
    %1089 = vmatprep.subr.bf16.mxu0 0
    %1090 = vmatpush1.bf16.msra.mxu0 0
    %1091 = vmatprep.subr.bf16.mxu0 0
    %1092 = vmatpush1.bf16.msra.mxu0 0
    %1093 = vmatprep.subr.bf16.mxu0 0
    %1094 = vmatpush1.bf16.msra.mxu0 0
    %1095 = vmatprep.subr.bf16.mxu0 0
    %1096 = vmatpush1.bf16.msra.mxu0 0
    %1097 = vmatprep.subr.bf16.mxu0 0
    %1098 = vmatpush1.bf16.msra.mxu0 0
    %1099 = vmatprep.subr.bf16.mxu0 0
    %1100 = vmatpush1.bf16.msra.mxu0 0
    %1101 = vmatprep.subr.bf16.mxu0 0
    %1102 = vmatpush1.bf16.msra.mxu0 0
    %1103 = vmatprep.subr.bf16.mxu0 0
    %1104 = vmatpush1.bf16.msra.mxu0 0
    %1105 = vmatprep.subr.bf16.mxu0 0
    %1106 = vmatpush1.bf16.msra.mxu0 0
    %1107 = vmatprep.subr.bf16.mxu0 0
    %1108 = vmatpush1.bf16.msra.mxu0 0
    %1109 = vmatprep.subr.bf16.mxu0 0
    %1110 = vmatpush1.bf16.msra.mxu0 0
    %1111 = vmatprep.subr.bf16.mxu0 0
    %1112 = vmatpush1.bf16.msra.mxu0 0
    %1113 = vmatprep.subr.bf16.mxu0 0
    %1114 = vmatpush1.bf16.msra.mxu0 0
    %1115 = vmatprep.subr.bf16.mxu0 0
    %1116 = vmatpush1.bf16.msra.mxu0 0
    %1117 = vmatprep.subr.bf16.mxu0 0
    %1118 = vmatpush1.bf16.msra.mxu0 0
    %1119 = vmatprep.mubr.bf16.mxu0 0
    %1120 = vmatmul.mubr.bf16.gmra.mrb[0].mxu0 %v1085
    %v1121 = vpop.f32.mrb[0].mxu0
    %v1122 = vadd.f32 0.0, %v1121
    %v1123 = vpop.f32.mrb[0].mxu0
    %v1124 = vpop.f32.mrb[0].mxu0
    %v1125 = vadd.f32 0.0, %v1124
    %v1126 = vpop.f32.mrb[0].mxu0
    %1127 = vdwg.mxu0
    %v1128 = vpack.c.bf16 %v85, %v84
    %v1130 = vsel %vm700, %v1128, 0
    %1132 = vmatprep.subr.bf16.mxu0 0
    %1133 = vmatpush1.bf16.msra.mxu0 %v706
    %1134 = vmatprep.subr.bf16.mxu0 0
    %1135 = vmatpush1.bf16.msra.mxu0 0
    %1136 = vmatprep.subr.bf16.mxu0 0
    %1137 = vmatpush1.bf16.msra.mxu0 0
    %1138 = vmatprep.subr.bf16.mxu0 0
    %1139 = vmatpush1.bf16.msra.mxu0 0
    %1140 = vmatprep.subr.bf16.mxu0 0
    %1141 = vmatpush1.bf16.msra.mxu0 0
    %1142 = vmatprep.subr.bf16.mxu0 0
    %1143 = vmatpush1.bf16.msra.mxu0 0
    %1144 = vmatprep.subr.bf16.mxu0 0
    %1145 = vmatpush1.bf16.msra.mxu0 0
    %1146 = vmatprep.subr.bf16.mxu0 0
    %1147 = vmatpush1.bf16.msra.mxu0 0
    %1148 = vmatprep.subr.bf16.mxu0 0
    %1149 = vmatpush1.bf16.msra.mxu0 0
    %1150 = vmatprep.subr.bf16.mxu0 0
    %1151 = vmatpush1.bf16.msra.mxu0 0
    %1152 = vmatprep.subr.bf16.mxu0 0
    %1153 = vmatpush1.bf16.msra.mxu0 0
    %1154 = vmatprep.subr.bf16.mxu0 0
    %1155 = vmatpush1.bf16.msra.mxu0 0
    %1156 = vmatprep.subr.bf16.mxu0 0
    %1157 = vmatpush1.bf16.msra.mxu0 0
    %1158 = vmatprep.subr.bf16.mxu0 0
    %1159 = vmatpush1.bf16.msra.mxu0 0
    %1160 = vmatprep.subr.bf16.mxu0 0
    %1161 = vmatpush1.bf16.msra.mxu0 0
    %1162 = vmatprep.subr.bf16.mxu0 0
    %1163 = vmatpush1.bf16.msra.mxu0 0
    %1164 = vmatprep.mubr.bf16.mxu0 0
    %1165 = vmatmul.mubr.bf16.gmra.mrb[0].mxu0 %v1130
    %v1166 = vpop.f32.mrb[0].mxu0
    %v1167 = vadd.f32 0.0, %v1166
    %v1168 = vpop.f32.mrb[0].mxu0
    %v1169 = vpop.f32.mrb[0].mxu0
    %v1170 = vadd.f32 0.0, %v1169
    %v1171 = vpop.f32.mrb[0].mxu0
    %1172 = vdwg.mxu0
    %v1173 = vld [vmem:[#allocation7 + $0x140] sm:$0x1]
    %v1174 = vld [vmem:[#allocation7 + $0x110] sm:$0xff]
    %v1175 = vld [vmem:[#allocation7 + $0x118] sm:$0xff]
    %v1176 = vpack.c.bf16 %v1175, %v1174
    %v1177 = vsel %vm101, %v603, 0
    %1179 = vmatprep.subr.bf16.mxu0 0
    %1180 = vmatpush1.bf16.msra.mxu0 %v1176
    %1181 = vmatprep.subr.bf16.mxu0 0
    %1182 = vmatpush1.bf16.msra.mxu0 0
    %1183 = vmatprep.subr.bf16.mxu0 0
    %1184 = vmatpush1.bf16.msra.mxu0 0
    %1185 = vmatprep.subr.bf16.mxu0 0
    %1186 = vmatpush1.bf16.msra.mxu0 0
    %1187 = vmatprep.subr.bf16.mxu0 0
    %1188 = vmatpush1.bf16.msra.mxu0 0
    %1189 = vmatprep.subr.bf16.mxu0 0
    %1190 = vmatpush1.bf16.msra.mxu0 0
    %1191 = vmatprep.subr.bf16.mxu0 0
    %1192 = vmatpush1.bf16.msra.mxu0 0
    %1193 = vmatprep.subr.bf16.mxu0 0
    %1194 = vmatpush1.bf16.msra.mxu0 0
    %1195 = vmatprep.subr.bf16.mxu0 0
    %1196 = vmatpush1.bf16.msra.mxu0 0
    %1197 = vmatprep.subr.bf16.mxu0 0
    %1198 = vmatpush1.bf16.msra.mxu0 0
    %1199 = vmatprep.subr.bf16.mxu0 0
    %1200 = vmatpush1.bf16.msra.mxu0 0
    %1201 = vmatprep.subr.bf16.mxu0 0
    %1202 = vmatpush1.bf16.msra.mxu0 0
    %1203 = vmatprep.subr.bf16.mxu0 0
    %1204 = vmatpush1.bf16.msra.mxu0 0
    %1205 = vmatprep.subr.bf16.mxu0 0
    %1206 = vmatpush1.bf16.msra.mxu0 0
    %1207 = vmatprep.subr.bf16.mxu0 0
    %1208 = vmatpush1.bf16.msra.mxu0 0
    %1209 = vmatprep.subr.bf16.mxu0 0
    %1210 = vmatpush1.bf16.msra.mxu0 0
    %1211 = vmatprep.mubr.bf16.mxu0 0
    %1212 = vmatmul.mubr.bf16.gmra.mrb[0].mxu0 %v1177
    %v1213 = vpop.f32.mrb[0].mxu0
    %v1214 = vadd.f32 0.0, %v1213
    %v1215 = vpop.f32.mrb[0].mxu0
    %v1216 = vpop.f32.mrb[0].mxu0
    %v1217 = vadd.f32 0.0, %v1216
    %v1218 = vpop.f32.mrb[0].mxu0
    %1219 = vdwg.mxu0
    %v1220 = vlaneseq
    %v1221 = vshrl.u32 %v1220, 7
    %v1222 = vsub.s32 0, %v1221
    %v1223 = vrot.slane %v1173, %v1222
    %v1224 = vadd.f32 %v1223, %v1214
    %v1225 = vadd.f32 %v1223, %v1217
    %v1226 = vld [vmem:[#allocation7 + $0x120] sm:$0xff]
    %v1227 = vld [vmem:[#allocation7 + $0x128] sm:$0xff]
    %v1228 = vpack.c.bf16 %v1125, %v1122
    %v1229 = vpack.c.bf16 %v1227, %v1226
    %v1231 = vsel %vm101, %v1228, 0
    %1233 = vmatprep.subr.bf16.mxu0 0
    %1234 = vmatpush1.bf16.msra.mxu0 %v1229
    %1235 = vmatprep.subr.bf16.mxu0 0
    %1236 = vmatpush1.bf16.msra.mxu0 0
    %1237 = vmatprep.subr.bf16.mxu0 0
    %1238 = vmatpush1.bf16.msra.mxu0 0
    %1239 = vmatprep.subr.bf16.mxu0 0
    %1240 = vmatpush1.bf16.msra.mxu0 0
    %1241 = vmatprep.subr.bf16.mxu0 0
    %1242 = vmatpush1.bf16.msra.mxu0 0
    %1243 = vmatprep.subr.bf16.mxu0 0
    %1244 = vmatpush1.bf16.msra.mxu0 0
    %1245 = vmatprep.subr.bf16.mxu0 0
    %1246 = vmatpush1.bf16.msra.mxu0 0
    %1247 = vmatprep.subr.bf16.mxu0 0
    %1248 = vmatpush1.bf16.msra.mxu0 0
    %1249 = vmatprep.subr.bf16.mxu0 0
    %1250 = vmatpush1.bf16.msra.mxu0 0
    %1251 = vmatprep.subr.bf16.mxu0 0
    %1252 = vmatpush1.bf16.msra.mxu0 0
    %1253 = vmatprep.subr.bf16.mxu0 0
    %1254 = vmatpush1.bf16.msra.mxu0 0
    %1255 = vmatprep.subr.bf16.mxu0 0
    %1256 = vmatpush1.bf16.msra.mxu0 0
    %1257 = vmatprep.subr.bf16.mxu0 0
    %1258 = vmatpush1.bf16.msra.mxu0 0
    %1259 = vmatprep.subr.bf16.mxu0 0
    %1260 = vmatpush1.bf16.msra.mxu0 0
    %1261 = vmatprep.subr.bf16.mxu0 0
    %1262 = vmatpush1.bf16.msra.mxu0 0
    %1263 = vmatprep.subr.bf16.mxu0 0
    %1264 = vmatpush1.bf16.msra.mxu0 0
    %1265 = vmatprep.mubr.bf16.mxu0 0
    %1266 = vmatmul.mubr.bf16.gmra.mrb[0].mxu0 %v1231
    %v1267 = vpop.f32.mrb[0].mxu0
    %v1268 = vadd.f32 0.0, %v1267
    %v1269 = vpop.f32.mrb[0].mxu0
    %v1270 = vpop.f32.mrb[0].mxu0
    %v1271 = vadd.f32 0.0, %v1270
    %v1272 = vpop.f32.mrb[0].mxu0
    %1273 = vdwg.mxu0
    %v1274 = vadd.f32 %v1224, %v1268
    %v1275 = vadd.f32 %v1225, %v1271
    %v1276 = vld [vmem:[#allocation7 + $0x130] sm:$0xff]
    %v1277 = vld [vmem:[#allocation7 + $0x138] sm:$0xff]
    %v1278 = vpack.c.bf16 %v1170, %v1167
    %v1279 = vpack.c.bf16 %v1277, %v1276
    %v1281 = vsel %vm101, %v1278, 0
    %1283 = vmatprep.subr.bf16.mxu0 0
    %1284 = vmatpush1.bf16.msra.mxu0 %v1279
    %1285 = vmatprep.subr.bf16.mxu0 0
    %1286 = vmatpush1.bf16.msra.mxu0 0
    %1287 = vmatprep.subr.bf16.mxu0 0
    %1288 = vmatpush1.bf16.msra.mxu0 0
    %1289 = vmatprep.subr.bf16.mxu0 0
    %1290 = vmatpush1.bf16.msra.mxu0 0
    %1291 = vmatprep.subr.bf16.mxu0 0
    %1292 = vmatpush1.bf16.msra.mxu0 0
    %1293 = vmatprep.subr.bf16.mxu0 0
    %1294 = vmatpush1.bf16.msra.mxu0 0
    %1295 = vmatprep.subr.bf16.mxu0 0
    %1296 = vmatpush1.bf16.msra.mxu0 0
    %1297 = vmatprep.subr.bf16.mxu0 0
    %1298 = vmatpush1.bf16.msra.mxu0 0
    %1299 = vmatprep.subr.bf16.mxu0 0
    %1300 = vmatpush1.bf16.msra.mxu0 0
    %1301 = vmatprep.subr.bf16.mxu0 0
    %1302 = vmatpush1.bf16.msra.mxu0 0
    %1303 = vmatprep.subr.bf16.mxu0 0
    %1304 = vmatpush1.bf16.msra.mxu0 0
    %1305 = vmatprep.subr.bf16.mxu0 0
    %1306 = vmatpush1.bf16.msra.mxu0 0
    %1307 = vmatprep.subr.bf16.mxu0 0
    %1308 = vmatpush1.bf16.msra.mxu0 0
    %1309 = vmatprep.subr.bf16.mxu0 0
    %1310 = vmatpush1.bf16.msra.mxu0 0
    %1311 = vmatprep.subr.bf16.mxu0 0
    %1312 = vmatpush1.bf16.msra.mxu0 0
    %1313 = vmatprep.subr.bf16.mxu0 0
    %1314 = vmatpush1.bf16.msra.mxu0 0
    %1315 = vmatprep.mubr.bf16.mxu0 0
    %1316 = vmatmul.mubr.bf16.gmra.mrb[0].mxu0 %v1281
    %v1317 = vpop.f32.mrb[0].mxu0
    %v1318 = vadd.f32 0.0, %v1317
    %v1319 = vpop.f32.mrb[0].mxu0
    %v1320 = vpop.f32.mrb[0].mxu0
    %v1321 = vadd.f32 0.0, %v1320
    %v1322 = vpop.f32.mrb[0].mxu0
    %1323 = vdwg.mxu0
    %v1324 = vadd.f32 %v1274, %v1318
    %v1325 = vadd.f32 %v1275, %v1321
    %v1326 = vmax.f32 %v1324, 0.0
    %v1327 = vmax.f32 %v1325, 0.0
    %vm1328 = vcmp.ne.f32.partialorder %v1324, %v1324
    %vm1329 = vcmp.ne.f32.partialorder %v1325, %v1325
    %v1330 = vadd.f32 %v1324, 0.0
    %v1331 = vadd.f32 %v1325, 0.0
    %v1332 = vand.u32 2147483647, %v1324
    %v1333 = vand.u32 2147483647, %v1325
    %v1334 = vsub.f32 0.0, %v1332
    %v1335 = vsub.f32 0.0, %v1333
    %v1336 = vmul.f32 %v1334, 1.442695
    %v1337 = vpow.pop %v1336
    %v1338 = vmul.f32 %v1335, 1.442695
    %v1339 = vpow.pop %v1338
    %v1340 = vadd.f32 %v1337, 1.0
    %v1341 = vlog2.pop %v1340
    %v1342 = vmul.f32 %v1341, 0.6931472
    %v1343 = vmul.f32 -0.5, %v1337
    %v1344 = vadd.f32 %v1343, 1.0
    %v1345 = vmul.f32 %v1344, %v1337
    %v1346 = vand.u32 2147483647, %v1337
    %vm1347 = vcmp.lt.f32.partialorder %v1346, 0.0004427343
    %v1348 = vsel %vm1347, %v1345, %v1342
    %v1349 = vadd.f32 %v1339, 1.0
    %v1350 = vlog2.pop %v1349
    %v1351 = vmul.f32 %v1350, 0.6931472
    %v1352 = vmul.f32 -0.5, %v1339
    %v1353 = vadd.f32 %v1352, 1.0
    %v1354 = vmul.f32 %v1353, %v1339
    %v1355 = vand.u32 2147483647, %v1339
    %vm1356 = vcmp.lt.f32.partialorder %v1355, 0.0004427343
    %v1357 = vsel %vm1356, %v1354, %v1351
    %v1358 = vadd.f32 %v1326, %v1348
    %v1359 = vadd.f32 %v1327, %v1357
    %v1360 = vsel %vm1328, %v1330, %v1358
    %v1361 = vsel %vm1329, %v1331, %v1359
    %v1362 = vld [vmem:[#allocation7 + $0x148] sm:$0xff]
    %v1363 = vld [vmem:[#allocation7 + $0x150] sm:$0xff]
    %v1364 = vld [vmem:[#allocation7 + $0x158] sm:$0xff]
    %v1365 = vld [vmem:[#allocation7 + $0x160] sm:$0xff]
    %v1366 = vpack.c.bf16 %v1361, %v1360
    %v1367 = vpack.c.bf16 %v1363, %v1362
    %v1368 = vpack.c.bf16 %v1365, %v1364
    %v1369 = vld [vmem:[#allocation7 + $0x168] sm:$0x1]
    %v1370 = vlaneseq
    %v1371 = vshrl.u32 %v1370, 7
    %v1372 = vsub.s32 0, %v1371
    %v1373 = vrot.slane %v1369, %v1372
    %v1375 = vsel %vm194, %v1366, 0
    %1377 = vmatprep.subr.bf16.mxu0 0
    %1378 = vmatpush1.bf16.msra.mxu0 %v1367
    %1379 = vmatprep.subr.bf16.mxu0 0
    %1380 = vmatpush1.bf16.msra.mxu0 %v1368
    %1381 = vmatprep.subr.bf16.mxu0 0
    %1382 = vmatpush1.bf16.msra.mxu0 0
    %1383 = vmatprep.subr.bf16.mxu0 0
    %1384 = vmatpush1.bf16.msra.mxu0 0
    %1385 = vmatprep.subr.bf16.mxu0 0
    %1386 = vmatpush1.bf16.msra.mxu0 0
    %1387 = vmatprep.subr.bf16.mxu0 0
    %1388 = vmatpush1.bf16.msra.mxu0 0
    %1389 = vmatprep.subr.bf16.mxu0 0
    %1390 = vmatpush1.bf16.msra.mxu0 0
    %1391 = vmatprep.subr.bf16.mxu0 0
    %1392 = vmatpush1.bf16.msra.mxu0 0
    %1393 = vmatprep.subr.bf16.mxu0 0
    %1394 = vmatpush1.bf16.msra.mxu0 0
    %1395 = vmatprep.subr.bf16.mxu0 0
    %1396 = vmatpush1.bf16.msra.mxu0 0
    %1397 = vmatprep.subr.bf16.mxu0 0
    %1398 = vmatpush1.bf16.msra.mxu0 0
    %1399 = vmatprep.subr.bf16.mxu0 0
    %1400 = vmatpush1.bf16.msra.mxu0 0
    %1401 = vmatprep.subr.bf16.mxu0 0
    %1402 = vmatpush1.bf16.msra.mxu0 0
    %1403 = vmatprep.subr.bf16.mxu0 0
    %1404 = vmatpush1.bf16.msra.mxu0 0
    %1405 = vmatprep.subr.bf16.mxu0 0
    %1406 = vmatpush1.bf16.msra.mxu0 0
    %1407 = vmatprep.subr.bf16.mxu0 0
    %1408 = vmatpush1.bf16.msra.mxu0 0
    %1409 = vmatprep.mubr.bf16.mxu0 0
    %1410 = vmatmul.mubr.bf16.gmra.mrb[0].mxu0 %v1375
    %v1411 = vpop.f32.mrb[0].mxu0
    %v1412 = vadd.f32 %v1373, %v1411
    %v1413 = vpop.f32.mrb[0].mxu0
    %v1414 = vpop.f32.mrb[0].mxu0
    %v1415 = vadd.f32 %v1373, %v1414
    %v1416 = vpop.f32.mrb[0].mxu0
    %1417 = vdwg.mxu0
    %v1418 = vmax.f32 %v1412, 0.0
    %v1419 = vmax.f32 %v1415, 0.0
    %vm1420 = vcmp.ne.f32.partialorder %v1412, %v1412
    %vm1421 = vcmp.ne.f32.partialorder %v1415, %v1415
    %v1422 = vadd.f32 %v1412, 0.0
    %v1423 = vadd.f32 %v1415, 0.0
    %v1424 = vand.u32 2147483647, %v1412
    %v1425 = vand.u32 2147483647, %v1415
    %v1426 = vsub.f32 0.0, %v1424
    %v1427 = vsub.f32 0.0, %v1425
    %v1428 = vmul.f32 %v1426, 1.442695
    %v1429 = vpow.pop %v1428
    %v1430 = vmul.f32 %v1427, 1.442695
    %v1431 = vpow.pop %v1430
    %v1432 = vadd.f32 %v1429, 1.0
    %v1433 = vlog2.pop %v1432
    %v1434 = vmul.f32 %v1433, 0.6931472
    %v1435 = vmul.f32 -0.5, %v1429
    %v1436 = vadd.f32 %v1435, 1.0
    %v1437 = vmul.f32 %v1436, %v1429
    %v1438 = vand.u32 2147483647, %v1429
    %vm1439 = vcmp.lt.f32.partialorder %v1438, 0.0004427343
    %v1440 = vsel %vm1439, %v1437, %v1434
    %v1441 = vadd.f32 %v1431, 1.0
    %v1442 = vlog2.pop %v1441
    %v1443 = vmul.f32 %v1442, 0.6931472
    %v1444 = vmul.f32 -0.5, %v1431
    %v1445 = vadd.f32 %v1444, 1.0
    %v1446 = vmul.f32 %v1445, %v1431
    %v1447 = vand.u32 2147483647, %v1431
    %vm1448 = vcmp.lt.f32.partialorder %v1447, 0.0004427343
    %v1449 = vsel %vm1448, %v1446, %v1443
    %v1450 = vadd.f32 %v1418, %v1440
    %v1451 = vadd.f32 %v1419, %v1449
    %v1452 = vsel %vm1420, %v1422, %v1450
    %v1453 = vsel %vm1421, %v1423, %v1451
    %v1454 = vpack.c.bf16 %v86, %v86
    %v1456 = vsel %vm101, %v1454, 0
    %1458 = vmatprep.subr.bf16.mxu0 0
    %1459 = vmatpush1.bf16.msra.mxu0 %v1083
    %1460 = vmatprep.subr.bf16.mxu0 0
    %1461 = vmatpush1.bf16.msra.mxu0 0
    %1462 = vmatprep.subr.bf16.mxu0 0
    %1463 = vmatpush1.bf16.msra.mxu0 0
    %1464 = vmatprep.subr.bf16.mxu0 0
    %1465 = vmatpush1.bf16.msra.mxu0 0
    %1466 = vmatprep.subr.bf16.mxu0 0
    %1467 = vmatpush1.bf16.msra.mxu0 0
    %1468 = vmatprep.subr.bf16.mxu0 0
    %1469 = vmatpush1.bf16.msra.mxu0 0
    %1470 = vmatprep.subr.bf16.mxu0 0
    %1471 = vmatpush1.bf16.msra.mxu0 0
    %1472 = vmatprep.subr.bf16.mxu0 0
    %1473 = vmatpush1.bf16.msra.mxu0 0
    %1474 = vmatprep.subr.bf16.mxu0 0
    %1475 = vmatpush1.bf16.msra.mxu0 0
    %1476 = vmatprep.subr.bf16.mxu0 0
    %1477 = vmatpush1.bf16.msra.mxu0 0
    %1478 = vmatprep.subr.bf16.mxu0 0
    %1479 = vmatpush1.bf16.msra.mxu0 0
    %1480 = vmatprep.subr.bf16.mxu0 0
    %1481 = vmatpush1.bf16.msra.mxu0 0
    %1482 = vmatprep.subr.bf16.mxu0 0
    %1483 = vmatpush1.bf16.msra.mxu0 0
    %1484 = vmatprep.subr.bf16.mxu0 0
    %1485 = vmatpush1.bf16.msra.mxu0 0
    %1486 = vmatprep.subr.bf16.mxu0 0
    %1487 = vmatpush1.bf16.msra.mxu0 0
    %1488 = vmatprep.subr.bf16.mxu0 0
    %1489 = vmatpush1.bf16.msra.mxu0 0
    %1490 = vmatprep.mubr.bf16.mxu0 0
    %1491 = vmatmul.mubr.bf16.gmra.mrb[0].mxu0 %v1456
    %v1492 = vpop.f32.mrb[0].mxu0
    %v1493 = vadd.f32 0.0, %v1492
    %v1494 = vpop.f32.mrb[0].mxu0
    %v1495 = vpop.f32.mrb[0].mxu0
    %v1496 = vpop.f32.mrb[0].mxu0
    %1497 = vdwg.mxu0
    %v1498 = vpack.c.bf16 %v87, %v87
    %v1499 = vpack.c.bf16 %v1453, %v1452
    %v1501 = vsel %vm604, %v1498, 0
    %v1504 = vsel %vm608, %v1499, 0
    %1506 = vmatprep.subr.bf16.mxu0 0
    %1507 = vmatpush1.bf16.msra.mxu0 %v1504
    %1508 = vmatprep.subr.bf16.mxu0 0
    %1509 = vmatpush1.bf16.msra.mxu0 0
    %1510 = vmatprep.subr.bf16.mxu0 0
    %1511 = vmatpush1.bf16.msra.mxu0 0
    %1512 = vmatprep.subr.bf16.mxu0 0
    %1513 = vmatpush1.bf16.msra.mxu0 0
    %1514 = vmatprep.subr.bf16.mxu0 0
    %1515 = vmatpush1.bf16.msra.mxu0 0
    %1516 = vmatprep.subr.bf16.mxu0 0
    %1517 = vmatpush1.bf16.msra.mxu0 0
    %1518 = vmatprep.subr.bf16.mxu0 0
    %1519 = vmatpush1.bf16.msra.mxu0 0
    %1520 = vmatprep.subr.bf16.mxu0 0
    %1521 = vmatpush1.bf16.msra.mxu0 0
    %1522 = vmatprep.subr.bf16.mxu0 0
    %1523 = vmatpush1.bf16.msra.mxu0 0
    %1524 = vmatprep.subr.bf16.mxu0 0
    %1525 = vmatpush1.bf16.msra.mxu0 0
    %1526 = vmatprep.subr.bf16.mxu0 0
    %1527 = vmatpush1.bf16.msra.mxu0 0
    %1528 = vmatprep.subr.bf16.mxu0 0
    %1529 = vmatpush1.bf16.msra.mxu0 0
    %1530 = vmatprep.subr.bf16.mxu0 0
    %1531 = vmatpush1.bf16.msra.mxu0 0
    %1532 = vmatprep.subr.bf16.mxu0 0
    %1533 = vmatpush1.bf16.msra.mxu0 0
    %1534 = vmatprep.subr.bf16.mxu0 0
    %1535 = vmatpush1.bf16.msra.mxu0 0
    %1536 = vmatprep.subr.bf16.mxu0 0
    %1537 = vmatpush1.bf16.msra.mxu0 0
    %1538 = vmatprep.mubr.bf16.mxu0 0
    %1539 = vmatmul.mubr.bf16.gmra.mrb[0].mxu0 %v1501
    %v1540 = vpop.f32.mrb[0].mxu0
    %v1541 = vadd.f32 0.0, %v1540
    %v1542 = vpop.f32.mrb[0].mxu0
    %v1543 = vpop.f32.mrb[0].mxu0
    %v1544 = vpop.f32.mrb[0].mxu0
    %1545 = vdwg.mxu0
    %v1546 = vld [vmem:[#allocation7 + $0x70] sm:$0x1]
    %v1547 = vld [vmem:[#allocation7 + $0x40] sm:$0xff]
    %v1548 = vld [vmem:[#allocation7 + $0x48] sm:$0xff]
    %v1549 = vpack.c.bf16 %v1548, %v1547
    %v1550 = vsel %vm101, %v699, 0
    %1552 = vmatprep.subr.bf16.mxu0 0
    %1553 = vmatpush1.bf16.msra.mxu0 %v1549
    %1554 = vmatprep.subr.bf16.mxu0 0
    %1555 = vmatpush1.bf16.msra.mxu0 0
    %1556 = vmatprep.subr.bf16.mxu0 0
    %1557 = vmatpush1.bf16.msra.mxu0 0
    %1558 = vmatprep.subr.bf16.mxu0 0
    %1559 = vmatpush1.bf16.msra.mxu0 0
    %1560 = vmatprep.subr.bf16.mxu0 0
    %1561 = vmatpush1.bf16.msra.mxu0 0
    %1562 = vmatprep.subr.bf16.mxu0 0
    %1563 = vmatpush1.bf16.msra.mxu0 0
    %1564 = vmatprep.subr.bf16.mxu0 0
    %1565 = vmatpush1.bf16.msra.mxu0 0
    %1566 = vmatprep.subr.bf16.mxu0 0
    %1567 = vmatpush1.bf16.msra.mxu0 0
    %1568 = vmatprep.subr.bf16.mxu0 0
    %1569 = vmatpush1.bf16.msra.mxu0 0
    %1570 = vmatprep.subr.bf16.mxu0 0
    %1571 = vmatpush1.bf16.msra.mxu0 0
    %1572 = vmatprep.subr.bf16.mxu0 0
    %1573 = vmatpush1.bf16.msra.mxu0 0
    %1574 = vmatprep.subr.bf16.mxu0 0
    %1575 = vmatpush1.bf16.msra.mxu0 0
    %1576 = vmatprep.subr.bf16.mxu0 0
    %1577 = vmatpush1.bf16.msra.mxu0 0
    %1578 = vmatprep.subr.bf16.mxu0 0
    %1579 = vmatpush1.bf16.msra.mxu0 0
    %1580 = vmatprep.subr.bf16.mxu0 0
    %1581 = vmatpush1.bf16.msra.mxu0 0
    %1582 = vmatprep.subr.bf16.mxu0 0
    %1583 = vmatpush1.bf16.msra.mxu0 0
    %1584 = vmatprep.mubr.bf16.mxu0 0
    %1585 = vmatmul.mubr.bf16.gmra.mrb[0].mxu0 %v1550
    %v1586 = vpop.f32.mrb[0].mxu0
    %v1587 = vadd.f32 0.0, %v1586
    %v1588 = vpop.f32.mrb[0].mxu0
    %v1589 = vpop.f32.mrb[0].mxu0
    %v1590 = vpop.f32.mrb[0].mxu0
    %1591 = vdwg.mxu0
    %v1592 = vlaneseq
    %v1593 = vshrl.u32 %v1592, 7
    %v1594 = vsub.s32 0, %v1593
    %v1595 = vrot.slane %v1546, %v1594
    %v1596 = vadd.f32 %v1595, %v1587
    %v1597 = vld [vmem:[#allocation7 + $0x50] sm:$0xff]
    %v1598 = vld [vmem:[#allocation7 + $0x58] sm:$0xff]
    %v1599 = vpack.c.bf16 %v1493, %v1493
    %v1600 = vpack.c.bf16 %v1598, %v1597
    %v1602 = vsel %vm101, %v1599, 0
    %1604 = vmatprep.subr.bf16.mxu0 0
    %1605 = vmatpush1.bf16.msra.mxu0 %v1600
    %1606 = vmatprep.subr.bf16.mxu0 0
    %1607 = vmatpush1.bf16.msra.mxu0 0
    %1608 = vmatprep.subr.bf16.mxu0 0
    %1609 = vmatpush1.bf16.msra.mxu0 0
    %1610 = vmatprep.subr.bf16.mxu0 0
    %1611 = vmatpush1.bf16.msra.mxu0 0
    %1612 = vmatprep.subr.bf16.mxu0 0
    %1613 = vmatpush1.bf16.msra.mxu0 0
    %1614 = vmatprep.subr.bf16.mxu0 0
    %1615 = vmatpush1.bf16.msra.mxu0 0
    %1616 = vmatprep.subr.bf16.mxu0 0
    %1617 = vmatpush1.bf16.msra.mxu0 0
    %1618 = vmatprep.subr.bf16.mxu0 0
    %1619 = vmatpush1.bf16.msra.mxu0 0
    %1620 = vmatprep.subr.bf16.mxu0 0
    %1621 = vmatpush1.bf16.msra.mxu0 0
    %1622 = vmatprep.subr.bf16.mxu0 0
    %1623 = vmatpush1.bf16.msra.mxu0 0
    %1624 = vmatprep.subr.bf16.mxu0 0
    %1625 = vmatpush1.bf16.msra.mxu0 0
    %1626 = vmatprep.subr.bf16.mxu0 0
    %1627 = vmatpush1.bf16.msra.mxu0 0
    %1628 = vmatprep.subr.bf16.mxu0 0
    %1629 = vmatpush1.bf16.msra.mxu0 0
    %1630 = vmatprep.subr.bf16.mxu0 0
    %1631 = vmatpush1.bf16.msra.mxu0 0
    %1632 = vmatprep.subr.bf16.mxu0 0
    %1633 = vmatpush1.bf16.msra.mxu0 0
    %1634 = vmatprep.subr.bf16.mxu0 0
    %1635 = vmatpush1.bf16.msra.mxu0 0
    %1636 = vmatprep.mubr.bf16.mxu0 0
    %1637 = vmatmul.mubr.bf16.gmra.mrb[0].mxu0 %v1602
    %v1638 = vpop.f32.mrb[0].mxu0
    %v1639 = vadd.f32 0.0, %v1638
    %v1640 = vpop.f32.mrb[0].mxu0
    %v1641 = vpop.f32.mrb[0].mxu0
    %v1642 = vpop.f32.mrb[0].mxu0
    %1643 = vdwg.mxu0
    %v1644 = vadd.f32 %v1596, %v1639
    %v1645 = vld [vmem:[#allocation7 + $0x60] sm:$0xff]
    %v1646 = vld [vmem:[#allocation7 + $0x68] sm:$0xff]
    %v1647 = vpack.c.bf16 %v1541, %v1541
    %v1648 = vpack.c.bf16 %v1646, %v1645
    %v1650 = vsel %vm101, %v1647, 0
    %1652 = vmatprep.subr.bf16.mxu0 0
    %1653 = vmatpush1.bf16.msra.mxu0 %v1648
    %1654 = vmatprep.subr.bf16.mxu0 0
    %1655 = vmatpush1.bf16.msra.mxu0 0
    %1656 = vmatprep.subr.bf16.mxu0 0
    %1657 = vmatpush1.bf16.msra.mxu0 0
    %1658 = vmatprep.subr.bf16.mxu0 0
    %1659 = vmatpush1.bf16.msra.mxu0 0
    %1660 = vmatprep.subr.bf16.mxu0 0
    %1661 = vmatpush1.bf16.msra.mxu0 0
    %1662 = vmatprep.subr.bf16.mxu0 0
    %1663 = vmatpush1.bf16.msra.mxu0 0
    %1664 = vmatprep.subr.bf16.mxu0 0
    %1665 = vmatpush1.bf16.msra.mxu0 0
    %1666 = vmatprep.subr.bf16.mxu0 0
    %1667 = vmatpush1.bf16.msra.mxu0 0
    %1668 = vmatprep.subr.bf16.mxu0 0
    %1669 = vmatpush1.bf16.msra.mxu0 0
    %1670 = vmatprep.subr.bf16.mxu0 0
    %1671 = vmatpush1.bf16.msra.mxu0 0
    %1672 = vmatprep.subr.bf16.mxu0 0
    %1673 = vmatpush1.bf16.msra.mxu0 0
    %1674 = vmatprep.subr.bf16.mxu0 0
    %1675 = vmatpush1.bf16.msra.mxu0 0
    %1676 = vmatprep.subr.bf16.mxu0 0
    %1677 = vmatpush1.bf16.msra.mxu0 0
    %1678 = vmatprep.subr.bf16.mxu0 0
    %1679 = vmatpush1.bf16.msra.mxu0 0
    %1680 = vmatprep.subr.bf16.mxu0 0
    %1681 = vmatpush1.bf16.msra.mxu0 0
    %1682 = vmatprep.subr.bf16.mxu0 0
    %1683 = vmatpush1.bf16.msra.mxu0 0
    %1684 = vmatprep.mubr.bf16.mxu0 0
    %1685 = vmatmul.mubr.bf16.gmra.mrb[0].mxu0 %v1650
    %v1686 = vpop.f32.mrb[0].mxu0
    %v1687 = vadd.f32 0.0, %v1686
    %v1688 = vpop.f32.mrb[0].mxu0
    %v1689 = vpop.f32.mrb[0].mxu0
    %v1690 = vpop.f32.mrb[0].mxu0
    %1691 = vdwg.mxu0
    %v1692 = vadd.f32 %v1644, %v1687
    %v1693 = vmax.f32 %v1692, 0.0
    %vm1694 = vcmp.ne.f32.partialorder %v1692, %v1692
    %v1695 = vadd.f32 %v1692, 0.0
    %v1696 = vand.u32 2147483647, %v1692
    %v1697 = vsub.f32 0.0, %v1696
    %v1698 = vmul.f32 %v1697, 1.442695
    %v1699 = vpow.pop %v1698
    %v1700 = vadd.f32 %v1699, 1.0
    %v1701 = vlog2.pop %v1700
    %v1702 = vmul.f32 %v1701, 0.6931472
    %v1703 = vmul.f32 -0.5, %v1699
    %v1704 = vadd.f32 %v1703, 1.0
    %v1705 = vmul.f32 %v1704, %v1699
    %v1706 = vand.u32 2147483647, %v1699
    %vm1707 = vcmp.lt.f32.partialorder %v1706, 0.0004427343
    %v1708 = vsel %vm1707, %v1705, %v1702
    %v1709 = vadd.f32 %v1693, %v1708
    %v1710 = vsel %vm1694, %v1695, %v1709
    %v1711 = vld [vmem:[#allocation7 + $0x78] sm:$0xff]
    %v1712 = vld [vmem:[#allocation7 + $0x80] sm:$0xff]
    %v1713 = vld [vmem:[#allocation7 + $0x88] sm:$0xff]
    %v1714 = vld [vmem:[#allocation7 + $0x90] sm:$0xff]
    %v1715 = vpack.c.bf16 %v1710, %v1710
    %v1716 = vpack.c.bf16 %v1712, %v1711
    %v1717 = vpack.c.bf16 %v1714, %v1713
    %v1718 = vld [vmem:[#allocation7 + $0x98] sm:$0x1]
    %v1719 = vlaneseq
    %v1720 = vshrl.u32 %v1719, 7
    %v1721 = vsub.s32 0, %v1720
    %v1722 = vrot.slane %v1718, %v1721
    %v1724 = vsel %vm194, %v1715, 0
    %1726 = vmatprep.subr.bf16.mxu0 0
    %1727 = vmatpush1.bf16.msra.mxu0 %v1716
    %1728 = vmatprep.subr.bf16.mxu0 0
    %1729 = vmatpush1.bf16.msra.mxu0 %v1717
    %1730 = vmatprep.subr.bf16.mxu0 0
    %1731 = vmatpush1.bf16.msra.mxu0 0
    %1732 = vmatprep.subr.bf16.mxu0 0
    %1733 = vmatpush1.bf16.msra.mxu0 0
    %1734 = vmatprep.subr.bf16.mxu0 0
    %1735 = vmatpush1.bf16.msra.mxu0 0
    %1736 = vmatprep.subr.bf16.mxu0 0
    %1737 = vmatpush1.bf16.msra.mxu0 0
    %1738 = vmatprep.subr.bf16.mxu0 0
    %1739 = vmatpush1.bf16.msra.mxu0 0
    %1740 = vmatprep.subr.bf16.mxu0 0
    %1741 = vmatpush1.bf16.msra.mxu0 0
    %1742 = vmatprep.subr.bf16.mxu0 0
    %1743 = vmatpush1.bf16.msra.mxu0 0
    %1744 = vmatprep.subr.bf16.mxu0 0
    %1745 = vmatpush1.bf16.msra.mxu0 0
    %1746 = vmatprep.subr.bf16.mxu0 0
    %1747 = vmatpush1.bf16.msra.mxu0 0
    %1748 = vmatprep.subr.bf16.mxu0 0
    %1749 = vmatpush1.bf16.msra.mxu0 0
    %1750 = vmatprep.subr.bf16.mxu0 0
    %1751 = vmatpush1.bf16.msra.mxu0 0
    %1752 = vmatprep.subr.bf16.mxu0 0
    %1753 = vmatpush1.bf16.msra.mxu0 0
    %1754 = vmatprep.subr.bf16.mxu0 0
    %1755 = vmatpush1.bf16.msra.mxu0 0
    %1756 = vmatprep.subr.bf16.mxu0 0
    %1757 = vmatpush1.bf16.msra.mxu0 0
    %1758 = vmatprep.mubr.bf16.mxu0 0
    %1759 = vmatmul.mubr.bf16.gmra.mrb[0].mxu0 %v1724
    %v1760 = vpop.f32.mrb[0].mxu0
    %v1761 = vadd.f32 %v1722, %v1760
    %v1762 = vpop.f32.mrb[0].mxu0
    %v1763 = vpop.f32.mrb[0].mxu0
    %v1764 = vpop.f32.mrb[0].mxu0
    %1765 = vdwg.mxu0
    %v1766 = vmax.f32 %v1761, 0.0
    %vm1767 = vcmp.ne.f32.partialorder %v1761, %v1761
    %v1768 = vadd.f32 %v1761, 0.0
    %v1769 = vand.u32 2147483647, %v1761
    %v1770 = vsub.f32 0.0, %v1769
    %v1771 = vmul.f32 %v1770, 1.442695
    %v1772 = vpow.pop %v1771
    %v1773 = vadd.f32 %v1772, 1.0
    %v1774 = vlog2.pop %v1773
    %v1775 = vmul.f32 %v1774, 0.6931472
    %v1776 = vmul.f32 -0.5, %v1772
    %v1777 = vadd.f32 %v1776, 1.0
    %v1778 = vmul.f32 %v1777, %v1772
    %v1779 = vand.u32 2147483647, %v1772
    %vm1780 = vcmp.lt.f32.partialorder %v1779, 0.0004427343
    %v1781 = vsel %vm1780, %v1778, %v1775
    %v1782 = vadd.f32 %v1766, %v1781
    %v1783 = vsel %vm1767, %v1768, %v1782
    %v1784 = vadd.f32 %v1080, %v273
    %v1785 = vadd.f32 %v1081, %v274
    %v1786 = vadd.f32 %v1452, %v456
    %v1787 = vadd.f32 %v1453, %v457
    %v1788 = vadd.f32 %v1783, %v601
    %v1789 = vld [vmem:[#allocation7 + $0x2e0] sm:$0xff]
    %v1790 = vld [vmem:[#allocation7 + $0x2e8] sm:$0xff]
    %v1791 = vpack.c.bf16 %v1785, %v1784
    %v1792 = vpack.c.bf16 %v1790, %v1789
    %v1793 = vld [vmem:[#allocation7 + $0x2f0] sm:$0x1]
    %v1794 = vlaneseq
    %v1795 = vshrl.u32 %v1794, 7
    %v1796 = vsub.s32 0, %v1795
    %v1797 = vrot.slane %v1793, %v1796
    %v1799 = vsel %vm101, %v1791, 0
    %1801 = vmatprep.subr.bf16.mxu0 0
    %1802 = vmatpush1.bf16.msra.mxu0 %v1792
    %1803 = vmatprep.subr.bf16.mxu0 0
    %1804 = vmatpush1.bf16.msra.mxu0 0
    %1805 = vmatprep.subr.bf16.mxu0 0
    %1806 = vmatpush1.bf16.msra.mxu0 0
    %1807 = vmatprep.subr.bf16.mxu0 0
    %1808 = vmatpush1.bf16.msra.mxu0 0
    %1809 = vmatprep.subr.bf16.mxu0 0
    %1810 = vmatpush1.bf16.msra.mxu0 0
    %1811 = vmatprep.subr.bf16.mxu0 0
    %1812 = vmatpush1.bf16.msra.mxu0 0
    %1813 = vmatprep.subr.bf16.mxu0 0
    %1814 = vmatpush1.bf16.msra.mxu0 0
    %1815 = vmatprep.subr.bf16.mxu0 0
    %1816 = vmatpush1.bf16.msra.mxu0 0
    %1817 = vmatprep.subr.bf16.mxu0 0
    %1818 = vmatpush1.bf16.msra.mxu0 0
    %1819 = vmatprep.subr.bf16.mxu0 0
    %1820 = vmatpush1.bf16.msra.mxu0 0
    %1821 = vmatprep.subr.bf16.mxu0 0
    %1822 = vmatpush1.bf16.msra.mxu0 0
    %1823 = vmatprep.subr.bf16.mxu0 0
    %1824 = vmatpush1.bf16.msra.mxu0 0
    %1825 = vmatprep.subr.bf16.mxu0 0
    %1826 = vmatpush1.bf16.msra.mxu0 0
    %1827 = vmatprep.subr.bf16.mxu0 0
    %1828 = vmatpush1.bf16.msra.mxu0 0
    %1829 = vmatprep.subr.bf16.mxu0 0
    %1830 = vmatpush1.bf16.msra.mxu0 0
    %1831 = vmatprep.subr.bf16.mxu0 0
    %1832 = vmatpush1.bf16.msra.mxu0 0
    %1833 = vmatprep.mubr.bf16.mxu0 0
    %1834 = vmatmul.mubr.bf16.gmra.mrb[0].mxu0 %v1799
    %v1835 = vpop.f32.mrb[0].mxu0
    %v1836 = vadd.f32 %v1797, %v1835
    %v1837 = vpop.f32.mrb[0].mxu0
    %v1838 = vpop.f32.mrb[0].mxu0
    %v1839 = vadd.f32 %v1797, %v1838
    %v1840 = vpop.f32.mrb[0].mxu0
    %1841 = vdwg.mxu0
    %v1842 = vmax.f32 %v1836, 0.0
    %v1843 = vmax.f32 %v1839, 0.0
    %vm1844 = vcmp.ne.f32.partialorder %v1836, %v1836
    %vm1845 = vcmp.ne.f32.partialorder %v1839, %v1839
    %v1846 = vadd.f32 %v1836, 0.0
    %v1847 = vadd.f32 %v1839, 0.0
    %v1848 = vand.u32 2147483647, %v1836
    %v1849 = vand.u32 2147483647, %v1839
    %v1850 = vsub.f32 0.0, %v1848
    %v1851 = vsub.f32 0.0, %v1849
    %v1852 = vmul.f32 %v1850, 1.442695
    %v1853 = vpow.pop %v1852
    %v1854 = vmul.f32 %v1851, 1.442695
    %v1855 = vpow.pop %v1854
    %v1856 = vadd.f32 %v1853, 1.0
    %v1857 = vlog2.pop %v1856
    %v1858 = vmul.f32 %v1857, 0.6931472
    %v1859 = vmul.f32 -0.5, %v1853
    %v1860 = vadd.f32 %v1859, 1.0
    %v1861 = vmul.f32 %v1860, %v1853
    %v1862 = vand.u32 2147483647, %v1853
    %vm1863 = vcmp.lt.f32.partialorder %v1862, 0.0004427343
    %v1864 = vsel %vm1863, %v1861, %v1858
    %v1865 = vadd.f32 %v1855, 1.0
    %v1866 = vlog2.pop %v1865
    %v1867 = vmul.f32 %v1866, 0.6931472
    %v1868 = vmul.f32 -0.5, %v1855
    %v1869 = vadd.f32 %v1868, 1.0
    %v1870 = vmul.f32 %v1869, %v1855
    %v1871 = vand.u32 2147483647, %v1855
    %vm1872 = vcmp.lt.f32.partialorder %v1871, 0.0004427343
    %v1873 = vsel %vm1872, %v1870, %v1867
    %v1874 = vadd.f32 %v1842, %v1864
    %v1875 = vadd.f32 %v1843, %v1873
    %v1876 = vsel %vm1844, %v1846, %v1874
    %v1877 = vsel %vm1845, %v1847, %v1875
    %v1878 = vld [vmem:[#allocation7 + $0x2f8] sm:$0xff]
    %v1879 = vld [vmem:[#allocation7 + $0x300] sm:$0xff]
    %v1880 = vld [vmem:[#allocation7 + $0x308] sm:$0xff]
    %v1881 = vld [vmem:[#allocation7 + $0x310] sm:$0xff]
    %v1882 = vpack.c.bf16 %v1877, %v1876
    %v1883 = vpack.c.bf16 %v1879, %v1878
    %v1884 = vpack.c.bf16 %v1881, %v1880
    %v1885 = vld [vmem:[#allocation7 + $0x318] sm:$0x1]
    %v1886 = vlaneseq
    %v1887 = vshrl.u32 %v1886, 7
    %v1888 = vsub.s32 0, %v1887
    %v1889 = vrot.slane %v1885, %v1888
    %v1891 = vsel %vm194, %v1882, 0
    %1893 = vmatprep.subr.bf16.mxu0 0
    %1894 = vmatpush1.bf16.msra.mxu0 %v1883
    %1895 = vmatprep.subr.bf16.mxu0 0
    %1896 = vmatpush1.bf16.msra.mxu0 %v1884
    %1897 = vmatprep.subr.bf16.mxu0 0
    %1898 = vmatpush1.bf16.msra.mxu0 0
    %1899 = vmatprep.subr.bf16.mxu0 0
    %1900 = vmatpush1.bf16.msra.mxu0 0
    %1901 = vmatprep.subr.bf16.mxu0 0
    %1902 = vmatpush1.bf16.msra.mxu0 0
    %1903 = vmatprep.subr.bf16.mxu0 0
    %1904 = vmatpush1.bf16.msra.mxu0 0
    %1905 = vmatprep.subr.bf16.mxu0 0
    %1906 = vmatpush1.bf16.msra.mxu0 0
    %1907 = vmatprep.subr.bf16.mxu0 0
    %1908 = vmatpush1.bf16.msra.mxu0 0
    %1909 = vmatprep.subr.bf16.mxu0 0
    %1910 = vmatpush1.bf16.msra.mxu0 0
    %1911 = vmatprep.subr.bf16.mxu0 0
    %1912 = vmatpush1.bf16.msra.mxu0 0
    %1913 = vmatprep.subr.bf16.mxu0 0
    %1914 = vmatpush1.bf16.msra.mxu0 0
    %1915 = vmatprep.subr.bf16.mxu0 0
    %1916 = vmatpush1.bf16.msra.mxu0 0
    %1917 = vmatprep.subr.bf16.mxu0 0
    %1918 = vmatpush1.bf16.msra.mxu0 0
    %1919 = vmatprep.subr.bf16.mxu0 0
    %1920 = vmatpush1.bf16.msra.mxu0 0
    %1921 = vmatprep.subr.bf16.mxu0 0
    %1922 = vmatpush1.bf16.msra.mxu0 0
    %1923 = vmatprep.subr.bf16.mxu0 0
    %1924 = vmatpush1.bf16.msra.mxu0 0
    %1925 = vmatprep.mubr.bf16.mxu0 0
    %1926 = vmatmul.mubr.bf16.gmra.mrb[0].mxu0 %v1891
    %v1927 = vpop.f32.mrb[0].mxu0
    %v1928 = vadd.f32 %v1889, %v1927
    %v1929 = vpop.f32.mrb[0].mxu0
    %v1930 = vpop.f32.mrb[0].mxu0
    %v1931 = vadd.f32 %v1889, %v1930
    %v1932 = vpop.f32.mrb[0].mxu0
    %1933 = vdwg.mxu0
    %v1934 = vmax.f32 %v1928, 0.0
    %v1935 = vmax.f32 %v1931, 0.0
    %vm1936 = vcmp.ne.f32.partialorder %v1928, %v1928
    %vm1937 = vcmp.ne.f32.partialorder %v1931, %v1931
    %v1938 = vadd.f32 %v1928, 0.0
    %v1939 = vadd.f32 %v1931, 0.0
    %v1940 = vand.u32 2147483647, %v1928
    %v1941 = vand.u32 2147483647, %v1931
    %v1942 = vsub.f32 0.0, %v1940
    %v1943 = vsub.f32 0.0, %v1941
    %v1944 = vmul.f32 %v1942, 1.442695
    %v1945 = vpow.pop %v1944
    %v1946 = vmul.f32 %v1943, 1.442695
    %v1947 = vpow.pop %v1946
    %v1948 = vadd.f32 %v1945, 1.0
    %v1949 = vlog2.pop %v1948
    %v1950 = vmul.f32 %v1949, 0.6931472
    %v1951 = vmul.f32 -0.5, %v1945
    %v1952 = vadd.f32 %v1951, 1.0
    %v1953 = vmul.f32 %v1952, %v1945
    %v1954 = vand.u32 2147483647, %v1945
    %vm1955 = vcmp.lt.f32.partialorder %v1954, 0.0004427343
    %v1956 = vsel %vm1955, %v1953, %v1950
    %v1957 = vadd.f32 %v1947, 1.0
    %v1958 = vlog2.pop %v1957
    %v1959 = vmul.f32 %v1958, 0.6931472
    %v1960 = vmul.f32 -0.5, %v1947
    %v1961 = vadd.f32 %v1960, 1.0
    %v1962 = vmul.f32 %v1961, %v1947
    %v1963 = vand.u32 2147483647, %v1947
    %vm1964 = vcmp.lt.f32.partialorder %v1963, 0.0004427343
    %v1965 = vsel %vm1964, %v1962, %v1959
    %v1966 = vadd.f32 %v1934, %v1956
    %v1967 = vadd.f32 %v1935, %v1965
    %v1968 = vsel %vm1936, %v1938, %v1966
    %v1969 = vsel %vm1937, %v1939, %v1967
    %v1970 = vld [vmem:[#allocation7 + $0x320] sm:$0xff]
    %v1971 = vld [vmem:[#allocation7 + $0x328] sm:$0xff]
    %v1972 = vpack.c.bf16 %v1787, %v1786
    %v1973 = vpack.c.bf16 %v1971, %v1970
    %v1974 = vld [vmem:[#allocation7 + $0x330] sm:$0x1]
    %v1975 = vlaneseq
    %v1976 = vshrl.u32 %v1975, 7
    %v1977 = vsub.s32 0, %v1976
    %v1978 = vrot.slane %v1974, %v1977
    %v1980 = vsel %vm101, %v1972, 0
    %1982 = vmatprep.subr.bf16.mxu0 0
    %1983 = vmatpush1.bf16.msra.mxu0 %v1973
    %1984 = vmatprep.subr.bf16.mxu0 0
    %1985 = vmatpush1.bf16.msra.mxu0 0
    %1986 = vmatprep.subr.bf16.mxu0 0
    %1987 = vmatpush1.bf16.msra.mxu0 0
    %1988 = vmatprep.subr.bf16.mxu0 0
    %1989 = vmatpush1.bf16.msra.mxu0 0
    %1990 = vmatprep.subr.bf16.mxu0 0
    %1991 = vmatpush1.bf16.msra.mxu0 0
    %1992 = vmatprep.subr.bf16.mxu0 0
    %1993 = vmatpush1.bf16.msra.mxu0 0
    %1994 = vmatprep.subr.bf16.mxu0 0
    %1995 = vmatpush1.bf16.msra.mxu0 0
    %1996 = vmatprep.subr.bf16.mxu0 0
    %1997 = vmatpush1.bf16.msra.mxu0 0
    %1998 = vmatprep.subr.bf16.mxu0 0
    %1999 = vmatpush1.bf16.msra.mxu0 0
    %2000 = vmatprep.subr.bf16.mxu0 0
    %2001 = vmatpush1.bf16.msra.mxu0 0
    %2002 = vmatprep.subr.bf16.mxu0 0
    %2003 = vmatpush1.bf16.msra.mxu0 0
    %2004 = vmatprep.subr.bf16.mxu0 0
    %2005 = vmatpush1.bf16.msra.mxu0 0
    %2006 = vmatprep.subr.bf16.mxu0 0
    %2007 = vmatpush1.bf16.msra.mxu0 0
    %2008 = vmatprep.subr.bf16.mxu0 0
    %2009 = vmatpush1.bf16.msra.mxu0 0
    %2010 = vmatprep.subr.bf16.mxu0 0
    %2011 = vmatpush1.bf16.msra.mxu0 0
    %2012 = vmatprep.subr.bf16.mxu0 0
    %2013 = vmatpush1.bf16.msra.mxu0 0
    %2014 = vmatprep.mubr.bf16.mxu0 0
    %2015 = vmatmul.mubr.bf16.gmra.mrb[0].mxu0 %v1980
    %v2016 = vpop.f32.mrb[0].mxu0
    %v2017 = vadd.f32 %v1978, %v2016
    %v2018 = vpop.f32.mrb[0].mxu0
    %v2019 = vpop.f32.mrb[0].mxu0
    %v2020 = vadd.f32 %v1978, %v2019
    %v2021 = vpop.f32.mrb[0].mxu0
    %2022 = vdwg.mxu0
    %v2023 = vmax.f32 %v2017, 0.0
    %v2024 = vmax.f32 %v2020, 0.0
    %vm2025 = vcmp.ne.f32.partialorder %v2017, %v2017
    %vm2026 = vcmp.ne.f32.partialorder %v2020, %v2020
    %v2027 = vadd.f32 %v2017, 0.0
    %v2028 = vadd.f32 %v2020, 0.0
    %v2029 = vand.u32 2147483647, %v2017
    %v2030 = vand.u32 2147483647, %v2020
    %v2031 = vsub.f32 0.0, %v2029
    %v2032 = vsub.f32 0.0, %v2030
    %v2033 = vmul.f32 %v2031, 1.442695
    %v2034 = vpow.pop %v2033
    %v2035 = vmul.f32 %v2032, 1.442695
    %v2036 = vpow.pop %v2035
    %v2037 = vadd.f32 %v2034, 1.0
    %v2038 = vlog2.pop %v2037
    %v2039 = vmul.f32 %v2038, 0.6931472
    %v2040 = vmul.f32 -0.5, %v2034
    %v2041 = vadd.f32 %v2040, 1.0
    %v2042 = vmul.f32 %v2041, %v2034
    %v2043 = vand.u32 2147483647, %v2034
    %vm2044 = vcmp.lt.f32.partialorder %v2043, 0.0004427343
    %v2045 = vsel %vm2044, %v2042, %v2039
    %v2046 = vadd.f32 %v2036, 1.0
    %v2047 = vlog2.pop %v2046
    %v2048 = vmul.f32 %v2047, 0.6931472
    %v2049 = vmul.f32 -0.5, %v2036
    %v2050 = vadd.f32 %v2049, 1.0
    %v2051 = vmul.f32 %v2050, %v2036
    %v2052 = vand.u32 2147483647, %v2036
    %vm2053 = vcmp.lt.f32.partialorder %v2052, 0.0004427343
    %v2054 = vsel %vm2053, %v2051, %v2048
    %v2055 = vadd.f32 %v2023, %v2045
    %v2056 = vadd.f32 %v2024, %v2054
    %v2057 = vsel %vm2025, %v2027, %v2055
    %v2058 = vsel %vm2026, %v2028, %v2056
    %v2059 = vld [vmem:[#allocation7 + $0x338] sm:$0xff]
    %v2060 = vld [vmem:[#allocation7 + $0x340] sm:$0xff]
    %v2061 = vld [vmem:[#allocation7 + $0x348] sm:$0xff]
    %v2062 = vld [vmem:[#allocation7 + $0x350] sm:$0xff]
    %v2063 = vpack.c.bf16 %v2058, %v2057
    %v2064 = vpack.c.bf16 %v2060, %v2059
    %v2065 = vpack.c.bf16 %v2062, %v2061
    %v2066 = vld [vmem:[#allocation7 + $0x358] sm:$0x1]
    %v2067 = vlaneseq
    %v2068 = vshrl.u32 %v2067, 7
    %v2069 = vsub.s32 0, %v2068
    %v2070 = vrot.slane %v2066, %v2069
    %v2072 = vsel %vm194, %v2063, 0
    %2074 = vmatprep.subr.bf16.mxu0 0
    %2075 = vmatpush1.bf16.msra.mxu0 %v2064
    %2076 = vmatprep.subr.bf16.mxu0 0
    %2077 = vmatpush1.bf16.msra.mxu0 %v2065
    %2078 = vmatprep.subr.bf16.mxu0 0
    %2079 = vmatpush1.bf16.msra.mxu0 0
    %2080 = vmatprep.subr.bf16.mxu0 0
    %2081 = vmatpush1.bf16.msra.mxu0 0
    %2082 = vmatprep.subr.bf16.mxu0 0
    %2083 = vmatpush1.bf16.msra.mxu0 0
    %2084 = vmatprep.subr.bf16.mxu0 0
    %2085 = vmatpush1.bf16.msra.mxu0 0
    %2086 = vmatprep.subr.bf16.mxu0 0
    %2087 = vmatpush1.bf16.msra.mxu0 0
    %2088 = vmatprep.subr.bf16.mxu0 0
    %2089 = vmatpush1.bf16.msra.mxu0 0
    %2090 = vmatprep.subr.bf16.mxu0 0
    %2091 = vmatpush1.bf16.msra.mxu0 0
    %2092 = vmatprep.subr.bf16.mxu0 0
    %2093 = vmatpush1.bf16.msra.mxu0 0
    %2094 = vmatprep.subr.bf16.mxu0 0
    %2095 = vmatpush1.bf16.msra.mxu0 0
    %2096 = vmatprep.subr.bf16.mxu0 0
    %2097 = vmatpush1.bf16.msra.mxu0 0
    %2098 = vmatprep.subr.bf16.mxu0 0
    %2099 = vmatpush1.bf16.msra.mxu0 0
    %2100 = vmatprep.subr.bf16.mxu0 0
    %2101 = vmatpush1.bf16.msra.mxu0 0
    %2102 = vmatprep.subr.bf16.mxu0 0
    %2103 = vmatpush1.bf16.msra.mxu0 0
    %2104 = vmatprep.subr.bf16.mxu0 0
    %2105 = vmatpush1.bf16.msra.mxu0 0
    %2106 = vmatprep.mubr.bf16.mxu0 0
    %2107 = vmatmul.mubr.bf16.gmra.mrb[0].mxu0 %v2072
    %v2108 = vpop.f32.mrb[0].mxu0
    %v2109 = vadd.f32 %v2070, %v2108
    %v2110 = vpop.f32.mrb[0].mxu0
    %v2111 = vpop.f32.mrb[0].mxu0
    %v2112 = vadd.f32 %v2070, %v2111
    %v2113 = vpop.f32.mrb[0].mxu0
    %2114 = vdwg.mxu0
    %v2115 = vmax.f32 %v2109, 0.0
    %v2116 = vmax.f32 %v2112, 0.0
    %vm2117 = vcmp.ne.f32.partialorder %v2109, %v2109
    %vm2118 = vcmp.ne.f32.partialorder %v2112, %v2112
    %v2119 = vadd.f32 %v2109, 0.0
    %v2120 = vadd.f32 %v2112, 0.0
    %v2121 = vand.u32 2147483647, %v2109
    %v2122 = vand.u32 2147483647, %v2112
    %v2123 = vsub.f32 0.0, %v2121
    %v2124 = vsub.f32 0.0, %v2122
    %v2125 = vmul.f32 %v2123, 1.442695
    %v2126 = vpow.pop %v2125
    %v2127 = vmul.f32 %v2124, 1.442695
    %v2128 = vpow.pop %v2127
    %v2129 = vadd.f32 %v2126, 1.0
    %v2130 = vlog2.pop %v2129
    %v2131 = vmul.f32 %v2130, 0.6931472
    %v2132 = vmul.f32 -0.5, %v2126
    %v2133 = vadd.f32 %v2132, 1.0
    %v2134 = vmul.f32 %v2133, %v2126
    %v2135 = vand.u32 2147483647, %v2126
    %vm2136 = vcmp.lt.f32.partialorder %v2135, 0.0004427343
    %v2137 = vsel %vm2136, %v2134, %v2131
    %v2138 = vadd.f32 %v2128, 1.0
    %v2139 = vlog2.pop %v2138
    %v2140 = vmul.f32 %v2139, 0.6931472
    %v2141 = vmul.f32 -0.5, %v2128
    %v2142 = vadd.f32 %v2141, 1.0
    %v2143 = vmul.f32 %v2142, %v2128
    %v2144 = vand.u32 2147483647, %v2128
    %vm2145 = vcmp.lt.f32.partialorder %v2144, 0.0004427343
    %v2146 = vsel %vm2145, %v2143, %v2140
    %v2147 = vadd.f32 %v2115, %v2137
    %v2148 = vadd.f32 %v2116, %v2146
    %v2149 = vsel %vm2117, %v2119, %v2147
    %v2150 = vsel %vm2118, %v2120, %v2148
    %v2151 = vld [vmem:[#allocation7 + $0x170] sm:$0xff]
    %v2152 = vld [vmem:[#allocation7 + $0x178] sm:$0xff]
    %v2153 = vpack.c.bf16 %v1788, %v1788
    %v2154 = vpack.c.bf16 %v2152, %v2151
    %v2155 = vld [vmem:[#allocation7 + $0x180] sm:$0x1]
    %v2156 = vlaneseq
    %v2157 = vshrl.u32 %v2156, 7
    %v2158 = vsub.s32 0, %v2157
    %v2159 = vrot.slane %v2155, %v2158
    %v2161 = vsel %vm101, %v2153, 0
    %2163 = vmatprep.subr.bf16.mxu0 0
    %2164 = vmatpush1.bf16.msra.mxu0 %v2154
    %2165 = vmatprep.subr.bf16.mxu0 0
    %2166 = vmatpush1.bf16.msra.mxu0 0
    %2167 = vmatprep.subr.bf16.mxu0 0
    %2168 = vmatpush1.bf16.msra.mxu0 0
    %2169 = vmatprep.subr.bf16.mxu0 0
    %2170 = vmatpush1.bf16.msra.mxu0 0
    %2171 = vmatprep.subr.bf16.mxu0 0
    %2172 = vmatpush1.bf16.msra.mxu0 0
    %2173 = vmatprep.subr.bf16.mxu0 0
    %2174 = vmatpush1.bf16.msra.mxu0 0
    %2175 = vmatprep.subr.bf16.mxu0 0
    %2176 = vmatpush1.bf16.msra.mxu0 0
    %2177 = vmatprep.subr.bf16.mxu0 0
    %2178 = vmatpush1.bf16.msra.mxu0 0
    %2179 = vmatprep.subr.bf16.mxu0 0
    %2180 = vmatpush1.bf16.msra.mxu0 0
    %2181 = vmatprep.subr.bf16.mxu0 0
    %2182 = vmatpush1.bf16.msra.mxu0 0
    %2183 = vmatprep.subr.bf16.mxu0 0
    %2184 = vmatpush1.bf16.msra.mxu0 0
    %2185 = vmatprep.subr.bf16.mxu0 0
    %2186 = vmatpush1.bf16.msra.mxu0 0
    %2187 = vmatprep.subr.bf16.mxu0 0
    %2188 = vmatpush1.bf16.msra.mxu0 0
    %2189 = vmatprep.subr.bf16.mxu0 0
    %2190 = vmatpush1.bf16.msra.mxu0 0
    %2191 = vmatprep.subr.bf16.mxu0 0
    %2192 = vmatpush1.bf16.msra.mxu0 0
    %2193 = vmatprep.subr.bf16.mxu0 0
    %2194 = vmatpush1.bf16.msra.mxu0 0
    %2195 = vmatprep.mubr.bf16.mxu0 0
    %2196 = vmatmul.mubr.bf16.gmra.mrb[0].mxu0 %v2161
    %v2197 = vpop.f32.mrb[0].mxu0
    %v2198 = vadd.f32 %v2159, %v2197
    %v2199 = vpop.f32.mrb[0].mxu0
    %v2200 = vpop.f32.mrb[0].mxu0
    %v2201 = vpop.f32.mrb[0].mxu0
    %2202 = vdwg.mxu0
    %v2203 = vmax.f32 %v2198, 0.0
    %vm2204 = vcmp.ne.f32.partialorder %v2198, %v2198
    %v2205 = vadd.f32 %v2198, 0.0
    %v2206 = vand.u32 2147483647, %v2198
    %v2207 = vsub.f32 0.0, %v2206
    %v2208 = vmul.f32 %v2207, 1.442695
    %v2209 = vpow.pop %v2208
    %v2210 = vadd.f32 %v2209, 1.0
    %v2211 = vlog2.pop %v2210
    %v2212 = vmul.f32 %v2211, 0.6931472
    %v2213 = vmul.f32 -0.5, %v2209
    %v2214 = vadd.f32 %v2213, 1.0
    %v2215 = vmul.f32 %v2214, %v2209
    %v2216 = vand.u32 2147483647, %v2209
    %vm2217 = vcmp.lt.f32.partialorder %v2216, 0.0004427343
    %v2218 = vsel %vm2217, %v2215, %v2212
    %v2219 = vadd.f32 %v2203, %v2218
    %v2220 = vsel %vm2204, %v2205, %v2219
    %v2221 = vld [vmem:[#allocation7 + $0x188] sm:$0xff]
    %v2222 = vld [vmem:[#allocation7 + $0x190] sm:$0xff]
    %v2223 = vld [vmem:[#allocation7 + $0x198] sm:$0xff]
    %v2224 = vld [vmem:[#allocation7 + $0x1a0] sm:$0xff]
    %v2225 = vpack.c.bf16 %v2220, %v2220
    %v2226 = vpack.c.bf16 %v2222, %v2221
    %v2227 = vpack.c.bf16 %v2224, %v2223
    %v2228 = vld [vmem:[#allocation7 + $0x1a8] sm:$0x1]
    %v2229 = vlaneseq
    %v2230 = vshrl.u32 %v2229, 7
    %v2231 = vsub.s32 0, %v2230
    %v2232 = vrot.slane %v2228, %v2231
    %v2234 = vsel %vm194, %v2225, 0
    %2236 = vmatprep.subr.bf16.mxu0 0
    %2237 = vmatpush1.bf16.msra.mxu0 %v2226
    %2238 = vmatprep.subr.bf16.mxu0 0
    %2239 = vmatpush1.bf16.msra.mxu0 %v2227
    %2240 = vmatprep.subr.bf16.mxu0 0
    %2241 = vmatpush1.bf16.msra.mxu0 0
    %2242 = vmatprep.subr.bf16.mxu0 0
    %2243 = vmatpush1.bf16.msra.mxu0 0
    %2244 = vmatprep.subr.bf16.mxu0 0
    %2245 = vmatpush1.bf16.msra.mxu0 0
    %2246 = vmatprep.subr.bf16.mxu0 0
    %2247 = vmatpush1.bf16.msra.mxu0 0
    %2248 = vmatprep.subr.bf16.mxu0 0
    %2249 = vmatpush1.bf16.msra.mxu0 0
    %2250 = vmatprep.subr.bf16.mxu0 0
    %2251 = vmatpush1.bf16.msra.mxu0 0
    %2252 = vmatprep.subr.bf16.mxu0 0
    %2253 = vmatpush1.bf16.msra.mxu0 0
    %2254 = vmatprep.subr.bf16.mxu0 0
    %2255 = vmatpush1.bf16.msra.mxu0 0
    %2256 = vmatprep.subr.bf16.mxu0 0
    %2257 = vmatpush1.bf16.msra.mxu0 0
    %2258 = vmatprep.subr.bf16.mxu0 0
    %2259 = vmatpush1.bf16.msra.mxu0 0
    %2260 = vmatprep.subr.bf16.mxu0 0
    %2261 = vmatpush1.bf16.msra.mxu0 0
    %2262 = vmatprep.subr.bf16.mxu0 0
    %2263 = vmatpush1.bf16.msra.mxu0 0
    %2264 = vmatprep.subr.bf16.mxu0 0
    %2265 = vmatpush1.bf16.msra.mxu0 0
    %2266 = vmatprep.subr.bf16.mxu0 0
    %2267 = vmatpush1.bf16.msra.mxu0 0
    %2268 = vmatprep.mubr.bf16.mxu0 0
    %2269 = vmatmul.mubr.bf16.gmra.mrb[0].mxu0 %v2234
    %v2270 = vpop.f32.mrb[0].mxu0
    %v2271 = vadd.f32 %v2232, %v2270
    %v2272 = vpop.f32.mrb[0].mxu0
    %v2273 = vpop.f32.mrb[0].mxu0
    %v2274 = vpop.f32.mrb[0].mxu0
    %2275 = vdwg.mxu0
    %v2276 = vmax.f32 %v2271, 0.0
    %vm2277 = vcmp.ne.f32.partialorder %v2271, %v2271
    %v2278 = vadd.f32 %v2271, 0.0
    %v2279 = vand.u32 2147483647, %v2271
    %v2280 = vsub.f32 0.0, %v2279
    %v2281 = vmul.f32 %v2280, 1.442695
    %v2282 = vpow.pop %v2281
    %v2283 = vadd.f32 %v2282, 1.0
    %v2284 = vlog2.pop %v2283
    %v2285 = vmul.f32 %v2284, 0.6931472
    %v2286 = vmul.f32 -0.5, %v2282
    %v2287 = vadd.f32 %v2286, 1.0
    %v2288 = vmul.f32 %v2287, %v2282
    %v2289 = vand.u32 2147483647, %v2282
    %vm2290 = vcmp.lt.f32.partialorder %v2289, 0.0004427343
    %v2291 = vsel %vm2290, %v2288, %v2285
    %v2292 = vadd.f32 %v2276, %v2291
    %v2293 = vsel %vm2277, %v2278, %v2292
    %v2294 = vpack.c.bf16 %v2150, %v2149
    %v2296 = vsel %vm608, %v2294, 0
    %2298 = vmatprep.subr.bf16.mxu0 0
    %2299 = vmatpush1.bf16.msra.mxu0 %v2296
    %2300 = vmatprep.subr.bf16.mxu0 0
    %2301 = vmatpush1.bf16.msra.mxu0 0
    %2302 = vmatprep.subr.bf16.mxu0 0
    %2303 = vmatpush1.bf16.msra.mxu0 0
    %2304 = vmatprep.subr.bf16.mxu0 0
    %2305 = vmatpush1.bf16.msra.mxu0 0
    %2306 = vmatprep.subr.bf16.mxu0 0
    %2307 = vmatpush1.bf16.msra.mxu0 0
    %2308 = vmatprep.subr.bf16.mxu0 0
    %2309 = vmatpush1.bf16.msra.mxu0 0
    %2310 = vmatprep.subr.bf16.mxu0 0
    %2311 = vmatpush1.bf16.msra.mxu0 0
    %2312 = vmatprep.subr.bf16.mxu0 0
    %2313 = vmatpush1.bf16.msra.mxu0 0
    %2314 = vmatprep.subr.bf16.mxu0 0
    %2315 = vmatpush1.bf16.msra.mxu0 0
    %2316 = vmatprep.subr.bf16.mxu0 0
    %2317 = vmatpush1.bf16.msra.mxu0 0
    %2318 = vmatprep.subr.bf16.mxu0 0
    %2319 = vmatpush1.bf16.msra.mxu0 0
    %2320 = vmatprep.subr.bf16.mxu0 0
    %2321 = vmatpush1.bf16.msra.mxu0 0
    %2322 = vmatprep.subr.bf16.mxu0 0
    %2323 = vmatpush1.bf16.msra.mxu0 0
    %2324 = vmatprep.subr.bf16.mxu0 0
    %2325 = vmatpush1.bf16.msra.mxu0 0
    %2326 = vmatprep.subr.bf16.mxu0 0
    %2327 = vmatpush1.bf16.msra.mxu0 0
    %2328 = vmatprep.subr.bf16.mxu0 0
    %2329 = vmatpush1.bf16.msra.mxu0 0
    %2330 = vmatprep.mubr.bf16.mxu0 0
    %2331 = vmatmul.mubr.bf16.gmra.mrb[0].mxu0 %v606
    %v2332 = vpop.f32.mrb[0].mxu0
    %v2333 = vadd.f32 0.0, %v2332
    %v2334 = vpop.f32.mrb[0].mxu0
    %v2335 = vpop.f32.mrb[0].mxu0
    %v2336 = vadd.f32 0.0, %v2335
    %v2337 = vpop.f32.mrb[0].mxu0
    %2338 = vdwg.mxu0
    %2339 = vmatprep.subr.bf16.mxu0 0
    %2340 = vmatpush1.bf16.msra.mxu0 %v2296
    %2341 = vmatprep.subr.bf16.mxu0 0
    %2342 = vmatpush1.bf16.msra.mxu0 0
    %2343 = vmatprep.subr.bf16.mxu0 0
    %2344 = vmatpush1.bf16.msra.mxu0 0
    %2345 = vmatprep.subr.bf16.mxu0 0
    %2346 = vmatpush1.bf16.msra.mxu0 0
    %2347 = vmatprep.subr.bf16.mxu0 0
    %2348 = vmatpush1.bf16.msra.mxu0 0
    %2349 = vmatprep.subr.bf16.mxu0 0
    %2350 = vmatpush1.bf16.msra.mxu0 0
    %2351 = vmatprep.subr.bf16.mxu0 0
    %2352 = vmatpush1.bf16.msra.mxu0 0
    %2353 = vmatprep.subr.bf16.mxu0 0
    %2354 = vmatpush1.bf16.msra.mxu0 0
    %2355 = vmatprep.subr.bf16.mxu0 0
    %2356 = vmatpush1.bf16.msra.mxu0 0
    %2357 = vmatprep.subr.bf16.mxu0 0
    %2358 = vmatpush1.bf16.msra.mxu0 0
    %2359 = vmatprep.subr.bf16.mxu0 0
    %2360 = vmatpush1.bf16.msra.mxu0 0
    %2361 = vmatprep.subr.bf16.mxu0 0
    %2362 = vmatpush1.bf16.msra.mxu0 0
    %2363 = vmatprep.subr.bf16.mxu0 0
    %2364 = vmatpush1.bf16.msra.mxu0 0
    %2365 = vmatprep.subr.bf16.mxu0 0
    %2366 = vmatpush1.bf16.msra.mxu0 0
    %2367 = vmatprep.subr.bf16.mxu0 0
    %2368 = vmatpush1.bf16.msra.mxu0 0
    %2369 = vmatprep.subr.bf16.mxu0 0
    %2370 = vmatpush1.bf16.msra.mxu0 0
    %2371 = vmatprep.mubr.bf16.mxu0 0
    %2372 = vmatmul.mubr.bf16.gmra.mrb[0].mxu0 %v655
    %v2373 = vpop.f32.mrb[0].mxu0
    %v2374 = vadd.f32 0.0, %v2373
    %v2375 = vpop.f32.mrb[0].mxu0
    %v2376 = vpop.f32.mrb[0].mxu0
    %v2377 = vadd.f32 0.0, %v2376
    %v2378 = vpop.f32.mrb[0].mxu0
    %2379 = vdwg.mxu0
    %v2380 = vpack.c.bf16 %v2293, %v2293
    %v2382 = vsel %vm704, %v2380, 0
    %2384 = vmatprep.subr.bf16.mxu0 0
    %2385 = vmatpush1.bf16.msra.mxu0 %v2382
    %2386 = vmatprep.subr.bf16.mxu0 0
    %2387 = vmatpush1.bf16.msra.mxu0 0
    %2388 = vmatprep.subr.bf16.mxu0 0
    %2389 = vmatpush1.bf16.msra.mxu0 0
    %2390 = vmatprep.subr.bf16.mxu0 0
    %2391 = vmatpush1.bf16.msra.mxu0 0
    %2392 = vmatprep.subr.bf16.mxu0 0
    %2393 = vmatpush1.bf16.msra.mxu0 0
    %2394 = vmatprep.subr.bf16.mxu0 0
    %2395 = vmatpush1.bf16.msra.mxu0 0
    %2396 = vmatprep.subr.bf16.mxu0 0
    %2397 = vmatpush1.bf16.msra.mxu0 0
    %2398 = vmatprep.subr.bf16.mxu0 0
    %2399 = vmatpush1.bf16.msra.mxu0 0
    %2400 = vmatprep.subr.bf16.mxu0 0
    %2401 = vmatpush1.bf16.msra.mxu0 0
    %2402 = vmatprep.subr.bf16.mxu0 0
    %2403 = vmatpush1.bf16.msra.mxu0 0
    %2404 = vmatprep.subr.bf16.mxu0 0
    %2405 = vmatpush1.bf16.msra.mxu0 0
    %2406 = vmatprep.subr.bf16.mxu0 0
    %2407 = vmatpush1.bf16.msra.mxu0 0
    %2408 = vmatprep.subr.bf16.mxu0 0
    %2409 = vmatpush1.bf16.msra.mxu0 0
    %2410 = vmatprep.subr.bf16.mxu0 0
    %2411 = vmatpush1.bf16.msra.mxu0 0
    %2412 = vmatprep.subr.bf16.mxu0 0
    %2413 = vmatpush1.bf16.msra.mxu0 0
    %2414 = vmatprep.subr.bf16.mxu0 0
    %2415 = vmatpush1.bf16.msra.mxu0 0
    %2416 = vmatprep.mubr.bf16.mxu0 0
    %2417 = vmatmul.mubr.bf16.gmra.mrb[0].mxu0 %v702
    %v2418 = vpop.f32.mrb[0].mxu0
    %v2419 = vadd.f32 0.0, %v2418
    %v2420 = vpop.f32.mrb[0].mxu0
    %v2421 = vpop.f32.mrb[0].mxu0
    %v2422 = vadd.f32 0.0, %v2421
    %v2423 = vpop.f32.mrb[0].mxu0
    %2424 = vdwg.mxu0
    %v2425 = vld [vmem:[#allocation7 + $0x250] sm:$0x1]
    %v2426 = vld [vmem:[#allocation7 + $0x210] sm:$0xff]
    %v2427 = vld [vmem:[#allocation7 + $0x218] sm:$0xff]
    %v2428 = vpack.c.bf16 %v2336, %v2333
    %v2429 = vpack.c.bf16 %v2427, %v2426
    %v2431 = vsel %vm101, %v2428, 0
    %2433 = vmatprep.subr.bf16.mxu0 0
    %2434 = vmatpush1.bf16.msra.mxu0 %v2429
    %2435 = vmatprep.subr.bf16.mxu0 0
    %2436 = vmatpush1.bf16.msra.mxu0 0
    %2437 = vmatprep.subr.bf16.mxu0 0
    %2438 = vmatpush1.bf16.msra.mxu0 0
    %2439 = vmatprep.subr.bf16.mxu0 0
    %2440 = vmatpush1.bf16.msra.mxu0 0
    %2441 = vmatprep.subr.bf16.mxu0 0
    %2442 = vmatpush1.bf16.msra.mxu0 0
    %2443 = vmatprep.subr.bf16.mxu0 0
    %2444 = vmatpush1.bf16.msra.mxu0 0
    %2445 = vmatprep.subr.bf16.mxu0 0
    %2446 = vmatpush1.bf16.msra.mxu0 0
    %2447 = vmatprep.subr.bf16.mxu0 0
    %2448 = vmatpush1.bf16.msra.mxu0 0
    %2449 = vmatprep.subr.bf16.mxu0 0
    %2450 = vmatpush1.bf16.msra.mxu0 0
    %2451 = vmatprep.subr.bf16.mxu0 0
    %2452 = vmatpush1.bf16.msra.mxu0 0
    %2453 = vmatprep.subr.bf16.mxu0 0
    %2454 = vmatpush1.bf16.msra.mxu0 0
    %2455 = vmatprep.subr.bf16.mxu0 0
    %2456 = vmatpush1.bf16.msra.mxu0 0
    %2457 = vmatprep.subr.bf16.mxu0 0
    %2458 = vmatpush1.bf16.msra.mxu0 0
    %2459 = vmatprep.subr.bf16.mxu0 0
    %2460 = vmatpush1.bf16.msra.mxu0 0
    %2461 = vmatprep.subr.bf16.mxu0 0
    %2462 = vmatpush1.bf16.msra.mxu0 0
    %2463 = vmatprep.subr.bf16.mxu0 0
    %2464 = vmatpush1.bf16.msra.mxu0 0
    %2465 = vmatprep.mubr.bf16.mxu0 0
    %2466 = vmatmul.mubr.bf16.gmra.mrb[0].mxu0 %v2431
    %v2467 = vpop.f32.mrb[0].mxu0
    %v2468 = vadd.f32 0.0, %v2467
    %v2469 = vpop.f32.mrb[0].mxu0
    %v2470 = vpop.f32.mrb[0].mxu0
    %v2471 = vadd.f32 0.0, %v2470
    %v2472 = vpop.f32.mrb[0].mxu0
    %2473 = vdwg.mxu0
    %v2474 = vlaneseq
    %v2475 = vshrl.u32 %v2474, 7
    %v2476 = vsub.s32 0, %v2475
    %v2477 = vrot.slane %v2425, %v2476
    %v2478 = vadd.f32 %v2477, %v2468
    %v2479 = vadd.f32 %v2477, %v2471
    %v2480 = vld [vmem:[#allocation7 + $0x220] sm:$0xff]
    %v2481 = vld [vmem:[#allocation7 + $0x228] sm:$0xff]
    %v2482 = vpack.c.bf16 %v2377, %v2374
    %v2483 = vpack.c.bf16 %v2481, %v2480
    %v2485 = vsel %vm101, %v2482, 0
    %2487 = vmatprep.subr.bf16.mxu0 0
    %2488 = vmatpush1.bf16.msra.mxu0 %v2483
    %2489 = vmatprep.subr.bf16.mxu0 0
    %2490 = vmatpush1.bf16.msra.mxu0 0
    %2491 = vmatprep.subr.bf16.mxu0 0
    %2492 = vmatpush1.bf16.msra.mxu0 0
    %2493 = vmatprep.subr.bf16.mxu0 0
    %2494 = vmatpush1.bf16.msra.mxu0 0
    %2495 = vmatprep.subr.bf16.mxu0 0
    %2496 = vmatpush1.bf16.msra.mxu0 0
    %2497 = vmatprep.subr.bf16.mxu0 0
    %2498 = vmatpush1.bf16.msra.mxu0 0
    %2499 = vmatprep.subr.bf16.mxu0 0
    %2500 = vmatpush1.bf16.msra.mxu0 0
    %2501 = vmatprep.subr.bf16.mxu0 0
    %2502 = vmatpush1.bf16.msra.mxu0 0
    %2503 = vmatprep.subr.bf16.mxu0 0
    %2504 = vmatpush1.bf16.msra.mxu0 0
    %2505 = vmatprep.subr.bf16.mxu0 0
    %2506 = vmatpush1.bf16.msra.mxu0 0
    %2507 = vmatprep.subr.bf16.mxu0 0
    %2508 = vmatpush1.bf16.msra.mxu0 0
    %2509 = vmatprep.subr.bf16.mxu0 0
    %2510 = vmatpush1.bf16.msra.mxu0 0
    %2511 = vmatprep.subr.bf16.mxu0 0
    %2512 = vmatpush1.bf16.msra.mxu0 0
    %2513 = vmatprep.subr.bf16.mxu0 0
    %2514 = vmatpush1.bf16.msra.mxu0 0
    %2515 = vmatprep.subr.bf16.mxu0 0
    %2516 = vmatpush1.bf16.msra.mxu0 0
    %2517 = vmatprep.subr.bf16.mxu0 0
    %2518 = vmatpush1.bf16.msra.mxu0 0
    %2519 = vmatprep.mubr.bf16.mxu0 0
    %2520 = vmatmul.mubr.bf16.gmra.mrb[0].mxu0 %v2485
    %v2521 = vpop.f32.mrb[0].mxu0
    %v2522 = vadd.f32 0.0, %v2521
    %v2523 = vpop.f32.mrb[0].mxu0
    %v2524 = vpop.f32.mrb[0].mxu0
    %v2525 = vadd.f32 0.0, %v2524
    %v2526 = vpop.f32.mrb[0].mxu0
    %2527 = vdwg.mxu0
    %v2528 = vadd.f32 %v2478, %v2522
    %v2529 = vadd.f32 %v2479, %v2525
    %v2530 = vld [vmem:[#allocation7 + $0x230] sm:$0xff]
    %v2531 = vld [vmem:[#allocation7 + $0x238] sm:$0xff]
    %v2532 = vpack.c.bf16 %v1969, %v1968
    %v2533 = vpack.c.bf16 %v2531, %v2530
    %v2535 = vsel %vm101, %v2532, 0
    %2537 = vmatprep.subr.bf16.mxu0 0
    %2538 = vmatpush1.bf16.msra.mxu0 %v2533
    %2539 = vmatprep.subr.bf16.mxu0 0
    %2540 = vmatpush1.bf16.msra.mxu0 0
    %2541 = vmatprep.subr.bf16.mxu0 0
    %2542 = vmatpush1.bf16.msra.mxu0 0
    %2543 = vmatprep.subr.bf16.mxu0 0
    %2544 = vmatpush1.bf16.msra.mxu0 0
    %2545 = vmatprep.subr.bf16.mxu0 0
    %2546 = vmatpush1.bf16.msra.mxu0 0
    %2547 = vmatprep.subr.bf16.mxu0 0
    %2548 = vmatpush1.bf16.msra.mxu0 0
    %2549 = vmatprep.subr.bf16.mxu0 0
    %2550 = vmatpush1.bf16.msra.mxu0 0
    %2551 = vmatprep.subr.bf16.mxu0 0
    %2552 = vmatpush1.bf16.msra.mxu0 0
    %2553 = vmatprep.subr.bf16.mxu0 0
    %2554 = vmatpush1.bf16.msra.mxu0 0
    %2555 = vmatprep.subr.bf16.mxu0 0
    %2556 = vmatpush1.bf16.msra.mxu0 0
    %2557 = vmatprep.subr.bf16.mxu0 0
    %2558 = vmatpush1.bf16.msra.mxu0 0
    %2559 = vmatprep.subr.bf16.mxu0 0
    %2560 = vmatpush1.bf16.msra.mxu0 0
    %2561 = vmatprep.subr.bf16.mxu0 0
    %2562 = vmatpush1.bf16.msra.mxu0 0
    %2563 = vmatprep.subr.bf16.mxu0 0
    %2564 = vmatpush1.bf16.msra.mxu0 0
    %2565 = vmatprep.subr.bf16.mxu0 0
    %2566 = vmatpush1.bf16.msra.mxu0 0
    %2567 = vmatprep.subr.bf16.mxu0 0
    %2568 = vmatpush1.bf16.msra.mxu0 0
    %2569 = vmatprep.mubr.bf16.mxu0 0
    %2570 = vmatmul.mubr.bf16.gmra.mrb[0].mxu0 %v2535
    %v2571 = vpop.f32.mrb[0].mxu0
    %v2572 = vadd.f32 0.0, %v2571
    %v2573 = vpop.f32.mrb[0].mxu0
    %v2574 = vpop.f32.mrb[0].mxu0
    %v2575 = vadd.f32 0.0, %v2574
    %v2576 = vpop.f32.mrb[0].mxu0
    %2577 = vdwg.mxu0
    %v2578 = vadd.f32 %v2528, %v2572
    %v2579 = vadd.f32 %v2529, %v2575
    %v2580 = vld [vmem:[#allocation7 + $0x240] sm:$0xff]
    %v2581 = vld [vmem:[#allocation7 + $0x248] sm:$0xff]
    %v2582 = vpack.c.bf16 %v2422, %v2419
    %v2583 = vpack.c.bf16 %v2581, %v2580
    %v2585 = vsel %vm101, %v2582, 0
    %2587 = vmatprep.subr.bf16.mxu0 0
    %2588 = vmatpush1.bf16.msra.mxu0 %v2583
    %2589 = vmatprep.subr.bf16.mxu0 0
    %2590 = vmatpush1.bf16.msra.mxu0 0
    %2591 = vmatprep.subr.bf16.mxu0 0
    %2592 = vmatpush1.bf16.msra.mxu0 0
    %2593 = vmatprep.subr.bf16.mxu0 0
    %2594 = vmatpush1.bf16.msra.mxu0 0
    %2595 = vmatprep.subr.bf16.mxu0 0
    %2596 = vmatpush1.bf16.msra.mxu0 0
    %2597 = vmatprep.subr.bf16.mxu0 0
    %2598 = vmatpush1.bf16.msra.mxu0 0
    %2599 = vmatprep.subr.bf16.mxu0 0
    %2600 = vmatpush1.bf16.msra.mxu0 0
    %2601 = vmatprep.subr.bf16.mxu0 0
    %2602 = vmatpush1.bf16.msra.mxu0 0
    %2603 = vmatprep.subr.bf16.mxu0 0
    %2604 = vmatpush1.bf16.msra.mxu0 0
    %2605 = vmatprep.subr.bf16.mxu0 0
    %2606 = vmatpush1.bf16.msra.mxu0 0
    %2607 = vmatprep.subr.bf16.mxu0 0
    %2608 = vmatpush1.bf16.msra.mxu0 0
    %2609 = vmatprep.subr.bf16.mxu0 0
    %2610 = vmatpush1.bf16.msra.mxu0 0
    %2611 = vmatprep.subr.bf16.mxu0 0
    %2612 = vmatpush1.bf16.msra.mxu0 0
    %2613 = vmatprep.subr.bf16.mxu0 0
    %2614 = vmatpush1.bf16.msra.mxu0 0
    %2615 = vmatprep.subr.bf16.mxu0 0
    %2616 = vmatpush1.bf16.msra.mxu0 0
    %2617 = vmatprep.subr.bf16.mxu0 0
    %2618 = vmatpush1.bf16.msra.mxu0 0
    %2619 = vmatprep.mubr.bf16.mxu0 0
    %2620 = vmatmul.mubr.bf16.gmra.mrb[0].mxu0 %v2585
    %v2621 = vpop.f32.mrb[0].mxu0
    %v2622 = vadd.f32 0.0, %v2621
    %v2623 = vpop.f32.mrb[0].mxu0
    %v2624 = vpop.f32.mrb[0].mxu0
    %v2625 = vadd.f32 0.0, %v2624
    %v2626 = vpop.f32.mrb[0].mxu0
    %2627 = vdwg.mxu0
    %v2628 = vadd.f32 %v2578, %v2622
    %v2629 = vadd.f32 %v2579, %v2625
    %v2630 = vmax.f32 %v2628, 0.0
    %v2631 = vmax.f32 %v2629, 0.0
    %vm2632 = vcmp.ne.f32.partialorder %v2628, %v2628
    %vm2633 = vcmp.ne.f32.partialorder %v2629, %v2629
    %v2634 = vadd.f32 %v2628, 0.0
    %v2635 = vadd.f32 %v2629, 0.0
    %v2636 = vand.u32 2147483647, %v2628
    %v2637 = vand.u32 2147483647, %v2629
    %v2638 = vsub.f32 0.0, %v2636
    %v2639 = vsub.f32 0.0, %v2637
    %v2640 = vmul.f32 %v2638, 1.442695
    %v2641 = vpow.pop %v2640
    %v2642 = vmul.f32 %v2639, 1.442695
    %v2643 = vpow.pop %v2642
    %v2644 = vadd.f32 %v2641, 1.0
    %v2645 = vlog2.pop %v2644
    %v2646 = vmul.f32 %v2645, 0.6931472
    %v2647 = vmul.f32 -0.5, %v2641
    %v2648 = vadd.f32 %v2647, 1.0
    %v2649 = vmul.f32 %v2648, %v2641
    %v2650 = vand.u32 2147483647, %v2641
    %vm2651 = vcmp.lt.f32.partialorder %v2650, 0.0004427343
    %v2652 = vsel %vm2651, %v2649, %v2646
    %v2653 = vadd.f32 %v2643, 1.0
    %v2654 = vlog2.pop %v2653
    %v2655 = vmul.f32 %v2654, 0.6931472
    %v2656 = vmul.f32 -0.5, %v2643
    %v2657 = vadd.f32 %v2656, 1.0
    %v2658 = vmul.f32 %v2657, %v2643
    %v2659 = vand.u32 2147483647, %v2643
    %vm2660 = vcmp.lt.f32.partialorder %v2659, 0.0004427343
    %v2661 = vsel %vm2660, %v2658, %v2655
    %v2662 = vadd.f32 %v2630, %v2652
    %v2663 = vadd.f32 %v2631, %v2661
    %v2664 = vsel %vm2632, %v2634, %v2662
    %v2665 = vsel %vm2633, %v2635, %v2663
    %v2666 = vld [vmem:[#allocation7 + $0x258] sm:$0xff]
    %v2667 = vld [vmem:[#allocation7 + $0x260] sm:$0xff]
    %v2668 = vld [vmem:[#allocation7 + $0x268] sm:$0xff]
    %v2669 = vld [vmem:[#allocation7 + $0x270] sm:$0xff]
    %v2670 = vpack.c.bf16 %v2665, %v2664
    %v2671 = vpack.c.bf16 %v2667, %v2666
    %v2672 = vpack.c.bf16 %v2669, %v2668
    %v2673 = vld [vmem:[#allocation7 + $0x278] sm:$0x1]
    %v2674 = vlaneseq
    %v2675 = vshrl.u32 %v2674, 7
    %v2676 = vsub.s32 0, %v2675
    %v2677 = vrot.slane %v2673, %v2676
    %v2679 = vsel %vm194, %v2670, 0
    %2681 = vmatprep.subr.bf16.mxu0 0
    %2682 = vmatpush1.bf16.msra.mxu0 %v2671
    %2683 = vmatprep.subr.bf16.mxu0 0
    %2684 = vmatpush1.bf16.msra.mxu0 %v2672
    %2685 = vmatprep.subr.bf16.mxu0 0
    %2686 = vmatpush1.bf16.msra.mxu0 0
    %2687 = vmatprep.subr.bf16.mxu0 0
    %2688 = vmatpush1.bf16.msra.mxu0 0
    %2689 = vmatprep.subr.bf16.mxu0 0
    %2690 = vmatpush1.bf16.msra.mxu0 0
    %2691 = vmatprep.subr.bf16.mxu0 0
    %2692 = vmatpush1.bf16.msra.mxu0 0
    %2693 = vmatprep.subr.bf16.mxu0 0
    %2694 = vmatpush1.bf16.msra.mxu0 0
    %2695 = vmatprep.subr.bf16.mxu0 0
    %2696 = vmatpush1.bf16.msra.mxu0 0
    %2697 = vmatprep.subr.bf16.mxu0 0
    %2698 = vmatpush1.bf16.msra.mxu0 0
    %2699 = vmatprep.subr.bf16.mxu0 0
    %2700 = vmatpush1.bf16.msra.mxu0 0
    %2701 = vmatprep.subr.bf16.mxu0 0
    %2702 = vmatpush1.bf16.msra.mxu0 0
    %2703 = vmatprep.subr.bf16.mxu0 0
    %2704 = vmatpush1.bf16.msra.mxu0 0
    %2705 = vmatprep.subr.bf16.mxu0 0
    %2706 = vmatpush1.bf16.msra.mxu0 0
    %2707 = vmatprep.subr.bf16.mxu0 0
    %2708 = vmatpush1.bf16.msra.mxu0 0
    %2709 = vmatprep.subr.bf16.mxu0 0
    %2710 = vmatpush1.bf16.msra.mxu0 0
    %2711 = vmatprep.subr.bf16.mxu0 0
    %2712 = vmatpush1.bf16.msra.mxu0 0
    %2713 = vmatprep.mubr.bf16.mxu0 0
    %2714 = vmatmul.mubr.bf16.gmra.mrb[0].mxu0 %v2679
    %v2715 = vpop.f32.mrb[0].mxu0
    %v2716 = vadd.f32 %v2677, %v2715
    %v2717 = vpop.f32.mrb[0].mxu0
    %v2718 = vpop.f32.mrb[0].mxu0
    %v2719 = vadd.f32 %v2677, %v2718
    %v2720 = vpop.f32.mrb[0].mxu0
    %2721 = vdwg.mxu0
    %v2722 = vmax.f32 %v2716, 0.0
    %v2723 = vmax.f32 %v2719, 0.0
    %vm2724 = vcmp.ne.f32.partialorder %v2716, %v2716
    %vm2725 = vcmp.ne.f32.partialorder %v2719, %v2719
    %v2726 = vadd.f32 %v2716, 0.0
    %v2727 = vadd.f32 %v2719, 0.0
    %v2728 = vand.u32 2147483647, %v2716
    %v2729 = vand.u32 2147483647, %v2719
    %v2730 = vsub.f32 0.0, %v2728
    %v2731 = vsub.f32 0.0, %v2729
    %v2732 = vmul.f32 %v2730, 1.442695
    %v2733 = vpow.pop %v2732
    %v2734 = vmul.f32 %v2731, 1.442695
    %v2735 = vpow.pop %v2734
    %v2736 = vadd.f32 %v2733, 1.0
    %v2737 = vlog2.pop %v2736
    %v2738 = vmul.f32 %v2737, 0.6931472
    %v2739 = vmul.f32 -0.5, %v2733
    %v2740 = vadd.f32 %v2739, 1.0
    %v2741 = vmul.f32 %v2740, %v2733
    %v2742 = vand.u32 2147483647, %v2733
    %vm2743 = vcmp.lt.f32.partialorder %v2742, 0.0004427343
    %v2744 = vsel %vm2743, %v2741, %v2738
    %v2745 = vadd.f32 %v2735, 1.0
    %v2746 = vlog2.pop %v2745
    %v2747 = vmul.f32 %v2746, 0.6931472
    %v2748 = vmul.f32 -0.5, %v2735
    %v2749 = vadd.f32 %v2748, 1.0
    %v2750 = vmul.f32 %v2749, %v2735
    %v2751 = vand.u32 2147483647, %v2735
    %vm2752 = vcmp.lt.f32.partialorder %v2751, 0.0004427343
    %v2753 = vsel %vm2752, %v2750, %v2747
    %v2754 = vadd.f32 %v2722, %v2744
    %v2755 = vadd.f32 %v2723, %v2753
    %v2756 = vsel %vm2724, %v2726, %v2754
    %v2757 = vsel %vm2725, %v2727, %v2755
    %v2758 = vpack.c.bf16 %v2757, %v2756
    %2759 = vmatprep.subr.bf16.mxu0 0
    %2760 = vmatpush1.bf16.msra.mxu0 %v2758
    %2761 = vmatprep.subr.bf16.mxu0 0
    %2762 = vmatpush1.bf16.msra.mxu0 0
    %2763 = vmatprep.subr.bf16.mxu0 0
    %2764 = vmatpush1.bf16.msra.mxu0 0
    %2765 = vmatprep.subr.bf16.mxu0 0
    %2766 = vmatpush1.bf16.msra.mxu0 0
    %2767 = vmatprep.subr.bf16.mxu0 0
    %2768 = vmatpush1.bf16.msra.mxu0 0
    %2769 = vmatprep.subr.bf16.mxu0 0
    %2770 = vmatpush1.bf16.msra.mxu0 0
    %2771 = vmatprep.subr.bf16.mxu0 0
    %2772 = vmatpush1.bf16.msra.mxu0 0
    %2773 = vmatprep.subr.bf16.mxu0 0
    %2774 = vmatpush1.bf16.msra.mxu0 0
    %2775 = vmatprep.subr.bf16.mxu0 0
    %2776 = vmatpush1.bf16.msra.mxu0 0
    %2777 = vmatprep.subr.bf16.mxu0 0
    %2778 = vmatpush1.bf16.msra.mxu0 0
    %2779 = vmatprep.subr.bf16.mxu0 0
    %2780 = vmatpush1.bf16.msra.mxu0 0
    %2781 = vmatprep.subr.bf16.mxu0 0
    %2782 = vmatpush1.bf16.msra.mxu0 0
    %2783 = vmatprep.subr.bf16.mxu0 0
    %2784 = vmatpush1.bf16.msra.mxu0 0
    %2785 = vmatprep.subr.bf16.mxu0 0
    %2786 = vmatpush1.bf16.msra.mxu0 0
    %2787 = vmatprep.subr.bf16.mxu0 0
    %2788 = vmatpush1.bf16.msra.mxu0 0
    %2789 = vmatprep.subr.bf16.mxu0 0
    %2790 = vmatpush1.bf16.msra.mxu0 0
    %2791 = vmatprep.mubr.bf16.mxu0 0
    %2792 = vmatmul.mubr.bf16.gmra.mrb[0].mxu0 %v1085
    %v2793 = vpop.f32.mrb[0].mxu0
    %v2794 = vadd.f32 0.0, %v2793
    %v2795 = vpop.f32.mrb[0].mxu0
    %v2796 = vpop.f32.mrb[0].mxu0
    %v2797 = vadd.f32 0.0, %v2796
    %v2798 = vpop.f32.mrb[0].mxu0
    %2799 = vdwg.mxu0
    %2800 = vmatprep.subr.bf16.mxu0 0
    %2801 = vmatpush1.bf16.msra.mxu0 %v2382
    %2802 = vmatprep.subr.bf16.mxu0 0
    %2803 = vmatpush1.bf16.msra.mxu0 0
    %2804 = vmatprep.subr.bf16.mxu0 0
    %2805 = vmatpush1.bf16.msra.mxu0 0
    %2806 = vmatprep.subr.bf16.mxu0 0
    %2807 = vmatpush1.bf16.msra.mxu0 0
    %2808 = vmatprep.subr.bf16.mxu0 0
    %2809 = vmatpush1.bf16.msra.mxu0 0
    %2810 = vmatprep.subr.bf16.mxu0 0
    %2811 = vmatpush1.bf16.msra.mxu0 0
    %2812 = vmatprep.subr.bf16.mxu0 0
    %2813 = vmatpush1.bf16.msra.mxu0 0
    %2814 = vmatprep.subr.bf16.mxu0 0
    %2815 = vmatpush1.bf16.msra.mxu0 0
    %2816 = vmatprep.subr.bf16.mxu0 0
    %2817 = vmatpush1.bf16.msra.mxu0 0
    %2818 = vmatprep.subr.bf16.mxu0 0
    %2819 = vmatpush1.bf16.msra.mxu0 0
    %2820 = vmatprep.subr.bf16.mxu0 0
    %2821 = vmatpush1.bf16.msra.mxu0 0
    %2822 = vmatprep.subr.bf16.mxu0 0
    %2823 = vmatpush1.bf16.msra.mxu0 0
    %2824 = vmatprep.subr.bf16.mxu0 0
    %2825 = vmatpush1.bf16.msra.mxu0 0
    %2826 = vmatprep.subr.bf16.mxu0 0
    %2827 = vmatpush1.bf16.msra.mxu0 0
    %2828 = vmatprep.subr.bf16.mxu0 0
    %2829 = vmatpush1.bf16.msra.mxu0 0
    %2830 = vmatprep.subr.bf16.mxu0 0
    %2831 = vmatpush1.bf16.msra.mxu0 0
    %2832 = vmatprep.mubr.bf16.mxu0 0
    %2833 = vmatmul.mubr.bf16.gmra.mrb[0].mxu0 %v1130
    %v2834 = vpop.f32.mrb[0].mxu0
    %v2835 = vadd.f32 0.0, %v2834
    %v2836 = vpop.f32.mrb[0].mxu0
    %v2837 = vpop.f32.mrb[0].mxu0
    %v2838 = vadd.f32 0.0, %v2837
    %v2839 = vpop.f32.mrb[0].mxu0
    %2840 = vdwg.mxu0
    %v2841 = vld [vmem:[#allocation7 + $0x2b0] sm:$0x1]
    %v2842 = vld [vmem:[#allocation7 + $0x280] sm:$0xff]
    %v2843 = vld [vmem:[#allocation7 + $0x288] sm:$0xff]
    %v2844 = vpack.c.bf16 %v2843, %v2842
    %v2845 = vsel %vm101, %v2294, 0
    %2847 = vmatprep.subr.bf16.mxu0 0
    %2848 = vmatpush1.bf16.msra.mxu0 %v2844
    %2849 = vmatprep.subr.bf16.mxu0 0
    %2850 = vmatpush1.bf16.msra.mxu0 0
    %2851 = vmatprep.subr.bf16.mxu0 0
    %2852 = vmatpush1.bf16.msra.mxu0 0
    %2853 = vmatprep.subr.bf16.mxu0 0
    %2854 = vmatpush1.bf16.msra.mxu0 0
    %2855 = vmatprep.subr.bf16.mxu0 0
    %2856 = vmatpush1.bf16.msra.mxu0 0
    %2857 = vmatprep.subr.bf16.mxu0 0
    %2858 = vmatpush1.bf16.msra.mxu0 0
    %2859 = vmatprep.subr.bf16.mxu0 0
    %2860 = vmatpush1.bf16.msra.mxu0 0
    %2861 = vmatprep.subr.bf16.mxu0 0
    %2862 = vmatpush1.bf16.msra.mxu0 0
    %2863 = vmatprep.subr.bf16.mxu0 0
    %2864 = vmatpush1.bf16.msra.mxu0 0
    %2865 = vmatprep.subr.bf16.mxu0 0
    %2866 = vmatpush1.bf16.msra.mxu0 0
    %2867 = vmatprep.subr.bf16.mxu0 0
    %2868 = vmatpush1.bf16.msra.mxu0 0
    %2869 = vmatprep.subr.bf16.mxu0 0
    %2870 = vmatpush1.bf16.msra.mxu0 0
    %2871 = vmatprep.subr.bf16.mxu0 0
    %2872 = vmatpush1.bf16.msra.mxu0 0
    %2873 = vmatprep.subr.bf16.mxu0 0
    %2874 = vmatpush1.bf16.msra.mxu0 0
    %2875 = vmatprep.subr.bf16.mxu0 0
    %2876 = vmatpush1.bf16.msra.mxu0 0
    %2877 = vmatprep.subr.bf16.mxu0 0
    %2878 = vmatpush1.bf16.msra.mxu0 0
    %2879 = vmatprep.mubr.bf16.mxu0 0
    %2880 = vmatmul.mubr.bf16.gmra.mrb[0].mxu0 %v2845
    %v2881 = vpop.f32.mrb[0].mxu0
    %v2882 = vadd.f32 0.0, %v2881
    %v2883 = vpop.f32.mrb[0].mxu0
    %v2884 = vpop.f32.mrb[0].mxu0
    %v2885 = vadd.f32 0.0, %v2884
    %v2886 = vpop.f32.mrb[0].mxu0
    %2887 = vdwg.mxu0
    %v2888 = vlaneseq
    %v2889 = vshrl.u32 %v2888, 7
    %v2890 = vsub.s32 0, %v2889
    %v2891 = vrot.slane %v2841, %v2890
    %v2892 = vadd.f32 %v2891, %v2882
    %v2893 = vadd.f32 %v2891, %v2885
    %v2894 = vld [vmem:[#allocation7 + $0x290] sm:$0xff]
    %v2895 = vld [vmem:[#allocation7 + $0x298] sm:$0xff]
    %v2896 = vpack.c.bf16 %v2797, %v2794
    %v2897 = vpack.c.bf16 %v2895, %v2894
    %v2899 = vsel %vm101, %v2896, 0
    %2901 = vmatprep.subr.bf16.mxu0 0
    %2902 = vmatpush1.bf16.msra.mxu0 %v2897
    %2903 = vmatprep.subr.bf16.mxu0 0
    %2904 = vmatpush1.bf16.msra.mxu0 0
    %2905 = vmatprep.subr.bf16.mxu0 0
    %2906 = vmatpush1.bf16.msra.mxu0 0
    %2907 = vmatprep.subr.bf16.mxu0 0
    %2908 = vmatpush1.bf16.msra.mxu0 0
    %2909 = vmatprep.subr.bf16.mxu0 0
    %2910 = vmatpush1.bf16.msra.mxu0 0
    %2911 = vmatprep.subr.bf16.mxu0 0
    %2912 = vmatpush1.bf16.msra.mxu0 0
    %2913 = vmatprep.subr.bf16.mxu0 0
    %2914 = vmatpush1.bf16.msra.mxu0 0
    %2915 = vmatprep.subr.bf16.mxu0 0
    %2916 = vmatpush1.bf16.msra.mxu0 0
    %2917 = vmatprep.subr.bf16.mxu0 0
    %2918 = vmatpush1.bf16.msra.mxu0 0
    %2919 = vmatprep.subr.bf16.mxu0 0
    %2920 = vmatpush1.bf16.msra.mxu0 0
    %2921 = vmatprep.subr.bf16.mxu0 0
    %2922 = vmatpush1.bf16.msra.mxu0 0
    %2923 = vmatprep.subr.bf16.mxu0 0
    %2924 = vmatpush1.bf16.msra.mxu0 0
    %2925 = vmatprep.subr.bf16.mxu0 0
    %2926 = vmatpush1.bf16.msra.mxu0 0
    %2927 = vmatprep.subr.bf16.mxu0 0
    %2928 = vmatpush1.bf16.msra.mxu0 0
    %2929 = vmatprep.subr.bf16.mxu0 0
    %2930 = vmatpush1.bf16.msra.mxu0 0
    %2931 = vmatprep.subr.bf16.mxu0 0
    %2932 = vmatpush1.bf16.msra.mxu0 0
    %2933 = vmatprep.mubr.bf16.mxu0 0
    %2934 = vmatmul.mubr.bf16.gmra.mrb[0].mxu0 %v2899
    %v2935 = vpop.f32.mrb[0].mxu0
    %v2936 = vadd.f32 0.0, %v2935
    %v2937 = vpop.f32.mrb[0].mxu0
    %v2938 = vpop.f32.mrb[0].mxu0
    %v2939 = vadd.f32 0.0, %v2938
    %v2940 = vpop.f32.mrb[0].mxu0
    %2941 = vdwg.mxu0
    %v2942 = vadd.f32 %v2892, %v2936
    %v2943 = vadd.f32 %v2893, %v2939
    %v2944 = vld [vmem:[#allocation7 + $0x2a0] sm:$0xff]
    %v2945 = vld [vmem:[#allocation7 + $0x2a8] sm:$0xff]
    %v2946 = vpack.c.bf16 %v2838, %v2835
    %v2947 = vpack.c.bf16 %v2945, %v2944
    %v2949 = vsel %vm101, %v2946, 0
    %2951 = vmatprep.subr.bf16.mxu0 0
    %2952 = vmatpush1.bf16.msra.mxu0 %v2947
    %2953 = vmatprep.subr.bf16.mxu0 0
    %2954 = vmatpush1.bf16.msra.mxu0 0
    %2955 = vmatprep.subr.bf16.mxu0 0
    %2956 = vmatpush1.bf16.msra.mxu0 0
    %2957 = vmatprep.subr.bf16.mxu0 0
    %2958 = vmatpush1.bf16.msra.mxu0 0
    %2959 = vmatprep.subr.bf16.mxu0 0
    %2960 = vmatpush1.bf16.msra.mxu0 0
    %2961 = vmatprep.subr.bf16.mxu0 0
    %2962 = vmatpush1.bf16.msra.mxu0 0
    %2963 = vmatprep.subr.bf16.mxu0 0
    %2964 = vmatpush1.bf16.msra.mxu0 0
    %2965 = vmatprep.subr.bf16.mxu0 0
    %2966 = vmatpush1.bf16.msra.mxu0 0
    %2967 = vmatprep.subr.bf16.mxu0 0
    %2968 = vmatpush1.bf16.msra.mxu0 0
    %2969 = vmatprep.subr.bf16.mxu0 0
    %2970 = vmatpush1.bf16.msra.mxu0 0
    %2971 = vmatprep.subr.bf16.mxu0 0
    %2972 = vmatpush1.bf16.msra.mxu0 0
    %2973 = vmatprep.subr.bf16.mxu0 0
    %2974 = vmatpush1.bf16.msra.mxu0 0
    %2975 = vmatprep.subr.bf16.mxu0 0
    %2976 = vmatpush1.bf16.msra.mxu0 0
    %2977 = vmatprep.subr.bf16.mxu0 0
    %2978 = vmatpush1.bf16.msra.mxu0 0
    %2979 = vmatprep.subr.bf16.mxu0 0
    %2980 = vmatpush1.bf16.msra.mxu0 0
    %2981 = vmatprep.subr.bf16.mxu0 0
    %2982 = vmatpush1.bf16.msra.mxu0 0
    %2983 = vmatprep.mubr.bf16.mxu0 0
    %2984 = vmatmul.mubr.bf16.gmra.mrb[0].mxu0 %v2949
    %v2985 = vpop.f32.mrb[0].mxu0
    %v2986 = vadd.f32 0.0, %v2985
    %v2987 = vpop.f32.mrb[0].mxu0
    %v2988 = vpop.f32.mrb[0].mxu0
    %v2989 = vadd.f32 0.0, %v2988
    %v2990 = vpop.f32.mrb[0].mxu0
    %2991 = vdwg.mxu0
    %v2992 = vadd.f32 %v2942, %v2986
    %v2993 = vadd.f32 %v2943, %v2989
    %v2994 = vmax.f32 %v2992, 0.0
    %v2995 = vmax.f32 %v2993, 0.0
    %vm2996 = vcmp.ne.f32.partialorder %v2992, %v2992
    %vm2997 = vcmp.ne.f32.partialorder %v2993, %v2993
    %v2998 = vadd.f32 %v2992, 0.0
    %v2999 = vadd.f32 %v2993, 0.0
    %v3000 = vand.u32 2147483647, %v2992
    %v3001 = vand.u32 2147483647, %v2993
    %v3002 = vsub.f32 0.0, %v3000
    %v3003 = vsub.f32 0.0, %v3001
    %v3004 = vmul.f32 %v3002, 1.442695
    %v3005 = vpow.pop %v3004
    %v3006 = vmul.f32 %v3003, 1.442695
    %v3007 = vpow.pop %v3006
    %v3008 = vadd.f32 %v3005, 1.0
    %v3009 = vlog2.pop %v3008
    %v3010 = vmul.f32 %v3009, 0.6931472
    %v3011 = vmul.f32 -0.5, %v3005
    %v3012 = vadd.f32 %v3011, 1.0
    %v3013 = vmul.f32 %v3012, %v3005
    %v3014 = vand.u32 2147483647, %v3005
    %vm3015 = vcmp.lt.f32.partialorder %v3014, 0.0004427343
    %v3016 = vsel %vm3015, %v3013, %v3010
    %v3017 = vadd.f32 %v3007, 1.0
    %v3018 = vlog2.pop %v3017
    %v3019 = vmul.f32 %v3018, 0.6931472
    %v3020 = vmul.f32 -0.5, %v3007
    %v3021 = vadd.f32 %v3020, 1.0
    %v3022 = vmul.f32 %v3021, %v3007
    %v3023 = vand.u32 2147483647, %v3007
    %vm3024 = vcmp.lt.f32.partialorder %v3023, 0.0004427343
    %v3025 = vsel %vm3024, %v3022, %v3019
    %v3026 = vadd.f32 %v2994, %v3016
    %v3027 = vadd.f32 %v2995, %v3025
    %v3028 = vsel %vm2996, %v2998, %v3026
    %v3029 = vsel %vm2997, %v2999, %v3027
    %v3030 = vld [vmem:[#allocation7 + $0x2b8] sm:$0xff]
    %v3031 = vld [vmem:[#allocation7 + $0x2c0] sm:$0xff]
    %v3032 = vld [vmem:[#allocation7 + $0x2c8] sm:$0xff]
    %v3033 = vld [vmem:[#allocation7 + $0x2d0] sm:$0xff]
    %v3034 = vpack.c.bf16 %v3029, %v3028
    %v3035 = vpack.c.bf16 %v3031, %v3030
    %v3036 = vpack.c.bf16 %v3033, %v3032
    %v3037 = vld [vmem:[#allocation7 + $0x2d8] sm:$0x1]
    %v3038 = vlaneseq
    %v3039 = vshrl.u32 %v3038, 7
    %v3040 = vsub.s32 0, %v3039
    %v3041 = vrot.slane %v3037, %v3040
    %v3043 = vsel %vm194, %v3034, 0
    %3045 = vmatprep.subr.bf16.mxu0 0
    %3046 = vmatpush1.bf16.msra.mxu0 %v3035
    %3047 = vmatprep.subr.bf16.mxu0 0
    %3048 = vmatpush1.bf16.msra.mxu0 %v3036
    %3049 = vmatprep.subr.bf16.mxu0 0
    %3050 = vmatpush1.bf16.msra.mxu0 0
    %3051 = vmatprep.subr.bf16.mxu0 0
    %3052 = vmatpush1.bf16.msra.mxu0 0
    %3053 = vmatprep.subr.bf16.mxu0 0
    %3054 = vmatpush1.bf16.msra.mxu0 0
    %3055 = vmatprep.subr.bf16.mxu0 0
    %3056 = vmatpush1.bf16.msra.mxu0 0
    %3057 = vmatprep.subr.bf16.mxu0 0
    %3058 = vmatpush1.bf16.msra.mxu0 0
    %3059 = vmatprep.subr.bf16.mxu0 0
    %3060 = vmatpush1.bf16.msra.mxu0 0
    %3061 = vmatprep.subr.bf16.mxu0 0
    %3062 = vmatpush1.bf16.msra.mxu0 0
    %3063 = vmatprep.subr.bf16.mxu0 0
    %3064 = vmatpush1.bf16.msra.mxu0 0
    %3065 = vmatprep.subr.bf16.mxu0 0
    %3066 = vmatpush1.bf16.msra.mxu0 0
    %3067 = vmatprep.subr.bf16.mxu0 0
    %3068 = vmatpush1.bf16.msra.mxu0 0
    %3069 = vmatprep.subr.bf16.mxu0 0
    %3070 = vmatpush1.bf16.msra.mxu0 0
    %3071 = vmatprep.subr.bf16.mxu0 0
    %3072 = vmatpush1.bf16.msra.mxu0 0
    %3073 = vmatprep.subr.bf16.mxu0 0
    %3074 = vmatpush1.bf16.msra.mxu0 0
    %3075 = vmatprep.subr.bf16.mxu0 0
    %3076 = vmatpush1.bf16.msra.mxu0 0
    %3077 = vmatprep.mubr.bf16.mxu0 0
    %3078 = vmatmul.mubr.bf16.gmra.mrb[0].mxu0 %v3043
    %v3079 = vpop.f32.mrb[0].mxu0
    %v3080 = vadd.f32 %v3041, %v3079
    %v3081 = vpop.f32.mrb[0].mxu0
    %v3082 = vpop.f32.mrb[0].mxu0
    %v3083 = vadd.f32 %v3041, %v3082
    %v3084 = vpop.f32.mrb[0].mxu0
    %3085 = vdwg.mxu0
    %v3086 = vmax.f32 %v3080, 0.0
    %v3087 = vmax.f32 %v3083, 0.0
    %vm3088 = vcmp.ne.f32.partialorder %v3080, %v3080
    %vm3089 = vcmp.ne.f32.partialorder %v3083, %v3083
    %v3090 = vadd.f32 %v3080, 0.0
    %v3091 = vadd.f32 %v3083, 0.0
    %v3092 = vand.u32 2147483647, %v3080
    %v3093 = vand.u32 2147483647, %v3083
    %v3094 = vsub.f32 0.0, %v3092
    %v3095 = vsub.f32 0.0, %v3093
    %v3096 = vmul.f32 %v3094, 1.442695
    %v3097 = vpow.pop %v3096
    %v3098 = vmul.f32 %v3095, 1.442695
    %v3099 = vpow.pop %v3098
    %v3100 = vadd.f32 %v3097, 1.0
    %v3101 = vlog2.pop %v3100
    %v3102 = vmul.f32 %v3101, 0.6931472
    %v3103 = vmul.f32 -0.5, %v3097
    %v3104 = vadd.f32 %v3103, 1.0
    %v3105 = vmul.f32 %v3104, %v3097
    %v3106 = vand.u32 2147483647, %v3097
    %vm3107 = vcmp.lt.f32.partialorder %v3106, 0.0004427343
    %v3108 = vsel %vm3107, %v3105, %v3102
    %v3109 = vadd.f32 %v3099, 1.0
    %v3110 = vlog2.pop %v3109
    %v3111 = vmul.f32 %v3110, 0.6931472
    %v3112 = vmul.f32 -0.5, %v3099
    %v3113 = vadd.f32 %v3112, 1.0
    %v3114 = vmul.f32 %v3113, %v3099
    %v3115 = vand.u32 2147483647, %v3099
    %vm3116 = vcmp.lt.f32.partialorder %v3115, 0.0004427343
    %v3117 = vsel %vm3116, %v3114, %v3111
    %v3118 = vadd.f32 %v3086, %v3108
    %v3119 = vadd.f32 %v3087, %v3117
    %v3120 = vsel %vm3088, %v3090, %v3118
    %v3121 = vsel %vm3089, %v3091, %v3119
    %3122 = vmatprep.subr.bf16.mxu0 0
    %3123 = vmatpush1.bf16.msra.mxu0 %v2758
    %3124 = vmatprep.subr.bf16.mxu0 0
    %3125 = vmatpush1.bf16.msra.mxu0 0
    %3126 = vmatprep.subr.bf16.mxu0 0
    %3127 = vmatpush1.bf16.msra.mxu0 0
    %3128 = vmatprep.subr.bf16.mxu0 0
    %3129 = vmatpush1.bf16.msra.mxu0 0
    %3130 = vmatprep.subr.bf16.mxu0 0
    %3131 = vmatpush1.bf16.msra.mxu0 0
    %3132 = vmatprep.subr.bf16.mxu0 0
    %3133 = vmatpush1.bf16.msra.mxu0 0
    %3134 = vmatprep.subr.bf16.mxu0 0
    %3135 = vmatpush1.bf16.msra.mxu0 0
    %3136 = vmatprep.subr.bf16.mxu0 0
    %3137 = vmatpush1.bf16.msra.mxu0 0
    %3138 = vmatprep.subr.bf16.mxu0 0
    %3139 = vmatpush1.bf16.msra.mxu0 0
    %3140 = vmatprep.subr.bf16.mxu0 0
    %3141 = vmatpush1.bf16.msra.mxu0 0
    %3142 = vmatprep.subr.bf16.mxu0 0
    %3143 = vmatpush1.bf16.msra.mxu0 0
    %3144 = vmatprep.subr.bf16.mxu0 0
    %3145 = vmatpush1.bf16.msra.mxu0 0
    %3146 = vmatprep.subr.bf16.mxu0 0
    %3147 = vmatpush1.bf16.msra.mxu0 0
    %3148 = vmatprep.subr.bf16.mxu0 0
    %3149 = vmatpush1.bf16.msra.mxu0 0
    %3150 = vmatprep.subr.bf16.mxu0 0
    %3151 = vmatpush1.bf16.msra.mxu0 0
    %3152 = vmatprep.subr.bf16.mxu0 0
    %3153 = vmatpush1.bf16.msra.mxu0 0
    %3154 = vmatprep.mubr.bf16.mxu0 0
    %3155 = vmatmul.mubr.bf16.gmra.mrb[0].mxu0 %v1456
    %v3156 = vpop.f32.mrb[0].mxu0
    %v3157 = vadd.f32 0.0, %v3156
    %v3158 = vpop.f32.mrb[0].mxu0
    %v3159 = vpop.f32.mrb[0].mxu0
    %v3160 = vpop.f32.mrb[0].mxu0
    %3161 = vdwg.mxu0
    %v3162 = vpack.c.bf16 %v3121, %v3120
    %v3164 = vsel %vm608, %v3162, 0
    %3166 = vmatprep.subr.bf16.mxu0 0
    %3167 = vmatpush1.bf16.msra.mxu0 %v3164
    %3168 = vmatprep.subr.bf16.mxu0 0
    %3169 = vmatpush1.bf16.msra.mxu0 0
    %3170 = vmatprep.subr.bf16.mxu0 0
    %3171 = vmatpush1.bf16.msra.mxu0 0
    %3172 = vmatprep.subr.bf16.mxu0 0
    %3173 = vmatpush1.bf16.msra.mxu0 0
    %3174 = vmatprep.subr.bf16.mxu0 0
    %3175 = vmatpush1.bf16.msra.mxu0 0
    %3176 = vmatprep.subr.bf16.mxu0 0
    %3177 = vmatpush1.bf16.msra.mxu0 0
    %3178 = vmatprep.subr.bf16.mxu0 0
    %3179 = vmatpush1.bf16.msra.mxu0 0
    %3180 = vmatprep.subr.bf16.mxu0 0
    %3181 = vmatpush1.bf16.msra.mxu0 0
    %3182 = vmatprep.subr.bf16.mxu0 0
    %3183 = vmatpush1.bf16.msra.mxu0 0
    %3184 = vmatprep.subr.bf16.mxu0 0
    %3185 = vmatpush1.bf16.msra.mxu0 0
    %3186 = vmatprep.subr.bf16.mxu0 0
    %3187 = vmatpush1.bf16.msra.mxu0 0
    %3188 = vmatprep.subr.bf16.mxu0 0
    %3189 = vmatpush1.bf16.msra.mxu0 0
    %3190 = vmatprep.subr.bf16.mxu0 0
    %3191 = vmatpush1.bf16.msra.mxu0 0
    %3192 = vmatprep.subr.bf16.mxu0 0
    %3193 = vmatpush1.bf16.msra.mxu0 0
    %3194 = vmatprep.subr.bf16.mxu0 0
    %3195 = vmatpush1.bf16.msra.mxu0 0
    %3196 = vmatprep.subr.bf16.mxu0 0
    %3197 = vmatpush1.bf16.msra.mxu0 0
    %3198 = vmatprep.mubr.bf16.mxu0 0
    %3199 = vmatmul.mubr.bf16.gmra.mrb[0].mxu0 %v1501
    %v3200 = vpop.f32.mrb[0].mxu0
    %v3201 = vadd.f32 0.0, %v3200
    %v3202 = vpop.f32.mrb[0].mxu0
    %v3203 = vpop.f32.mrb[0].mxu0
    %v3204 = vpop.f32.mrb[0].mxu0
    %3205 = vdwg.mxu0
    %v3206 = vld [vmem:[#allocation7 + $0x1e0] sm:$0x1]
    %v3207 = vld [vmem:[#allocation7 + $0x1b0] sm:$0xff]
    %v3208 = vld [vmem:[#allocation7 + $0x1b8] sm:$0xff]
    %v3209 = vpack.c.bf16 %v3208, %v3207
    %v3210 = vsel %vm101, %v2380, 0
    %3212 = vmatprep.subr.bf16.mxu0 0
    %3213 = vmatpush1.bf16.msra.mxu0 %v3209
    %3214 = vmatprep.subr.bf16.mxu0 0
    %3215 = vmatpush1.bf16.msra.mxu0 0
    %3216 = vmatprep.subr.bf16.mxu0 0
    %3217 = vmatpush1.bf16.msra.mxu0 0
    %3218 = vmatprep.subr.bf16.mxu0 0
    %3219 = vmatpush1.bf16.msra.mxu0 0
    %3220 = vmatprep.subr.bf16.mxu0 0
    %3221 = vmatpush1.bf16.msra.mxu0 0
    %3222 = vmatprep.subr.bf16.mxu0 0
    %3223 = vmatpush1.bf16.msra.mxu0 0
    %3224 = vmatprep.subr.bf16.mxu0 0
    %3225 = vmatpush1.bf16.msra.mxu0 0
    %3226 = vmatprep.subr.bf16.mxu0 0
    %3227 = vmatpush1.bf16.msra.mxu0 0
    %3228 = vmatprep.subr.bf16.mxu0 0
    %3229 = vmatpush1.bf16.msra.mxu0 0
    %3230 = vmatprep.subr.bf16.mxu0 0
    %3231 = vmatpush1.bf16.msra.mxu0 0
    %3232 = vmatprep.subr.bf16.mxu0 0
    %3233 = vmatpush1.bf16.msra.mxu0 0
    %3234 = vmatprep.subr.bf16.mxu0 0
    %3235 = vmatpush1.bf16.msra.mxu0 0
    %3236 = vmatprep.subr.bf16.mxu0 0
    %3237 = vmatpush1.bf16.msra.mxu0 0
    %3238 = vmatprep.subr.bf16.mxu0 0
    %3239 = vmatpush1.bf16.msra.mxu0 0
    %3240 = vmatprep.subr.bf16.mxu0 0
    %3241 = vmatpush1.bf16.msra.mxu0 0
    %3242 = vmatprep.subr.bf16.mxu0 0
    %3243 = vmatpush1.bf16.msra.mxu0 0
    %3244 = vmatprep.mubr.bf16.mxu0 0
    %3245 = vmatmul.mubr.bf16.gmra.mrb[0].mxu0 %v3210
    %v3246 = vpop.f32.mrb[0].mxu0
    %v3247 = vadd.f32 0.0, %v3246
    %v3248 = vpop.f32.mrb[0].mxu0
    %v3249 = vpop.f32.mrb[0].mxu0
    %v3250 = vpop.f32.mrb[0].mxu0
    %3251 = vdwg.mxu0
    %v3252 = vlaneseq
    %v3253 = vshrl.u32 %v3252, 7
    %v3254 = vsub.s32 0, %v3253
    %v3255 = vrot.slane %v3206, %v3254
    %v3256 = vadd.f32 %v3255, %v3247
    %v3257 = vld [vmem:[#allocation7 + $0x1c0] sm:$0xff]
    %v3258 = vld [vmem:[#allocation7 + $0x1c8] sm:$0xff]
    %v3259 = vpack.c.bf16 %v3157, %v3157
    %v3260 = vpack.c.bf16 %v3258, %v3257
    %v3262 = vsel %vm101, %v3259, 0
    %3264 = vmatprep.subr.bf16.mxu0 0
    %3265 = vmatpush1.bf16.msra.mxu0 %v3260
    %3266 = vmatprep.subr.bf16.mxu0 0
    %3267 = vmatpush1.bf16.msra.mxu0 0
    %3268 = vmatprep.subr.bf16.mxu0 0
    %3269 = vmatpush1.bf16.msra.mxu0 0
    %3270 = vmatprep.subr.bf16.mxu0 0
    %3271 = vmatpush1.bf16.msra.mxu0 0
    %3272 = vmatprep.subr.bf16.mxu0 0
    %3273 = vmatpush1.bf16.msra.mxu0 0
    %3274 = vmatprep.subr.bf16.mxu0 0
    %3275 = vmatpush1.bf16.msra.mxu0 0
    %3276 = vmatprep.subr.bf16.mxu0 0
    %3277 = vmatpush1.bf16.msra.mxu0 0
    %3278 = vmatprep.subr.bf16.mxu0 0
    %3279 = vmatpush1.bf16.msra.mxu0 0
    %3280 = vmatprep.subr.bf16.mxu0 0
    %3281 = vmatpush1.bf16.msra.mxu0 0
    %3282 = vmatprep.subr.bf16.mxu0 0
    %3283 = vmatpush1.bf16.msra.mxu0 0
    %3284 = vmatprep.subr.bf16.mxu0 0
    %3285 = vmatpush1.bf16.msra.mxu0 0
    %3286 = vmatprep.subr.bf16.mxu0 0
    %3287 = vmatpush1.bf16.msra.mxu0 0
    %3288 = vmatprep.subr.bf16.mxu0 0
    %3289 = vmatpush1.bf16.msra.mxu0 0
    %3290 = vmatprep.subr.bf16.mxu0 0
    %3291 = vmatpush1.bf16.msra.mxu0 0
    %3292 = vmatprep.subr.bf16.mxu0 0
    %3293 = vmatpush1.bf16.msra.mxu0 0
    %3294 = vmatprep.subr.bf16.mxu0 0
    %3295 = vmatpush1.bf16.msra.mxu0 0
    %3296 = vmatprep.mubr.bf16.mxu0 0
    %3297 = vmatmul.mubr.bf16.gmra.mrb[0].mxu0 %v3262
    %v3298 = vpop.f32.mrb[0].mxu0
    %v3299 = vadd.f32 0.0, %v3298
    %v3300 = vpop.f32.mrb[0].mxu0
    %v3301 = vpop.f32.mrb[0].mxu0
    %v3302 = vpop.f32.mrb[0].mxu0
    %3303 = vdwg.mxu0
    %v3304 = vadd.f32 %v3256, %v3299
    %v3305 = vld [vmem:[#allocation7 + $0x1d0] sm:$0xff]
    %v3306 = vld [vmem:[#allocation7 + $0x1d8] sm:$0xff]
    %v3307 = vpack.c.bf16 %v3201, %v3201
    %v3308 = vpack.c.bf16 %v3306, %v3305
    %v3310 = vsel %vm101, %v3307, 0
    %3312 = vmatprep.subr.bf16.mxu0 0
    %3313 = vmatpush1.bf16.msra.mxu0 %v3308
    %3314 = vmatprep.subr.bf16.mxu0 0
    %3315 = vmatpush1.bf16.msra.mxu0 0
    %3316 = vmatprep.subr.bf16.mxu0 0
    %3317 = vmatpush1.bf16.msra.mxu0 0
    %3318 = vmatprep.subr.bf16.mxu0 0
    %3319 = vmatpush1.bf16.msra.mxu0 0
    %3320 = vmatprep.subr.bf16.mxu0 0
    %3321 = vmatpush1.bf16.msra.mxu0 0
    %3322 = vmatprep.subr.bf16.mxu0 0
    %3323 = vmatpush1.bf16.msra.mxu0 0
    %3324 = vmatprep.subr.bf16.mxu0 0
    %3325 = vmatpush1.bf16.msra.mxu0 0
    %3326 = vmatprep.subr.bf16.mxu0 0
    %3327 = vmatpush1.bf16.msra.mxu0 0
    %3328 = vmatprep.subr.bf16.mxu0 0
    %3329 = vmatpush1.bf16.msra.mxu0 0
    %3330 = vmatprep.subr.bf16.mxu0 0
    %3331 = vmatpush1.bf16.msra.mxu0 0
    %3332 = vmatprep.subr.bf16.mxu0 0
    %3333 = vmatpush1.bf16.msra.mxu0 0
    %3334 = vmatprep.subr.bf16.mxu0 0
    %3335 = vmatpush1.bf16.msra.mxu0 0
    %3336 = vmatprep.subr.bf16.mxu0 0
    %3337 = vmatpush1.bf16.msra.mxu0 0
    %3338 = vmatprep.subr.bf16.mxu0 0
    %3339 = vmatpush1.bf16.msra.mxu0 0
    %3340 = vmatprep.subr.bf16.mxu0 0
    %3341 = vmatpush1.bf16.msra.mxu0 0
    %3342 = vmatprep.subr.bf16.mxu0 0
    %3343 = vmatpush1.bf16.msra.mxu0 0
    %3344 = vmatprep.mubr.bf16.mxu0 0
    %3345 = vmatmul.mubr.bf16.gmra.mrb[0].mxu0 %v3310
    %v3346 = vpop.f32.mrb[0].mxu0
    %v3347 = vadd.f32 0.0, %v3346
    %v3348 = vpop.f32.mrb[0].mxu0
    %v3349 = vpop.f32.mrb[0].mxu0
    %v3350 = vpop.f32.mrb[0].mxu0
    %3351 = vdwg.mxu0
    %v3352 = vadd.f32 %v3304, %v3347
    %v3353 = vmax.f32 %v3352, 0.0
    %vm3354 = vcmp.ne.f32.partialorder %v3352, %v3352
    %v3355 = vadd.f32 %v3352, 0.0
    %v3356 = vand.u32 2147483647, %v3352
    %v3357 = vsub.f32 0.0, %v3356
    %v3358 = vmul.f32 %v3357, 1.442695
    %v3359 = vpow.pop %v3358
    %v3360 = vadd.f32 %v3359, 1.0
    %v3361 = vlog2.pop %v3360
    %v3362 = vmul.f32 %v3361, 0.6931472
    %v3363 = vmul.f32 -0.5, %v3359
    %v3364 = vadd.f32 %v3363, 1.0
    %v3365 = vmul.f32 %v3364, %v3359
    %v3366 = vand.u32 2147483647, %v3359
    %vm3367 = vcmp.lt.f32.partialorder %v3366, 0.0004427343
    %v3368 = vsel %vm3367, %v3365, %v3362
    %v3369 = vadd.f32 %v3353, %v3368
    %v3370 = vsel %vm3354, %v3355, %v3369
    %v3371 = vld [vmem:[#allocation7 + $0x1e8] sm:$0xff]
    %v3372 = vld [vmem:[#allocation7 + $0x1f0] sm:$0xff]
    %v3373 = vld [vmem:[#allocation7 + $0x1f8] sm:$0xff]
    %v3374 = vld [vmem:[#allocation7 + $0x200] sm:$0xff]
    %v3375 = vpack.c.bf16 %v3370, %v3370
    %v3376 = vpack.c.bf16 %v3372, %v3371
    %v3377 = vpack.c.bf16 %v3374, %v3373
    %v3378 = vld [vmem:[#allocation7 + $0x208] sm:$0x1]
    %v3379 = vlaneseq
    %v3380 = vshrl.u32 %v3379, 7
    %v3381 = vsub.s32 0, %v3380
    %v3382 = vrot.slane %v3378, %v3381
    %v3384 = vsel %vm194, %v3375, 0
    %3386 = vmatprep.subr.bf16.mxu0 0
    %3387 = vmatpush1.bf16.msra.mxu0 %v3376
    %3388 = vmatprep.subr.bf16.mxu0 0
    %3389 = vmatpush1.bf16.msra.mxu0 %v3377
    %3390 = vmatprep.subr.bf16.mxu0 0
    %3391 = vmatpush1.bf16.msra.mxu0 0
    %3392 = vmatprep.subr.bf16.mxu0 0
    %3393 = vmatpush1.bf16.msra.mxu0 0
    %3394 = vmatprep.subr.bf16.mxu0 0
    %3395 = vmatpush1.bf16.msra.mxu0 0
    %3396 = vmatprep.subr.bf16.mxu0 0
    %3397 = vmatpush1.bf16.msra.mxu0 0
    %3398 = vmatprep.subr.bf16.mxu0 0
    %3399 = vmatpush1.bf16.msra.mxu0 0
    %3400 = vmatprep.subr.bf16.mxu0 0
    %3401 = vmatpush1.bf16.msra.mxu0 0
    %3402 = vmatprep.subr.bf16.mxu0 0
    %3403 = vmatpush1.bf16.msra.mxu0 0
    %3404 = vmatprep.subr.bf16.mxu0 0
    %3405 = vmatpush1.bf16.msra.mxu0 0
    %3406 = vmatprep.subr.bf16.mxu0 0
    %3407 = vmatpush1.bf16.msra.mxu0 0
    %3408 = vmatprep.subr.bf16.mxu0 0
    %3409 = vmatpush1.bf16.msra.mxu0 0
    %3410 = vmatprep.subr.bf16.mxu0 0
    %3411 = vmatpush1.bf16.msra.mxu0 0
    %3412 = vmatprep.subr.bf16.mxu0 0
    %3413 = vmatpush1.bf16.msra.mxu0 0
    %3414 = vmatprep.subr.bf16.mxu0 0
    %3415 = vmatpush1.bf16.msra.mxu0 0
    %3416 = vmatprep.subr.bf16.mxu0 0
    %3417 = vmatpush1.bf16.msra.mxu0 0
    %3418 = vmatprep.mubr.bf16.mxu0 0
    %3419 = vmatmul.mubr.bf16.gmra.mrb[0].mxu0 %v3384
    %v3420 = vpop.f32.mrb[0].mxu0
    %v3421 = vadd.f32 %v3382, %v3420
    %v3422 = vpop.f32.mrb[0].mxu0
    %v3423 = vpop.f32.mrb[0].mxu0
    %v3424 = vpop.f32.mrb[0].mxu0
    %3425 = vdwg.mxu0
    %v3426 = vmax.f32 %v3421, 0.0
    %vm3427 = vcmp.ne.f32.partialorder %v3421, %v3421
    %v3428 = vadd.f32 %v3421, 0.0
    %v3429 = vand.u32 2147483647, %v3421
    %v3430 = vsub.f32 0.0, %v3429
    %v3431 = vmul.f32 %v3430, 1.442695
    %v3432 = vpow.pop %v3431
    %v3433 = vadd.f32 %v3432, 1.0
    %v3434 = vlog2.pop %v3433
    %v3435 = vmul.f32 %v3434, 0.6931472
    %v3436 = vmul.f32 -0.5, %v3432
    %v3437 = vadd.f32 %v3436, 1.0
    %v3438 = vmul.f32 %v3437, %v3432
    %v3439 = vand.u32 2147483647, %v3432
    %vm3440 = vcmp.lt.f32.partialorder %v3439, 0.0004427343
    %v3441 = vsel %vm3440, %v3438, %v3435
    %v3442 = vadd.f32 %v3426, %v3441
    %v3443 = vsel %vm3427, %v3428, %v3442
    %v3444 = vadd.f32 %v2756, %v1784
    %v3445 = vadd.f32 %v2757, %v1785
    %v3446 = vadd.f32 %v3120, %v1786
    %v3447 = vadd.f32 %v3121, %v1787
    %v3448 = vadd.f32 %v3443, %v1788
    %v3449 = vld [vmem:[#allocation7 + $0x420] sm:$0xff]
    %v3450 = vld [vmem:[#allocation7 + $0x428] sm:$0xff]
    %v3451 = vpack.c.bf16 %v3450, %v3449
    %v3452 = vld [vmem:[#allocation7 + $0x430] sm:$0xff]
    %v3453 = vld [vmem:[#allocation7 + $0x438] sm:$0xff]
    %v3454 = vpack.c.bf16 %v3453, %v3452
    %v3455 = vld [vmem:[#allocation7 + $0x440] sm:$0xff]
    %v3456 = vld [vmem:[#allocation7 + $0x448] sm:$0xff]
    %v3457 = vpack.c.bf16 %v3456, %v3455
    %v3458 = vld [vmem:[#allocation7 + $0x450] sm:$0x1]
    %v3459 = vld [vmem:[#allocation7 + $0x458] sm:$0x1]
    %v3460 = vadd.f32 %v3458, %v3459
    %vm3461 = vcmp.gt.f32.partialorder %v89, 0.5
    %v3462 = vpack.c.bf16 %v3447, %v3446
    %v3464 = vsel %vm101, 0, 0
    %3466 = vmatprep.subr.bf16.mxu0 0
    %3467 = vmatpush1.bf16.msra.mxu0 %v3454
    %3468 = vmatprep.subr.bf16.mxu0 0
    %3469 = vmatpush1.bf16.msra.mxu0 0
    %3470 = vmatprep.subr.bf16.mxu0 0
    %3471 = vmatpush1.bf16.msra.mxu0 0
    %3472 = vmatprep.subr.bf16.mxu0 0
    %3473 = vmatpush1.bf16.msra.mxu0 0
    %3474 = vmatprep.subr.bf16.mxu0 0
    %3475 = vmatpush1.bf16.msra.mxu0 0
    %3476 = vmatprep.subr.bf16.mxu0 0
    %3477 = vmatpush1.bf16.msra.mxu0 0
    %3478 = vmatprep.subr.bf16.mxu0 0
    %3479 = vmatpush1.bf16.msra.mxu0 0
    %3480 = vmatprep.subr.bf16.mxu0 0
    %3481 = vmatpush1.bf16.msra.mxu0 0
    %3482 = vmatprep.subr.bf16.mxu0 0
    %3483 = vmatpush1.bf16.msra.mxu0 0
    %3484 = vmatprep.subr.bf16.mxu0 0
    %3485 = vmatpush1.bf16.msra.mxu0 0
    %3486 = vmatprep.subr.bf16.mxu0 0
    %3487 = vmatpush1.bf16.msra.mxu0 0
    %3488 = vmatprep.subr.bf16.mxu0 0
    %3489 = vmatpush1.bf16.msra.mxu0 0
    %3490 = vmatprep.subr.bf16.mxu0 0
    %3491 = vmatpush1.bf16.msra.mxu0 0
    %3492 = vmatprep.subr.bf16.mxu0 0
    %3493 = vmatpush1.bf16.msra.mxu0 0
    %3494 = vmatprep.subr.bf16.mxu0 0
    %3495 = vmatpush1.bf16.msra.mxu0 0
    %3496 = vmatprep.subr.bf16.mxu0 0
    %3497 = vmatpush1.bf16.msra.mxu0 0
    %3498 = vmatprep.mubr.bf16.mxu0 0
    %3499 = vmatmul.mubr.bf16.gmra.mrb[0].mxu0 %v3464
    %v3500 = vpop.f32.mrb[0].mxu0
    %v3501 = vadd.f32 0.0, %v3500
    %v3502 = vpop.f32.mrb[0].mxu0
    %v3503 = vpop.f32.mrb[0].mxu0
    %v3504 = vpop.f32.mrb[0].mxu0
    %3505 = vdwg.mxu0
    %3506 = vmatprep.subr.bf16.mxu0 0
    %3507 = vmatpush1.bf16.msra.mxu0 %v3451
    %3508 = vmatprep.subr.bf16.mxu0 0
    %3509 = vmatpush1.bf16.msra.mxu0 0
    %3510 = vmatprep.subr.bf16.mxu0 0
    %3511 = vmatpush1.bf16.msra.mxu0 0
    %3512 = vmatprep.subr.bf16.mxu0 0
    %3513 = vmatpush1.bf16.msra.mxu0 0
    %3514 = vmatprep.subr.bf16.mxu0 0
    %3515 = vmatpush1.bf16.msra.mxu0 0
    %3516 = vmatprep.subr.bf16.mxu0 0
    %3517 = vmatpush1.bf16.msra.mxu0 0
    %3518 = vmatprep.subr.bf16.mxu0 0
    %3519 = vmatpush1.bf16.msra.mxu0 0
    %3520 = vmatprep.subr.bf16.mxu0 0
    %3521 = vmatpush1.bf16.msra.mxu0 0
    %3522 = vmatprep.subr.bf16.mxu0 0
    %3523 = vmatpush1.bf16.msra.mxu0 0
    %3524 = vmatprep.subr.bf16.mxu0 0
    %3525 = vmatpush1.bf16.msra.mxu0 0
    %3526 = vmatprep.subr.bf16.mxu0 0
    %3527 = vmatpush1.bf16.msra.mxu0 0
    %3528 = vmatprep.subr.bf16.mxu0 0
    %3529 = vmatpush1.bf16.msra.mxu0 0
    %3530 = vmatprep.subr.bf16.mxu0 0
    %3531 = vmatpush1.bf16.msra.mxu0 0
    %3532 = vmatprep.subr.bf16.mxu0 0
    %3533 = vmatpush1.bf16.msra.mxu0 0
    %3534 = vmatprep.subr.bf16.mxu0 0
    %3535 = vmatpush1.bf16.msra.mxu0 0
    %3536 = vmatprep.subr.bf16.mxu0 0
    %3537 = vmatpush1.bf16.msra.mxu0 0
    %3538 = vmatprep.mubr.bf16.mxu0 0
    %3539 = vmatmul.mubr.bf16.gmra.mrb[0].mxu0 %v3464
    %v3540 = vpop.f32.mrb[0].mxu0
    %v3541 = vadd.f32 %v3501, %v3540
    %v3542 = vpop.f32.mrb[0].mxu0
    %v3543 = vpop.f32.mrb[0].mxu0
    %v3544 = vpop.f32.mrb[0].mxu0
    %3545 = vdwg.mxu0
    %3546 = vmatprep.subr.bf16.mxu0 0
    %3547 = vmatpush1.bf16.msra.mxu0 %v3457
    %3548 = vmatprep.subr.bf16.mxu0 0
    %3549 = vmatpush1.bf16.msra.mxu0 0
    %3550 = vmatprep.subr.bf16.mxu0 0
    %3551 = vmatpush1.bf16.msra.mxu0 0
    %3552 = vmatprep.subr.bf16.mxu0 0
    %3553 = vmatpush1.bf16.msra.mxu0 0
    %3554 = vmatprep.subr.bf16.mxu0 0
    %3555 = vmatpush1.bf16.msra.mxu0 0
    %3556 = vmatprep.subr.bf16.mxu0 0
    %3557 = vmatpush1.bf16.msra.mxu0 0
    %3558 = vmatprep.subr.bf16.mxu0 0
    %3559 = vmatpush1.bf16.msra.mxu0 0
    %3560 = vmatprep.subr.bf16.mxu0 0
    %3561 = vmatpush1.bf16.msra.mxu0 0
    %3562 = vmatprep.subr.bf16.mxu0 0
    %3563 = vmatpush1.bf16.msra.mxu0 0
    %3564 = vmatprep.subr.bf16.mxu0 0
    %3565 = vmatpush1.bf16.msra.mxu0 0
    %3566 = vmatprep.subr.bf16.mxu0 0
    %3567 = vmatpush1.bf16.msra.mxu0 0
    %3568 = vmatprep.subr.bf16.mxu0 0
    %3569 = vmatpush1.bf16.msra.mxu0 0
    %3570 = vmatprep.subr.bf16.mxu0 0
    %3571 = vmatpush1.bf16.msra.mxu0 0
    %3572 = vmatprep.subr.bf16.mxu0 0
    %3573 = vmatpush1.bf16.msra.mxu0 0
    %3574 = vmatprep.subr.bf16.mxu0 0
    %3575 = vmatpush1.bf16.msra.mxu0 0
    %3576 = vmatprep.subr.bf16.mxu0 0
    %3577 = vmatpush1.bf16.msra.mxu0 0
    %3578 = vmatprep.mubr.bf16.mxu0 0
    %3579 = vmatmul.mubr.bf16.gmra.mrb[0].mxu0 %v3464
    %v3580 = vpop.f32.mrb[0].mxu0
    %v3581 = vadd.f32 0.0, %v3580
    %v3582 = vpop.f32.mrb[0].mxu0
    %v3583 = vpop.f32.mrb[0].mxu0
    %v3584 = vpop.f32.mrb[0].mxu0
    %3585 = vdwg.mxu0
    %v3586 = vadd.f32 %v3541, %v3581
    %v3587 = vlaneseq
    %v3588 = vshrl.u32 %v3587, 7
    %v3589 = vsub.s32 0, %v3588
    %v3590 = vrot.slane %v3460, %v3589
    %v3591 = vadd.f32 %v3586, %v3590
    %v3592 = vxor.u32 %v3591, 2147483648
    %v3593 = vmul.f32 %v3592, 1.442695
    %v3594 = vpow.pop %v3593
    %v3595 = vadd.f32 %v3594, 1.0
    %v3596 = vrcp.pop %v3595
    %v3597 = vmul.f32 1.0, %v3596
    %v3598 = vtanh.pop %v3591
    %v3599 = vmul.f32 %v3597, 0.0
    %3601 = vrot.lane.b32.xlu0 %v3598, 96
    %v3602 = vpop.permute.xlu0 %3601
    %v3604 = vmul.f32 %v3597, %v3602
    %3606 = vrot.lane.b32.xlu0 %v3604, 16
    %v3607 = vpop.permute.xlu0 %3606
    %v3609 = vadd.f32 %v3599, %v3607
    %v3610 = vtanh.pop %v3609
    %3612 = vrot.lane.b32.xlu0 %v3610, 32
    %v3613 = vpop.permute.xlu0 %3612
    %v3615 = vmul.f32 %v3597, %v3613
    %v3616 = vpack.c.bf16 %v3615, %v3615
    %3618 = vrot.lane.b32.xlu0 %v3616, 80
    %v3619 = vpop.permute.xlu0 %3618
    %v3621 = vsel %vm101, %v3619, 0
    %v3624 = vsel %vm101, %v3462, 0
    %3626 = vmatprep.subr.bf16.mxu0 0
    %3627 = vmatpush1.bf16.xpose.msra.mxu0 %v3624
    %3628 = vmatprep.subr.bf16.mxu0 0
    %3629 = vmatpush1.bf16.xpose.msra.mxu0 0
    %3630 = vmatprep.subr.bf16.mxu0 0
    %3631 = vmatpush1.bf16.xpose.msra.mxu0 0
    %3632 = vmatprep.subr.bf16.mxu0 0
    %3633 = vmatpush1.bf16.xpose.msra.mxu0 0
    %3634 = vmatprep.subr.bf16.mxu0 0
    %3635 = vmatpush1.bf16.xpose.msra.mxu0 0
    %3636 = vmatprep.subr.bf16.mxu0 0
    %3637 = vmatpush1.bf16.xpose.msra.mxu0 0
    %3638 = vmatprep.subr.bf16.mxu0 0
    %3639 = vmatpush1.bf16.xpose.msra.mxu0 0
    %3640 = vmatprep.subr.bf16.mxu0 0
    %3641 = vmatpush1.bf16.xpose.msra.mxu0 0
    %3642 = vmatprep.subr.bf16.mxu0 0
    %3643 = vmatpush1.bf16.xpose.msra.mxu0 0
    %3644 = vmatprep.subr.bf16.mxu0 0
    %3645 = vmatpush1.bf16.xpose.msra.mxu0 0
    %3646 = vmatprep.subr.bf16.mxu0 0
    %3647 = vmatpush1.bf16.xpose.msra.mxu0 0
    %3648 = vmatprep.subr.bf16.mxu0 0
    %3649 = vmatpush1.bf16.xpose.msra.mxu0 0
    %3650 = vmatprep.subr.bf16.mxu0 0
    %3651 = vmatpush1.bf16.xpose.msra.mxu0 0
    %3652 = vmatprep.subr.bf16.mxu0 0
    %3653 = vmatpush1.bf16.xpose.msra.mxu0 0
    %3654 = vmatprep.subr.bf16.mxu0 0
    %3655 = vmatpush1.bf16.xpose.msra.mxu0 0
    %3656 = vmatprep.subr.bf16.mxu0 0
    %3657 = vmatpush1.bf16.xpose.msra.mxu0 0
    %3658 = vmatprep.mubr.bf16.mxu0 0
    %3659 = vmatmul.mubr.bf16.gmra.mrb[0].mxu0 %v3621
    %v3660 = vpop.f32.mrb[0].mxu0
    %v3661 = vadd.f32 0.0, %v3660
    %v3662 = vpop.f32.mrb[0].mxu0
    %v3663 = vpop.f32.mrb[0].mxu0
    %v3664 = vpop.f32.mrb[0].mxu0
    %3665 = vdwg.mxu0
    %v3666 = vsel %vm3461, %v3661, -1e+30
    %vm3667 = vcmask 74752
    %v3668 = vsel %vm3667, %v3666, -inf
    %3669 = vmax.xlane.f32.xlu0 %v3668
    %v3670 = vpop.xlane.xlu0 %3669
    %v3671 = vsub.f32 %v3666, %v3670
    %v3672 = vmul.f32 %v3671, 1.442695
    %v3673 = vpow.pop %v3672
    %v3674 = vsel %vm3461, %v3673, 0.0
    %v3675 = vsel %vm3667, %v3674, 0.0
    %3676 = vadd.xlane.f32.xlu0 %v3675
    %v3677 = vpop.xlane.xlu0 %3676
    %v3678 = vmax.f32 %v3677, 1e-20
    %v3679 = vrcp.pop %v3678
    %v3680 = vmul.f32 %v3674, %v3679
    %v3681 = vpack.c.bf16 %v3680, %v3680
    %v3683 = vsel %vm604, %v3681, 0
    %v3685 = vsel %vm608, %v3462, 0
    %3687 = vmatprep.subr.bf16.mxu0 0
    %3688 = vmatpush1.bf16.msra.mxu0 %v3685
    %3689 = vmatprep.subr.bf16.mxu0 0
    %3690 = vmatpush1.bf16.msra.mxu0 0
    %3691 = vmatprep.subr.bf16.mxu0 0
    %3692 = vmatpush1.bf16.msra.mxu0 0
    %3693 = vmatprep.subr.bf16.mxu0 0
    %3694 = vmatpush1.bf16.msra.mxu0 0
    %3695 = vmatprep.subr.bf16.mxu0 0
    %3696 = vmatpush1.bf16.msra.mxu0 0
    %3697 = vmatprep.subr.bf16.mxu0 0
    %3698 = vmatpush1.bf16.msra.mxu0 0
    %3699 = vmatprep.subr.bf16.mxu0 0
    %3700 = vmatpush1.bf16.msra.mxu0 0
    %3701 = vmatprep.subr.bf16.mxu0 0
    %3702 = vmatpush1.bf16.msra.mxu0 0
    %3703 = vmatprep.subr.bf16.mxu0 0
    %3704 = vmatpush1.bf16.msra.mxu0 0
    %3705 = vmatprep.subr.bf16.mxu0 0
    %3706 = vmatpush1.bf16.msra.mxu0 0
    %3707 = vmatprep.subr.bf16.mxu0 0
    %3708 = vmatpush1.bf16.msra.mxu0 0
    %3709 = vmatprep.subr.bf16.mxu0 0
    %3710 = vmatpush1.bf16.msra.mxu0 0
    %3711 = vmatprep.subr.bf16.mxu0 0
    %3712 = vmatpush1.bf16.msra.mxu0 0
    %3713 = vmatprep.subr.bf16.mxu0 0
    %3714 = vmatpush1.bf16.msra.mxu0 0
    %3715 = vmatprep.subr.bf16.mxu0 0
    %3716 = vmatpush1.bf16.msra.mxu0 0
    %3717 = vmatprep.subr.bf16.mxu0 0
    %3718 = vmatpush1.bf16.msra.mxu0 0
    %3719 = vmatprep.mubr.bf16.mxu0 0
    %3720 = vmatmul.mubr.bf16.gmra.mrb[0].mxu0 %v3683
    %v3721 = vpop.f32.mrb[0].mxu0
    %v3722 = vadd.f32 0.0, %v3721
    %v3723 = vpop.f32.mrb[0].mxu0
    %v3724 = vpop.f32.mrb[0].mxu0
    %v3725 = vpop.f32.mrb[0].mxu0
    %3726 = vdwg.mxu0
    %v3727 = vpack.c.bf16 %v3722, %v3722
    %v3729 = vsel %vm101, %v3727, 0
    %3731 = vmatprep.subr.bf16.mxu0 0
    %3732 = vmatpush1.bf16.msra.mxu0 %v3454
    %3733 = vmatprep.subr.bf16.mxu0 0
    %3734 = vmatpush1.bf16.msra.mxu0 0
    %3735 = vmatprep.subr.bf16.mxu0 0
    %3736 = vmatpush1.bf16.msra.mxu0 0
    %3737 = vmatprep.subr.bf16.mxu0 0
    %3738 = vmatpush1.bf16.msra.mxu0 0
    %3739 = vmatprep.subr.bf16.mxu0 0
    %3740 = vmatpush1.bf16.msra.mxu0 0
    %3741 = vmatprep.subr.bf16.mxu0 0
    %3742 = vmatpush1.bf16.msra.mxu0 0
    %3743 = vmatprep.subr.bf16.mxu0 0
    %3744 = vmatpush1.bf16.msra.mxu0 0
    %3745 = vmatprep.subr.bf16.mxu0 0
    %3746 = vmatpush1.bf16.msra.mxu0 0
    %3747 = vmatprep.subr.bf16.mxu0 0
    %3748 = vmatpush1.bf16.msra.mxu0 0
    %3749 = vmatprep.subr.bf16.mxu0 0
    %3750 = vmatpush1.bf16.msra.mxu0 0
    %3751 = vmatprep.subr.bf16.mxu0 0
    %3752 = vmatpush1.bf16.msra.mxu0 0
    %3753 = vmatprep.subr.bf16.mxu0 0
    %3754 = vmatpush1.bf16.msra.mxu0 0
    %3755 = vmatprep.subr.bf16.mxu0 0
    %3756 = vmatpush1.bf16.msra.mxu0 0
    %3757 = vmatprep.subr.bf16.mxu0 0
    %3758 = vmatpush1.bf16.msra.mxu0 0
    %3759 = vmatprep.subr.bf16.mxu0 0
    %3760 = vmatpush1.bf16.msra.mxu0 0
    %3761 = vmatprep.subr.bf16.mxu0 0
    %3762 = vmatpush1.bf16.msra.mxu0 0
    %3763 = vmatprep.mubr.bf16.mxu0 0
    %3764 = vmatmul.mubr.bf16.gmra.mrb[0].mxu0 %v3729
    %v3765 = vpop.f32.mrb[0].mxu0
    %v3766 = vadd.f32 0.0, %v3765
    %v3767 = vpop.f32.mrb[0].mxu0
    %v3768 = vpop.f32.mrb[0].mxu0
    %v3769 = vpop.f32.mrb[0].mxu0
    %3770 = vdwg.mxu0
    %3771 = vmatprep.subr.bf16.mxu0 0
    %3772 = vmatpush1.bf16.msra.mxu0 %v3451
    %3773 = vmatprep.subr.bf16.mxu0 0
    %3774 = vmatpush1.bf16.msra.mxu0 0
    %3775 = vmatprep.subr.bf16.mxu0 0
    %3776 = vmatpush1.bf16.msra.mxu0 0
    %3777 = vmatprep.subr.bf16.mxu0 0
    %3778 = vmatpush1.bf16.msra.mxu0 0
    %3779 = vmatprep.subr.bf16.mxu0 0
    %3780 = vmatpush1.bf16.msra.mxu0 0
    %3781 = vmatprep.subr.bf16.mxu0 0
    %3782 = vmatpush1.bf16.msra.mxu0 0
    %3783 = vmatprep.subr.bf16.mxu0 0
    %3784 = vmatpush1.bf16.msra.mxu0 0
    %3785 = vmatprep.subr.bf16.mxu0 0
    %3786 = vmatpush1.bf16.msra.mxu0 0
    %3787 = vmatprep.subr.bf16.mxu0 0
    %3788 = vmatpush1.bf16.msra.mxu0 0
    %3789 = vmatprep.subr.bf16.mxu0 0
    %3790 = vmatpush1.bf16.msra.mxu0 0
    %3791 = vmatprep.subr.bf16.mxu0 0
    %3792 = vmatpush1.bf16.msra.mxu0 0
    %3793 = vmatprep.subr.bf16.mxu0 0
    %3794 = vmatpush1.bf16.msra.mxu0 0
    %3795 = vmatprep.subr.bf16.mxu0 0
    %3796 = vmatpush1.bf16.msra.mxu0 0
    %3797 = vmatprep.subr.bf16.mxu0 0
    %3798 = vmatpush1.bf16.msra.mxu0 0
    %3799 = vmatprep.subr.bf16.mxu0 0
    %3800 = vmatpush1.bf16.msra.mxu0 0
    %3801 = vmatprep.subr.bf16.mxu0 0
    %3802 = vmatpush1.bf16.msra.mxu0 0
    %3803 = vmatprep.mubr.bf16.mxu0 0
    %3804 = vmatmul.mubr.bf16.gmra.mrb[0].mxu0 %v3621
    %v3805 = vpop.f32.mrb[0].mxu0
    %v3806 = vadd.f32 %v3766, %v3805
    %v3807 = vpop.f32.mrb[0].mxu0
    %v3808 = vpop.f32.mrb[0].mxu0
    %v3809 = vpop.f32.mrb[0].mxu0
    %3810 = vdwg.mxu0
    %3811 = vmatprep.subr.bf16.mxu0 0
    %3812 = vmatpush1.bf16.msra.mxu0 %v3457
    %3813 = vmatprep.subr.bf16.mxu0 0
    %3814 = vmatpush1.bf16.msra.mxu0 0
    %3815 = vmatprep.subr.bf16.mxu0 0
    %3816 = vmatpush1.bf16.msra.mxu0 0
    %3817 = vmatprep.subr.bf16.mxu0 0
    %3818 = vmatpush1.bf16.msra.mxu0 0
    %3819 = vmatprep.subr.bf16.mxu0 0
    %3820 = vmatpush1.bf16.msra.mxu0 0
    %3821 = vmatprep.subr.bf16.mxu0 0
    %3822 = vmatpush1.bf16.msra.mxu0 0
    %3823 = vmatprep.subr.bf16.mxu0 0
    %3824 = vmatpush1.bf16.msra.mxu0 0
    %3825 = vmatprep.subr.bf16.mxu0 0
    %3826 = vmatpush1.bf16.msra.mxu0 0
    %3827 = vmatprep.subr.bf16.mxu0 0
    %3828 = vmatpush1.bf16.msra.mxu0 0
    %3829 = vmatprep.subr.bf16.mxu0 0
    %3830 = vmatpush1.bf16.msra.mxu0 0
    %3831 = vmatprep.subr.bf16.mxu0 0
    %3832 = vmatpush1.bf16.msra.mxu0 0
    %3833 = vmatprep.subr.bf16.mxu0 0
    %3834 = vmatpush1.bf16.msra.mxu0 0
    %3835 = vmatprep.subr.bf16.mxu0 0
    %3836 = vmatpush1.bf16.msra.mxu0 0
    %3837 = vmatprep.subr.bf16.mxu0 0
    %3838 = vmatpush1.bf16.msra.mxu0 0
    %3839 = vmatprep.subr.bf16.mxu0 0
    %3840 = vmatpush1.bf16.msra.mxu0 0
    %3841 = vmatprep.subr.bf16.mxu0 0
    %3842 = vmatpush1.bf16.msra.mxu0 0
    %3843 = vmatprep.mubr.bf16.mxu0 0
    %3844 = vmatmul.mubr.bf16.gmra.mrb[0].mxu0 %v3621
    %v3845 = vpop.f32.mrb[0].mxu0
    %v3846 = vadd.f32 0.0, %v3845
    %v3847 = vpop.f32.mrb[0].mxu0
    %v3848 = vpop.f32.mrb[0].mxu0
    %v3849 = vpop.f32.mrb[0].mxu0
    %3850 = vdwg.mxu0
    %v3851 = vadd.f32 %v3806, %v3846
    %v3852 = vadd.f32 %v3851, %v3590
    %v3853 = vxor.u32 %v3852, 2147483648
    %v3854 = vmul.f32 %v3853, 1.442695
    %v3855 = vpow.pop %v3854
    %v3856 = vadd.f32 %v3855, 1.0
    %v3857 = vrcp.pop %v3856
    %v3858 = vmul.f32 1.0, %v3857
    %v3859 = vtanh.pop %v3852
    %v3860 = vmul.f32 %v3858, %v3609
    %3862 = vrot.lane.b32.xlu0 %v3859, 96
    %v3863 = vpop.permute.xlu0 %3862
    %v3865 = vmul.f32 %v3858, %v3863
    %3867 = vrot.lane.b32.xlu0 %v3865, 16
    %v3868 = vpop.permute.xlu0 %3867
    %v3870 = vadd.f32 %v3860, %v3868
    %v3871 = vtanh.pop %v3870
    %3873 = vrot.lane.b32.xlu0 %v3871, 32
    %v3874 = vpop.permute.xlu0 %3873
    %v3876 = vmul.f32 %v3858, %v3874
    %v3877 = vpack.c.bf16 %v3876, %v3876
    %3879 = vrot.lane.b32.xlu0 %v3877, 80
    %v3880 = vpop.permute.xlu0 %3879
    %v3882 = vsel %vm101, %v3880, 0
    %3884 = vmatprep.subr.bf16.mxu0 0
    %3885 = vmatpush1.bf16.xpose.msra.mxu0 %v3624
    %3886 = vmatprep.subr.bf16.mxu0 0
    %3887 = vmatpush1.bf16.xpose.msra.mxu0 0
    %3888 = vmatprep.subr.bf16.mxu0 0
    %3889 = vmatpush1.bf16.xpose.msra.mxu0 0
    %3890 = vmatprep.subr.bf16.mxu0 0
    %3891 = vmatpush1.bf16.xpose.msra.mxu0 0
    %3892 = vmatprep.subr.bf16.mxu0 0
    %3893 = vmatpush1.bf16.xpose.msra.mxu0 0
    %3894 = vmatprep.subr.bf16.mxu0 0
    %3895 = vmatpush1.bf16.xpose.msra.mxu0 0
    %3896 = vmatprep.subr.bf16.mxu0 0
    %3897 = vmatpush1.bf16.xpose.msra.mxu0 0
    %3898 = vmatprep.subr.bf16.mxu0 0
    %3899 = vmatpush1.bf16.xpose.msra.mxu0 0
    %3900 = vmatprep.subr.bf16.mxu0 0
    %3901 = vmatpush1.bf16.xpose.msra.mxu0 0
    %3902 = vmatprep.subr.bf16.mxu0 0
    %3903 = vmatpush1.bf16.xpose.msra.mxu0 0
    %3904 = vmatprep.subr.bf16.mxu0 0
    %3905 = vmatpush1.bf16.xpose.msra.mxu0 0
    %3906 = vmatprep.subr.bf16.mxu0 0
    %3907 = vmatpush1.bf16.xpose.msra.mxu0 0
    %3908 = vmatprep.subr.bf16.mxu0 0
    %3909 = vmatpush1.bf16.xpose.msra.mxu0 0
    %3910 = vmatprep.subr.bf16.mxu0 0
    %3911 = vmatpush1.bf16.xpose.msra.mxu0 0
    %3912 = vmatprep.subr.bf16.mxu0 0
    %3913 = vmatpush1.bf16.xpose.msra.mxu0 0
    %3914 = vmatprep.subr.bf16.mxu0 0
    %3915 = vmatpush1.bf16.xpose.msra.mxu0 0
    %3916 = vmatprep.mubr.bf16.mxu0 0
    %3917 = vmatmul.mubr.bf16.gmra.mrb[0].mxu0 %v3882
    %v3918 = vpop.f32.mrb[0].mxu0
    %v3919 = vadd.f32 0.0, %v3918
    %v3920 = vpop.f32.mrb[0].mxu0
    %v3921 = vpop.f32.mrb[0].mxu0
    %v3922 = vpop.f32.mrb[0].mxu0
    %3923 = vdwg.mxu0
    %v3924 = vsel %vm3461, %v3919, -1e+30
    %v3925 = vsel %vm3667, %v3924, -inf
    %3926 = vmax.xlane.f32.xlu0 %v3925
    %v3927 = vpop.xlane.xlu0 %3926
    %v3928 = vsub.f32 %v3924, %v3927
    %v3929 = vmul.f32 %v3928, 1.442695
    %v3930 = vpow.pop %v3929
    %v3931 = vsel %vm3461, %v3930, 0.0
    %v3932 = vsel %vm3667, %v3931, 0.0
    %3933 = vadd.xlane.f32.xlu0 %v3932
    %v3934 = vpop.xlane.xlu0 %3933
    %v3935 = vmax.f32 %v3934, 1e-20
    %v3936 = vrcp.pop %v3935
    %v3937 = vmul.f32 %v3931, %v3936
    %v3938 = vpack.c.bf16 %v3937, %v3937
    %v3940 = vsel %vm604, %v3938, 0
    %3942 = vmatprep.subr.bf16.mxu0 0
    %3943 = vmatpush1.bf16.msra.mxu0 %v3685
    %3944 = vmatprep.subr.bf16.mxu0 0
    %3945 = vmatpush1.bf16.msra.mxu0 0
    %3946 = vmatprep.subr.bf16.mxu0 0
    %3947 = vmatpush1.bf16.msra.mxu0 0
    %3948 = vmatprep.subr.bf16.mxu0 0
    %3949 = vmatpush1.bf16.msra.mxu0 0
    %3950 = vmatprep.subr.bf16.mxu0 0
    %3951 = vmatpush1.bf16.msra.mxu0 0
    %3952 = vmatprep.subr.bf16.mxu0 0
    %3953 = vmatpush1.bf16.msra.mxu0 0
    %3954 = vmatprep.subr.bf16.mxu0 0
    %3955 = vmatpush1.bf16.msra.mxu0 0
    %3956 = vmatprep.subr.bf16.mxu0 0
    %3957 = vmatpush1.bf16.msra.mxu0 0
    %3958 = vmatprep.subr.bf16.mxu0 0
    %3959 = vmatpush1.bf16.msra.mxu0 0
    %3960 = vmatprep.subr.bf16.mxu0 0
    %3961 = vmatpush1.bf16.msra.mxu0 0
    %3962 = vmatprep.subr.bf16.mxu0 0
    %3963 = vmatpush1.bf16.msra.mxu0 0
    %3964 = vmatprep.subr.bf16.mxu0 0
    %3965 = vmatpush1.bf16.msra.mxu0 0
    %3966 = vmatprep.subr.bf16.mxu0 0
    %3967 = vmatpush1.bf16.msra.mxu0 0
    %3968 = vmatprep.subr.bf16.mxu0 0
    %3969 = vmatpush1.bf16.msra.mxu0 0
    %3970 = vmatprep.subr.bf16.mxu0 0
    %3971 = vmatpush1.bf16.msra.mxu0 0
    %3972 = vmatprep.subr.bf16.mxu0 0
    %3973 = vmatpush1.bf16.msra.mxu0 0
    %3974 = vmatprep.mubr.bf16.mxu0 0
    %3975 = vmatmul.mubr.bf16.gmra.mrb[0].mxu0 %v3940
    %v3976 = vpop.f32.mrb[0].mxu0
    %v3977 = vadd.f32 0.0, %v3976
    %v3978 = vpop.f32.mrb[0].mxu0
    %v3979 = vpop.f32.mrb[0].mxu0
    %v3980 = vpop.f32.mrb[0].mxu0
    %3981 = vdwg.mxu0
    %v3982 = vld [vmem:[#allocation7 + $0x3a0] sm:$0xff]
    %v3983 = vld [vmem:[#allocation7 + $0x3a8] sm:$0xff]
    %v3984 = vpack.c.bf16 %v3983, %v3982
    %v3985 = vld [vmem:[#allocation7 + $0x3b0] sm:$0xff]
    %v3986 = vld [vmem:[#allocation7 + $0x3b8] sm:$0xff]
    %v3987 = vpack.c.bf16 %v3986, %v3985
    %v3988 = vld [vmem:[#allocation7 + $0x3c0] sm:$0xff]
    %v3989 = vld [vmem:[#allocation7 + $0x3c8] sm:$0xff]
    %v3990 = vpack.c.bf16 %v3989, %v3988
    %v3991 = vld [vmem:[#allocation7 + $0x3d0] sm:$0x1]
    %v3992 = vld [vmem:[#allocation7 + $0x3d8] sm:$0x1]
    %v3993 = vadd.f32 %v3991, %v3992
    %vm3994 = vcmp.gt.f32.partialorder %v88, 0.5
    %v3995 = vpack.c.bf16 %v3445, %v3444
    %3996 = vmatprep.subr.bf16.mxu0 0
    %3997 = vmatpush1.bf16.msra.mxu0 %v3987
    %3998 = vmatprep.subr.bf16.mxu0 0
    %3999 = vmatpush1.bf16.msra.mxu0 0
    %4000 = vmatprep.subr.bf16.mxu0 0
    %4001 = vmatpush1.bf16.msra.mxu0 0
    %4002 = vmatprep.subr.bf16.mxu0 0
    %4003 = vmatpush1.bf16.msra.mxu0 0
    %4004 = vmatprep.subr.bf16.mxu0 0
    %4005 = vmatpush1.bf16.msra.mxu0 0
    %4006 = vmatprep.subr.bf16.mxu0 0
    %4007 = vmatpush1.bf16.msra.mxu0 0
    %4008 = vmatprep.subr.bf16.mxu0 0
    %4009 = vmatpush1.bf16.msra.mxu0 0
    %4010 = vmatprep.subr.bf16.mxu0 0
    %4011 = vmatpush1.bf16.msra.mxu0 0
    %4012 = vmatprep.subr.bf16.mxu0 0
    %4013 = vmatpush1.bf16.msra.mxu0 0
    %4014 = vmatprep.subr.bf16.mxu0 0
    %4015 = vmatpush1.bf16.msra.mxu0 0
    %4016 = vmatprep.subr.bf16.mxu0 0
    %4017 = vmatpush1.bf16.msra.mxu0 0
    %4018 = vmatprep.subr.bf16.mxu0 0
    %4019 = vmatpush1.bf16.msra.mxu0 0
    %4020 = vmatprep.subr.bf16.mxu0 0
    %4021 = vmatpush1.bf16.msra.mxu0 0
    %4022 = vmatprep.subr.bf16.mxu0 0
    %4023 = vmatpush1.bf16.msra.mxu0 0
    %4024 = vmatprep.subr.bf16.mxu0 0
    %4025 = vmatpush1.bf16.msra.mxu0 0
    %4026 = vmatprep.subr.bf16.mxu0 0
    %4027 = vmatpush1.bf16.msra.mxu0 0
    %4028 = vmatprep.mubr.bf16.mxu0 0
    %4029 = vmatmul.mubr.bf16.gmra.mrb[0].mxu0 %v3464
    %v4030 = vpop.f32.mrb[0].mxu0
    %v4031 = vadd.f32 0.0, %v4030
    %v4032 = vpop.f32.mrb[0].mxu0
    %v4033 = vpop.f32.mrb[0].mxu0
    %v4034 = vpop.f32.mrb[0].mxu0
    %4035 = vdwg.mxu0
    %4036 = vmatprep.subr.bf16.mxu0 0
    %4037 = vmatpush1.bf16.msra.mxu0 %v3984
    %4038 = vmatprep.subr.bf16.mxu0 0
    %4039 = vmatpush1.bf16.msra.mxu0 0
    %4040 = vmatprep.subr.bf16.mxu0 0
    %4041 = vmatpush1.bf16.msra.mxu0 0
    %4042 = vmatprep.subr.bf16.mxu0 0
    %4043 = vmatpush1.bf16.msra.mxu0 0
    %4044 = vmatprep.subr.bf16.mxu0 0
    %4045 = vmatpush1.bf16.msra.mxu0 0
    %4046 = vmatprep.subr.bf16.mxu0 0
    %4047 = vmatpush1.bf16.msra.mxu0 0
    %4048 = vmatprep.subr.bf16.mxu0 0
    %4049 = vmatpush1.bf16.msra.mxu0 0
    %4050 = vmatprep.subr.bf16.mxu0 0
    %4051 = vmatpush1.bf16.msra.mxu0 0
    %4052 = vmatprep.subr.bf16.mxu0 0
    %4053 = vmatpush1.bf16.msra.mxu0 0
    %4054 = vmatprep.subr.bf16.mxu0 0
    %4055 = vmatpush1.bf16.msra.mxu0 0
    %4056 = vmatprep.subr.bf16.mxu0 0
    %4057 = vmatpush1.bf16.msra.mxu0 0
    %4058 = vmatprep.subr.bf16.mxu0 0
    %4059 = vmatpush1.bf16.msra.mxu0 0
    %4060 = vmatprep.subr.bf16.mxu0 0
    %4061 = vmatpush1.bf16.msra.mxu0 0
    %4062 = vmatprep.subr.bf16.mxu0 0
    %4063 = vmatpush1.bf16.msra.mxu0 0
    %4064 = vmatprep.subr.bf16.mxu0 0
    %4065 = vmatpush1.bf16.msra.mxu0 0
    %4066 = vmatprep.subr.bf16.mxu0 0
    %4067 = vmatpush1.bf16.msra.mxu0 0
    %4068 = vmatprep.mubr.bf16.mxu0 0
    %4069 = vmatmul.mubr.bf16.gmra.mrb[0].mxu0 %v3464
    %v4070 = vpop.f32.mrb[0].mxu0
    %v4071 = vadd.f32 %v4031, %v4070
    %v4072 = vpop.f32.mrb[0].mxu0
    %v4073 = vpop.f32.mrb[0].mxu0
    %v4074 = vpop.f32.mrb[0].mxu0
    %4075 = vdwg.mxu0
    %4076 = vmatprep.subr.bf16.mxu0 0
    %4077 = vmatpush1.bf16.msra.mxu0 %v3990
    %4078 = vmatprep.subr.bf16.mxu0 0
    %4079 = vmatpush1.bf16.msra.mxu0 0
    %4080 = vmatprep.subr.bf16.mxu0 0
    %4081 = vmatpush1.bf16.msra.mxu0 0
    %4082 = vmatprep.subr.bf16.mxu0 0
    %4083 = vmatpush1.bf16.msra.mxu0 0
    %4084 = vmatprep.subr.bf16.mxu0 0
    %4085 = vmatpush1.bf16.msra.mxu0 0
    %4086 = vmatprep.subr.bf16.mxu0 0
    %4087 = vmatpush1.bf16.msra.mxu0 0
    %4088 = vmatprep.subr.bf16.mxu0 0
    %4089 = vmatpush1.bf16.msra.mxu0 0
    %4090 = vmatprep.subr.bf16.mxu0 0
    %4091 = vmatpush1.bf16.msra.mxu0 0
    %4092 = vmatprep.subr.bf16.mxu0 0
    %4093 = vmatpush1.bf16.msra.mxu0 0
    %4094 = vmatprep.subr.bf16.mxu0 0
    %4095 = vmatpush1.bf16.msra.mxu0 0
    %4096 = vmatprep.subr.bf16.mxu0 0
    %4097 = vmatpush1.bf16.msra.mxu0 0
    %4098 = vmatprep.subr.bf16.mxu0 0
    %4099 = vmatpush1.bf16.msra.mxu0 0
    %4100 = vmatprep.subr.bf16.mxu0 0
    %4101 = vmatpush1.bf16.msra.mxu0 0
    %4102 = vmatprep.subr.bf16.mxu0 0
    %4103 = vmatpush1.bf16.msra.mxu0 0
    %4104 = vmatprep.subr.bf16.mxu0 0
    %4105 = vmatpush1.bf16.msra.mxu0 0
    %4106 = vmatprep.subr.bf16.mxu0 0
    %4107 = vmatpush1.bf16.msra.mxu0 0
    %4108 = vmatprep.mubr.bf16.mxu0 0
    %4109 = vmatmul.mubr.bf16.gmra.mrb[0].mxu0 %v3464
    %v4110 = vpop.f32.mrb[0].mxu0
    %v4111 = vadd.f32 0.0, %v4110
    %v4112 = vpop.f32.mrb[0].mxu0
    %v4113 = vpop.f32.mrb[0].mxu0
    %v4114 = vpop.f32.mrb[0].mxu0
    %4115 = vdwg.mxu0
    %v4116 = vadd.f32 %v4071, %v4111
    %v4117 = vlaneseq
    %v4118 = vshrl.u32 %v4117, 7
    %v4119 = vsub.s32 0, %v4118
    %v4120 = vrot.slane %v3993, %v4119
    %v4121 = vadd.f32 %v4116, %v4120
    %v4122 = vxor.u32 %v4121, 2147483648
    %v4123 = vmul.f32 %v4122, 1.442695
    %v4124 = vpow.pop %v4123
    %v4125 = vadd.f32 %v4124, 1.0
    %v4126 = vrcp.pop %v4125
    %v4127 = vmul.f32 1.0, %v4126
    %v4128 = vtanh.pop %v4121
    %v4129 = vmul.f32 %v4127, 0.0
    %4131 = vrot.lane.b32.xlu0 %v4128, 96
    %v4132 = vpop.permute.xlu0 %4131
    %v4134 = vmul.f32 %v4127, %v4132
    %4136 = vrot.lane.b32.xlu0 %v4134, 16
    %v4137 = vpop.permute.xlu0 %4136
    %v4139 = vadd.f32 %v4129, %v4137
    %v4140 = vtanh.pop %v4139
    %4142 = vrot.lane.b32.xlu0 %v4140, 32
    %v4143 = vpop.permute.xlu0 %4142
    %v4145 = vmul.f32 %v4127, %v4143
    %v4146 = vpack.c.bf16 %v4145, %v4145
    %4148 = vrot.lane.b32.xlu0 %v4146, 80
    %v4149 = vpop.permute.xlu0 %4148
    %v4151 = vsel %vm101, %v4149, 0
    %v4154 = vsel %vm101, %v3995, 0
    %4156 = vmatprep.subr.bf16.mxu0 0
    %4157 = vmatpush1.bf16.xpose.msra.mxu0 %v4154
    %4158 = vmatprep.subr.bf16.mxu0 0
    %4159 = vmatpush1.bf16.xpose.msra.mxu0 0
    %4160 = vmatprep.subr.bf16.mxu0 0
    %4161 = vmatpush1.bf16.xpose.msra.mxu0 0
    %4162 = vmatprep.subr.bf16.mxu0 0
    %4163 = vmatpush1.bf16.xpose.msra.mxu0 0
    %4164 = vmatprep.subr.bf16.mxu0 0
    %4165 = vmatpush1.bf16.xpose.msra.mxu0 0
    %4166 = vmatprep.subr.bf16.mxu0 0
    %4167 = vmatpush1.bf16.xpose.msra.mxu0 0
    %4168 = vmatprep.subr.bf16.mxu0 0
    %4169 = vmatpush1.bf16.xpose.msra.mxu0 0
    %4170 = vmatprep.subr.bf16.mxu0 0
    %4171 = vmatpush1.bf16.xpose.msra.mxu0 0
    %4172 = vmatprep.subr.bf16.mxu0 0
    %4173 = vmatpush1.bf16.xpose.msra.mxu0 0
    %4174 = vmatprep.subr.bf16.mxu0 0
    %4175 = vmatpush1.bf16.xpose.msra.mxu0 0
    %4176 = vmatprep.subr.bf16.mxu0 0
    %4177 = vmatpush1.bf16.xpose.msra.mxu0 0
    %4178 = vmatprep.subr.bf16.mxu0 0
    %4179 = vmatpush1.bf16.xpose.msra.mxu0 0
    %4180 = vmatprep.subr.bf16.mxu0 0
    %4181 = vmatpush1.bf16.xpose.msra.mxu0 0
    %4182 = vmatprep.subr.bf16.mxu0 0
    %4183 = vmatpush1.bf16.xpose.msra.mxu0 0
    %4184 = vmatprep.subr.bf16.mxu0 0
    %4185 = vmatpush1.bf16.xpose.msra.mxu0 0
    %4186 = vmatprep.subr.bf16.mxu0 0
    %4187 = vmatpush1.bf16.xpose.msra.mxu0 0
    %4188 = vmatprep.mubr.bf16.mxu0 0
    %4189 = vmatmul.mubr.bf16.gmra.mrb[0].mxu0 %v4151
    %v4190 = vpop.f32.mrb[0].mxu0
    %v4191 = vadd.f32 0.0, %v4190
    %v4192 = vpop.f32.mrb[0].mxu0
    %v4193 = vpop.f32.mrb[0].mxu0
    %v4194 = vpop.f32.mrb[0].mxu0
    %4195 = vdwg.mxu0
    %v4196 = vsel %vm3994, %v4191, -1e+30
    %vm4197 = vcmask 123904
    %v4198 = vsel %vm4197, %v4196, -inf
    %4199 = vmax.xlane.f32.xlu0 %v4198
    %v4200 = vpop.xlane.xlu0 %4199
    %v4201 = vsub.f32 %v4196, %v4200
    %v4202 = vmul.f32 %v4201, 1.442695
    %v4203 = vpow.pop %v4202
    %v4204 = vsel %vm3994, %v4203, 0.0
    %v4205 = vsel %vm4197, %v4204, 0.0
    %4206 = vadd.xlane.f32.xlu0 %v4205
    %v4207 = vpop.xlane.xlu0 %4206
    %v4208 = vmax.f32 %v4207, 1e-20
    %v4209 = vrcp.pop %v4208
    %v4210 = vmul.f32 %v4204, %v4209
    %v4211 = vpack.c.bf16 %v4210, %v4210
    %v4213 = vsel %vm101, %v4211, 0
    %4215 = vmatprep.subr.bf16.mxu0 0
    %4216 = vmatpush1.bf16.msra.mxu0 %v3995
    %4217 = vmatprep.subr.bf16.mxu0 0
    %4218 = vmatpush1.bf16.msra.mxu0 0
    %4219 = vmatprep.subr.bf16.mxu0 0
    %4220 = vmatpush1.bf16.msra.mxu0 0
    %4221 = vmatprep.subr.bf16.mxu0 0
    %4222 = vmatpush1.bf16.msra.mxu0 0
    %4223 = vmatprep.subr.bf16.mxu0 0
    %4224 = vmatpush1.bf16.msra.mxu0 0
    %4225 = vmatprep.subr.bf16.mxu0 0
    %4226 = vmatpush1.bf16.msra.mxu0 0
    %4227 = vmatprep.subr.bf16.mxu0 0
    %4228 = vmatpush1.bf16.msra.mxu0 0
    %4229 = vmatprep.subr.bf16.mxu0 0
    %4230 = vmatpush1.bf16.msra.mxu0 0
    %4231 = vmatprep.subr.bf16.mxu0 0
    %4232 = vmatpush1.bf16.msra.mxu0 0
    %4233 = vmatprep.subr.bf16.mxu0 0
    %4234 = vmatpush1.bf16.msra.mxu0 0
    %4235 = vmatprep.subr.bf16.mxu0 0
    %4236 = vmatpush1.bf16.msra.mxu0 0
    %4237 = vmatprep.subr.bf16.mxu0 0
    %4238 = vmatpush1.bf16.msra.mxu0 0
    %4239 = vmatprep.subr.bf16.mxu0 0
    %4240 = vmatpush1.bf16.msra.mxu0 0
    %4241 = vmatprep.subr.bf16.mxu0 0
    %4242 = vmatpush1.bf16.msra.mxu0 0
    %4243 = vmatprep.subr.bf16.mxu0 0
    %4244 = vmatpush1.bf16.msra.mxu0 0
    %4245 = vmatprep.subr.bf16.mxu0 0
    %4246 = vmatpush1.bf16.msra.mxu0 0
    %4247 = vmatprep.mubr.bf16.mxu0 0
    %4248 = vmatmul.mubr.bf16.gmra.mrb[0].mxu0 %v4213
    %v4249 = vpop.f32.mrb[0].mxu0
    %v4250 = vadd.f32 0.0, %v4249
    %v4251 = vpop.f32.mrb[0].mxu0
    %v4252 = vpop.f32.mrb[0].mxu0
    %v4253 = vpop.f32.mrb[0].mxu0
    %4254 = vdwg.mxu0
    %v4255 = vpack.c.bf16 %v4250, %v4250
    %v4257 = vsel %vm101, %v4255, 0
    %4259 = vmatprep.subr.bf16.mxu0 0
    %4260 = vmatpush1.bf16.msra.mxu0 %v3987
    %4261 = vmatprep.subr.bf16.mxu0 0
    %4262 = vmatpush1.bf16.msra.mxu0 0
    %4263 = vmatprep.subr.bf16.mxu0 0
    %4264 = vmatpush1.bf16.msra.mxu0 0
    %4265 = vmatprep.subr.bf16.mxu0 0
    %4266 = vmatpush1.bf16.msra.mxu0 0
    %4267 = vmatprep.subr.bf16.mxu0 0
    %4268 = vmatpush1.bf16.msra.mxu0 0
    %4269 = vmatprep.subr.bf16.mxu0 0
    %4270 = vmatpush1.bf16.msra.mxu0 0
    %4271 = vmatprep.subr.bf16.mxu0 0
    %4272 = vmatpush1.bf16.msra.mxu0 0
    %4273 = vmatprep.subr.bf16.mxu0 0
    %4274 = vmatpush1.bf16.msra.mxu0 0
    %4275 = vmatprep.subr.bf16.mxu0 0
    %4276 = vmatpush1.bf16.msra.mxu0 0
    %4277 = vmatprep.subr.bf16.mxu0 0
    %4278 = vmatpush1.bf16.msra.mxu0 0
    %4279 = vmatprep.subr.bf16.mxu0 0
    %4280 = vmatpush1.bf16.msra.mxu0 0
    %4281 = vmatprep.subr.bf16.mxu0 0
    %4282 = vmatpush1.bf16.msra.mxu0 0
    %4283 = vmatprep.subr.bf16.mxu0 0
    %4284 = vmatpush1.bf16.msra.mxu0 0
    %4285 = vmatprep.subr.bf16.mxu0 0
    %4286 = vmatpush1.bf16.msra.mxu0 0
    %4287 = vmatprep.subr.bf16.mxu0 0
    %4288 = vmatpush1.bf16.msra.mxu0 0
    %4289 = vmatprep.subr.bf16.mxu0 0
    %4290 = vmatpush1.bf16.msra.mxu0 0
    %4291 = vmatprep.mubr.bf16.mxu0 0
    %4292 = vmatmul.mubr.bf16.gmra.mrb[0].mxu0 %v4257
    %v4293 = vpop.f32.mrb[0].mxu0
    %v4294 = vadd.f32 0.0, %v4293
    %v4295 = vpop.f32.mrb[0].mxu0
    %v4296 = vpop.f32.mrb[0].mxu0
    %v4297 = vpop.f32.mrb[0].mxu0
    %4298 = vdwg.mxu0
    %4299 = vmatprep.subr.bf16.mxu0 0
    %4300 = vmatpush1.bf16.msra.mxu0 %v3984
    %4301 = vmatprep.subr.bf16.mxu0 0
    %4302 = vmatpush1.bf16.msra.mxu0 0
    %4303 = vmatprep.subr.bf16.mxu0 0
    %4304 = vmatpush1.bf16.msra.mxu0 0
    %4305 = vmatprep.subr.bf16.mxu0 0
    %4306 = vmatpush1.bf16.msra.mxu0 0
    %4307 = vmatprep.subr.bf16.mxu0 0
    %4308 = vmatpush1.bf16.msra.mxu0 0
    %4309 = vmatprep.subr.bf16.mxu0 0
    %4310 = vmatpush1.bf16.msra.mxu0 0
    %4311 = vmatprep.subr.bf16.mxu0 0
    %4312 = vmatpush1.bf16.msra.mxu0 0
    %4313 = vmatprep.subr.bf16.mxu0 0
    %4314 = vmatpush1.bf16.msra.mxu0 0
    %4315 = vmatprep.subr.bf16.mxu0 0
    %4316 = vmatpush1.bf16.msra.mxu0 0
    %4317 = vmatprep.subr.bf16.mxu0 0
    %4318 = vmatpush1.bf16.msra.mxu0 0
    %4319 = vmatprep.subr.bf16.mxu0 0
    %4320 = vmatpush1.bf16.msra.mxu0 0
    %4321 = vmatprep.subr.bf16.mxu0 0
    %4322 = vmatpush1.bf16.msra.mxu0 0
    %4323 = vmatprep.subr.bf16.mxu0 0
    %4324 = vmatpush1.bf16.msra.mxu0 0
    %4325 = vmatprep.subr.bf16.mxu0 0
    %4326 = vmatpush1.bf16.msra.mxu0 0
    %4327 = vmatprep.subr.bf16.mxu0 0
    %4328 = vmatpush1.bf16.msra.mxu0 0
    %4329 = vmatprep.subr.bf16.mxu0 0
    %4330 = vmatpush1.bf16.msra.mxu0 0
    %4331 = vmatprep.mubr.bf16.mxu0 0
    %4332 = vmatmul.mubr.bf16.gmra.mrb[0].mxu0 %v4151
    %v4333 = vpop.f32.mrb[0].mxu0
    %v4334 = vadd.f32 %v4294, %v4333
    %v4335 = vpop.f32.mrb[0].mxu0
    %v4336 = vpop.f32.mrb[0].mxu0
    %v4337 = vpop.f32.mrb[0].mxu0
    %4338 = vdwg.mxu0
    %4339 = vmatprep.subr.bf16.mxu0 0
    %4340 = vmatpush1.bf16.msra.mxu0 %v3990
    %4341 = vmatprep.subr.bf16.mxu0 0
    %4342 = vmatpush1.bf16.msra.mxu0 0
    %4343 = vmatprep.subr.bf16.mxu0 0
    %4344 = vmatpush1.bf16.msra.mxu0 0
    %4345 = vmatprep.subr.bf16.mxu0 0
    %4346 = vmatpush1.bf16.msra.mxu0 0
    %4347 = vmatprep.subr.bf16.mxu0 0
    %4348 = vmatpush1.bf16.msra.mxu0 0
    %4349 = vmatprep.subr.bf16.mxu0 0
    %4350 = vmatpush1.bf16.msra.mxu0 0
    %4351 = vmatprep.subr.bf16.mxu0 0
    %4352 = vmatpush1.bf16.msra.mxu0 0
    %4353 = vmatprep.subr.bf16.mxu0 0
    %4354 = vmatpush1.bf16.msra.mxu0 0
    %4355 = vmatprep.subr.bf16.mxu0 0
    %4356 = vmatpush1.bf16.msra.mxu0 0
    %4357 = vmatprep.subr.bf16.mxu0 0
    %4358 = vmatpush1.bf16.msra.mxu0 0
    %4359 = vmatprep.subr.bf16.mxu0 0
    %4360 = vmatpush1.bf16.msra.mxu0 0
    %4361 = vmatprep.subr.bf16.mxu0 0
    %4362 = vmatpush1.bf16.msra.mxu0 0
    %4363 = vmatprep.subr.bf16.mxu0 0
    %4364 = vmatpush1.bf16.msra.mxu0 0
    %4365 = vmatprep.subr.bf16.mxu0 0
    %4366 = vmatpush1.bf16.msra.mxu0 0
    %4367 = vmatprep.subr.bf16.mxu0 0
    %4368 = vmatpush1.bf16.msra.mxu0 0
    %4369 = vmatprep.subr.bf16.mxu0 0
    %4370 = vmatpush1.bf16.msra.mxu0 0
    %4371 = vmatprep.mubr.bf16.mxu0 0
    %4372 = vmatmul.mubr.bf16.gmra.mrb[0].mxu0 %v4151
    %v4373 = vpop.f32.mrb[0].mxu0
    %v4374 = vadd.f32 0.0, %v4373
    %v4375 = vpop.f32.mrb[0].mxu0
    %v4376 = vpop.f32.mrb[0].mxu0
    %v4377 = vpop.f32.mrb[0].mxu0
    %4378 = vdwg.mxu0
    %v4379 = vadd.f32 %v4334, %v4374
    %v4380 = vadd.f32 %v4379, %v4120
    %v4381 = vxor.u32 %v4380, 2147483648
    %v4382 = vmul.f32 %v4381, 1.442695
    %v4383 = vpow.pop %v4382
    %v4384 = vadd.f32 %v4383, 1.0
    %v4385 = vrcp.pop %v4384
    %v4386 = vmul.f32 1.0, %v4385
    %v4387 = vtanh.pop %v4380
    %v4388 = vmul.f32 %v4386, %v4139
    %4390 = vrot.lane.b32.xlu0 %v4387, 96
    %v4391 = vpop.permute.xlu0 %4390
    %v4393 = vmul.f32 %v4386, %v4391
    %4395 = vrot.lane.b32.xlu0 %v4393, 16
    %v4396 = vpop.permute.xlu0 %4395
    %v4398 = vadd.f32 %v4388, %v4396
    %v4399 = vtanh.pop %v4398
    %4401 = vrot.lane.b32.xlu0 %v4399, 32
    %v4402 = vpop.permute.xlu0 %4401
    %v4404 = vmul.f32 %v4386, %v4402
    %v4405 = vpack.c.bf16 %v4404, %v4404
    %4407 = vrot.lane.b32.xlu0 %v4405, 80
    %v4408 = vpop.permute.xlu0 %4407
    %v4410 = vsel %vm101, %v4408, 0
    %4412 = vmatprep.subr.bf16.mxu0 0
    %4413 = vmatpush1.bf16.xpose.msra.mxu0 %v4154
    %4414 = vmatprep.subr.bf16.mxu0 0
    %4415 = vmatpush1.bf16.xpose.msra.mxu0 0
    %4416 = vmatprep.subr.bf16.mxu0 0
    %4417 = vmatpush1.bf16.xpose.msra.mxu0 0
    %4418 = vmatprep.subr.bf16.mxu0 0
    %4419 = vmatpush1.bf16.xpose.msra.mxu0 0
    %4420 = vmatprep.subr.bf16.mxu0 0
    %4421 = vmatpush1.bf16.xpose.msra.mxu0 0
    %4422 = vmatprep.subr.bf16.mxu0 0
    %4423 = vmatpush1.bf16.xpose.msra.mxu0 0
    %4424 = vmatprep.subr.bf16.mxu0 0
    %4425 = vmatpush1.bf16.xpose.msra.mxu0 0
    %4426 = vmatprep.subr.bf16.mxu0 0
    %4427 = vmatpush1.bf16.xpose.msra.mxu0 0
    %4428 = vmatprep.subr.bf16.mxu0 0
    %4429 = vmatpush1.bf16.xpose.msra.mxu0 0
    %4430 = vmatprep.subr.bf16.mxu0 0
    %4431 = vmatpush1.bf16.xpose.msra.mxu0 0
    %4432 = vmatprep.subr.bf16.mxu0 0
    %4433 = vmatpush1.bf16.xpose.msra.mxu0 0
    %4434 = vmatprep.subr.bf16.mxu0 0
    %4435 = vmatpush1.bf16.xpose.msra.mxu0 0
    %4436 = vmatprep.subr.bf16.mxu0 0
    %4437 = vmatpush1.bf16.xpose.msra.mxu0 0
    %4438 = vmatprep.subr.bf16.mxu0 0
    %4439 = vmatpush1.bf16.xpose.msra.mxu0 0
    %4440 = vmatprep.subr.bf16.mxu0 0
    %4441 = vmatpush1.bf16.xpose.msra.mxu0 0
    %4442 = vmatprep.subr.bf16.mxu0 0
    %4443 = vmatpush1.bf16.xpose.msra.mxu0 0
    %4444 = vmatprep.mubr.bf16.mxu0 0
    %4445 = vmatmul.mubr.bf16.gmra.mrb[0].mxu0 %v4410
    %v4446 = vpop.f32.mrb[0].mxu0
    %v4447 = vadd.f32 0.0, %v4446
    %v4448 = vpop.f32.mrb[0].mxu0
    %v4449 = vpop.f32.mrb[0].mxu0
    %v4450 = vpop.f32.mrb[0].mxu0
    %4451 = vdwg.mxu0
    %v4452 = vsel %vm3994, %v4447, -1e+30
    %v4453 = vsel %vm4197, %v4452, -inf
    %4454 = vmax.xlane.f32.xlu0 %v4453
    %v4455 = vpop.xlane.xlu0 %4454
    %v4456 = vsub.f32 %v4452, %v4455
    %v4457 = vmul.f32 %v4456, 1.442695
    %v4458 = vpow.pop %v4457
    %v4459 = vsel %vm3994, %v4458, 0.0
    %v4460 = vsel %vm4197, %v4459, 0.0
    %4461 = vadd.xlane.f32.xlu0 %v4460
    %v4462 = vpop.xlane.xlu0 %4461
    %v4463 = vmax.f32 %v4462, 1e-20
    %v4464 = vrcp.pop %v4463
    %v4465 = vmul.f32 %v4459, %v4464
    %v4466 = vpack.c.bf16 %v4465, %v4465
    %v4468 = vsel %vm101, %v4466, 0
    %4470 = vmatprep.subr.bf16.mxu0 0
    %4471 = vmatpush1.bf16.msra.mxu0 %v3995
    %4472 = vmatprep.subr.bf16.mxu0 0
    %4473 = vmatpush1.bf16.msra.mxu0 0
    %4474 = vmatprep.subr.bf16.mxu0 0
    %4475 = vmatpush1.bf16.msra.mxu0 0
    %4476 = vmatprep.subr.bf16.mxu0 0
    %4477 = vmatpush1.bf16.msra.mxu0 0
    %4478 = vmatprep.subr.bf16.mxu0 0
    %4479 = vmatpush1.bf16.msra.mxu0 0
    %4480 = vmatprep.subr.bf16.mxu0 0
    %4481 = vmatpush1.bf16.msra.mxu0 0
    %4482 = vmatprep.subr.bf16.mxu0 0
    %4483 = vmatpush1.bf16.msra.mxu0 0
    %4484 = vmatprep.subr.bf16.mxu0 0
    %4485 = vmatpush1.bf16.msra.mxu0 0
    %4486 = vmatprep.subr.bf16.mxu0 0
    %4487 = vmatpush1.bf16.msra.mxu0 0
    %4488 = vmatprep.subr.bf16.mxu0 0
    %4489 = vmatpush1.bf16.msra.mxu0 0
    %4490 = vmatprep.subr.bf16.mxu0 0
    %4491 = vmatpush1.bf16.msra.mxu0 0
    %4492 = vmatprep.subr.bf16.mxu0 0
    %4493 = vmatpush1.bf16.msra.mxu0 0
    %4494 = vmatprep.subr.bf16.mxu0 0
    %4495 = vmatpush1.bf16.msra.mxu0 0
    %4496 = vmatprep.subr.bf16.mxu0 0
    %4497 = vmatpush1.bf16.msra.mxu0 0
    %4498 = vmatprep.subr.bf16.mxu0 0
    %4499 = vmatpush1.bf16.msra.mxu0 0
    %4500 = vmatprep.subr.bf16.mxu0 0
    %4501 = vmatpush1.bf16.msra.mxu0 0
    %4502 = vmatprep.mubr.bf16.mxu0 0
    %4503 = vmatmul.mubr.bf16.gmra.mrb[0].mxu0 %v4468
    %v4504 = vpop.f32.mrb[0].mxu0
    %v4505 = vadd.f32 0.0, %v4504
    %v4506 = vpop.f32.mrb[0].mxu0
    %v4507 = vpop.f32.mrb[0].mxu0
    %v4508 = vpop.f32.mrb[0].mxu0
    %4509 = vdwg.mxu0
    %v4510 = vld [vmem:[#allocation7 + $0x4b0] sm:$0x1]
    %v4511 = vld [vmem:[#allocation7 + $0x460] sm:$0xff]
    %v4512 = vld [vmem:[#allocation7 + $0x468] sm:$0xff]
    %v4513 = vpack.c.bf16 %v4512, %v4511
    %4514 = vmatprep.subr.bf16.mxu0 0
    %4515 = vmatpush1.bf16.msra.mxu0 %v4513
    %4516 = vmatprep.subr.bf16.mxu0 0
    %4517 = vmatpush1.bf16.msra.mxu0 0
    %4518 = vmatprep.subr.bf16.mxu0 0
    %4519 = vmatpush1.bf16.msra.mxu0 0
    %4520 = vmatprep.subr.bf16.mxu0 0
    %4521 = vmatpush1.bf16.msra.mxu0 0
    %4522 = vmatprep.subr.bf16.mxu0 0
    %4523 = vmatpush1.bf16.msra.mxu0 0
    %4524 = vmatprep.subr.bf16.mxu0 0
    %4525 = vmatpush1.bf16.msra.mxu0 0
    %4526 = vmatprep.subr.bf16.mxu0 0
    %4527 = vmatpush1.bf16.msra.mxu0 0
    %4528 = vmatprep.subr.bf16.mxu0 0
    %4529 = vmatpush1.bf16.msra.mxu0 0
    %4530 = vmatprep.subr.bf16.mxu0 0
    %4531 = vmatpush1.bf16.msra.mxu0 0
    %4532 = vmatprep.subr.bf16.mxu0 0
    %4533 = vmatpush1.bf16.msra.mxu0 0
    %4534 = vmatprep.subr.bf16.mxu0 0
    %4535 = vmatpush1.bf16.msra.mxu0 0
    %4536 = vmatprep.subr.bf16.mxu0 0
    %4537 = vmatpush1.bf16.msra.mxu0 0
    %4538 = vmatprep.subr.bf16.mxu0 0
    %4539 = vmatpush1.bf16.msra.mxu0 0
    %4540 = vmatprep.subr.bf16.mxu0 0
    %4541 = vmatpush1.bf16.msra.mxu0 0
    %4542 = vmatprep.subr.bf16.mxu0 0
    %4543 = vmatpush1.bf16.msra.mxu0 0
    %4544 = vmatprep.subr.bf16.mxu0 0
    %4545 = vmatpush1.bf16.msra.mxu0 0
    %4546 = vmatprep.mubr.bf16.mxu0 0
    %4547 = vmatmul.mubr.bf16.gmra.mrb[0].mxu0 %v3882
    %v4548 = vpop.f32.mrb[0].mxu0
    %v4549 = vadd.f32 0.0, %v4548
    %v4550 = vpop.f32.mrb[0].mxu0
    %v4551 = vpop.f32.mrb[0].mxu0
    %v4552 = vpop.f32.mrb[0].mxu0
    %4553 = vdwg.mxu0
    %v4554 = vlaneseq
    %v4555 = vshrl.u32 %v4554, 7
    %v4556 = vsub.s32 0, %v4555
    %v4557 = vrot.slane %v4510, %v4556
    %v4558 = vadd.f32 %v4557, %v4549
    %v4559 = vld [vmem:[#allocation7 + $0x470] sm:$0xff]
    %v4560 = vld [vmem:[#allocation7 + $0x478] sm:$0xff]
    %v4561 = vpack.c.bf16 %v3977, %v3977
    %v4562 = vpack.c.bf16 %v4560, %v4559
    %v4564 = vsel %vm101, %v4561, 0
    %4566 = vmatprep.subr.bf16.mxu0 0
    %4567 = vmatpush1.bf16.msra.mxu0 %v4562
    %4568 = vmatprep.subr.bf16.mxu0 0
    %4569 = vmatpush1.bf16.msra.mxu0 0
    %4570 = vmatprep.subr.bf16.mxu0 0
    %4571 = vmatpush1.bf16.msra.mxu0 0
    %4572 = vmatprep.subr.bf16.mxu0 0
    %4573 = vmatpush1.bf16.msra.mxu0 0
    %4574 = vmatprep.subr.bf16.mxu0 0
    %4575 = vmatpush1.bf16.msra.mxu0 0
    %4576 = vmatprep.subr.bf16.mxu0 0
    %4577 = vmatpush1.bf16.msra.mxu0 0
    %4578 = vmatprep.subr.bf16.mxu0 0
    %4579 = vmatpush1.bf16.msra.mxu0 0
    %4580 = vmatprep.subr.bf16.mxu0 0
    %4581 = vmatpush1.bf16.msra.mxu0 0
    %4582 = vmatprep.subr.bf16.mxu0 0
    %4583 = vmatpush1.bf16.msra.mxu0 0
    %4584 = vmatprep.subr.bf16.mxu0 0
    %4585 = vmatpush1.bf16.msra.mxu0 0
    %4586 = vmatprep.subr.bf16.mxu0 0
    %4587 = vmatpush1.bf16.msra.mxu0 0
    %4588 = vmatprep.subr.bf16.mxu0 0
    %4589 = vmatpush1.bf16.msra.mxu0 0
    %4590 = vmatprep.subr.bf16.mxu0 0
    %4591 = vmatpush1.bf16.msra.mxu0 0
    %4592 = vmatprep.subr.bf16.mxu0 0
    %4593 = vmatpush1.bf16.msra.mxu0 0
    %4594 = vmatprep.subr.bf16.mxu0 0
    %4595 = vmatpush1.bf16.msra.mxu0 0
    %4596 = vmatprep.subr.bf16.mxu0 0
    %4597 = vmatpush1.bf16.msra.mxu0 0
    %4598 = vmatprep.mubr.bf16.mxu0 0
    %4599 = vmatmul.mubr.bf16.gmra.mrb[0].mxu0 %v4564
    %v4600 = vpop.f32.mrb[0].mxu0
    %v4601 = vadd.f32 0.0, %v4600
    %v4602 = vpop.f32.mrb[0].mxu0
    %v4603 = vpop.f32.mrb[0].mxu0
    %v4604 = vpop.f32.mrb[0].mxu0
    %4605 = vdwg.mxu0
    %v4606 = vadd.f32 %v4558, %v4601
    %v4607 = vld [vmem:[#allocation7 + $0x480] sm:$0xff]
    %v4608 = vld [vmem:[#allocation7 + $0x488] sm:$0xff]
    %v4609 = vpack.c.bf16 %v4608, %v4607
    %4610 = vmatprep.subr.bf16.mxu0 0
    %4611 = vmatpush1.bf16.msra.mxu0 %v4609
    %4612 = vmatprep.subr.bf16.mxu0 0
    %4613 = vmatpush1.bf16.msra.mxu0 0
    %4614 = vmatprep.subr.bf16.mxu0 0
    %4615 = vmatpush1.bf16.msra.mxu0 0
    %4616 = vmatprep.subr.bf16.mxu0 0
    %4617 = vmatpush1.bf16.msra.mxu0 0
    %4618 = vmatprep.subr.bf16.mxu0 0
    %4619 = vmatpush1.bf16.msra.mxu0 0
    %4620 = vmatprep.subr.bf16.mxu0 0
    %4621 = vmatpush1.bf16.msra.mxu0 0
    %4622 = vmatprep.subr.bf16.mxu0 0
    %4623 = vmatpush1.bf16.msra.mxu0 0
    %4624 = vmatprep.subr.bf16.mxu0 0
    %4625 = vmatpush1.bf16.msra.mxu0 0
    %4626 = vmatprep.subr.bf16.mxu0 0
    %4627 = vmatpush1.bf16.msra.mxu0 0
    %4628 = vmatprep.subr.bf16.mxu0 0
    %4629 = vmatpush1.bf16.msra.mxu0 0
    %4630 = vmatprep.subr.bf16.mxu0 0
    %4631 = vmatpush1.bf16.msra.mxu0 0
    %4632 = vmatprep.subr.bf16.mxu0 0
    %4633 = vmatpush1.bf16.msra.mxu0 0
    %4634 = vmatprep.subr.bf16.mxu0 0
    %4635 = vmatpush1.bf16.msra.mxu0 0
    %4636 = vmatprep.subr.bf16.mxu0 0
    %4637 = vmatpush1.bf16.msra.mxu0 0
    %4638 = vmatprep.subr.bf16.mxu0 0
    %4639 = vmatpush1.bf16.msra.mxu0 0
    %4640 = vmatprep.subr.bf16.mxu0 0
    %4641 = vmatpush1.bf16.msra.mxu0 0
    %4642 = vmatprep.mubr.bf16.mxu0 0
    %4643 = vmatmul.mubr.bf16.gmra.mrb[0].mxu0 %v4410
    %v4644 = vpop.f32.mrb[0].mxu0
    %v4645 = vadd.f32 0.0, %v4644
    %v4646 = vpop.f32.mrb[0].mxu0
    %v4647 = vpop.f32.mrb[0].mxu0
    %v4648 = vpop.f32.mrb[0].mxu0
    %4649 = vdwg.mxu0
    %v4650 = vadd.f32 %v4606, %v4645
    %v4651 = vld [vmem:[#allocation7 + $0x490] sm:$0xff]
    %v4652 = vld [vmem:[#allocation7 + $0x498] sm:$0xff]
    %v4653 = vpack.c.bf16 %v4505, %v4505
    %v4654 = vpack.c.bf16 %v4652, %v4651
    %v4656 = vsel %vm101, %v4653, 0
    %4658 = vmatprep.subr.bf16.mxu0 0
    %4659 = vmatpush1.bf16.msra.mxu0 %v4654
    %4660 = vmatprep.subr.bf16.mxu0 0
    %4661 = vmatpush1.bf16.msra.mxu0 0
    %4662 = vmatprep.subr.bf16.mxu0 0
    %4663 = vmatpush1.bf16.msra.mxu0 0
    %4664 = vmatprep.subr.bf16.mxu0 0
    %4665 = vmatpush1.bf16.msra.mxu0 0
    %4666 = vmatprep.subr.bf16.mxu0 0
    %4667 = vmatpush1.bf16.msra.mxu0 0
    %4668 = vmatprep.subr.bf16.mxu0 0
    %4669 = vmatpush1.bf16.msra.mxu0 0
    %4670 = vmatprep.subr.bf16.mxu0 0
    %4671 = vmatpush1.bf16.msra.mxu0 0
    %4672 = vmatprep.subr.bf16.mxu0 0
    %4673 = vmatpush1.bf16.msra.mxu0 0
    %4674 = vmatprep.subr.bf16.mxu0 0
    %4675 = vmatpush1.bf16.msra.mxu0 0
    %4676 = vmatprep.subr.bf16.mxu0 0
    %4677 = vmatpush1.bf16.msra.mxu0 0
    %4678 = vmatprep.subr.bf16.mxu0 0
    %4679 = vmatpush1.bf16.msra.mxu0 0
    %4680 = vmatprep.subr.bf16.mxu0 0
    %4681 = vmatpush1.bf16.msra.mxu0 0
    %4682 = vmatprep.subr.bf16.mxu0 0
    %4683 = vmatpush1.bf16.msra.mxu0 0
    %4684 = vmatprep.subr.bf16.mxu0 0
    %4685 = vmatpush1.bf16.msra.mxu0 0
    %4686 = vmatprep.subr.bf16.mxu0 0
    %4687 = vmatpush1.bf16.msra.mxu0 0
    %4688 = vmatprep.subr.bf16.mxu0 0
    %4689 = vmatpush1.bf16.msra.mxu0 0
    %4690 = vmatprep.mubr.bf16.mxu0 0
    %4691 = vmatmul.mubr.bf16.gmra.mrb[0].mxu0 %v4656
    %v4692 = vpop.f32.mrb[0].mxu0
    %v4693 = vadd.f32 0.0, %v4692
    %v4694 = vpop.f32.mrb[0].mxu0
    %v4695 = vpop.f32.mrb[0].mxu0
    %v4696 = vpop.f32.mrb[0].mxu0
    %4697 = vdwg.mxu0
    %v4698 = vadd.f32 %v4650, %v4693
    %v4699 = vld [vmem:[#allocation7 + $0x4a0] sm:$0xff]
    %v4700 = vld [vmem:[#allocation7 + $0x4a8] sm:$0xff]
    %v4701 = vpack.c.bf16 %v3448, %v3448
    %v4702 = vpack.c.bf16 %v4700, %v4699
    %v4704 = vsel %vm101, %v4701, 0
    %4706 = vmatprep.subr.bf16.mxu0 0
    %4707 = vmatpush1.bf16.msra.mxu0 %v4702
    %4708 = vmatprep.subr.bf16.mxu0 0
    %4709 = vmatpush1.bf16.msra.mxu0 0
    %4710 = vmatprep.subr.bf16.mxu0 0
    %4711 = vmatpush1.bf16.msra.mxu0 0
    %4712 = vmatprep.subr.bf16.mxu0 0
    %4713 = vmatpush1.bf16.msra.mxu0 0
    %4714 = vmatprep.subr.bf16.mxu0 0
    %4715 = vmatpush1.bf16.msra.mxu0 0
    %4716 = vmatprep.subr.bf16.mxu0 0
    %4717 = vmatpush1.bf16.msra.mxu0 0
    %4718 = vmatprep.subr.bf16.mxu0 0
    %4719 = vmatpush1.bf16.msra.mxu0 0
    %4720 = vmatprep.subr.bf16.mxu0 0
    %4721 = vmatpush1.bf16.msra.mxu0 0
    %4722 = vmatprep.subr.bf16.mxu0 0
    %4723 = vmatpush1.bf16.msra.mxu0 0
    %4724 = vmatprep.subr.bf16.mxu0 0
    %4725 = vmatpush1.bf16.msra.mxu0 0
    %4726 = vmatprep.subr.bf16.mxu0 0
    %4727 = vmatpush1.bf16.msra.mxu0 0
    %4728 = vmatprep.subr.bf16.mxu0 0
    %4729 = vmatpush1.bf16.msra.mxu0 0
    %4730 = vmatprep.subr.bf16.mxu0 0
    %4731 = vmatpush1.bf16.msra.mxu0 0
    %4732 = vmatprep.subr.bf16.mxu0 0
    %4733 = vmatpush1.bf16.msra.mxu0 0
    %4734 = vmatprep.subr.bf16.mxu0 0
    %4735 = vmatpush1.bf16.msra.mxu0 0
    %4736 = vmatprep.subr.bf16.mxu0 0
    %4737 = vmatpush1.bf16.msra.mxu0 0
    %4738 = vmatprep.mubr.bf16.mxu0 0
    %4739 = vmatmul.mubr.bf16.gmra.mrb[0].mxu0 %v4704
    %v4740 = vpop.f32.mrb[0].mxu0
    %v4741 = vadd.f32 0.0, %v4740
    %v4742 = vpop.f32.mrb[0].mxu0
    %v4743 = vpop.f32.mrb[0].mxu0
    %v4744 = vpop.f32.mrb[0].mxu0
    %4745 = vdwg.mxu0
    %v4746 = vadd.f32 %v4698, %v4741
    %v4747 = vmax.f32 %v4746, 0.0
    %vm4748 = vcmp.ne.f32.partialorder %v4746, %v4746
    %v4749 = vadd.f32 %v4746, 0.0
    %v4750 = vand.u32 2147483647, %v4746
    %v4751 = vsub.f32 0.0, %v4750
    %v4752 = vmul.f32 %v4751, 1.442695
    %v4753 = vpow.pop %v4752
    %v4754 = vadd.f32 %v4753, 1.0
    %v4755 = vlog2.pop %v4754
    %v4756 = vmul.f32 %v4755, 0.6931472
    %v4757 = vmul.f32 -0.5, %v4753
    %v4758 = vadd.f32 %v4757, 1.0
    %v4759 = vmul.f32 %v4758, %v4753
    %v4760 = vand.u32 2147483647, %v4753
    %vm4761 = vcmp.lt.f32.partialorder %v4760, 0.0004427343
    %v4762 = vsel %vm4761, %v4759, %v4756
    %v4763 = vadd.f32 %v4747, %v4762
    %v4764 = vsel %vm4748, %v4749, %v4763
    %v4765 = vld [vmem:[#allocation7 + $0x4b8] sm:$0xff]
    %v4766 = vld [vmem:[#allocation7 + $0x4c0] sm:$0xff]
    %v4767 = vld [vmem:[#allocation7 + $0x4c8] sm:$0xff]
    %v4768 = vld [vmem:[#allocation7 + $0x4d0] sm:$0xff]
    %v4769 = vpack.c.bf16 %v4764, %v4764
    %v4770 = vpack.c.bf16 %v4766, %v4765
    %v4771 = vpack.c.bf16 %v4768, %v4767
    %v4772 = vld [vmem:[#allocation7 + $0x4d8] sm:$0x1]
    %v4773 = vlaneseq
    %v4774 = vshrl.u32 %v4773, 7
    %v4775 = vsub.s32 0, %v4774
    %v4776 = vrot.slane %v4772, %v4775
    %v4778 = vsel %vm194, %v4769, 0
    %4780 = vmatprep.subr.bf16.mxu0 0
    %4781 = vmatpush1.bf16.msra.mxu0 %v4770
    %4782 = vmatprep.subr.bf16.mxu0 0
    %4783 = vmatpush1.bf16.msra.mxu0 %v4771
    %4784 = vmatprep.subr.bf16.mxu0 0
    %4785 = vmatpush1.bf16.msra.mxu0 0
    %4786 = vmatprep.subr.bf16.mxu0 0
    %4787 = vmatpush1.bf16.msra.mxu0 0
    %4788 = vmatprep.subr.bf16.mxu0 0
    %4789 = vmatpush1.bf16.msra.mxu0 0
    %4790 = vmatprep.subr.bf16.mxu0 0
    %4791 = vmatpush1.bf16.msra.mxu0 0
    %4792 = vmatprep.subr.bf16.mxu0 0
    %4793 = vmatpush1.bf16.msra.mxu0 0
    %4794 = vmatprep.subr.bf16.mxu0 0
    %4795 = vmatpush1.bf16.msra.mxu0 0
    %4796 = vmatprep.subr.bf16.mxu0 0
    %4797 = vmatpush1.bf16.msra.mxu0 0
    %4798 = vmatprep.subr.bf16.mxu0 0
    %4799 = vmatpush1.bf16.msra.mxu0 0
    %4800 = vmatprep.subr.bf16.mxu0 0
    %4801 = vmatpush1.bf16.msra.mxu0 0
    %4802 = vmatprep.subr.bf16.mxu0 0
    %4803 = vmatpush1.bf16.msra.mxu0 0
    %4804 = vmatprep.subr.bf16.mxu0 0
    %4805 = vmatpush1.bf16.msra.mxu0 0
    %4806 = vmatprep.subr.bf16.mxu0 0
    %4807 = vmatpush1.bf16.msra.mxu0 0
    %4808 = vmatprep.subr.bf16.mxu0 0
    %4809 = vmatpush1.bf16.msra.mxu0 0
    %4810 = vmatprep.subr.bf16.mxu0 0
    %4811 = vmatpush1.bf16.msra.mxu0 0
    %4812 = vmatprep.mubr.bf16.mxu0 0
    %4813 = vmatmul.mubr.bf16.gmra.mrb[0].mxu0 %v4778
    %v4814 = vpop.f32.mrb[0].mxu0
    %v4815 = vadd.f32 %v4776, %v4814
    %v4816 = vpop.f32.mrb[0].mxu0
    %v4817 = vpop.f32.mrb[0].mxu0
    %v4818 = vpop.f32.mrb[0].mxu0
    %4819 = vdwg.mxu0
    %v4820 = vmax.f32 %v4815, 0.0
    %vm4821 = vcmp.ne.f32.partialorder %v4815, %v4815
    %v4822 = vadd.f32 %v4815, 0.0
    %v4823 = vand.u32 2147483647, %v4815
    %v4824 = vsub.f32 0.0, %v4823
    %v4825 = vmul.f32 %v4824, 1.442695
    %v4826 = vpow.pop %v4825
    %v4827 = vadd.f32 %v4826, 1.0
    %v4828 = vlog2.pop %v4827
    %v4829 = vmul.f32 %v4828, 0.6931472
    %v4830 = vmul.f32 -0.5, %v4826
    %v4831 = vadd.f32 %v4830, 1.0
    %v4832 = vmul.f32 %v4831, %v4826
    %v4833 = vand.u32 2147483647, %v4826
    %vm4834 = vcmp.lt.f32.partialorder %v4833, 0.0004427343
    %v4835 = vsel %vm4834, %v4832, %v4829
    %v4836 = vadd.f32 %v4820, %v4835
    %v4837 = vsel %vm4821, %v4822, %v4836
    %v4838 = vld [vmem:[#allocation7 + $0x4e0] sm:$0xff]
    %v4839 = vld [vmem:[#allocation7 + $0x4e8] sm:$0xff]
    %v4840 = vpack.c.bf16 %v4837, %v4837
    %v4841 = vpack.c.bf16 %v4839, %v4838
    %v4842 = vld [vmem:[#allocation7 + $0x4f0] sm:$0x1]
    %v4843 = vlaneseq
    %v4844 = vshrl.u32 %v4843, 7
    %v4845 = vsub.s32 0, %v4844
    %v4846 = vrot.slane %v4842, %v4845
    %v4848 = vsel %vm101, %v4840, 0
    %4850 = vmatprep.subr.bf16.mxu0 0
    %4851 = vmatpush1.bf16.msra.mxu0 %v4841
    %4852 = vmatprep.subr.bf16.mxu0 0
    %4853 = vmatpush1.bf16.msra.mxu0 0
    %4854 = vmatprep.subr.bf16.mxu0 0
    %4855 = vmatpush1.bf16.msra.mxu0 0
    %4856 = vmatprep.subr.bf16.mxu0 0
    %4857 = vmatpush1.bf16.msra.mxu0 0
    %4858 = vmatprep.subr.bf16.mxu0 0
    %4859 = vmatpush1.bf16.msra.mxu0 0
    %4860 = vmatprep.subr.bf16.mxu0 0
    %4861 = vmatpush1.bf16.msra.mxu0 0
    %4862 = vmatprep.subr.bf16.mxu0 0
    %4863 = vmatpush1.bf16.msra.mxu0 0
    %4864 = vmatprep.subr.bf16.mxu0 0
    %4865 = vmatpush1.bf16.msra.mxu0 0
    %4866 = vmatprep.subr.bf16.mxu0 0
    %4867 = vmatpush1.bf16.msra.mxu0 0
    %4868 = vmatprep.subr.bf16.mxu0 0
    %4869 = vmatpush1.bf16.msra.mxu0 0
    %4870 = vmatprep.subr.bf16.mxu0 0
    %4871 = vmatpush1.bf16.msra.mxu0 0
    %4872 = vmatprep.subr.bf16.mxu0 0
    %4873 = vmatpush1.bf16.msra.mxu0 0
    %4874 = vmatprep.subr.bf16.mxu0 0
    %4875 = vmatpush1.bf16.msra.mxu0 0
    %4876 = vmatprep.subr.bf16.mxu0 0
    %4877 = vmatpush1.bf16.msra.mxu0 0
    %4878 = vmatprep.subr.bf16.mxu0 0
    %4879 = vmatpush1.bf16.msra.mxu0 0
    %4880 = vmatprep.subr.bf16.mxu0 0
    %4881 = vmatpush1.bf16.msra.mxu0 0
    %4882 = vmatprep.mubr.bf16.mxu0 0
    %4883 = vmatmul.mubr.bf16.gmra.mrb[0].mxu0 %v4848
    %v4884 = vpop.f32.mrb[0].mxu0
    %v4885 = vadd.f32 %v4846, %v4884
    %v4886 = vpop.f32.mrb[0].mxu0
    %v4887 = vpop.f32.mrb[0].mxu0
    %v4888 = vpop.f32.mrb[0].mxu0
    %4889 = vdwg.mxu0
    %v4890 = vxor.u32 %v4885, 2147483648
    %v4891 = vmul.f32 %v4890, 1.442695
    %v4892 = vpow.pop %v4891
    %v4893 = vadd.f32 %v4892, 1.0
    %v4894 = vrcp.pop %v4893
    %v4895 = vmul.f32 1.0, %v4894
    %vm4896 = vcmask 1024
    %4897 = vst.msk [vmem:[%s5] sm:$0x3] %vm4896, %v4895
    // Predicated region
    $region38: #{forward.1} parent=1 // pred_check
      _
    $region39: #{forward.1} parent=1 // pred_check_branch
      %4899 = sbr.rel (0) target = $region41
    $region40: #{forward.1} parent=1 // pred_region
      _
    $region41: #{forward.1} parent=1 // pred_fallthru
      _
    // Predicated region
    $region42: #{forward.1} parent=1 // pred_check
      _
    $region43: #{forward.1} parent=1 // pred_check_branch
      %4901 = sbr.rel (0) target = $region45
    $region44: #{forward.1} parent=1 // pred_region
      _
    $region45: #{forward.1} parent=1 // pred_fallthru
      _
    %4902 = vsyncpa [#allocation3], 1
    %4903 = vsyncpa [#allocation5], 1
    %4904 = vsyncpa [#allocation8], 1

</llo_original>
